<compile_context>
chip_gen: v5e
topology: v5e:2x2
jax: 0.10.0
libtpu: 0.0.40
codegen_flags: <defaults>
</compile_context>

<pallas_src>
import jax
import jax.numpy as jnp
from jax.experimental import pallas as pl
from jax.experimental.pallas import tpu as pltpu


def _make_kernel(c_out):
    def kernel(xa_ref, w1_ref, b1_ref, w2_ref, o_ref):
        # xa_ref: (TR, Ca); w1_ref: (Ca, Ch); b1_ref: (1, Ch); w2_ref: (Ch, C)
        z = jnp.dot(xa_ref[...], w1_ref[...],
                    preferred_element_type=jnp.float32,
                    precision=jax.lax.Precision.HIGHEST)
        h = jnp.maximum(z + b1_ref[...], 0.0)
        y = jnp.dot(h, w2_ref[...],
                    preferred_element_type=jnp.float32,
                    precision=jax.lax.Precision.HIGHEST)
        # Residual: the first C lanes of the augmented input are exactly x.
        # Re-read from VMEM (vld slots are idle) instead of holding xa live.
        o_ref[...] = (xa_ref[:, :c_out] + y).astype(o_ref.dtype)
    return kernel


def _pick_row_tile(n_rows, bytes_per_row):
    """~2 MiB of in+out per grid step, multiple of 8 rows, grid >= 2 if possible."""
    tr = max(8, min(2048, ((2 * 2 ** 20) // bytes_per_row) // 8 * 8))
    half = max(8, (((n_rows + 1) // 2) + 7) // 8 * 8)   # ceil(n/2), rounded up to 8
    return int(min(tr, half))


def fasterblock(x, conv_w, w1, bn_gamma, bn_beta, bn_mean, bn_var, w2, eps=1e-5):
    """FasterBlock forward (inc == dim, eval mode).

    x:      (B, C, H, W) float32 (NCHW, like PyTorch).
    conv_w: (Cc, Cc, 3, 3)  Partial_conv3 weight, Cc = C // n_div, no bias.
    w1:     (Ch, C)         mlp[0] 1x1 conv weight, Ch = C * mlp_ratio, no bias.
    bn_*:   (Ch,)           mlp[1] BatchNorm2d gamma/beta/running_mean/running_var.
    w2:     (C, Ch)         mlp[3] 1x1 conv weight, no bias.
    """
    B, C, H, W = x.shape
    Cc = conv_w.shape[0]
    Ch = w1.shape[0]

    # ---- wrapper-side layout plumbing (channels-last + partial im2col) ------
    x_nhwc = jnp.transpose(x, (0, 2, 3, 1))                       # (B, H, W, C)
    x1p = jnp.pad(x_nhwc[..., :Cc], ((0, 0), (1, 1), (1, 1), (0, 0)))
    offsets = [(dy, dx) for dy in range(3) for dx in range(3) if (dy, dx) != (1, 1)]
    patches = [x1p[:, dy:dy + H, dx:dx + W, :] for dy, dx in offsets]
    xa = jnp.concatenate([x_nhwc] + patches, axis=-1)             # (B, H, W, Ca)
    ca = C + 8 * Cc
    xa_rows = xa.reshape(B * H * W, ca)

    # ---- fold (3x3 partial conv) + (1x1 conv) + (eval BatchNorm) ------------
    w1t = w1.T                                                    # (C, Ch)
    s = bn_gamma / jnp.sqrt(bn_var + eps)
    t = bn_beta - bn_mean * s

    def fold(dy, dx):                                             # tap (dy,dx) -> (Cc, Ch)
        return conv_w[:, :, dy, dx].T @ w1t[:Cc, :]

    w1a = jnp.concatenate(
        [fold(1, 1), w1t[Cc:, :]] + [fold(dy, dx) for dy, dx in offsets],
        axis=0) * s[None, :]                                      # (Ca, Ch)
    b1 = t.reshape(1, Ch)
    w2t = w2.T                                                    # (Ch, C)

    # ---- row tiling ----------------------------------------------------------
    n_rows = B * H * W
    tr = _pick_row_tile(n_rows, 4 * (ca + C))
    n_pad = pl.cdiv(n_rows, tr) * tr
    if n_pad != n_rows:
        xa_rows = jnp.pad(xa_rows, ((0, n_pad - n_rows), (0, 0)))
    grid = (n_pad // tr,)

    vmem_need = 4 * (2 * tr * (ca + C) + 2 * (ca * Ch + Ch + Ch * C))
    cp_kwargs = dict(dimension_semantics=("parallel",))
    if vmem_need > 8 * 2 ** 20:   # only bump for large feature maps (v5e 16 MiB default)
        cp_kwargs["vmem_limit_bytes"] = int(min(2 * vmem_need, 60 * 2 ** 20))

    out_rows = pl.pallas_call(
        _make_kernel(C),
        out_shape=jax.ShapeDtypeStruct((n_pad, C), x.dtype),
        grid_spec=pltpu.PrefetchScalarGridSpec(
            num_scalar_prefetch=0,
            grid=grid,
            in_specs=[
                pl.BlockSpec((tr, ca), lambda i: (i, 0)),          # augmented rows
                pl.BlockSpec((ca, Ch), lambda i: (0, 0)),          # folded W1 (resident)
                pl.BlockSpec((1, Ch), lambda i: (0, 0)),           # folded BN bias
                pl.BlockSpec((Ch, C), lambda i: (0, 0)),           # W2^T
            ],
            out_specs=pl.BlockSpec((tr, C), lambda i: (i, 0)),
        ),
        compiler_params=pltpu.CompilerParams(**cp_kwargs),
    )(xa_rows, w1a, b1, w2t)

    return out_rows[:n_rows].reshape(B, H, W, C).transpose(0, 3, 1, 2)


def fasterblock_ref(x, conv_w, w1, bn_gamma, bn_beta, bn_mean, bn_var, w2, eps=1e-5):
    """Pure-JAX reference matching the PyTorch FasterBlock forward (eval mode)."""
    B, C, H, W = x.shape
    Cc = conv_w.shape[0]
    x1c = jax.lax.conv_general_dilated(
        x[:, :Cc], conv_w, window_strides=(1, 1), padding=((1, 1), (1, 1)),
        dimension_numbers=("NCHW", "OIHW", "NCHW"),
        precision=jax.lax.Precision.HIGHEST)
    xm = jnp.concatenate([x1c, x[:, Cc:]], axis=1)
    z = jnp.einsum("bchw,oc->bohw", xm, w1, precision=jax.lax.Precision.HIGHEST)
    s = bn_gamma / jnp.sqrt(bn_var + eps)
    t = bn_beta - bn_mean * s
    h = jnp.maximum(z * s[None, :, None, None] + t[None, :, None, None], 0.0)
    y = jnp.einsum("bchw,oc->bohw", h, w2, precision=jax.lax.Precision.HIGHEST)
    return x + y


if __name__ == "__main__":
    jax.config.update("jax_default_matmul_precision", "highest")

    key = jax.random.PRNGKey(0)
    B, dim, H, W = 2, 128, 16, 16        # dim = 128 keeps all lane dims 128-multiples
    n_div, mlp_ratio = 4, 2
    Cc = dim // n_div                    # 32
    Ch = dim * mlp_ratio                 # 256

    ks = jax.random.split(key, 8)
    x = jax.random.normal(ks[0], (B, dim, H, W), dtype=jnp.float32)
    conv_w = jax.random.normal(ks[1], (Cc, Cc, 3, 3), dtype=jnp.float32) * (1.0 / (3.0 * Cc ** 0.5))
    w1 = jax.random.normal(ks[2], (Ch, dim), dtype=jnp.float32) * (1.0 / dim ** 0.5)
    w2 = jax.random.normal(ks[3], (dim, Ch), dtype=jnp.float32) * (1.0 / Ch ** 0.5)
    bn_gamma = 1.0 + 0.1 * jax.random.normal(ks[4], (Ch,), dtype=jnp.float32)
    bn_beta = 0.1 * jax.random.normal(ks[5], (Ch,), dtype=jnp.float32)
    bn_mean = 0.1 * jax.random.normal(ks[6], (Ch,), dtype=jnp.float32)
    bn_var = jax.random.uniform(ks[7], (Ch,), dtype=jnp.float32, minval=0.5, maxval=1.5)

    out = fasterblock(x, conv_w, w1, bn_gamma, bn_beta, bn_mean, bn_var, w2)
    jax.block_until_ready(out)

    ref = fasterblock_ref(x, conv_w, w1, bn_gamma, bn_beta, bn_mean, bn_var, w2)
    assert out.shape == x.shape
    max_err = float(jnp.max(jnp.abs(out - ref)))
    assert jnp.allclose(out, ref, atol=2e-3, rtol=2e-3), f"mismatch vs reference (max abs err {max_err})"

    print("KERNEL_OK")
</pallas_src>

<mosaic_0001>
module attributes {stable_mosaic.version = 11 : i64} {
  func.func @kernel(%arg0: i32, %arg1: memref<256x384xf32, #tpu.memory_space<vmem>>, %arg2: memref<384x256xf32, #tpu.memory_space<vmem>>, %arg3: memref<1x256xf32, #tpu.memory_space<vmem>>, %arg4: memref<256x128xf32, #tpu.memory_space<vmem>>, %arg5: memref<256x128xf32, #tpu.memory_space<vmem>>) attributes {dimension_semantics = [#tpu.dimension_semantics<parallel>], iteration_bounds = array<i64: 2>, scalar_prefetch = 0 : i64, scratch_operands = 0 : i64, tpu.core_type = #tpu.core_type<tc>, window_params = [{transform_indices = @transform_0, window_bounds = array<i64: 256, 384>}, {pipeline_mode = #tpu.pipeline_mode<synchronous>, transform_indices = @transform_1, window_bounds = array<i64: 384, 256>}, {pipeline_mode = #tpu.pipeline_mode<synchronous>, transform_indices = @transform_2, window_bounds = array<i64: 1, 256>}, {pipeline_mode = #tpu.pipeline_mode<synchronous>, transform_indices = @transform_3, window_bounds = array<i64: 256, 128>}, {transform_indices = @transform_4, window_bounds = array<i64: 256, 128>}]} {
    %c0 = arith.constant 0 : index
    %c0_0 = arith.constant 0 : index
    %0 = vector.load %arg1[%c0, %c0_0] : memref<256x384xf32, #tpu.memory_space<vmem>>, vector<256x384xf32>
    %c0_1 = arith.constant 0 : index
    %c0_2 = arith.constant 0 : index
    %1 = vector.load %arg2[%c0_1, %c0_2] : memref<384x256xf32, #tpu.memory_space<vmem>>, vector<384x256xf32>
    %cst = arith.constant dense<0.000000e+00> : vector<256x256xf32>
    %2 = tpu.matmul %0, %1, %cst {dimension_numbers = #tpu.dot_dimension_numbers<[1], [0], [0], [1], [0, 0, 1, 1], [], []>, precision = #tpu.contract_precision<fp32>} : vector<256x384xf32>, vector<384x256xf32>, vector<256x256xf32> -> vector<256x256xf32>
    %c0_3 = arith.constant 0 : index
    %c0_4 = arith.constant 0 : index
    %3 = vector.load %arg3[%c0_3, %c0_4] : memref<1x256xf32, #tpu.memory_space<vmem>>, vector<1x256xf32>
    %4 = vector.broadcast %3 : vector<1x256xf32> to vector<256x256xf32>
    %5 = arith.addf %2, %4 : vector<256x256xf32>
    %cst_5 = arith.constant 0.000000e+00 : f32
    %6 = vector.broadcast %cst_5 : f32 to vector<256x256xf32>
    %7 = arith.maximumf %5, %6 : vector<256x256xf32>
    %c0_6 = arith.constant 0 : index
    %c0_7 = arith.constant 0 : index
    %8 = vector.load %arg4[%c0_6, %c0_7] : memref<256x128xf32, #tpu.memory_space<vmem>>, vector<256x128xf32>
    %cst_8 = arith.constant dense<0.000000e+00> : vector<256x128xf32>
    %9 = tpu.matmul %7, %8, %cst_8 {dimension_numbers = #tpu.dot_dimension_numbers<[1], [0], [0], [1], [0, 0, 1, 1], [], []>, precision = #tpu.contract_precision<fp32>} : vector<256x256xf32>, vector<256x128xf32>, vector<256x128xf32> -> vector<256x128xf32>
    %c0_9 = arith.constant 0 : index
    %c0_10 = arith.constant 0 : index
    %10 = vector.load %arg1[%c0_9, %c0_10] : memref<256x384xf32, #tpu.memory_space<vmem>>, vector<256x128xf32>
    %11 = arith.addf %10, %9 : vector<256x128xf32>
    %c0_11 = arith.constant 0 : index
    %c0_12 = arith.constant 0 : index
    %12 = vector.load %arg5[%c0_11, %c0_12] : memref<256x128xf32, #tpu.memory_space<vmem>>, vector<256x128xf32>
    tpu.vector_store %arg5[%c0_11, %c0_12], %11 {strides = array<i32>} : memref<256x128xf32, #tpu.memory_space<vmem>>, vector<256x128xf32>,
    return
  }
  func.func @transform_0(%arg0: i32) -> (i32, i32) {
    %c0_i32 = arith.constant 0 : i32
    %c0_i32_0 = arith.constant 0 : i32
    return %arg0, %c0_i32 : i32, i32
  }
  func.func @transform_1(%arg0: i32) -> (i32, i32) {
    %c0_i32 = arith.constant 0 : i32
    %c0_i32_0 = arith.constant 0 : i32
    %c0_i32_1 = arith.constant 0 : i32
    return %c0_i32, %c0_i32_0 : i32, i32
  }
  func.func @transform_2(%arg0: i32) -> (i32, i32) {
    %c0_i32 = arith.constant 0 : i32
    %c0_i32_0 = arith.constant 0 : i32
    %c0_i32_1 = arith.constant 0 : i32
    return %c0_i32, %c0_i32_0 : i32, i32
  }
  func.func @transform_3(%arg0: i32) -> (i32, i32) {
    %c0_i32 = arith.constant 0 : i32
    %c0_i32_0 = arith.constant 0 : i32
    %c0_i32_1 = arith.constant 0 : i32
    return %c0_i32, %c0_i32_0 : i32, i32
  }
  func.func @transform_4(%arg0: i32) -> (i32, i32) {
    %c0_i32 = arith.constant 0 : i32
    %c0_i32_0 = arith.constant 0 : i32
    return %arg0, %c0_i32 : i32, i32
  }
}

</mosaic_0001>

<llo_original>
// kernel: tpu_custom_call.1
$region0: #{tpu_custom_call.1}
  #allocation0 [shape = 'u32[]', space=smem, size = 0x4, offset = 0x4, fixed_abs, tag = 'smem constant byte address 0x4 - core index']
  #allocation1 [shape = 'u32[72,128]{1,0:T(1,128)}', space=vmem, size = 0x9000, scoped, tag = 'internal scratch']
  %s0 = inlined_call_operand.hbm [shape: f32[512,384], index: 0, kind: input, shape index: {}]
  %s1 = inlined_call_operand.hbm [shape: f32[384,256], index: 1, kind: input, shape index: {}]
  %s2 = inlined_call_operand.hbm [shape: f32[1,256], index: 2, kind: input, shape index: {}]
  %s3 = inlined_call_operand.hbm [shape: f32[256,128], index: 3, kind: input, shape index: {}]
  %s4 = inlined_call_operand.hbm [shape: f32[512,128], index: 4, kind: output, shape index: {}]
  %s5 = sld [smem:[#allocation0]]
  $region65: #{tpu_custom_call.1} parent=0
    _
  %s7 = ssub.s32 1, %s5
  %s8 = scalar_select 0, %s7, %s5
  $region1: #{tpu_custom_call.1} parent=0
    #allocation2 [shape = 'u8[786432]{0}', space=vmem, size = 0xc0000, scoped, tag = 'input window, operand 0']
    #allocation3 [shape = 's32[2]{0}', space=sflag, size = 0x8, scoped, tag = 'scoped memory for tpu_custom_call.1']
    #allocation4 [shape = 's32[2]{0}', space=sflag, size = 0x8, scoped, tag = 'scoped memory for tpu_custom_call.1']
    #allocation5 [shape = 'u8[393216]{0}', space=vmem, size = 0x60000, scoped, tag = 'input window, operand 1, single buffered']
    #allocation6 [shape = 's32[1]{0}', space=sflag, size = 0x4, scoped, tag = 'scoped memory for tpu_custom_call.1']
    #allocation7 [shape = 'u8[1024]{0}', space=vmem, size = 0x400, scoped, tag = 'input window, operand 2, single buffered']
    #allocation8 [shape = 'u8[131072]{0}', space=vmem, size = 0x20000, scoped, tag = 'input window, operand 3, single buffered']
    #allocation9 [shape = 's32[1]{0}', space=sflag, size = 0x4, scoped, tag = 'scoped memory for tpu_custom_call.1']
    #allocation10 [shape = 'u8[262144]{0}', space=vmem, size = 0x40000, scoped, tag = 'output window, operand 0']
    %9 = vsyncpa [#allocation3], 0
    %s10 = scalar_lea.sflag [#allocation3], 1
    %11 = vsyncpa %s10, 0
    %12 = vsyncpa [#allocation6], 0
    %13 = vsyncpa [#allocation9], 0
    %14 = vsyncpa [#allocation4], 0
    %s15 = scalar_lea.sflag [#allocation4], 1
    %16 = vsyncpa %s15, 0
    loop: start=0, step=1, limit=4
    $region2: #{tpu_custom_call.1} parent=1 // loop_pre_header
      _
    $region3: #{tpu_custom_call.1} parent=1 // loop_header
      %s18 = sphi 0, %s22
      %p19 = scmp.ge.s32.totalorder %s18, 4
      %s28 = sphi 0, %s30
      %s31 = sphi 0, %s28
      %s32 = sphi 0, %s31
      %s48 = sphi 0, %s32
      %s52 = sphi 0, %s52
      %s54 = sphi 0, %s52
      %s55 = sphi 0, %s54
      %s69 = sphi 0, %s55
      %s73 = sphi 0, %s73
      %s75 = sphi 0, %s73
      %s76 = sphi 0, %s75
      %s90 = sphi 0, %s76
      %s94 = sphi 0, %s94
      %s96 = sphi 0, %s94
      %s97 = sphi 0, %s96
      %s111 = sphi 0, %s97
      %s117 = sphi 0, %s119
      %s120 = sphi 0, %s117
      %s121 = sphi 0, %s120
      %s137 = sphi 0, %s121
    $region4: #{tpu_custom_call.1} parent=1 // loop_header_branch
      %21 = sbr.rel (%p19) target = $region8
    $region5: #{tpu_custom_call.1} parent=1 // loop_body
      %s23 = ssub.s32 %s18, 1
      %s24 = ssub.s32 %s18, 2
      %s25 = sadd.s32 %s18, 1
      %s26 = ssub.s32 %s18, %s25
      %p27 = scmp.eq.s32.totalorder %s26, 0
      %s29 = sadd.s32 %s28, 1
      %s30 = scalar_select %p27, %s28, %s29
      %p33 = pneg %p27
      %p34 = scmp.eq.s32.totalorder %s18, 1
      %p35 = por %p33, %p34
      %p36 = scmp.ne.s32.totalorder %s28, %s31
      %p37 = scmp.eq.s32.totalorder %s18, 0
      %p38 = por %p36, %p37
      %p39 = scmp.ne.s32.totalorder %s28, %s31
      %p40 = scmp.eq.s32.totalorder %s23, 1
      %p41 = por %p39, %p40
      %p42 = scmp.ne.s32.totalorder %s31, %s32
      %p43 = scmp.eq.s32.totalorder %s23, 0
      %p44 = por %p42, %p43
      %p45 = scmp.ne.s32.totalorder %s31, %s32
      %p46 = scmp.eq.s32.totalorder %s24, 1
      %p47 = por %p45, %p46
      %p49 = scmp.ne.s32.totalorder %s32, %s48
      %p50 = scmp.eq.s32.totalorder %s24, 0
      %p51 = por %p49, %p50
      %s53 = sadd.s32 %s52, 1
      %p56 = scmp.eq.s32.totalorder %s18, 1
      %p57 = scmp.ne.s32.totalorder %s52, %s54
      %p58 = scmp.eq.s32.totalorder %s18, 0
      %p59 = por %p57, %p58
      %p60 = scmp.ne.s32.totalorder %s52, %s54
      %p61 = scmp.eq.s32.totalorder %s23, 1
      %p62 = por %p60, %p61
      %p63 = scmp.ne.s32.totalorder %s54, %s55
      %p64 = scmp.eq.s32.totalorder %s23, 0
      %p65 = por %p63, %p64
      %p66 = scmp.ne.s32.totalorder %s54, %s55
      %p67 = scmp.eq.s32.totalorder %s24, 1
      %p68 = por %p66, %p67
      %p70 = scmp.ne.s32.totalorder %s55, %s69
      %p71 = scmp.eq.s32.totalorder %s24, 0
      %p72 = por %p70, %p71
      %s74 = sadd.s32 %s73, 1
      %p77 = scmp.eq.s32.totalorder %s18, 1
      %p78 = scmp.ne.s32.totalorder %s73, %s75
      %p79 = scmp.eq.s32.totalorder %s18, 0
      %p80 = por %p78, %p79
      %p81 = scmp.ne.s32.totalorder %s73, %s75
      %p82 = scmp.eq.s32.totalorder %s23, 1
      %p83 = por %p81, %p82
      %p84 = scmp.ne.s32.totalorder %s75, %s76
      %p85 = scmp.eq.s32.totalorder %s23, 0
      %p86 = por %p84, %p85
      %p87 = scmp.ne.s32.totalorder %s75, %s76
      %p88 = scmp.eq.s32.totalorder %s24, 1
      %p89 = por %p87, %p88
      %p91 = scmp.ne.s32.totalorder %s76, %s90
      %p92 = scmp.eq.s32.totalorder %s24, 0
      %p93 = por %p91, %p92
      %s95 = sadd.s32 %s94, 1
      %p98 = scmp.eq.s32.totalorder %s18, 1
      %p99 = scmp.ne.s32.totalorder %s94, %s96
      %p100 = scmp.eq.s32.totalorder %s18, 0
      %p101 = por %p99, %p100
      %p102 = scmp.ne.s32.totalorder %s94, %s96
      %p103 = scmp.eq.s32.totalorder %s23, 1
      %p104 = por %p102, %p103
      %p105 = scmp.ne.s32.totalorder %s96, %s97
      %p106 = scmp.eq.s32.totalorder %s23, 0
      %p107 = por %p105, %p106
      %p108 = scmp.ne.s32.totalorder %s96, %s97
      %p109 = scmp.eq.s32.totalorder %s24, 1
      %p110 = por %p108, %p109
      %p112 = scmp.ne.s32.totalorder %s97, %s111
      %p113 = scmp.eq.s32.totalorder %s24, 0
      %p114 = por %p112, %p113
      %s115 = ssub.s32 %s18, %s25
      %p116 = scmp.eq.s32.totalorder %s115, 0
      %s118 = sadd.s32 %s117, 1
      %s119 = scalar_select %p116, %s117, %s118
      %p122 = pneg %p116
      %p123 = scmp.eq.s32.totalorder %s18, 1
      %p124 = por %p122, %p123
      %p125 = scmp.ne.s32.totalorder %s117, %s120
      %p126 = scmp.eq.s32.totalorder %s18, 0
      %p127 = por %p125, %p126
      %p128 = scmp.ne.s32.totalorder %s117, %s120
      %p129 = scmp.eq.s32.totalorder %s23, 1
      %p130 = por %p128, %p129
      %p131 = scmp.ne.s32.totalorder %s120, %s121
      %p132 = scmp.eq.s32.totalorder %s23, 0
      %p133 = por %p131, %p132
      %p134 = scmp.ne.s32.totalorder %s120, %s121
      %p135 = scmp.eq.s32.totalorder %s24, 1
      %p136 = por %p134, %p135
      %p138 = scmp.ne.s32.totalorder %s121, %s137
      %p139 = scmp.eq.s32.totalorder %s24, 0
      %p140 = por %p138, %p139
      %p141 = scmp.le.s32.totalorder 1, %s18
      %p142 = scmp.lt.s32.totalorder %s18, 3
      %p143 = pnand %p141, %p142
      %p144 = pneg %p143
      // Predicated region
      $region9: #{tpu_custom_call.1} parent=5 // pred_check
        _
      $region10: #{tpu_custom_call.1} parent=5 // pred_check_branch
        %146 = sbr.rel (%p143) target = $region12
      $region11: #{tpu_custom_call.1} parent=5 // pred_region
        %s147 = ssub.s32 %s18, 1
        // Predicated region
        $region13: #{tpu_custom_call.1} parent=11 // pred_check
          %p148 = pneg %p65
        $region14: #{tpu_custom_call.1} parent=11 // pred_check_branch
          %150 = sbr.rel (%p148) target = $region16
        $region15: #{tpu_custom_call.1} parent=11 // pred_region
          %152 = vsyncadd [#allocation6], 0
          %s153 = sshll.u32 %s1, 4
          %s154 = int_to_ptr.hbm [resolvable:$true] %s153
          %s155 = sshll.u32 [#allocation5], 4
          %s156 = int_to_ptr.vmem [resolvable:$true] %s155
          %161 = dma.hbm_to_vmem [thread:$0]  %s154, 12288, %s156, [#allocation6], 256, 256, 16
        $region16: #{tpu_custom_call.1} parent=11 // pred_fallthru
          _
        // Predicated region
        $region17: #{tpu_custom_call.1} parent=11 // pred_check
          %p162 = pneg %p86
        $region18: #{tpu_custom_call.1} parent=11 // pred_check_branch
          %164 = sbr.rel (%p162) target = $region20
        $region19: #{tpu_custom_call.1} parent=11 // pred_region
          %166 = vsyncadd [#allocation6], 0
          %s168 = sshll.u32 %s2, 4
          %s169 = int_to_ptr.hbm [resolvable:$true] %s168
          %s170 = sshll.u32 [#allocation7], 4
          %s171 = int_to_ptr.vmem [resolvable:$true] %s170
          %173 = dma.hbm_to_vmem [thread:$0]  %s169, 32, %s171, [#allocation6]
        $region20: #{tpu_custom_call.1} parent=11 // pred_fallthru
          _
        // Predicated region
        $region21: #{tpu_custom_call.1} parent=11 // pred_check
          %p174 = pneg %p107
        $region22: #{tpu_custom_call.1} parent=11 // pred_check_branch
          %176 = sbr.rel (%p174) target = $region24
        $region23: #{tpu_custom_call.1} parent=11 // pred_region
          %178 = vsyncadd [#allocation9], 0
          %s179 = sshll.u32 %s3, 4
          %s180 = int_to_ptr.hbm [resolvable:$true] %s179
          %s181 = sshll.u32 [#allocation8], 4
          %s182 = int_to_ptr.vmem [resolvable:$true] %s181
          %187 = dma.hbm_to_vmem [thread:$0]  %s180, 4096, %s182, [#allocation9], 128, 128, 8
        $region24: #{tpu_custom_call.1} parent=11 // pred_fallthru
          _
      $region12: #{tpu_custom_call.1} parent=5 // pred_fallthru
        _
      %p188 = scmp.lt.s32.totalorder %s18, 2
      // Predicated region
      $region25: #{tpu_custom_call.1} parent=5 // pred_check
        %p189 = pneg %p188
      $region26: #{tpu_custom_call.1} parent=5 // pred_check_branch
        %191 = sbr.rel (%p189) target = $region28
      $region27: #{tpu_custom_call.1} parent=5 // pred_region
        // Predicated region
        $region29: #{tpu_custom_call.1} parent=27 // pred_check
          %p192 = pneg %p38
        $region30: #{tpu_custom_call.1} parent=27 // pred_check_branch
          %194 = sbr.rel (%p192) target = $region32
        $region31: #{tpu_custom_call.1} parent=27 // pred_region
          %s195 = sand.u32 %s28, 1
          %s196 = scalar_lea.sflag [#allocation3], %s195
          %s197 = sand.u32 %s28, 1
          %s198 = smul.addr %s197, 768
          %s199 = scalar_lea.vmem [#allocation2], %s198
          %s200 = smul.u32 32, %s18
          %202 = vsyncadd %s196, 0
          %s203 = smul.addr %s200, 3
          %s204 = smul.addr %s203, 8
          %s205 = scalar_lea.hbm %s0, %s204
          %s206 = sshll.u32 %s205, 4
          %s207 = int_to_ptr.hbm [resolvable:$true] %s206
          %s208 = sshll.u32 %s199, 4
          %s209 = int_to_ptr.vmem [resolvable:$true] %s208
          %214 = dma.hbm_to_vmem [thread:$0]  %s207, 12288, %s209, %s196, 384, 384, 24
        $region32: #{tpu_custom_call.1} parent=27 // pred_fallthru
          _
      $region28: #{tpu_custom_call.1} parent=5 // pred_fallthru
        _
      %p215 = scmp.le.s32.totalorder 1, %s18
      %p216 = scmp.lt.s32.totalorder %s18, 3
      %p217 = pnand %p215, %p216
      %p218 = pneg %p217
      // Predicated region
      $region33: #{tpu_custom_call.1} parent=5 // pred_check
        _
      $region34: #{tpu_custom_call.1} parent=5 // pred_check_branch
        %220 = sbr.rel (%p217) target = $region36
      $region35: #{tpu_custom_call.1} parent=5 // pred_region
        %s221 = ssub.s32 %s18, 1
        %s222 = sand.u32 %s31, 1
        %s223 = scalar_lea.sflag [#allocation3], %s222
        %s224 = sand.u32 %s31, 1
        %s225 = smul.addr %s224, 768
        %s226 = scalar_lea.vmem [#allocation2], %s225
        // Predicated region
        $region37: #{tpu_custom_call.1} parent=35 // pred_check
          %p227 = pneg %p44
        $region38: #{tpu_custom_call.1} parent=35 // pred_check_branch
          %229 = sbr.rel (%p227) target = $region40
        $region39: #{tpu_custom_call.1} parent=35 // pred_region
          %231 = dma.done %s223, 12288
        $region40: #{tpu_custom_call.1} parent=35 // pred_fallthru
          _
        // Predicated region
        $region41: #{tpu_custom_call.1} parent=35 // pred_check
          %p232 = pneg %p65
        $region42: #{tpu_custom_call.1} parent=35 // pred_check_branch
          %234 = sbr.rel (%p232) target = $region44
        $region43: #{tpu_custom_call.1} parent=35 // pred_region
          %236 = dma.done [#allocation6], 12288
        $region44: #{tpu_custom_call.1} parent=35 // pred_fallthru
          _
        // Predicated region
        $region45: #{tpu_custom_call.1} parent=35 // pred_check
          %p237 = pneg %p86
        $region46: #{tpu_custom_call.1} parent=35 // pred_check_branch
          %239 = sbr.rel (%p237) target = $region48
        $region47: #{tpu_custom_call.1} parent=35 // pred_region
          %241 = dma.done [#allocation6], 32
        $region48: #{tpu_custom_call.1} parent=35 // pred_fallthru
          _
        // Predicated region
        $region49: #{tpu_custom_call.1} parent=35 // pred_check
          %p242 = pneg %p107
        $region50: #{tpu_custom_call.1} parent=35 // pred_check_branch
          %244 = sbr.rel (%p242) target = $region52
        $region51: #{tpu_custom_call.1} parent=35 // pred_region
          %246 = dma.done [#allocation9], 4096
        $region52: #{tpu_custom_call.1} parent=35 // pred_fallthru
          _
        %s247 = sand.u32 %s31, 1
        %s248 = scalar_lea.sflag [#allocation3], %s247
        %s249 = sand.u32 %s31, 1
        %s250 = smul.addr %s249, 768
        %s251 = scalar_lea.vmem [#allocation2], %s250
        %p252 = pneg %p44
        %p253 = pneg %p41
        %p254 = pneg %p65
        %p255 = pneg %p62
        %p256 = pneg %p86
        %p257 = pneg %p83
        %p258 = pneg %p107
        %p259 = pneg %p104
        %p260 = pneg %p133
        %p261 = pneg %p130
        %s262 = sand.u32 %s120, 1
        %s263 = scalar_lea.sflag [#allocation4], %s262
        %s264 = sand.u32 %s120, 1
        %s265 = smul.addr %s264, 256
        %s266 = scalar_lea.vmem [#allocation10], %s265
        %s267 = smul.u32 32, %s23
        %s268 = smul.u32 32, %s23
        %v269 = vld [vmem:[%s226] sm:$0xff]
        %v270 = vld [vmem:[%s226 + $0x8] sm:$0xff]
        %v271 = vld [vmem:[%s226 + $0x10] sm:$0xff]
        %v272 = vld [vmem:[%s226 + $0x18] sm:$0xff]
        %v273 = vld [vmem:[%s226 + $0x20] sm:$0xff]
        %v274 = vld [vmem:[%s226 + $0x28] sm:$0xff]
        %v275 = vld [vmem:[%s226 + $0x30] sm:$0xff]
        %v276 = vld [vmem:[%s226 + $0x38] sm:$0xff]
        %v277 = vld [vmem:[%s226 + $0x40] sm:$0xff]
        %v278 = vld [vmem:[%s226 + $0x48] sm:$0xff]
        %v279 = vld [vmem:[%s226 + $0x50] sm:$0xff]
        %v280 = vld [vmem:[%s226 + $0x58] sm:$0xff]
        %v281 = vld [vmem:[%s226 + $0x60] sm:$0xff]
        %v282 = vld [vmem:[%s226 + $0x68] sm:$0xff]
        %v283 = vld [vmem:[%s226 + $0x70] sm:$0xff]
        %v284 = vld [vmem:[%s226 + $0x78] sm:$0xff]
        %v285 = vld [vmem:[%s226 + $0x80] sm:$0xff]
        %v286 = vld [vmem:[%s226 + $0x88] sm:$0xff]
        %v287 = vld [vmem:[%s226 + $0x90] sm:$0xff]
        %v288 = vld [vmem:[%s226 + $0x98] sm:$0xff]
        %v289 = vld [vmem:[%s226 + $0xa0] sm:$0xff]
        %v290 = vld [vmem:[%s226 + $0xa8] sm:$0xff]
        %v291 = vld [vmem:[%s226 + $0xb0] sm:$0xff]
        %v292 = vld [vmem:[%s226 + $0xb8] sm:$0xff]
        %v293 = vld [vmem:[%s226 + $0xc0] sm:$0xff]
        %v294 = vld [vmem:[%s226 + $0xc8] sm:$0xff]
        %v295 = vld [vmem:[%s226 + $0xd0] sm:$0xff]
        %v296 = vld [vmem:[%s226 + $0xd8] sm:$0xff]
        %v297 = vld [vmem:[%s226 + $0xe0] sm:$0xff]
        %v298 = vld [vmem:[%s226 + $0xe8] sm:$0xff]
        %v299 = vld [vmem:[%s226 + $0xf0] sm:$0xff]
        %v300 = vld [vmem:[%s226 + $0xf8] sm:$0xff]
        %v301 = vld [vmem:[%s226 + $0x100] sm:$0xff]
        %v302 = vld [vmem:[%s226 + $0x108] sm:$0xff]
        %v303 = vld [vmem:[%s226 + $0x110] sm:$0xff]
        %v304 = vld [vmem:[%s226 + $0x118] sm:$0xff]
        %v305 = vld [vmem:[%s226 + $0x120] sm:$0xff]
        %v306 = vld [vmem:[%s226 + $0x128] sm:$0xff]
        %v307 = vld [vmem:[%s226 + $0x130] sm:$0xff]
        %v308 = vld [vmem:[%s226 + $0x138] sm:$0xff]
        %v309 = vld [vmem:[%s226 + $0x140] sm:$0xff]
        %v310 = vld [vmem:[%s226 + $0x148] sm:$0xff]
        %v311 = vld [vmem:[%s226 + $0x150] sm:$0xff]
        %v312 = vld [vmem:[%s226 + $0x158] sm:$0xff]
        %v313 = vld [vmem:[%s226 + $0x160] sm:$0xff]
        %v314 = vld [vmem:[%s226 + $0x168] sm:$0xff]
        %v315 = vld [vmem:[%s226 + $0x170] sm:$0xff]
        %v316 = vld [vmem:[%s226 + $0x178] sm:$0xff]
        %v317 = vld [vmem:[%s226 + $0x180] sm:$0xff]
        %v318 = vld [vmem:[%s226 + $0x188] sm:$0xff]
        %v319 = vld [vmem:[%s226 + $0x190] sm:$0xff]
        %v320 = vld [vmem:[%s226 + $0x198] sm:$0xff]
        %v321 = vld [vmem:[%s226 + $0x1a0] sm:$0xff]
        %v322 = vld [vmem:[%s226 + $0x1a8] sm:$0xff]
        %v323 = vld [vmem:[%s226 + $0x1b0] sm:$0xff]
        %v324 = vld [vmem:[%s226 + $0x1b8] sm:$0xff]
        %v325 = vld [vmem:[%s226 + $0x1c0] sm:$0xff]
        %v326 = vld [vmem:[%s226 + $0x1c8] sm:$0xff]
        %v327 = vld [vmem:[%s226 + $0x1d0] sm:$0xff]
        %v328 = vld [vmem:[%s226 + $0x1d8] sm:$0xff]
        %v329 = vld [vmem:[%s226 + $0x1e0] sm:$0xff]
        %v330 = vld [vmem:[%s226 + $0x1e8] sm:$0xff]
        %v331 = vld [vmem:[%s226 + $0x1f0] sm:$0xff]
        %v332 = vld [vmem:[%s226 + $0x1f8] sm:$0xff]
        %v333 = vld [vmem:[%s226 + $0x200] sm:$0xff]
        %v334 = vld [vmem:[%s226 + $0x208] sm:$0xff]
        %v335 = vld [vmem:[%s226 + $0x210] sm:$0xff]
        %v336 = vld [vmem:[%s226 + $0x218] sm:$0xff]
        %v337 = vld [vmem:[%s226 + $0x220] sm:$0xff]
        %v338 = vld [vmem:[%s226 + $0x228] sm:$0xff]
        %v339 = vld [vmem:[%s226 + $0x230] sm:$0xff]
        %v340 = vld [vmem:[%s226 + $0x238] sm:$0xff]
        %v341 = vld [vmem:[%s226 + $0x240] sm:$0xff]
        %v342 = vld [vmem:[%s226 + $0x248] sm:$0xff]
        %v343 = vld [vmem:[%s226 + $0x250] sm:$0xff]
        %v344 = vld [vmem:[%s226 + $0x258] sm:$0xff]
        %v345 = vld [vmem:[%s226 + $0x260] sm:$0xff]
        %v346 = vld [vmem:[%s226 + $0x268] sm:$0xff]
        %v347 = vld [vmem:[%s226 + $0x270] sm:$0xff]
        %v348 = vld [vmem:[%s226 + $0x278] sm:$0xff]
        %v349 = vld [vmem:[%s226 + $0x280] sm:$0xff]
        %v350 = vld [vmem:[%s226 + $0x288] sm:$0xff]
        %v351 = vld [vmem:[%s226 + $0x290] sm:$0xff]
        %v352 = vld [vmem:[%s226 + $0x298] sm:$0xff]
        %v353 = vld [vmem:[%s226 + $0x2a0] sm:$0xff]
        %v354 = vld [vmem:[%s226 + $0x2a8] sm:$0xff]
        %v355 = vld [vmem:[%s226 + $0x2b0] sm:$0xff]
        %v356 = vld [vmem:[%s226 + $0x2b8] sm:$0xff]
        %v357 = vld [vmem:[%s226 + $0x2c0] sm:$0xff]
        %v358 = vld [vmem:[%s226 + $0x2c8] sm:$0xff]
        %v359 = vld [vmem:[%s226 + $0x2d0] sm:$0xff]
        %v360 = vld [vmem:[%s226 + $0x2d8] sm:$0xff]
        %v361 = vld [vmem:[%s226 + $0x2e0] sm:$0xff]
        %v362 = vld [vmem:[%s226 + $0x2e8] sm:$0xff]
        %v363 = vld [vmem:[%s226 + $0x2f0] sm:$0xff]
        %v364 = vld [vmem:[%s226 + $0x2f8] sm:$0xff]
        %v365 = vld [vmem:[#allocation5] sm:$0xff]
        %v366 = vld [vmem:[#allocation5 + $0x8] sm:$0xff]
        %v367 = vld [vmem:[#allocation5 + $0x10] sm:$0xff]
        %v368 = vld [vmem:[#allocation5 + $0x18] sm:$0xff]
        %v369 = vld [vmem:[#allocation5 + $0x20] sm:$0xff]
        %v370 = vld [vmem:[#allocation5 + $0x28] sm:$0xff]
        %v371 = vld [vmem:[#allocation5 + $0x30] sm:$0xff]
        %v372 = vld [vmem:[#allocation5 + $0x38] sm:$0xff]
        %v373 = vld [vmem:[#allocation5 + $0x40] sm:$0xff]
        %v374 = vld [vmem:[#allocation5 + $0x48] sm:$0xff]
        %v375 = vld [vmem:[#allocation5 + $0x50] sm:$0xff]
        %v376 = vld [vmem:[#allocation5 + $0x58] sm:$0xff]
        %v377 = vld [vmem:[#allocation5 + $0x60] sm:$0xff]
        %v378 = vld [vmem:[#allocation5 + $0x68] sm:$0xff]
        %v379 = vld [vmem:[#allocation5 + $0x70] sm:$0xff]
        %v380 = vld [vmem:[#allocation5 + $0x78] sm:$0xff]
        %v381 = vld [vmem:[#allocation5 + $0x80] sm:$0xff]
        %v382 = vld [vmem:[#allocation5 + $0x88] sm:$0xff]
        %v383 = vld [vmem:[#allocation5 + $0x90] sm:$0xff]
        %v384 = vld [vmem:[#allocation5 + $0x98] sm:$0xff]
        %v385 = vld [vmem:[#allocation5 + $0xa0] sm:$0xff]
        %v386 = vld [vmem:[#allocation5 + $0xa8] sm:$0xff]
        %v387 = vld [vmem:[#allocation5 + $0xb0] sm:$0xff]
        %v388 = vld [vmem:[#allocation5 + $0xb8] sm:$0xff]
        %v389 = vld [vmem:[#allocation5 + $0xc0] sm:$0xff]
        %v390 = vld [vmem:[#allocation5 + $0xc8] sm:$0xff]
        %v391 = vld [vmem:[#allocation5 + $0xd0] sm:$0xff]
        %v392 = vld [vmem:[#allocation5 + $0xd8] sm:$0xff]
        %v393 = vld [vmem:[#allocation5 + $0xe0] sm:$0xff]
        %v394 = vld [vmem:[#allocation5 + $0xe8] sm:$0xff]
        %v395 = vld [vmem:[#allocation5 + $0xf0] sm:$0xff]
        %v396 = vld [vmem:[#allocation5 + $0xf8] sm:$0xff]
        %v397 = vld [vmem:[#allocation5 + $0x100] sm:$0xff]
        %v398 = vld [vmem:[#allocation5 + $0x108] sm:$0xff]
        %v399 = vld [vmem:[#allocation5 + $0x110] sm:$0xff]
        %v400 = vld [vmem:[#allocation5 + $0x118] sm:$0xff]
        %v401 = vld [vmem:[#allocation5 + $0x120] sm:$0xff]
        %v402 = vld [vmem:[#allocation5 + $0x128] sm:$0xff]
        %v403 = vld [vmem:[#allocation5 + $0x130] sm:$0xff]
        %v404 = vld [vmem:[#allocation5 + $0x138] sm:$0xff]
        %v405 = vld [vmem:[#allocation5 + $0x140] sm:$0xff]
        %v406 = vld [vmem:[#allocation5 + $0x148] sm:$0xff]
        %v407 = vld [vmem:[#allocation5 + $0x150] sm:$0xff]
        %v408 = vld [vmem:[#allocation5 + $0x158] sm:$0xff]
        %v409 = vld [vmem:[#allocation5 + $0x160] sm:$0xff]
        %v410 = vld [vmem:[#allocation5 + $0x168] sm:$0xff]
        %v411 = vld [vmem:[#allocation5 + $0x170] sm:$0xff]
        %v412 = vld [vmem:[#allocation5 + $0x178] sm:$0xff]
        %v413 = vld [vmem:[#allocation5 + $0x180] sm:$0xff]
        %v414 = vld [vmem:[#allocation5 + $0x188] sm:$0xff]
        %v415 = vld [vmem:[#allocation5 + $0x190] sm:$0xff]
        %v416 = vld [vmem:[#allocation5 + $0x198] sm:$0xff]
        %v417 = vld [vmem:[#allocation5 + $0x1a0] sm:$0xff]
        %v418 = vld [vmem:[#allocation5 + $0x1a8] sm:$0xff]
        %v419 = vld [vmem:[#allocation5 + $0x1b0] sm:$0xff]
        %v420 = vld [vmem:[#allocation5 + $0x1b8] sm:$0xff]
        %v421 = vld [vmem:[#allocation5 + $0x1c0] sm:$0xff]
        %v422 = vld [vmem:[#allocation5 + $0x1c8] sm:$0xff]
        %v423 = vld [vmem:[#allocation5 + $0x1d0] sm:$0xff]
        %v424 = vld [vmem:[#allocation5 + $0x1d8] sm:$0xff]
        %v425 = vld [vmem:[#allocation5 + $0x1e0] sm:$0xff]
        %v426 = vld [vmem:[#allocation5 + $0x1e8] sm:$0xff]
        %v427 = vld [vmem:[#allocation5 + $0x1f0] sm:$0xff]
        %v428 = vld [vmem:[#allocation5 + $0x1f8] sm:$0xff]
        %v429 = vld [vmem:[#allocation5 + $0x200] sm:$0xff]
        %v430 = vld [vmem:[#allocation5 + $0x208] sm:$0xff]
        %v431 = vld [vmem:[#allocation5 + $0x210] sm:$0xff]
        %v432 = vld [vmem:[#allocation5 + $0x218] sm:$0xff]
        %v433 = vld [vmem:[#allocation5 + $0x220] sm:$0xff]
        %v434 = vld [vmem:[#allocation5 + $0x228] sm:$0xff]
        %v435 = vld [vmem:[#allocation5 + $0x230] sm:$0xff]
        %v436 = vld [vmem:[#allocation5 + $0x238] sm:$0xff]
        %v437 = vld [vmem:[#allocation5 + $0x240] sm:$0xff]
        %v438 = vld [vmem:[#allocation5 + $0x248] sm:$0xff]
        %v439 = vld [vmem:[#allocation5 + $0x250] sm:$0xff]
        %v440 = vld [vmem:[#allocation5 + $0x258] sm:$0xff]
        %v441 = vld [vmem:[#allocation5 + $0x260] sm:$0xff]
        %v442 = vld [vmem:[#allocation5 + $0x268] sm:$0xff]
        %v443 = vld [vmem:[#allocation5 + $0x270] sm:$0xff]
        %v444 = vld [vmem:[#allocation5 + $0x278] sm:$0xff]
        %v445 = vld [vmem:[#allocation5 + $0x280] sm:$0xff]
        %v446 = vld [vmem:[#allocation5 + $0x288] sm:$0xff]
        %v447 = vld [vmem:[#allocation5 + $0x290] sm:$0xff]
        %v448 = vld [vmem:[#allocation5 + $0x298] sm:$0xff]
        %v449 = vld [vmem:[#allocation5 + $0x2a0] sm:$0xff]
        %v450 = vld [vmem:[#allocation5 + $0x2a8] sm:$0xff]
        %v451 = vld [vmem:[#allocation5 + $0x2b0] sm:$0xff]
        %v452 = vld [vmem:[#allocation5 + $0x2b8] sm:$0xff]
        %v453 = vld [vmem:[#allocation5 + $0x2c0] sm:$0xff]
        %v454 = vld [vmem:[#allocation5 + $0x2c8] sm:$0xff]
        %v455 = vld [vmem:[#allocation5 + $0x2d0] sm:$0xff]
        %v456 = vld [vmem:[#allocation5 + $0x2d8] sm:$0xff]
        %v457 = vld [vmem:[#allocation5 + $0x2e0] sm:$0xff]
        %v458 = vld [vmem:[#allocation5 + $0x2e8] sm:$0xff]
        %v459 = vld [vmem:[#allocation5 + $0x2f0] sm:$0xff]
        %v460 = vld [vmem:[#allocation5 + $0x2f8] sm:$0xff]
        %v461 = vld [vmem:[#allocation7] sm:$0x3]
        %v463 = vperm.slane %v461, 0
        %v464 = vperm.slane %v461, 1
        %v467 = vand.u32 %v395, 4294901760
        %468 = vmatpush.msra.mxu0 %v467
        %v469 = vand.u32 %v393, 4294901760
        %470 = vmatpush.msra.mxu0 %v469
        %v471 = vand.u32 %v391, 4294901760
        %472 = vmatpush.msra.mxu0 %v471
        %v473 = vand.u32 %v389, 4294901760
        %474 = vmatpush.msra.mxu0 %v473
        %v475 = vand.u32 %v387, 4294901760
        %476 = vmatpush.msra.mxu0 %v475
        %v477 = vand.u32 %v385, 4294901760
        %478 = vmatpush.msra.mxu0 %v477
        %v479 = vand.u32 %v383, 4294901760
        %480 = vmatpush.msra.mxu0 %v479
        %v481 = vand.u32 %v381, 4294901760
        %482 = vmatpush.msra.mxu0 %v481
        %v483 = vand.u32 %v379, 4294901760
        %484 = vmatpush.msra.mxu0 %v483
        %v485 = vand.u32 %v377, 4294901760
        %486 = vmatpush.msra.mxu0 %v485
        %v487 = vand.u32 %v375, 4294901760
        %488 = vmatpush.msra.mxu0 %v487
        %v489 = vand.u32 %v373, 4294901760
        %490 = vmatpush.msra.mxu0 %v489
        %v491 = vand.u32 %v371, 4294901760
        %492 = vmatpush.msra.mxu0 %v491
        %v493 = vand.u32 %v369, 4294901760
        %494 = vmatpush.msra.mxu0 %v493
        %v495 = vand.u32 %v367, 4294901760
        %496 = vmatpush.msra.mxu0 %v495
        %v497 = vand.u32 %v365, 4294901760
        %498 = vmatpush.msra.mxu0 %v497
        %v499 = vand.u32 %v269, 4294901760
        %v500 = vsub.f32 %v269, %v499
        %v501 = vand.u32 %v500, 4294901760
        %v502 = vsub.f32 %v500, %v501
        %v503 = vand.u32 %v502, 4294901760
        %504 = vmatmul.f32.gmra.mxu0 %v503
        %v505 = vpop.f32.mrf.mxu0
        %v506 = vadd.f32 %v463, %v505
        %v507 = vand.u32 %v272, 4294901760
        %v508 = vsub.f32 %v272, %v507
        %v509 = vand.u32 %v508, 4294901760
        %v510 = vsub.f32 %v508, %v509
        %v511 = vand.u32 %v510, 4294901760
        %512 = vmatmul.f32.gmra.mxu0 %v511
        %v513 = vpop.f32.mrf.mxu0
        %v514 = vadd.f32 %v463, %v513
        %v515 = vand.u32 %v275, 4294901760
        %v516 = vsub.f32 %v275, %v515
        %v517 = vand.u32 %v516, 4294901760
        %v518 = vsub.f32 %v516, %v517
        %v519 = vand.u32 %v518, 4294901760
        %520 = vmatmul.f32.gmra.mxu0 %v519
        %v521 = vpop.f32.mrf.mxu0
        %v522 = vadd.f32 %v463, %v521
        %v523 = vand.u32 %v278, 4294901760
        %v524 = vsub.f32 %v278, %v523
        %v525 = vand.u32 %v524, 4294901760
        %v526 = vsub.f32 %v524, %v525
        %v527 = vand.u32 %v526, 4294901760
        %528 = vmatmul.f32.gmra.mxu0 %v527
        %v529 = vpop.f32.mrf.mxu0
        %v530 = vadd.f32 %v463, %v529
        %v531 = vand.u32 %v281, 4294901760
        %v532 = vsub.f32 %v281, %v531
        %v533 = vand.u32 %v532, 4294901760
        %v534 = vsub.f32 %v532, %v533
        %v535 = vand.u32 %v534, 4294901760
        %536 = vmatmul.f32.gmra.mxu0 %v535
        %v537 = vpop.f32.mrf.mxu0
        %v538 = vadd.f32 %v463, %v537
        %v539 = vand.u32 %v284, 4294901760
        %v540 = vsub.f32 %v284, %v539
        %v541 = vand.u32 %v540, 4294901760
        %v542 = vsub.f32 %v540, %v541
        %v543 = vand.u32 %v542, 4294901760
        %544 = vmatmul.f32.gmra.mxu0 %v543
        %v545 = vpop.f32.mrf.mxu0
        %v546 = vadd.f32 %v463, %v545
        %v547 = vand.u32 %v287, 4294901760
        %v548 = vsub.f32 %v287, %v547
        %v549 = vand.u32 %v548, 4294901760
        %v550 = vsub.f32 %v548, %v549
        %v551 = vand.u32 %v550, 4294901760
        %552 = vmatmul.f32.gmra.mxu0 %v551
        %v553 = vpop.f32.mrf.mxu0
        %v554 = vadd.f32 %v463, %v553
        %v555 = vand.u32 %v290, 4294901760
        %v556 = vsub.f32 %v290, %v555
        %v557 = vand.u32 %v556, 4294901760
        %v558 = vsub.f32 %v556, %v557
        %v559 = vand.u32 %v558, 4294901760
        %560 = vmatmul.f32.gmra.mxu0 %v559
        %v561 = vpop.f32.mrf.mxu0
        %v562 = vadd.f32 %v463, %v561
        %v563 = vand.u32 %v293, 4294901760
        %v564 = vsub.f32 %v293, %v563
        %v565 = vand.u32 %v564, 4294901760
        %v566 = vsub.f32 %v564, %v565
        %v567 = vand.u32 %v566, 4294901760
        %568 = vmatmul.f32.gmra.mxu0 %v567
        %v569 = vpop.f32.mrf.mxu0
        %v570 = vadd.f32 %v463, %v569
        %v571 = vand.u32 %v296, 4294901760
        %v572 = vsub.f32 %v296, %v571
        %v573 = vand.u32 %v572, 4294901760
        %v574 = vsub.f32 %v572, %v573
        %v575 = vand.u32 %v574, 4294901760
        %576 = vmatmul.f32.gmra.mxu0 %v575
        %v577 = vpop.f32.mrf.mxu0
        %v578 = vadd.f32 %v463, %v577
        %v579 = vand.u32 %v299, 4294901760
        %v580 = vsub.f32 %v299, %v579
        %v581 = vand.u32 %v580, 4294901760
        %v582 = vsub.f32 %v580, %v581
        %v583 = vand.u32 %v582, 4294901760
        %584 = vmatmul.f32.gmra.mxu0 %v583
        %v585 = vpop.f32.mrf.mxu0
        %v586 = vadd.f32 %v463, %v585
        %v587 = vand.u32 %v302, 4294901760
        %v588 = vsub.f32 %v302, %v587
        %v589 = vand.u32 %v588, 4294901760
        %v590 = vsub.f32 %v588, %v589
        %v591 = vand.u32 %v590, 4294901760
        %592 = vmatmul.f32.gmra.mxu0 %v591
        %v593 = vpop.f32.mrf.mxu0
        %v594 = vadd.f32 %v463, %v593
        %v595 = vand.u32 %v305, 4294901760
        %v596 = vsub.f32 %v305, %v595
        %v597 = vand.u32 %v596, 4294901760
        %v598 = vsub.f32 %v596, %v597
        %v599 = vand.u32 %v598, 4294901760
        %600 = vmatmul.f32.gmra.mxu0 %v599
        %v601 = vpop.f32.mrf.mxu0
        %v602 = vadd.f32 %v463, %v601
        %v603 = vand.u32 %v308, 4294901760
        %v604 = vsub.f32 %v308, %v603
        %v605 = vand.u32 %v604, 4294901760
        %v606 = vsub.f32 %v604, %v605
        %v607 = vand.u32 %v606, 4294901760
        %608 = vmatmul.f32.gmra.mxu0 %v607
        %v609 = vpop.f32.mrf.mxu0
        %v610 = vadd.f32 %v463, %v609
        %v611 = vand.u32 %v311, 4294901760
        %v612 = vsub.f32 %v311, %v611
        %v613 = vand.u32 %v612, 4294901760
        %v614 = vsub.f32 %v612, %v613
        %v615 = vand.u32 %v614, 4294901760
        %616 = vmatmul.f32.gmra.mxu0 %v615
        %v617 = vpop.f32.mrf.mxu0
        %v618 = vadd.f32 %v463, %v617
        %v619 = vand.u32 %v314, 4294901760
        %v620 = vsub.f32 %v314, %v619
        %v621 = vand.u32 %v620, 4294901760
        %v622 = vsub.f32 %v620, %v621
        %v623 = vand.u32 %v622, 4294901760
        %624 = vmatmul.f32.gmra.mxu0 %v623
        %v625 = vpop.f32.mrf.mxu0
        %v626 = vadd.f32 %v463, %v625
        %v627 = vand.u32 %v317, 4294901760
        %v628 = vsub.f32 %v317, %v627
        %v629 = vand.u32 %v628, 4294901760
        %v630 = vsub.f32 %v628, %v629
        %v631 = vand.u32 %v630, 4294901760
        %632 = vmatmul.f32.gmra.mxu0 %v631
        %v633 = vpop.f32.mrf.mxu0
        %v634 = vadd.f32 %v463, %v633
        %v635 = vand.u32 %v320, 4294901760
        %v636 = vsub.f32 %v320, %v635
        %v637 = vand.u32 %v636, 4294901760
        %v638 = vsub.f32 %v636, %v637
        %v639 = vand.u32 %v638, 4294901760
        %640 = vmatmul.f32.gmra.mxu0 %v639
        %v641 = vpop.f32.mrf.mxu0
        %v642 = vadd.f32 %v463, %v641
        %v643 = vand.u32 %v323, 4294901760
        %v644 = vsub.f32 %v323, %v643
        %v645 = vand.u32 %v644, 4294901760
        %v646 = vsub.f32 %v644, %v645
        %v647 = vand.u32 %v646, 4294901760
        %648 = vmatmul.f32.gmra.mxu0 %v647
        %v649 = vpop.f32.mrf.mxu0
        %v650 = vadd.f32 %v463, %v649
        %v651 = vand.u32 %v326, 4294901760
        %v652 = vsub.f32 %v326, %v651
        %v653 = vand.u32 %v652, 4294901760
        %v654 = vsub.f32 %v652, %v653
        %v655 = vand.u32 %v654, 4294901760
        %656 = vmatmul.f32.gmra.mxu0 %v655
        %v657 = vpop.f32.mrf.mxu0
        %v658 = vadd.f32 %v463, %v657
        %v659 = vand.u32 %v329, 4294901760
        %v660 = vsub.f32 %v329, %v659
        %v661 = vand.u32 %v660, 4294901760
        %v662 = vsub.f32 %v660, %v661
        %v663 = vand.u32 %v662, 4294901760
        %664 = vmatmul.f32.gmra.mxu0 %v663
        %v665 = vpop.f32.mrf.mxu0
        %v666 = vadd.f32 %v463, %v665
        %v667 = vand.u32 %v332, 4294901760
        %v668 = vsub.f32 %v332, %v667
        %v669 = vand.u32 %v668, 4294901760
        %v670 = vsub.f32 %v668, %v669
        %v671 = vand.u32 %v670, 4294901760
        %672 = vmatmul.f32.gmra.mxu0 %v671
        %v673 = vpop.f32.mrf.mxu0
        %v674 = vadd.f32 %v463, %v673
        %v675 = vand.u32 %v335, 4294901760
        %v676 = vsub.f32 %v335, %v675
        %v677 = vand.u32 %v676, 4294901760
        %v678 = vsub.f32 %v676, %v677
        %v679 = vand.u32 %v678, 4294901760
        %680 = vmatmul.f32.gmra.mxu0 %v679
        %v681 = vpop.f32.mrf.mxu0
        %v682 = vadd.f32 %v463, %v681
        %v683 = vand.u32 %v338, 4294901760
        %v684 = vsub.f32 %v338, %v683
        %v685 = vand.u32 %v684, 4294901760
        %v686 = vsub.f32 %v684, %v685
        %v687 = vand.u32 %v686, 4294901760
        %688 = vmatmul.f32.gmra.mxu0 %v687
        %v689 = vpop.f32.mrf.mxu0
        %v690 = vadd.f32 %v463, %v689
        %v691 = vand.u32 %v341, 4294901760
        %v692 = vsub.f32 %v341, %v691
        %v693 = vand.u32 %v692, 4294901760
        %v694 = vsub.f32 %v692, %v693
        %v695 = vand.u32 %v694, 4294901760
        %696 = vmatmul.f32.gmra.mxu0 %v695
        %v697 = vpop.f32.mrf.mxu0
        %v698 = vadd.f32 %v463, %v697
        %v699 = vand.u32 %v344, 4294901760
        %v700 = vsub.f32 %v344, %v699
        %v701 = vand.u32 %v700, 4294901760
        %v702 = vsub.f32 %v700, %v701
        %v703 = vand.u32 %v702, 4294901760
        %704 = vmatmul.f32.gmra.mxu0 %v703
        %v705 = vpop.f32.mrf.mxu0
        %v706 = vadd.f32 %v463, %v705
        %v707 = vand.u32 %v347, 4294901760
        %v708 = vsub.f32 %v347, %v707
        %v709 = vand.u32 %v708, 4294901760
        %v710 = vsub.f32 %v708, %v709
        %v711 = vand.u32 %v710, 4294901760
        %712 = vmatmul.f32.gmra.mxu0 %v711
        %v713 = vpop.f32.mrf.mxu0
        %v714 = vadd.f32 %v463, %v713
        %v715 = vand.u32 %v350, 4294901760
        %v716 = vsub.f32 %v350, %v715
        %v717 = vand.u32 %v716, 4294901760
        %v718 = vsub.f32 %v716, %v717
        %v719 = vand.u32 %v718, 4294901760
        %720 = vmatmul.f32.gmra.mxu0 %v719
        %v721 = vpop.f32.mrf.mxu0
        %v722 = vadd.f32 %v463, %v721
        %v723 = vand.u32 %v353, 4294901760
        %v724 = vsub.f32 %v353, %v723
        %v725 = vand.u32 %v724, 4294901760
        %v726 = vsub.f32 %v724, %v725
        %v727 = vand.u32 %v726, 4294901760
        %728 = vmatmul.f32.gmra.mxu0 %v727
        %v729 = vpop.f32.mrf.mxu0
        %v730 = vadd.f32 %v463, %v729
        %v731 = vand.u32 %v356, 4294901760
        %v732 = vsub.f32 %v356, %v731
        %v733 = vand.u32 %v732, 4294901760
        %v734 = vsub.f32 %v732, %v733
        %v735 = vand.u32 %v734, 4294901760
        %736 = vmatmul.f32.gmra.mxu0 %v735
        %v737 = vpop.f32.mrf.mxu0
        %v738 = vadd.f32 %v463, %v737
        %v739 = vand.u32 %v359, 4294901760
        %v740 = vsub.f32 %v359, %v739
        %v741 = vand.u32 %v740, 4294901760
        %v742 = vsub.f32 %v740, %v741
        %v743 = vand.u32 %v742, 4294901760
        %744 = vmatmul.f32.gmra.mxu0 %v743
        %v745 = vpop.f32.mrf.mxu0
        %v746 = vadd.f32 %v463, %v745
        %v747 = vand.u32 %v362, 4294901760
        %v748 = vsub.f32 %v362, %v747
        %v749 = vand.u32 %v748, 4294901760
        %v750 = vsub.f32 %v748, %v749
        %v751 = vand.u32 %v750, 4294901760
        %752 = vmatmul.f32.gmra.mxu0 %v751
        %v753 = vpop.f32.mrf.mxu0
        %v754 = vadd.f32 %v463, %v753
        %755 = vdwg.mxu0
        %v756 = vand.u32 %v395, 4294901760
        %v757 = vsub.f32 %v395, %v756
        %v758 = vand.u32 %v757, 4294901760
        %v759 = vsub.f32 %v757, %v758
        %v760 = vand.u32 %v759, 4294901760
        %761 = vmatpush.msra.mxu0 %v760
        %v762 = vand.u32 %v393, 4294901760
        %v763 = vsub.f32 %v393, %v762
        %v764 = vand.u32 %v763, 4294901760
        %v765 = vsub.f32 %v763, %v764
        %v766 = vand.u32 %v765, 4294901760
        %767 = vmatpush.msra.mxu0 %v766
        %v768 = vand.u32 %v391, 4294901760
        %v769 = vsub.f32 %v391, %v768
        %v770 = vand.u32 %v769, 4294901760
        %v771 = vsub.f32 %v769, %v770
        %v772 = vand.u32 %v771, 4294901760
        %773 = vmatpush.msra.mxu0 %v772
        %v774 = vand.u32 %v389, 4294901760
        %v775 = vsub.f32 %v389, %v774
        %v776 = vand.u32 %v775, 4294901760
        %v777 = vsub.f32 %v775, %v776
        %v778 = vand.u32 %v777, 4294901760
        %779 = vmatpush.msra.mxu0 %v778
        %v780 = vand.u32 %v387, 4294901760
        %v781 = vsub.f32 %v387, %v780
        %v782 = vand.u32 %v781, 4294901760
        %v783 = vsub.f32 %v781, %v782
        %v784 = vand.u32 %v783, 4294901760
        %785 = vmatpush.msra.mxu0 %v784
        %v786 = vand.u32 %v385, 4294901760
        %v787 = vsub.f32 %v385, %v786
        %v788 = vand.u32 %v787, 4294901760
        %v789 = vsub.f32 %v787, %v788
        %v790 = vand.u32 %v789, 4294901760
        %791 = vmatpush.msra.mxu0 %v790
        %v792 = vand.u32 %v383, 4294901760
        %v793 = vsub.f32 %v383, %v792
        %v794 = vand.u32 %v793, 4294901760
        %v795 = vsub.f32 %v793, %v794
        %v796 = vand.u32 %v795, 4294901760
        %797 = vmatpush.msra.mxu0 %v796
        %v798 = vand.u32 %v381, 4294901760
        %v799 = vsub.f32 %v381, %v798
        %v800 = vand.u32 %v799, 4294901760
        %v801 = vsub.f32 %v799, %v800
        %v802 = vand.u32 %v801, 4294901760
        %803 = vmatpush.msra.mxu0 %v802
        %v804 = vand.u32 %v379, 4294901760
        %v805 = vsub.f32 %v379, %v804
        %v806 = vand.u32 %v805, 4294901760
        %v807 = vsub.f32 %v805, %v806
        %v808 = vand.u32 %v807, 4294901760
        %809 = vmatpush.msra.mxu0 %v808
        %v810 = vand.u32 %v377, 4294901760
        %v811 = vsub.f32 %v377, %v810
        %v812 = vand.u32 %v811, 4294901760
        %v813 = vsub.f32 %v811, %v812
        %v814 = vand.u32 %v813, 4294901760
        %815 = vmatpush.msra.mxu0 %v814
        %v816 = vand.u32 %v375, 4294901760
        %v817 = vsub.f32 %v375, %v816
        %v818 = vand.u32 %v817, 4294901760
        %v819 = vsub.f32 %v817, %v818
        %v820 = vand.u32 %v819, 4294901760
        %821 = vmatpush.msra.mxu0 %v820
        %v822 = vand.u32 %v373, 4294901760
        %v823 = vsub.f32 %v373, %v822
        %v824 = vand.u32 %v823, 4294901760
        %v825 = vsub.f32 %v823, %v824
        %v826 = vand.u32 %v825, 4294901760
        %827 = vmatpush.msra.mxu0 %v826
        %v828 = vand.u32 %v371, 4294901760
        %v829 = vsub.f32 %v371, %v828
        %v830 = vand.u32 %v829, 4294901760
        %v831 = vsub.f32 %v829, %v830
        %v832 = vand.u32 %v831, 4294901760
        %833 = vmatpush.msra.mxu0 %v832
        %v834 = vand.u32 %v369, 4294901760
        %v835 = vsub.f32 %v369, %v834
        %v836 = vand.u32 %v835, 4294901760
        %v837 = vsub.f32 %v835, %v836
        %v838 = vand.u32 %v837, 4294901760
        %839 = vmatpush.msra.mxu0 %v838
        %v840 = vand.u32 %v367, 4294901760
        %v841 = vsub.f32 %v367, %v840
        %v842 = vand.u32 %v841, 4294901760
        %v843 = vsub.f32 %v841, %v842
        %v844 = vand.u32 %v843, 4294901760
        %845 = vmatpush.msra.mxu0 %v844
        %v846 = vand.u32 %v365, 4294901760
        %v847 = vsub.f32 %v365, %v846
        %v848 = vand.u32 %v847, 4294901760
        %v849 = vsub.f32 %v847, %v848
        %v850 = vand.u32 %v849, 4294901760
        %851 = vmatpush.msra.mxu0 %v850
        %v852 = vand.u32 %v269, 4294901760
        %853 = vmatmul.f32.gmra.mxu0 %v852
        %v854 = vpop.f32.mrf.mxu0
        %v855 = vadd.f32 %v506, %v854
        %v856 = vand.u32 %v272, 4294901760
        %857 = vmatmul.f32.gmra.mxu0 %v856
        %v858 = vpop.f32.mrf.mxu0
        %v859 = vadd.f32 %v514, %v858
        %v860 = vand.u32 %v275, 4294901760
        %861 = vmatmul.f32.gmra.mxu0 %v860
        %v862 = vpop.f32.mrf.mxu0
        %v863 = vadd.f32 %v522, %v862
        %v864 = vand.u32 %v278, 4294901760
        %865 = vmatmul.f32.gmra.mxu0 %v864
        %v866 = vpop.f32.mrf.mxu0
        %v867 = vadd.f32 %v530, %v866
        %v868 = vand.u32 %v281, 4294901760
        %869 = vmatmul.f32.gmra.mxu0 %v868
        %v870 = vpop.f32.mrf.mxu0
        %v871 = vadd.f32 %v538, %v870
        %v872 = vand.u32 %v284, 4294901760
        %873 = vmatmul.f32.gmra.mxu0 %v872
        %v874 = vpop.f32.mrf.mxu0
        %v875 = vadd.f32 %v546, %v874
        %v876 = vand.u32 %v287, 4294901760
        %877 = vmatmul.f32.gmra.mxu0 %v876
        %v878 = vpop.f32.mrf.mxu0
        %v879 = vadd.f32 %v554, %v878
        %v880 = vand.u32 %v290, 4294901760
        %881 = vmatmul.f32.gmra.mxu0 %v880
        %v882 = vpop.f32.mrf.mxu0
        %v883 = vadd.f32 %v562, %v882
        %v884 = vand.u32 %v293, 4294901760
        %885 = vmatmul.f32.gmra.mxu0 %v884
        %v886 = vpop.f32.mrf.mxu0
        %v887 = vadd.f32 %v570, %v886
        %v888 = vand.u32 %v296, 4294901760
        %889 = vmatmul.f32.gmra.mxu0 %v888
        %v890 = vpop.f32.mrf.mxu0
        %v891 = vadd.f32 %v578, %v890
        %v892 = vand.u32 %v299, 4294901760
        %893 = vmatmul.f32.gmra.mxu0 %v892
        %v894 = vpop.f32.mrf.mxu0
        %v895 = vadd.f32 %v586, %v894
        %v896 = vand.u32 %v302, 4294901760
        %897 = vmatmul.f32.gmra.mxu0 %v896
        %v898 = vpop.f32.mrf.mxu0
        %v899 = vadd.f32 %v594, %v898
        %v900 = vand.u32 %v305, 4294901760
        %901 = vmatmul.f32.gmra.mxu0 %v900
        %v902 = vpop.f32.mrf.mxu0
        %v903 = vadd.f32 %v602, %v902
        %v904 = vand.u32 %v308, 4294901760
        %905 = vmatmul.f32.gmra.mxu0 %v904
        %v906 = vpop.f32.mrf.mxu0
        %v907 = vadd.f32 %v610, %v906
        %v908 = vand.u32 %v311, 4294901760
        %909 = vmatmul.f32.gmra.mxu0 %v908
        %v910 = vpop.f32.mrf.mxu0
        %v911 = vadd.f32 %v618, %v910
        %v912 = vand.u32 %v314, 4294901760
        %913 = vmatmul.f32.gmra.mxu0 %v912
        %v914 = vpop.f32.mrf.mxu0
        %v915 = vadd.f32 %v626, %v914
        %v916 = vand.u32 %v317, 4294901760
        %917 = vmatmul.f32.gmra.mxu0 %v916
        %v918 = vpop.f32.mrf.mxu0
        %v919 = vadd.f32 %v634, %v918
        %v920 = vand.u32 %v320, 4294901760
        %921 = vmatmul.f32.gmra.mxu0 %v920
        %v922 = vpop.f32.mrf.mxu0
        %v923 = vadd.f32 %v642, %v922
        %v924 = vand.u32 %v323, 4294901760
        %925 = vmatmul.f32.gmra.mxu0 %v924
        %v926 = vpop.f32.mrf.mxu0
        %v927 = vadd.f32 %v650, %v926
        %v928 = vand.u32 %v326, 4294901760
        %929 = vmatmul.f32.gmra.mxu0 %v928
        %v930 = vpop.f32.mrf.mxu0
        %v931 = vadd.f32 %v658, %v930
        %v932 = vand.u32 %v329, 4294901760
        %933 = vmatmul.f32.gmra.mxu0 %v932
        %v934 = vpop.f32.mrf.mxu0
        %v935 = vadd.f32 %v666, %v934
        %v936 = vand.u32 %v332, 4294901760
        %937 = vmatmul.f32.gmra.mxu0 %v936
        %v938 = vpop.f32.mrf.mxu0
        %v939 = vadd.f32 %v674, %v938
        %v940 = vand.u32 %v335, 4294901760
        %941 = vmatmul.f32.gmra.mxu0 %v940
        %v942 = vpop.f32.mrf.mxu0
        %v943 = vadd.f32 %v682, %v942
        %v944 = vand.u32 %v338, 4294901760
        %945 = vmatmul.f32.gmra.mxu0 %v944
        %v946 = vpop.f32.mrf.mxu0
        %v947 = vadd.f32 %v690, %v946
        %v948 = vand.u32 %v341, 4294901760
        %949 = vmatmul.f32.gmra.mxu0 %v948
        %v950 = vpop.f32.mrf.mxu0
        %v951 = vadd.f32 %v698, %v950
        %v952 = vand.u32 %v344, 4294901760
        %953 = vmatmul.f32.gmra.mxu0 %v952
        %v954 = vpop.f32.mrf.mxu0
        %v955 = vadd.f32 %v706, %v954
        %v956 = vand.u32 %v347, 4294901760
        %957 = vmatmul.f32.gmra.mxu0 %v956
        %v958 = vpop.f32.mrf.mxu0
        %v959 = vadd.f32 %v714, %v958
        %v960 = vand.u32 %v350, 4294901760
        %961 = vmatmul.f32.gmra.mxu0 %v960
        %v962 = vpop.f32.mrf.mxu0
        %v963 = vadd.f32 %v722, %v962
        %v964 = vand.u32 %v353, 4294901760
        %965 = vmatmul.f32.gmra.mxu0 %v964
        %v966 = vpop.f32.mrf.mxu0
        %v967 = vadd.f32 %v730, %v966
        %v968 = vand.u32 %v356, 4294901760
        %969 = vmatmul.f32.gmra.mxu0 %v968
        %v970 = vpop.f32.mrf.mxu0
        %v971 = vadd.f32 %v738, %v970
        %v972 = vand.u32 %v359, 4294901760
        %973 = vmatmul.f32.gmra.mxu0 %v972
        %v974 = vpop.f32.mrf.mxu0
        %v975 = vadd.f32 %v746, %v974
        %v976 = vand.u32 %v362, 4294901760
        %977 = vmatmul.f32.gmra.mxu0 %v976
        %v978 = vpop.f32.mrf.mxu0
        %v979 = vadd.f32 %v754, %v978
        %980 = vdwg.mxu0
        %v981 = vand.u32 %v395, 4294901760
        %v982 = vsub.f32 %v395, %v981
        %983 = vmatpush.msra.mxu0 %v982
        %v984 = vand.u32 %v393, 4294901760
        %v985 = vsub.f32 %v393, %v984
        %986 = vmatpush.msra.mxu0 %v985
        %v987 = vand.u32 %v391, 4294901760
        %v988 = vsub.f32 %v391, %v987
        %989 = vmatpush.msra.mxu0 %v988
        %v990 = vand.u32 %v389, 4294901760
        %v991 = vsub.f32 %v389, %v990
        %992 = vmatpush.msra.mxu0 %v991
        %v993 = vand.u32 %v387, 4294901760
        %v994 = vsub.f32 %v387, %v993
        %995 = vmatpush.msra.mxu0 %v994
        %v996 = vand.u32 %v385, 4294901760
        %v997 = vsub.f32 %v385, %v996
        %998 = vmatpush.msra.mxu0 %v997
        %v999 = vand.u32 %v383, 4294901760
        %v1000 = vsub.f32 %v383, %v999
        %1001 = vmatpush.msra.mxu0 %v1000
        %v1002 = vand.u32 %v381, 4294901760
        %v1003 = vsub.f32 %v381, %v1002
        %1004 = vmatpush.msra.mxu0 %v1003
        %v1005 = vand.u32 %v379, 4294901760
        %v1006 = vsub.f32 %v379, %v1005
        %1007 = vmatpush.msra.mxu0 %v1006
        %v1008 = vand.u32 %v377, 4294901760
        %v1009 = vsub.f32 %v377, %v1008
        %1010 = vmatpush.msra.mxu0 %v1009
        %v1011 = vand.u32 %v375, 4294901760
        %v1012 = vsub.f32 %v375, %v1011
        %1013 = vmatpush.msra.mxu0 %v1012
        %v1014 = vand.u32 %v373, 4294901760
        %v1015 = vsub.f32 %v373, %v1014
        %1016 = vmatpush.msra.mxu0 %v1015
        %v1017 = vand.u32 %v371, 4294901760
        %v1018 = vsub.f32 %v371, %v1017
        %1019 = vmatpush.msra.mxu0 %v1018
        %v1020 = vand.u32 %v369, 4294901760
        %v1021 = vsub.f32 %v369, %v1020
        %1022 = vmatpush.msra.mxu0 %v1021
        %v1023 = vand.u32 %v367, 4294901760
        %v1024 = vsub.f32 %v367, %v1023
        %1025 = vmatpush.msra.mxu0 %v1024
        %v1026 = vand.u32 %v365, 4294901760
        %v1027 = vsub.f32 %v365, %v1026
        %1028 = vmatpush.msra.mxu0 %v1027
        %v1029 = vand.u32 %v269, 4294901760
        %v1030 = vsub.f32 %v269, %v1029
        %1031 = vmatmul.f32.gmra.mxu0 %v1030
        %v1032 = vpop.f32.mrf.mxu0
        %v1033 = vadd.f32 %v855, %v1032
        %v1034 = vand.u32 %v272, 4294901760
        %v1035 = vsub.f32 %v272, %v1034
        %1036 = vmatmul.f32.gmra.mxu0 %v1035
        %v1037 = vpop.f32.mrf.mxu0
        %v1038 = vadd.f32 %v859, %v1037
        %v1039 = vand.u32 %v275, 4294901760
        %v1040 = vsub.f32 %v275, %v1039
        %1041 = vmatmul.f32.gmra.mxu0 %v1040
        %v1042 = vpop.f32.mrf.mxu0
        %v1043 = vadd.f32 %v863, %v1042
        %v1044 = vand.u32 %v278, 4294901760
        %v1045 = vsub.f32 %v278, %v1044
        %1046 = vmatmul.f32.gmra.mxu0 %v1045
        %v1047 = vpop.f32.mrf.mxu0
        %v1048 = vadd.f32 %v867, %v1047
        %v1049 = vand.u32 %v281, 4294901760
        %v1050 = vsub.f32 %v281, %v1049
        %1051 = vmatmul.f32.gmra.mxu0 %v1050
        %v1052 = vpop.f32.mrf.mxu0
        %v1053 = vadd.f32 %v871, %v1052
        %v1054 = vand.u32 %v284, 4294901760
        %v1055 = vsub.f32 %v284, %v1054
        %1056 = vmatmul.f32.gmra.mxu0 %v1055
        %v1057 = vpop.f32.mrf.mxu0
        %v1058 = vadd.f32 %v875, %v1057
        %v1059 = vand.u32 %v287, 4294901760
        %v1060 = vsub.f32 %v287, %v1059
        %1061 = vmatmul.f32.gmra.mxu0 %v1060
        %v1062 = vpop.f32.mrf.mxu0
        %v1063 = vadd.f32 %v879, %v1062
        %v1064 = vand.u32 %v290, 4294901760
        %v1065 = vsub.f32 %v290, %v1064
        %1066 = vmatmul.f32.gmra.mxu0 %v1065
        %v1067 = vpop.f32.mrf.mxu0
        %v1068 = vadd.f32 %v883, %v1067
        %v1069 = vand.u32 %v293, 4294901760
        %v1070 = vsub.f32 %v293, %v1069
        %1071 = vmatmul.f32.gmra.mxu0 %v1070
        %v1072 = vpop.f32.mrf.mxu0
        %v1073 = vadd.f32 %v887, %v1072
        %v1074 = vand.u32 %v296, 4294901760
        %v1075 = vsub.f32 %v296, %v1074
        %1076 = vmatmul.f32.gmra.mxu0 %v1075
        %v1077 = vpop.f32.mrf.mxu0
        %v1078 = vadd.f32 %v891, %v1077
        %v1079 = vand.u32 %v299, 4294901760
        %v1080 = vsub.f32 %v299, %v1079
        %1081 = vmatmul.f32.gmra.mxu0 %v1080
        %v1082 = vpop.f32.mrf.mxu0
        %v1083 = vadd.f32 %v895, %v1082
        %v1084 = vand.u32 %v302, 4294901760
        %v1085 = vsub.f32 %v302, %v1084
        %1086 = vmatmul.f32.gmra.mxu0 %v1085
        %v1087 = vpop.f32.mrf.mxu0
        %v1088 = vadd.f32 %v899, %v1087
        %v1089 = vand.u32 %v305, 4294901760
        %v1090 = vsub.f32 %v305, %v1089
        %1091 = vmatmul.f32.gmra.mxu0 %v1090
        %v1092 = vpop.f32.mrf.mxu0
        %v1093 = vadd.f32 %v903, %v1092
        %v1094 = vand.u32 %v308, 4294901760
        %v1095 = vsub.f32 %v308, %v1094
        %1096 = vmatmul.f32.gmra.mxu0 %v1095
        %v1097 = vpop.f32.mrf.mxu0
        %v1098 = vadd.f32 %v907, %v1097
        %v1099 = vand.u32 %v311, 4294901760
        %v1100 = vsub.f32 %v311, %v1099
        %1101 = vmatmul.f32.gmra.mxu0 %v1100
        %v1102 = vpop.f32.mrf.mxu0
        %v1103 = vadd.f32 %v911, %v1102
        %v1104 = vand.u32 %v314, 4294901760
        %v1105 = vsub.f32 %v314, %v1104
        %1106 = vmatmul.f32.gmra.mxu0 %v1105
        %v1107 = vpop.f32.mrf.mxu0
        %v1108 = vadd.f32 %v915, %v1107
        %v1109 = vand.u32 %v317, 4294901760
        %v1110 = vsub.f32 %v317, %v1109
        %1111 = vmatmul.f32.gmra.mxu0 %v1110
        %v1112 = vpop.f32.mrf.mxu0
        %v1113 = vadd.f32 %v919, %v1112
        %v1114 = vand.u32 %v320, 4294901760
        %v1115 = vsub.f32 %v320, %v1114
        %1116 = vmatmul.f32.gmra.mxu0 %v1115
        %v1117 = vpop.f32.mrf.mxu0
        %v1118 = vadd.f32 %v923, %v1117
        %v1119 = vand.u32 %v323, 4294901760
        %v1120 = vsub.f32 %v323, %v1119
        %1121 = vmatmul.f32.gmra.mxu0 %v1120
        %v1122 = vpop.f32.mrf.mxu0
        %v1123 = vadd.f32 %v927, %v1122
        %v1124 = vand.u32 %v326, 4294901760
        %v1125 = vsub.f32 %v326, %v1124
        %1126 = vmatmul.f32.gmra.mxu0 %v1125
        %v1127 = vpop.f32.mrf.mxu0
        %v1128 = vadd.f32 %v931, %v1127
        %v1129 = vand.u32 %v329, 4294901760
        %v1130 = vsub.f32 %v329, %v1129
        %1131 = vmatmul.f32.gmra.mxu0 %v1130
        %v1132 = vpop.f32.mrf.mxu0
        %v1133 = vadd.f32 %v935, %v1132
        %v1134 = vand.u32 %v332, 4294901760
        %v1135 = vsub.f32 %v332, %v1134
        %1136 = vmatmul.f32.gmra.mxu0 %v1135
        %v1137 = vpop.f32.mrf.mxu0
        %v1138 = vadd.f32 %v939, %v1137
        %v1139 = vand.u32 %v335, 4294901760
        %v1140 = vsub.f32 %v335, %v1139
        %1141 = vmatmul.f32.gmra.mxu0 %v1140
        %v1142 = vpop.f32.mrf.mxu0
        %v1143 = vadd.f32 %v943, %v1142
        %v1144 = vand.u32 %v338, 4294901760
        %v1145 = vsub.f32 %v338, %v1144
        %1146 = vmatmul.f32.gmra.mxu0 %v1145
        %v1147 = vpop.f32.mrf.mxu0
        %v1148 = vadd.f32 %v947, %v1147
        %v1149 = vand.u32 %v341, 4294901760
        %v1150 = vsub.f32 %v341, %v1149
        %1151 = vmatmul.f32.gmra.mxu0 %v1150
        %v1152 = vpop.f32.mrf.mxu0
        %v1153 = vadd.f32 %v951, %v1152
        %v1154 = vand.u32 %v344, 4294901760
        %v1155 = vsub.f32 %v344, %v1154
        %1156 = vmatmul.f32.gmra.mxu0 %v1155
        %v1157 = vpop.f32.mrf.mxu0
        %v1158 = vadd.f32 %v955, %v1157
        %v1159 = vand.u32 %v347, 4294901760
        %v1160 = vsub.f32 %v347, %v1159
        %1161 = vmatmul.f32.gmra.mxu0 %v1160
        %v1162 = vpop.f32.mrf.mxu0
        %v1163 = vadd.f32 %v959, %v1162
        %v1164 = vand.u32 %v350, 4294901760
        %v1165 = vsub.f32 %v350, %v1164
        %1166 = vmatmul.f32.gmra.mxu0 %v1165
        %v1167 = vpop.f32.mrf.mxu0
        %v1168 = vadd.f32 %v963, %v1167
        %v1169 = vand.u32 %v353, 4294901760
        %v1170 = vsub.f32 %v353, %v1169
        %1171 = vmatmul.f32.gmra.mxu0 %v1170
        %v1172 = vpop.f32.mrf.mxu0
        %v1173 = vadd.f32 %v967, %v1172
        %v1174 = vand.u32 %v356, 4294901760
        %v1175 = vsub.f32 %v356, %v1174
        %1176 = vmatmul.f32.gmra.mxu0 %v1175
        %v1177 = vpop.f32.mrf.mxu0
        %v1178 = vadd.f32 %v971, %v1177
        %v1179 = vand.u32 %v359, 4294901760
        %v1180 = vsub.f32 %v359, %v1179
        %1181 = vmatmul.f32.gmra.mxu0 %v1180
        %v1182 = vpop.f32.mrf.mxu0
        %v1183 = vadd.f32 %v975, %v1182
        %v1184 = vand.u32 %v362, 4294901760
        %v1185 = vsub.f32 %v362, %v1184
        %1186 = vmatmul.f32.gmra.mxu0 %v1185
        %v1187 = vpop.f32.mrf.mxu0
        %v1188 = vadd.f32 %v979, %v1187
        %1189 = vdwg.mxu0
        %v1190 = vand.u32 %v395, 4294901760
        %1191 = vmatpush.msra.mxu0 %v1190
        %v1192 = vand.u32 %v393, 4294901760
        %1193 = vmatpush.msra.mxu0 %v1192
        %v1194 = vand.u32 %v391, 4294901760
        %1195 = vmatpush.msra.mxu0 %v1194
        %v1196 = vand.u32 %v389, 4294901760
        %1197 = vmatpush.msra.mxu0 %v1196
        %v1198 = vand.u32 %v387, 4294901760
        %1199 = vmatpush.msra.mxu0 %v1198
        %v1200 = vand.u32 %v385, 4294901760
        %1201 = vmatpush.msra.mxu0 %v1200
        %v1202 = vand.u32 %v383, 4294901760
        %1203 = vmatpush.msra.mxu0 %v1202
        %v1204 = vand.u32 %v381, 4294901760
        %1205 = vmatpush.msra.mxu0 %v1204
        %v1206 = vand.u32 %v379, 4294901760
        %1207 = vmatpush.msra.mxu0 %v1206
        %v1208 = vand.u32 %v377, 4294901760
        %1209 = vmatpush.msra.mxu0 %v1208
        %v1210 = vand.u32 %v375, 4294901760
        %1211 = vmatpush.msra.mxu0 %v1210
        %v1212 = vand.u32 %v373, 4294901760
        %1213 = vmatpush.msra.mxu0 %v1212
        %v1214 = vand.u32 %v371, 4294901760
        %1215 = vmatpush.msra.mxu0 %v1214
        %v1216 = vand.u32 %v369, 4294901760
        %1217 = vmatpush.msra.mxu0 %v1216
        %v1218 = vand.u32 %v367, 4294901760
        %1219 = vmatpush.msra.mxu0 %v1218
        %v1220 = vand.u32 %v365, 4294901760
        %1221 = vmatpush.msra.mxu0 %v1220
        %v1222 = vand.u32 %v269, 4294901760
        %v1223 = vsub.f32 %v269, %v1222
        %v1224 = vand.u32 %v1223, 4294901760
        %1225 = vmatmul.f32.gmra.mxu0 %v1224
        %v1226 = vpop.f32.mrf.mxu0
        %v1227 = vadd.f32 %v1033, %v1226
        %v1228 = vand.u32 %v272, 4294901760
        %v1229 = vsub.f32 %v272, %v1228
        %v1230 = vand.u32 %v1229, 4294901760
        %1231 = vmatmul.f32.gmra.mxu0 %v1230
        %v1232 = vpop.f32.mrf.mxu0
        %v1233 = vadd.f32 %v1038, %v1232
        %v1234 = vand.u32 %v275, 4294901760
        %v1235 = vsub.f32 %v275, %v1234
        %v1236 = vand.u32 %v1235, 4294901760
        %1237 = vmatmul.f32.gmra.mxu0 %v1236
        %v1238 = vpop.f32.mrf.mxu0
        %v1239 = vadd.f32 %v1043, %v1238
        %v1240 = vand.u32 %v278, 4294901760
        %v1241 = vsub.f32 %v278, %v1240
        %v1242 = vand.u32 %v1241, 4294901760
        %1243 = vmatmul.f32.gmra.mxu0 %v1242
        %v1244 = vpop.f32.mrf.mxu0
        %v1245 = vadd.f32 %v1048, %v1244
        %v1246 = vand.u32 %v281, 4294901760
        %v1247 = vsub.f32 %v281, %v1246
        %v1248 = vand.u32 %v1247, 4294901760
        %1249 = vmatmul.f32.gmra.mxu0 %v1248
        %v1250 = vpop.f32.mrf.mxu0
        %v1251 = vadd.f32 %v1053, %v1250
        %v1252 = vand.u32 %v284, 4294901760
        %v1253 = vsub.f32 %v284, %v1252
        %v1254 = vand.u32 %v1253, 4294901760
        %1255 = vmatmul.f32.gmra.mxu0 %v1254
        %v1256 = vpop.f32.mrf.mxu0
        %v1257 = vadd.f32 %v1058, %v1256
        %v1258 = vand.u32 %v287, 4294901760
        %v1259 = vsub.f32 %v287, %v1258
        %v1260 = vand.u32 %v1259, 4294901760
        %1261 = vmatmul.f32.gmra.mxu0 %v1260
        %v1262 = vpop.f32.mrf.mxu0
        %v1263 = vadd.f32 %v1063, %v1262
        %v1264 = vand.u32 %v290, 4294901760
        %v1265 = vsub.f32 %v290, %v1264
        %v1266 = vand.u32 %v1265, 4294901760
        %1267 = vmatmul.f32.gmra.mxu0 %v1266
        %v1268 = vpop.f32.mrf.mxu0
        %v1269 = vadd.f32 %v1068, %v1268
        %v1270 = vand.u32 %v293, 4294901760
        %v1271 = vsub.f32 %v293, %v1270
        %v1272 = vand.u32 %v1271, 4294901760
        %1273 = vmatmul.f32.gmra.mxu0 %v1272
        %v1274 = vpop.f32.mrf.mxu0
        %v1275 = vadd.f32 %v1073, %v1274
        %v1276 = vand.u32 %v296, 4294901760
        %v1277 = vsub.f32 %v296, %v1276
        %v1278 = vand.u32 %v1277, 4294901760
        %1279 = vmatmul.f32.gmra.mxu0 %v1278
        %v1280 = vpop.f32.mrf.mxu0
        %v1281 = vadd.f32 %v1078, %v1280
        %v1282 = vand.u32 %v299, 4294901760
        %v1283 = vsub.f32 %v299, %v1282
        %v1284 = vand.u32 %v1283, 4294901760
        %1285 = vmatmul.f32.gmra.mxu0 %v1284
        %v1286 = vpop.f32.mrf.mxu0
        %v1287 = vadd.f32 %v1083, %v1286
        %v1288 = vand.u32 %v302, 4294901760
        %v1289 = vsub.f32 %v302, %v1288
        %v1290 = vand.u32 %v1289, 4294901760
        %1291 = vmatmul.f32.gmra.mxu0 %v1290
        %v1292 = vpop.f32.mrf.mxu0
        %v1293 = vadd.f32 %v1088, %v1292
        %v1294 = vand.u32 %v305, 4294901760
        %v1295 = vsub.f32 %v305, %v1294
        %v1296 = vand.u32 %v1295, 4294901760
        %1297 = vmatmul.f32.gmra.mxu0 %v1296
        %v1298 = vpop.f32.mrf.mxu0
        %v1299 = vadd.f32 %v1093, %v1298
        %v1300 = vand.u32 %v308, 4294901760
        %v1301 = vsub.f32 %v308, %v1300
        %v1302 = vand.u32 %v1301, 4294901760
        %1303 = vmatmul.f32.gmra.mxu0 %v1302
        %v1304 = vpop.f32.mrf.mxu0
        %v1305 = vadd.f32 %v1098, %v1304
        %v1306 = vand.u32 %v311, 4294901760
        %v1307 = vsub.f32 %v311, %v1306
        %v1308 = vand.u32 %v1307, 4294901760
        %1309 = vmatmul.f32.gmra.mxu0 %v1308
        %v1310 = vpop.f32.mrf.mxu0
        %v1311 = vadd.f32 %v1103, %v1310
        %v1312 = vand.u32 %v314, 4294901760
        %v1313 = vsub.f32 %v314, %v1312
        %v1314 = vand.u32 %v1313, 4294901760
        %1315 = vmatmul.f32.gmra.mxu0 %v1314
        %v1316 = vpop.f32.mrf.mxu0
        %v1317 = vadd.f32 %v1108, %v1316
        %v1318 = vand.u32 %v317, 4294901760
        %v1319 = vsub.f32 %v317, %v1318
        %v1320 = vand.u32 %v1319, 4294901760
        %1321 = vmatmul.f32.gmra.mxu0 %v1320
        %v1322 = vpop.f32.mrf.mxu0
        %v1323 = vadd.f32 %v1113, %v1322
        %v1324 = vand.u32 %v320, 4294901760
        %v1325 = vsub.f32 %v320, %v1324
        %v1326 = vand.u32 %v1325, 4294901760
        %1327 = vmatmul.f32.gmra.mxu0 %v1326
        %v1328 = vpop.f32.mrf.mxu0
        %v1329 = vadd.f32 %v1118, %v1328
        %v1330 = vand.u32 %v323, 4294901760
        %v1331 = vsub.f32 %v323, %v1330
        %v1332 = vand.u32 %v1331, 4294901760
        %1333 = vmatmul.f32.gmra.mxu0 %v1332
        %v1334 = vpop.f32.mrf.mxu0
        %v1335 = vadd.f32 %v1123, %v1334
        %v1336 = vand.u32 %v326, 4294901760
        %v1337 = vsub.f32 %v326, %v1336
        %v1338 = vand.u32 %v1337, 4294901760
        %1339 = vmatmul.f32.gmra.mxu0 %v1338
        %v1340 = vpop.f32.mrf.mxu0
        %v1341 = vadd.f32 %v1128, %v1340
        %v1342 = vand.u32 %v329, 4294901760
        %v1343 = vsub.f32 %v329, %v1342
        %v1344 = vand.u32 %v1343, 4294901760
        %1345 = vmatmul.f32.gmra.mxu0 %v1344
        %v1346 = vpop.f32.mrf.mxu0
        %v1347 = vadd.f32 %v1133, %v1346
        %v1348 = vand.u32 %v332, 4294901760
        %v1349 = vsub.f32 %v332, %v1348
        %v1350 = vand.u32 %v1349, 4294901760
        %1351 = vmatmul.f32.gmra.mxu0 %v1350
        %v1352 = vpop.f32.mrf.mxu0
        %v1353 = vadd.f32 %v1138, %v1352
        %v1354 = vand.u32 %v335, 4294901760
        %v1355 = vsub.f32 %v335, %v1354
        %v1356 = vand.u32 %v1355, 4294901760
        %1357 = vmatmul.f32.gmra.mxu0 %v1356
        %v1358 = vpop.f32.mrf.mxu0
        %v1359 = vadd.f32 %v1143, %v1358
        %v1360 = vand.u32 %v338, 4294901760
        %v1361 = vsub.f32 %v338, %v1360
        %v1362 = vand.u32 %v1361, 4294901760
        %1363 = vmatmul.f32.gmra.mxu0 %v1362
        %v1364 = vpop.f32.mrf.mxu0
        %v1365 = vadd.f32 %v1148, %v1364
        %v1366 = vand.u32 %v341, 4294901760
        %v1367 = vsub.f32 %v341, %v1366
        %v1368 = vand.u32 %v1367, 4294901760
        %1369 = vmatmul.f32.gmra.mxu0 %v1368
        %v1370 = vpop.f32.mrf.mxu0
        %v1371 = vadd.f32 %v1153, %v1370
        %v1372 = vand.u32 %v344, 4294901760
        %v1373 = vsub.f32 %v344, %v1372
        %v1374 = vand.u32 %v1373, 4294901760
        %1375 = vmatmul.f32.gmra.mxu0 %v1374
        %v1376 = vpop.f32.mrf.mxu0
        %v1377 = vadd.f32 %v1158, %v1376
        %v1378 = vand.u32 %v347, 4294901760
        %v1379 = vsub.f32 %v347, %v1378
        %v1380 = vand.u32 %v1379, 4294901760
        %1381 = vmatmul.f32.gmra.mxu0 %v1380
        %v1382 = vpop.f32.mrf.mxu0
        %v1383 = vadd.f32 %v1163, %v1382
        %v1384 = vand.u32 %v350, 4294901760
        %v1385 = vsub.f32 %v350, %v1384
        %v1386 = vand.u32 %v1385, 4294901760
        %1387 = vmatmul.f32.gmra.mxu0 %v1386
        %v1388 = vpop.f32.mrf.mxu0
        %v1389 = vadd.f32 %v1168, %v1388
        %v1390 = vand.u32 %v353, 4294901760
        %v1391 = vsub.f32 %v353, %v1390
        %v1392 = vand.u32 %v1391, 4294901760
        %1393 = vmatmul.f32.gmra.mxu0 %v1392
        %v1394 = vpop.f32.mrf.mxu0
        %v1395 = vadd.f32 %v1173, %v1394
        %v1396 = vand.u32 %v356, 4294901760
        %v1397 = vsub.f32 %v356, %v1396
        %v1398 = vand.u32 %v1397, 4294901760
        %1399 = vmatmul.f32.gmra.mxu0 %v1398
        %v1400 = vpop.f32.mrf.mxu0
        %v1401 = vadd.f32 %v1178, %v1400
        %v1402 = vand.u32 %v359, 4294901760
        %v1403 = vsub.f32 %v359, %v1402
        %v1404 = vand.u32 %v1403, 4294901760
        %1405 = vmatmul.f32.gmra.mxu0 %v1404
        %v1406 = vpop.f32.mrf.mxu0
        %v1407 = vadd.f32 %v1183, %v1406
        %v1408 = vand.u32 %v362, 4294901760
        %v1409 = vsub.f32 %v362, %v1408
        %v1410 = vand.u32 %v1409, 4294901760
        %1411 = vmatmul.f32.gmra.mxu0 %v1410
        %v1412 = vpop.f32.mrf.mxu0
        %v1413 = vadd.f32 %v1188, %v1412
        %1414 = vdwg.mxu0
        %v1415 = vand.u32 %v395, 4294901760
        %v1416 = vsub.f32 %v395, %v1415
        %v1417 = vand.u32 %v1416, 4294901760
        %1418 = vmatpush.msra.mxu0 %v1417
        %v1419 = vand.u32 %v393, 4294901760
        %v1420 = vsub.f32 %v393, %v1419
        %v1421 = vand.u32 %v1420, 4294901760
        %1422 = vmatpush.msra.mxu0 %v1421
        %v1423 = vand.u32 %v391, 4294901760
        %v1424 = vsub.f32 %v391, %v1423
        %v1425 = vand.u32 %v1424, 4294901760
        %1426 = vmatpush.msra.mxu0 %v1425
        %v1427 = vand.u32 %v389, 4294901760
        %v1428 = vsub.f32 %v389, %v1427
        %v1429 = vand.u32 %v1428, 4294901760
        %1430 = vmatpush.msra.mxu0 %v1429
        %v1431 = vand.u32 %v387, 4294901760
        %v1432 = vsub.f32 %v387, %v1431
        %v1433 = vand.u32 %v1432, 4294901760
        %1434 = vmatpush.msra.mxu0 %v1433
        %v1435 = vand.u32 %v385, 4294901760
        %v1436 = vsub.f32 %v385, %v1435
        %v1437 = vand.u32 %v1436, 4294901760
        %1438 = vmatpush.msra.mxu0 %v1437
        %v1439 = vand.u32 %v383, 4294901760
        %v1440 = vsub.f32 %v383, %v1439
        %v1441 = vand.u32 %v1440, 4294901760
        %1442 = vmatpush.msra.mxu0 %v1441
        %v1443 = vand.u32 %v381, 4294901760
        %v1444 = vsub.f32 %v381, %v1443
        %v1445 = vand.u32 %v1444, 4294901760
        %1446 = vmatpush.msra.mxu0 %v1445
        %v1447 = vand.u32 %v379, 4294901760
        %v1448 = vsub.f32 %v379, %v1447
        %v1449 = vand.u32 %v1448, 4294901760
        %1450 = vmatpush.msra.mxu0 %v1449
        %v1451 = vand.u32 %v377, 4294901760
        %v1452 = vsub.f32 %v377, %v1451
        %v1453 = vand.u32 %v1452, 4294901760
        %1454 = vmatpush.msra.mxu0 %v1453
        %v1455 = vand.u32 %v375, 4294901760
        %v1456 = vsub.f32 %v375, %v1455
        %v1457 = vand.u32 %v1456, 4294901760
        %1458 = vmatpush.msra.mxu0 %v1457
        %v1459 = vand.u32 %v373, 4294901760
        %v1460 = vsub.f32 %v373, %v1459
        %v1461 = vand.u32 %v1460, 4294901760
        %1462 = vmatpush.msra.mxu0 %v1461
        %v1463 = vand.u32 %v371, 4294901760
        %v1464 = vsub.f32 %v371, %v1463
        %v1465 = vand.u32 %v1464, 4294901760
        %1466 = vmatpush.msra.mxu0 %v1465
        %v1467 = vand.u32 %v369, 4294901760
        %v1468 = vsub.f32 %v369, %v1467
        %v1469 = vand.u32 %v1468, 4294901760
        %1470 = vmatpush.msra.mxu0 %v1469
        %v1471 = vand.u32 %v367, 4294901760
        %v1472 = vsub.f32 %v367, %v1471
        %v1473 = vand.u32 %v1472, 4294901760
        %1474 = vmatpush.msra.mxu0 %v1473
        %v1475 = vand.u32 %v365, 4294901760
        %v1476 = vsub.f32 %v365, %v1475
        %v1477 = vand.u32 %v1476, 4294901760
        %1478 = vmatpush.msra.mxu0 %v1477
        %v1479 = vand.u32 %v269, 4294901760
        %1480 = vmatmul.f32.gmra.mxu0 %v1479
        %v1481 = vpop.f32.mrf.mxu0
        %v1482 = vadd.f32 %v1227, %v1481
        %v1483 = vand.u32 %v272, 4294901760
        %1484 = vmatmul.f32.gmra.mxu0 %v1483
        %v1485 = vpop.f32.mrf.mxu0
        %v1486 = vadd.f32 %v1233, %v1485
        %v1487 = vand.u32 %v275, 4294901760
        %1488 = vmatmul.f32.gmra.mxu0 %v1487
        %v1489 = vpop.f32.mrf.mxu0
        %v1490 = vadd.f32 %v1239, %v1489
        %v1491 = vand.u32 %v278, 4294901760
        %1492 = vmatmul.f32.gmra.mxu0 %v1491
        %v1493 = vpop.f32.mrf.mxu0
        %v1494 = vadd.f32 %v1245, %v1493
        %v1495 = vand.u32 %v281, 4294901760
        %1496 = vmatmul.f32.gmra.mxu0 %v1495
        %v1497 = vpop.f32.mrf.mxu0
        %v1498 = vadd.f32 %v1251, %v1497
        %v1499 = vand.u32 %v284, 4294901760
        %1500 = vmatmul.f32.gmra.mxu0 %v1499
        %v1501 = vpop.f32.mrf.mxu0
        %v1502 = vadd.f32 %v1257, %v1501
        %v1503 = vand.u32 %v287, 4294901760
        %1504 = vmatmul.f32.gmra.mxu0 %v1503
        %v1505 = vpop.f32.mrf.mxu0
        %v1506 = vadd.f32 %v1263, %v1505
        %v1507 = vand.u32 %v290, 4294901760
        %1508 = vmatmul.f32.gmra.mxu0 %v1507
        %v1509 = vpop.f32.mrf.mxu0
        %v1510 = vadd.f32 %v1269, %v1509
        %v1511 = vand.u32 %v293, 4294901760
        %1512 = vmatmul.f32.gmra.mxu0 %v1511
        %v1513 = vpop.f32.mrf.mxu0
        %v1514 = vadd.f32 %v1275, %v1513
        %v1515 = vand.u32 %v296, 4294901760
        %1516 = vmatmul.f32.gmra.mxu0 %v1515
        %v1517 = vpop.f32.mrf.mxu0
        %v1518 = vadd.f32 %v1281, %v1517
        %v1519 = vand.u32 %v299, 4294901760
        %1520 = vmatmul.f32.gmra.mxu0 %v1519
        %v1521 = vpop.f32.mrf.mxu0
        %v1522 = vadd.f32 %v1287, %v1521
        %v1523 = vand.u32 %v302, 4294901760
        %1524 = vmatmul.f32.gmra.mxu0 %v1523
        %v1525 = vpop.f32.mrf.mxu0
        %v1526 = vadd.f32 %v1293, %v1525
        %v1527 = vand.u32 %v305, 4294901760
        %1528 = vmatmul.f32.gmra.mxu0 %v1527
        %v1529 = vpop.f32.mrf.mxu0
        %v1530 = vadd.f32 %v1299, %v1529
        %v1531 = vand.u32 %v308, 4294901760
        %1532 = vmatmul.f32.gmra.mxu0 %v1531
        %v1533 = vpop.f32.mrf.mxu0
        %v1534 = vadd.f32 %v1305, %v1533
        %v1535 = vand.u32 %v311, 4294901760
        %1536 = vmatmul.f32.gmra.mxu0 %v1535
        %v1537 = vpop.f32.mrf.mxu0
        %v1538 = vadd.f32 %v1311, %v1537
        %v1539 = vand.u32 %v314, 4294901760
        %1540 = vmatmul.f32.gmra.mxu0 %v1539
        %v1541 = vpop.f32.mrf.mxu0
        %v1542 = vadd.f32 %v1317, %v1541
        %v1543 = vand.u32 %v317, 4294901760
        %1544 = vmatmul.f32.gmra.mxu0 %v1543
        %v1545 = vpop.f32.mrf.mxu0
        %v1546 = vadd.f32 %v1323, %v1545
        %v1547 = vand.u32 %v320, 4294901760
        %1548 = vmatmul.f32.gmra.mxu0 %v1547
        %v1549 = vpop.f32.mrf.mxu0
        %v1550 = vadd.f32 %v1329, %v1549
        %v1551 = vand.u32 %v323, 4294901760
        %1552 = vmatmul.f32.gmra.mxu0 %v1551
        %v1553 = vpop.f32.mrf.mxu0
        %v1554 = vadd.f32 %v1335, %v1553
        %v1555 = vand.u32 %v326, 4294901760
        %1556 = vmatmul.f32.gmra.mxu0 %v1555
        %v1557 = vpop.f32.mrf.mxu0
        %v1558 = vadd.f32 %v1341, %v1557
        %v1559 = vand.u32 %v329, 4294901760
        %1560 = vmatmul.f32.gmra.mxu0 %v1559
        %v1561 = vpop.f32.mrf.mxu0
        %v1562 = vadd.f32 %v1347, %v1561
        %v1563 = vand.u32 %v332, 4294901760
        %1564 = vmatmul.f32.gmra.mxu0 %v1563
        %v1565 = vpop.f32.mrf.mxu0
        %v1566 = vadd.f32 %v1353, %v1565
        %v1567 = vand.u32 %v335, 4294901760
        %1568 = vmatmul.f32.gmra.mxu0 %v1567
        %v1569 = vpop.f32.mrf.mxu0
        %v1570 = vadd.f32 %v1359, %v1569
        %v1571 = vand.u32 %v338, 4294901760
        %1572 = vmatmul.f32.gmra.mxu0 %v1571
        %v1573 = vpop.f32.mrf.mxu0
        %v1574 = vadd.f32 %v1365, %v1573
        %v1575 = vand.u32 %v341, 4294901760
        %1576 = vmatmul.f32.gmra.mxu0 %v1575
        %v1577 = vpop.f32.mrf.mxu0
        %v1578 = vadd.f32 %v1371, %v1577
        %v1579 = vand.u32 %v344, 4294901760
        %1580 = vmatmul.f32.gmra.mxu0 %v1579
        %v1581 = vpop.f32.mrf.mxu0
        %v1582 = vadd.f32 %v1377, %v1581
        %v1583 = vand.u32 %v347, 4294901760
        %1584 = vmatmul.f32.gmra.mxu0 %v1583
        %v1585 = vpop.f32.mrf.mxu0
        %v1586 = vadd.f32 %v1383, %v1585
        %v1587 = vand.u32 %v350, 4294901760
        %1588 = vmatmul.f32.gmra.mxu0 %v1587
        %v1589 = vpop.f32.mrf.mxu0
        %v1590 = vadd.f32 %v1389, %v1589
        %v1591 = vand.u32 %v353, 4294901760
        %1592 = vmatmul.f32.gmra.mxu0 %v1591
        %v1593 = vpop.f32.mrf.mxu0
        %v1594 = vadd.f32 %v1395, %v1593
        %v1595 = vand.u32 %v356, 4294901760
        %1596 = vmatmul.f32.gmra.mxu0 %v1595
        %v1597 = vpop.f32.mrf.mxu0
        %v1598 = vadd.f32 %v1401, %v1597
        %v1599 = vand.u32 %v359, 4294901760
        %1600 = vmatmul.f32.gmra.mxu0 %v1599
        %v1601 = vpop.f32.mrf.mxu0
        %v1602 = vadd.f32 %v1407, %v1601
        %v1603 = vand.u32 %v362, 4294901760
        %1604 = vmatmul.f32.gmra.mxu0 %v1603
        %v1605 = vpop.f32.mrf.mxu0
        %v1606 = vadd.f32 %v1413, %v1605
        %1607 = vdwg.mxu0
        %v1608 = vand.u32 %v395, 4294901760
        %1609 = vmatpush.msra.mxu0 %v1608
        %v1610 = vand.u32 %v393, 4294901760
        %1611 = vmatpush.msra.mxu0 %v1610
        %v1612 = vand.u32 %v391, 4294901760
        %1613 = vmatpush.msra.mxu0 %v1612
        %v1614 = vand.u32 %v389, 4294901760
        %1615 = vmatpush.msra.mxu0 %v1614
        %v1616 = vand.u32 %v387, 4294901760
        %1617 = vmatpush.msra.mxu0 %v1616
        %v1618 = vand.u32 %v385, 4294901760
        %1619 = vmatpush.msra.mxu0 %v1618
        %v1620 = vand.u32 %v383, 4294901760
        %1621 = vmatpush.msra.mxu0 %v1620
        %v1622 = vand.u32 %v381, 4294901760
        %1623 = vmatpush.msra.mxu0 %v1622
        %v1624 = vand.u32 %v379, 4294901760
        %1625 = vmatpush.msra.mxu0 %v1624
        %v1626 = vand.u32 %v377, 4294901760
        %1627 = vmatpush.msra.mxu0 %v1626
        %v1628 = vand.u32 %v375, 4294901760
        %1629 = vmatpush.msra.mxu0 %v1628
        %v1630 = vand.u32 %v373, 4294901760
        %1631 = vmatpush.msra.mxu0 %v1630
        %v1632 = vand.u32 %v371, 4294901760
        %1633 = vmatpush.msra.mxu0 %v1632
        %v1634 = vand.u32 %v369, 4294901760
        %1635 = vmatpush.msra.mxu0 %v1634
        %v1636 = vand.u32 %v367, 4294901760
        %1637 = vmatpush.msra.mxu0 %v1636
        %v1638 = vand.u32 %v365, 4294901760
        %1639 = vmatpush.msra.mxu0 %v1638
        %v1640 = vand.u32 %v269, 4294901760
        %1641 = vmatmul.f32.gmra.mxu0 %v1640
        %v1642 = vpop.f32.mrf.mxu0
        %v1643 = vadd.f32 %v1482, %v1642
        %v1644 = vand.u32 %v272, 4294901760
        %1645 = vmatmul.f32.gmra.mxu0 %v1644
        %v1646 = vpop.f32.mrf.mxu0
        %v1647 = vadd.f32 %v1486, %v1646
        %v1648 = vand.u32 %v275, 4294901760
        %1649 = vmatmul.f32.gmra.mxu0 %v1648
        %v1650 = vpop.f32.mrf.mxu0
        %v1651 = vadd.f32 %v1490, %v1650
        %v1652 = vand.u32 %v278, 4294901760
        %1653 = vmatmul.f32.gmra.mxu0 %v1652
        %v1654 = vpop.f32.mrf.mxu0
        %v1655 = vadd.f32 %v1494, %v1654
        %v1656 = vand.u32 %v281, 4294901760
        %1657 = vmatmul.f32.gmra.mxu0 %v1656
        %v1658 = vpop.f32.mrf.mxu0
        %v1659 = vadd.f32 %v1498, %v1658
        %v1660 = vand.u32 %v284, 4294901760
        %1661 = vmatmul.f32.gmra.mxu0 %v1660
        %v1662 = vpop.f32.mrf.mxu0
        %v1663 = vadd.f32 %v1502, %v1662
        %v1664 = vand.u32 %v287, 4294901760
        %1665 = vmatmul.f32.gmra.mxu0 %v1664
        %v1666 = vpop.f32.mrf.mxu0
        %v1667 = vadd.f32 %v1506, %v1666
        %v1668 = vand.u32 %v290, 4294901760
        %1669 = vmatmul.f32.gmra.mxu0 %v1668
        %v1670 = vpop.f32.mrf.mxu0
        %v1671 = vadd.f32 %v1510, %v1670
        %v1672 = vand.u32 %v293, 4294901760
        %1673 = vmatmul.f32.gmra.mxu0 %v1672
        %v1674 = vpop.f32.mrf.mxu0
        %v1675 = vadd.f32 %v1514, %v1674
        %v1676 = vand.u32 %v296, 4294901760
        %1677 = vmatmul.f32.gmra.mxu0 %v1676
        %v1678 = vpop.f32.mrf.mxu0
        %v1679 = vadd.f32 %v1518, %v1678
        %v1680 = vand.u32 %v299, 4294901760
        %1681 = vmatmul.f32.gmra.mxu0 %v1680
        %v1682 = vpop.f32.mrf.mxu0
        %v1683 = vadd.f32 %v1522, %v1682
        %v1684 = vand.u32 %v302, 4294901760
        %1685 = vmatmul.f32.gmra.mxu0 %v1684
        %v1686 = vpop.f32.mrf.mxu0
        %v1687 = vadd.f32 %v1526, %v1686
        %v1688 = vand.u32 %v305, 4294901760
        %1689 = vmatmul.f32.gmra.mxu0 %v1688
        %v1690 = vpop.f32.mrf.mxu0
        %v1691 = vadd.f32 %v1530, %v1690
        %v1692 = vand.u32 %v308, 4294901760
        %1693 = vmatmul.f32.gmra.mxu0 %v1692
        %v1694 = vpop.f32.mrf.mxu0
        %v1695 = vadd.f32 %v1534, %v1694
        %v1696 = vand.u32 %v311, 4294901760
        %1697 = vmatmul.f32.gmra.mxu0 %v1696
        %v1698 = vpop.f32.mrf.mxu0
        %v1699 = vadd.f32 %v1538, %v1698
        %v1700 = vand.u32 %v314, 4294901760
        %1701 = vmatmul.f32.gmra.mxu0 %v1700
        %v1702 = vpop.f32.mrf.mxu0
        %v1703 = vadd.f32 %v1542, %v1702
        %v1704 = vand.u32 %v317, 4294901760
        %1705 = vmatmul.f32.gmra.mxu0 %v1704
        %v1706 = vpop.f32.mrf.mxu0
        %v1707 = vadd.f32 %v1546, %v1706
        %v1708 = vand.u32 %v320, 4294901760
        %1709 = vmatmul.f32.gmra.mxu0 %v1708
        %v1710 = vpop.f32.mrf.mxu0
        %v1711 = vadd.f32 %v1550, %v1710
        %v1712 = vand.u32 %v323, 4294901760
        %1713 = vmatmul.f32.gmra.mxu0 %v1712
        %v1714 = vpop.f32.mrf.mxu0
        %v1715 = vadd.f32 %v1554, %v1714
        %v1716 = vand.u32 %v326, 4294901760
        %1717 = vmatmul.f32.gmra.mxu0 %v1716
        %v1718 = vpop.f32.mrf.mxu0
        %v1719 = vadd.f32 %v1558, %v1718
        %v1720 = vand.u32 %v329, 4294901760
        %1721 = vmatmul.f32.gmra.mxu0 %v1720
        %v1722 = vpop.f32.mrf.mxu0
        %v1723 = vadd.f32 %v1562, %v1722
        %v1724 = vand.u32 %v332, 4294901760
        %1725 = vmatmul.f32.gmra.mxu0 %v1724
        %v1726 = vpop.f32.mrf.mxu0
        %v1727 = vadd.f32 %v1566, %v1726
        %v1728 = vand.u32 %v335, 4294901760
        %1729 = vmatmul.f32.gmra.mxu0 %v1728
        %v1730 = vpop.f32.mrf.mxu0
        %v1731 = vadd.f32 %v1570, %v1730
        %v1732 = vand.u32 %v338, 4294901760
        %1733 = vmatmul.f32.gmra.mxu0 %v1732
        %v1734 = vpop.f32.mrf.mxu0
        %v1735 = vadd.f32 %v1574, %v1734
        %v1736 = vand.u32 %v341, 4294901760
        %1737 = vmatmul.f32.gmra.mxu0 %v1736
        %v1738 = vpop.f32.mrf.mxu0
        %v1739 = vadd.f32 %v1578, %v1738
        %v1740 = vand.u32 %v344, 4294901760
        %1741 = vmatmul.f32.gmra.mxu0 %v1740
        %v1742 = vpop.f32.mrf.mxu0
        %v1743 = vadd.f32 %v1582, %v1742
        %v1744 = vand.u32 %v347, 4294901760
        %1745 = vmatmul.f32.gmra.mxu0 %v1744
        %v1746 = vpop.f32.mrf.mxu0
        %v1747 = vadd.f32 %v1586, %v1746
        %v1748 = vand.u32 %v350, 4294901760
        %1749 = vmatmul.f32.gmra.mxu0 %v1748
        %v1750 = vpop.f32.mrf.mxu0
        %v1751 = vadd.f32 %v1590, %v1750
        %v1752 = vand.u32 %v353, 4294901760
        %1753 = vmatmul.f32.gmra.mxu0 %v1752
        %v1754 = vpop.f32.mrf.mxu0
        %v1755 = vadd.f32 %v1594, %v1754
        %v1756 = vand.u32 %v356, 4294901760
        %1757 = vmatmul.f32.gmra.mxu0 %v1756
        %v1758 = vpop.f32.mrf.mxu0
        %v1759 = vadd.f32 %v1598, %v1758
        %v1760 = vand.u32 %v359, 4294901760
        %1761 = vmatmul.f32.gmra.mxu0 %v1760
        %v1762 = vpop.f32.mrf.mxu0
        %v1763 = vadd.f32 %v1602, %v1762
        %v1764 = vand.u32 %v362, 4294901760
        %1765 = vmatmul.f32.gmra.mxu0 %v1764
        %v1766 = vpop.f32.mrf.mxu0
        %v1767 = vadd.f32 %v1606, %v1766
        %1768 = vdwg.mxu0
        %v1769 = vand.u32 %v427, 4294901760
        %1770 = vmatpush.msra.mxu0 %v1769
        %v1771 = vand.u32 %v425, 4294901760
        %1772 = vmatpush.msra.mxu0 %v1771
        %v1773 = vand.u32 %v423, 4294901760
        %1774 = vmatpush.msra.mxu0 %v1773
        %v1775 = vand.u32 %v421, 4294901760
        %1776 = vmatpush.msra.mxu0 %v1775
        %v1777 = vand.u32 %v419, 4294901760
        %1778 = vmatpush.msra.mxu0 %v1777
        %v1779 = vand.u32 %v417, 4294901760
        %1780 = vmatpush.msra.mxu0 %v1779
        %v1781 = vand.u32 %v415, 4294901760
        %1782 = vmatpush.msra.mxu0 %v1781
        %v1783 = vand.u32 %v413, 4294901760
        %1784 = vmatpush.msra.mxu0 %v1783
        %v1785 = vand.u32 %v411, 4294901760
        %1786 = vmatpush.msra.mxu0 %v1785
        %v1787 = vand.u32 %v409, 4294901760
        %1788 = vmatpush.msra.mxu0 %v1787
        %v1789 = vand.u32 %v407, 4294901760
        %1790 = vmatpush.msra.mxu0 %v1789
        %v1791 = vand.u32 %v405, 4294901760
        %1792 = vmatpush.msra.mxu0 %v1791
        %v1793 = vand.u32 %v403, 4294901760
        %1794 = vmatpush.msra.mxu0 %v1793
        %v1795 = vand.u32 %v401, 4294901760
        %1796 = vmatpush.msra.mxu0 %v1795
        %v1797 = vand.u32 %v399, 4294901760
        %1798 = vmatpush.msra.mxu0 %v1797
        %v1799 = vand.u32 %v397, 4294901760
        %1800 = vmatpush.msra.mxu0 %v1799
        %v1801 = vand.u32 %v270, 4294901760
        %v1802 = vsub.f32 %v270, %v1801
        %v1803 = vand.u32 %v1802, 4294901760
        %v1804 = vsub.f32 %v1802, %v1803
        %v1805 = vand.u32 %v1804, 4294901760
        %1806 = vmatmul.f32.gmra.mxu0 %v1805
        %v1807 = vpop.f32.mrf.mxu0
        %v1808 = vadd.f32 %v1643, %v1807
        %v1809 = vand.u32 %v273, 4294901760
        %v1810 = vsub.f32 %v273, %v1809
        %v1811 = vand.u32 %v1810, 4294901760
        %v1812 = vsub.f32 %v1810, %v1811
        %v1813 = vand.u32 %v1812, 4294901760
        %1814 = vmatmul.f32.gmra.mxu0 %v1813
        %v1815 = vpop.f32.mrf.mxu0
        %v1816 = vadd.f32 %v1647, %v1815
        %v1817 = vand.u32 %v276, 4294901760
        %v1818 = vsub.f32 %v276, %v1817
        %v1819 = vand.u32 %v1818, 4294901760
        %v1820 = vsub.f32 %v1818, %v1819
        %v1821 = vand.u32 %v1820, 4294901760
        %1822 = vmatmul.f32.gmra.mxu0 %v1821
        %v1823 = vpop.f32.mrf.mxu0
        %v1824 = vadd.f32 %v1651, %v1823
        %v1825 = vand.u32 %v279, 4294901760
        %v1826 = vsub.f32 %v279, %v1825
        %v1827 = vand.u32 %v1826, 4294901760
        %v1828 = vsub.f32 %v1826, %v1827
        %v1829 = vand.u32 %v1828, 4294901760
        %1830 = vmatmul.f32.gmra.mxu0 %v1829
        %v1831 = vpop.f32.mrf.mxu0
        %v1832 = vadd.f32 %v1655, %v1831
        %v1833 = vand.u32 %v282, 4294901760
        %v1834 = vsub.f32 %v282, %v1833
        %v1835 = vand.u32 %v1834, 4294901760
        %v1836 = vsub.f32 %v1834, %v1835
        %v1837 = vand.u32 %v1836, 4294901760
        %1838 = vmatmul.f32.gmra.mxu0 %v1837
        %v1839 = vpop.f32.mrf.mxu0
        %v1840 = vadd.f32 %v1659, %v1839
        %v1841 = vand.u32 %v285, 4294901760
        %v1842 = vsub.f32 %v285, %v1841
        %v1843 = vand.u32 %v1842, 4294901760
        %v1844 = vsub.f32 %v1842, %v1843
        %v1845 = vand.u32 %v1844, 4294901760
        %1846 = vmatmul.f32.gmra.mxu0 %v1845
        %v1847 = vpop.f32.mrf.mxu0
        %v1848 = vadd.f32 %v1663, %v1847
        %v1849 = vand.u32 %v288, 4294901760
        %v1850 = vsub.f32 %v288, %v1849
        %v1851 = vand.u32 %v1850, 4294901760
        %v1852 = vsub.f32 %v1850, %v1851
        %v1853 = vand.u32 %v1852, 4294901760
        %1854 = vmatmul.f32.gmra.mxu0 %v1853
        %v1855 = vpop.f32.mrf.mxu0
        %v1856 = vadd.f32 %v1667, %v1855
        %v1857 = vand.u32 %v291, 4294901760
        %v1858 = vsub.f32 %v291, %v1857
        %v1859 = vand.u32 %v1858, 4294901760
        %v1860 = vsub.f32 %v1858, %v1859
        %v1861 = vand.u32 %v1860, 4294901760
        %1862 = vmatmul.f32.gmra.mxu0 %v1861
        %v1863 = vpop.f32.mrf.mxu0
        %v1864 = vadd.f32 %v1671, %v1863
        %v1865 = vand.u32 %v294, 4294901760
        %v1866 = vsub.f32 %v294, %v1865
        %v1867 = vand.u32 %v1866, 4294901760
        %v1868 = vsub.f32 %v1866, %v1867
        %v1869 = vand.u32 %v1868, 4294901760
        %1870 = vmatmul.f32.gmra.mxu0 %v1869
        %v1871 = vpop.f32.mrf.mxu0
        %v1872 = vadd.f32 %v1675, %v1871
        %v1873 = vand.u32 %v297, 4294901760
        %v1874 = vsub.f32 %v297, %v1873
        %v1875 = vand.u32 %v1874, 4294901760
        %v1876 = vsub.f32 %v1874, %v1875
        %v1877 = vand.u32 %v1876, 4294901760
        %1878 = vmatmul.f32.gmra.mxu0 %v1877
        %v1879 = vpop.f32.mrf.mxu0
        %v1880 = vadd.f32 %v1679, %v1879
        %v1881 = vand.u32 %v300, 4294901760
        %v1882 = vsub.f32 %v300, %v1881
        %v1883 = vand.u32 %v1882, 4294901760
        %v1884 = vsub.f32 %v1882, %v1883
        %v1885 = vand.u32 %v1884, 4294901760
        %1886 = vmatmul.f32.gmra.mxu0 %v1885
        %v1887 = vpop.f32.mrf.mxu0
        %v1888 = vadd.f32 %v1683, %v1887
        %v1889 = vand.u32 %v303, 4294901760
        %v1890 = vsub.f32 %v303, %v1889
        %v1891 = vand.u32 %v1890, 4294901760
        %v1892 = vsub.f32 %v1890, %v1891
        %v1893 = vand.u32 %v1892, 4294901760
        %1894 = vmatmul.f32.gmra.mxu0 %v1893
        %v1895 = vpop.f32.mrf.mxu0
        %v1896 = vadd.f32 %v1687, %v1895
        %v1897 = vand.u32 %v306, 4294901760
        %v1898 = vsub.f32 %v306, %v1897
        %v1899 = vand.u32 %v1898, 4294901760
        %v1900 = vsub.f32 %v1898, %v1899
        %v1901 = vand.u32 %v1900, 4294901760
        %1902 = vmatmul.f32.gmra.mxu0 %v1901
        %v1903 = vpop.f32.mrf.mxu0
        %v1904 = vadd.f32 %v1691, %v1903
        %v1905 = vand.u32 %v309, 4294901760
        %v1906 = vsub.f32 %v309, %v1905
        %v1907 = vand.u32 %v1906, 4294901760
        %v1908 = vsub.f32 %v1906, %v1907
        %v1909 = vand.u32 %v1908, 4294901760
        %1910 = vmatmul.f32.gmra.mxu0 %v1909
        %v1911 = vpop.f32.mrf.mxu0
        %v1912 = vadd.f32 %v1695, %v1911
        %v1913 = vand.u32 %v312, 4294901760
        %v1914 = vsub.f32 %v312, %v1913
        %v1915 = vand.u32 %v1914, 4294901760
        %v1916 = vsub.f32 %v1914, %v1915
        %v1917 = vand.u32 %v1916, 4294901760
        %1918 = vmatmul.f32.gmra.mxu0 %v1917
        %v1919 = vpop.f32.mrf.mxu0
        %v1920 = vadd.f32 %v1699, %v1919
        %v1921 = vand.u32 %v315, 4294901760
        %v1922 = vsub.f32 %v315, %v1921
        %v1923 = vand.u32 %v1922, 4294901760
        %v1924 = vsub.f32 %v1922, %v1923
        %v1925 = vand.u32 %v1924, 4294901760
        %1926 = vmatmul.f32.gmra.mxu0 %v1925
        %v1927 = vpop.f32.mrf.mxu0
        %v1928 = vadd.f32 %v1703, %v1927
        %v1929 = vand.u32 %v318, 4294901760
        %v1930 = vsub.f32 %v318, %v1929
        %v1931 = vand.u32 %v1930, 4294901760
        %v1932 = vsub.f32 %v1930, %v1931
        %v1933 = vand.u32 %v1932, 4294901760
        %1934 = vmatmul.f32.gmra.mxu0 %v1933
        %v1935 = vpop.f32.mrf.mxu0
        %v1936 = vadd.f32 %v1707, %v1935
        %v1937 = vand.u32 %v321, 4294901760
        %v1938 = vsub.f32 %v321, %v1937
        %v1939 = vand.u32 %v1938, 4294901760
        %v1940 = vsub.f32 %v1938, %v1939
        %v1941 = vand.u32 %v1940, 4294901760
        %1942 = vmatmul.f32.gmra.mxu0 %v1941
        %v1943 = vpop.f32.mrf.mxu0
        %v1944 = vadd.f32 %v1711, %v1943
        %v1945 = vand.u32 %v324, 4294901760
        %v1946 = vsub.f32 %v324, %v1945
        %v1947 = vand.u32 %v1946, 4294901760
        %v1948 = vsub.f32 %v1946, %v1947
        %v1949 = vand.u32 %v1948, 4294901760
        %1950 = vmatmul.f32.gmra.mxu0 %v1949
        %v1951 = vpop.f32.mrf.mxu0
        %v1952 = vadd.f32 %v1715, %v1951
        %v1953 = vand.u32 %v327, 4294901760
        %v1954 = vsub.f32 %v327, %v1953
        %v1955 = vand.u32 %v1954, 4294901760
        %v1956 = vsub.f32 %v1954, %v1955
        %v1957 = vand.u32 %v1956, 4294901760
        %1958 = vmatmul.f32.gmra.mxu0 %v1957
        %v1959 = vpop.f32.mrf.mxu0
        %v1960 = vadd.f32 %v1719, %v1959
        %v1961 = vand.u32 %v330, 4294901760
        %v1962 = vsub.f32 %v330, %v1961
        %v1963 = vand.u32 %v1962, 4294901760
        %v1964 = vsub.f32 %v1962, %v1963
        %v1965 = vand.u32 %v1964, 4294901760
        %1966 = vmatmul.f32.gmra.mxu0 %v1965
        %v1967 = vpop.f32.mrf.mxu0
        %v1968 = vadd.f32 %v1723, %v1967
        %v1969 = vand.u32 %v333, 4294901760
        %v1970 = vsub.f32 %v333, %v1969
        %v1971 = vand.u32 %v1970, 4294901760
        %v1972 = vsub.f32 %v1970, %v1971
        %v1973 = vand.u32 %v1972, 4294901760
        %1974 = vmatmul.f32.gmra.mxu0 %v1973
        %v1975 = vpop.f32.mrf.mxu0
        %v1976 = vadd.f32 %v1727, %v1975
        %v1977 = vand.u32 %v336, 4294901760
        %v1978 = vsub.f32 %v336, %v1977
        %v1979 = vand.u32 %v1978, 4294901760
        %v1980 = vsub.f32 %v1978, %v1979
        %v1981 = vand.u32 %v1980, 4294901760
        %1982 = vmatmul.f32.gmra.mxu0 %v1981
        %v1983 = vpop.f32.mrf.mxu0
        %v1984 = vadd.f32 %v1731, %v1983
        %v1985 = vand.u32 %v339, 4294901760
        %v1986 = vsub.f32 %v339, %v1985
        %v1987 = vand.u32 %v1986, 4294901760
        %v1988 = vsub.f32 %v1986, %v1987
        %v1989 = vand.u32 %v1988, 4294901760
        %1990 = vmatmul.f32.gmra.mxu0 %v1989
        %v1991 = vpop.f32.mrf.mxu0
        %v1992 = vadd.f32 %v1735, %v1991
        %v1993 = vand.u32 %v342, 4294901760
        %v1994 = vsub.f32 %v342, %v1993
        %v1995 = vand.u32 %v1994, 4294901760
        %v1996 = vsub.f32 %v1994, %v1995
        %v1997 = vand.u32 %v1996, 4294901760
        %1998 = vmatmul.f32.gmra.mxu0 %v1997
        %v1999 = vpop.f32.mrf.mxu0
        %v2000 = vadd.f32 %v1739, %v1999
        %v2001 = vand.u32 %v345, 4294901760
        %v2002 = vsub.f32 %v345, %v2001
        %v2003 = vand.u32 %v2002, 4294901760
        %v2004 = vsub.f32 %v2002, %v2003
        %v2005 = vand.u32 %v2004, 4294901760
        %2006 = vmatmul.f32.gmra.mxu0 %v2005
        %v2007 = vpop.f32.mrf.mxu0
        %v2008 = vadd.f32 %v1743, %v2007
        %v2009 = vand.u32 %v348, 4294901760
        %v2010 = vsub.f32 %v348, %v2009
        %v2011 = vand.u32 %v2010, 4294901760
        %v2012 = vsub.f32 %v2010, %v2011
        %v2013 = vand.u32 %v2012, 4294901760
        %2014 = vmatmul.f32.gmra.mxu0 %v2013
        %v2015 = vpop.f32.mrf.mxu0
        %v2016 = vadd.f32 %v1747, %v2015
        %v2017 = vand.u32 %v351, 4294901760
        %v2018 = vsub.f32 %v351, %v2017
        %v2019 = vand.u32 %v2018, 4294901760
        %v2020 = vsub.f32 %v2018, %v2019
        %v2021 = vand.u32 %v2020, 4294901760
        %2022 = vmatmul.f32.gmra.mxu0 %v2021
        %v2023 = vpop.f32.mrf.mxu0
        %v2024 = vadd.f32 %v1751, %v2023
        %v2025 = vand.u32 %v354, 4294901760
        %v2026 = vsub.f32 %v354, %v2025
        %v2027 = vand.u32 %v2026, 4294901760
        %v2028 = vsub.f32 %v2026, %v2027
        %v2029 = vand.u32 %v2028, 4294901760
        %2030 = vmatmul.f32.gmra.mxu0 %v2029
        %v2031 = vpop.f32.mrf.mxu0
        %v2032 = vadd.f32 %v1755, %v2031
        %v2033 = vand.u32 %v357, 4294901760
        %v2034 = vsub.f32 %v357, %v2033
        %v2035 = vand.u32 %v2034, 4294901760
        %v2036 = vsub.f32 %v2034, %v2035
        %v2037 = vand.u32 %v2036, 4294901760
        %2038 = vmatmul.f32.gmra.mxu0 %v2037
        %v2039 = vpop.f32.mrf.mxu0
        %v2040 = vadd.f32 %v1759, %v2039
        %v2041 = vand.u32 %v360, 4294901760
        %v2042 = vsub.f32 %v360, %v2041
        %v2043 = vand.u32 %v2042, 4294901760
        %v2044 = vsub.f32 %v2042, %v2043
        %v2045 = vand.u32 %v2044, 4294901760
        %2046 = vmatmul.f32.gmra.mxu0 %v2045
        %v2047 = vpop.f32.mrf.mxu0
        %v2048 = vadd.f32 %v1763, %v2047
        %v2049 = vand.u32 %v363, 4294901760
        %v2050 = vsub.f32 %v363, %v2049
        %v2051 = vand.u32 %v2050, 4294901760
        %v2052 = vsub.f32 %v2050, %v2051
        %v2053 = vand.u32 %v2052, 4294901760
        %2054 = vmatmul.f32.gmra.mxu0 %v2053
        %v2055 = vpop.f32.mrf.mxu0
        %v2056 = vadd.f32 %v1767, %v2055
        %2057 = vdwg.mxu0
        %v2058 = vand.u32 %v427, 4294901760
        %v2059 = vsub.f32 %v427, %v2058
        %v2060 = vand.u32 %v2059, 4294901760
        %v2061 = vsub.f32 %v2059, %v2060
        %v2062 = vand.u32 %v2061, 4294901760
        %2063 = vmatpush.msra.mxu0 %v2062
        %v2064 = vand.u32 %v425, 4294901760
        %v2065 = vsub.f32 %v425, %v2064
        %v2066 = vand.u32 %v2065, 4294901760
        %v2067 = vsub.f32 %v2065, %v2066
        %v2068 = vand.u32 %v2067, 4294901760
        %2069 = vmatpush.msra.mxu0 %v2068
        %v2070 = vand.u32 %v423, 4294901760
        %v2071 = vsub.f32 %v423, %v2070
        %v2072 = vand.u32 %v2071, 4294901760
        %v2073 = vsub.f32 %v2071, %v2072
        %v2074 = vand.u32 %v2073, 4294901760
        %2075 = vmatpush.msra.mxu0 %v2074
        %v2076 = vand.u32 %v421, 4294901760
        %v2077 = vsub.f32 %v421, %v2076
        %v2078 = vand.u32 %v2077, 4294901760
        %v2079 = vsub.f32 %v2077, %v2078
        %v2080 = vand.u32 %v2079, 4294901760
        %2081 = vmatpush.msra.mxu0 %v2080
        %v2082 = vand.u32 %v419, 4294901760
        %v2083 = vsub.f32 %v419, %v2082
        %v2084 = vand.u32 %v2083, 4294901760
        %v2085 = vsub.f32 %v2083, %v2084
        %v2086 = vand.u32 %v2085, 4294901760
        %2087 = vmatpush.msra.mxu0 %v2086
        %v2088 = vand.u32 %v417, 4294901760
        %v2089 = vsub.f32 %v417, %v2088
        %v2090 = vand.u32 %v2089, 4294901760
        %v2091 = vsub.f32 %v2089, %v2090
        %v2092 = vand.u32 %v2091, 4294901760
        %2093 = vmatpush.msra.mxu0 %v2092
        %v2094 = vand.u32 %v415, 4294901760
        %v2095 = vsub.f32 %v415, %v2094
        %v2096 = vand.u32 %v2095, 4294901760
        %v2097 = vsub.f32 %v2095, %v2096
        %v2098 = vand.u32 %v2097, 4294901760
        %2099 = vmatpush.msra.mxu0 %v2098
        %v2100 = vand.u32 %v413, 4294901760
        %v2101 = vsub.f32 %v413, %v2100
        %v2102 = vand.u32 %v2101, 4294901760
        %v2103 = vsub.f32 %v2101, %v2102
        %v2104 = vand.u32 %v2103, 4294901760
        %2105 = vmatpush.msra.mxu0 %v2104
        %v2106 = vand.u32 %v411, 4294901760
        %v2107 = vsub.f32 %v411, %v2106
        %v2108 = vand.u32 %v2107, 4294901760
        %v2109 = vsub.f32 %v2107, %v2108
        %v2110 = vand.u32 %v2109, 4294901760
        %2111 = vmatpush.msra.mxu0 %v2110
        %v2112 = vand.u32 %v409, 4294901760
        %v2113 = vsub.f32 %v409, %v2112
        %v2114 = vand.u32 %v2113, 4294901760
        %v2115 = vsub.f32 %v2113, %v2114
        %v2116 = vand.u32 %v2115, 4294901760
        %2117 = vmatpush.msra.mxu0 %v2116
        %v2118 = vand.u32 %v407, 4294901760
        %v2119 = vsub.f32 %v407, %v2118
        %v2120 = vand.u32 %v2119, 4294901760
        %v2121 = vsub.f32 %v2119, %v2120
        %v2122 = vand.u32 %v2121, 4294901760
        %2123 = vmatpush.msra.mxu0 %v2122
        %v2124 = vand.u32 %v405, 4294901760
        %v2125 = vsub.f32 %v405, %v2124
        %v2126 = vand.u32 %v2125, 4294901760
        %v2127 = vsub.f32 %v2125, %v2126
        %v2128 = vand.u32 %v2127, 4294901760
        %2129 = vmatpush.msra.mxu0 %v2128
        %v2130 = vand.u32 %v403, 4294901760
        %v2131 = vsub.f32 %v403, %v2130
        %v2132 = vand.u32 %v2131, 4294901760
        %v2133 = vsub.f32 %v2131, %v2132
        %v2134 = vand.u32 %v2133, 4294901760
        %2135 = vmatpush.msra.mxu0 %v2134
        %v2136 = vand.u32 %v401, 4294901760
        %v2137 = vsub.f32 %v401, %v2136
        %v2138 = vand.u32 %v2137, 4294901760
        %v2139 = vsub.f32 %v2137, %v2138
        %v2140 = vand.u32 %v2139, 4294901760
        %2141 = vmatpush.msra.mxu0 %v2140
        %v2142 = vand.u32 %v399, 4294901760
        %v2143 = vsub.f32 %v399, %v2142
        %v2144 = vand.u32 %v2143, 4294901760
        %v2145 = vsub.f32 %v2143, %v2144
        %v2146 = vand.u32 %v2145, 4294901760
        %2147 = vmatpush.msra.mxu0 %v2146
        %v2148 = vand.u32 %v397, 4294901760
        %v2149 = vsub.f32 %v397, %v2148
        %v2150 = vand.u32 %v2149, 4294901760
        %v2151 = vsub.f32 %v2149, %v2150
        %v2152 = vand.u32 %v2151, 4294901760
        %2153 = vmatpush.msra.mxu0 %v2152
        %v2154 = vand.u32 %v270, 4294901760
        %2155 = vmatmul.f32.gmra.mxu0 %v2154
        %v2156 = vpop.f32.mrf.mxu0
        %v2157 = vadd.f32 %v1808, %v2156
        %v2158 = vand.u32 %v273, 4294901760
        %2159 = vmatmul.f32.gmra.mxu0 %v2158
        %v2160 = vpop.f32.mrf.mxu0
        %v2161 = vadd.f32 %v1816, %v2160
        %v2162 = vand.u32 %v276, 4294901760
        %2163 = vmatmul.f32.gmra.mxu0 %v2162
        %v2164 = vpop.f32.mrf.mxu0
        %v2165 = vadd.f32 %v1824, %v2164
        %v2166 = vand.u32 %v279, 4294901760
        %2167 = vmatmul.f32.gmra.mxu0 %v2166
        %v2168 = vpop.f32.mrf.mxu0
        %v2169 = vadd.f32 %v1832, %v2168
        %v2170 = vand.u32 %v282, 4294901760
        %2171 = vmatmul.f32.gmra.mxu0 %v2170
        %v2172 = vpop.f32.mrf.mxu0
        %v2173 = vadd.f32 %v1840, %v2172
        %v2174 = vand.u32 %v285, 4294901760
        %2175 = vmatmul.f32.gmra.mxu0 %v2174
        %v2176 = vpop.f32.mrf.mxu0
        %v2177 = vadd.f32 %v1848, %v2176
        %v2178 = vand.u32 %v288, 4294901760
        %2179 = vmatmul.f32.gmra.mxu0 %v2178
        %v2180 = vpop.f32.mrf.mxu0
        %v2181 = vadd.f32 %v1856, %v2180
        %v2182 = vand.u32 %v291, 4294901760
        %2183 = vmatmul.f32.gmra.mxu0 %v2182
        %v2184 = vpop.f32.mrf.mxu0
        %v2185 = vadd.f32 %v1864, %v2184
        %v2186 = vand.u32 %v294, 4294901760
        %2187 = vmatmul.f32.gmra.mxu0 %v2186
        %v2188 = vpop.f32.mrf.mxu0
        %v2189 = vadd.f32 %v1872, %v2188
        %v2190 = vand.u32 %v297, 4294901760
        %2191 = vmatmul.f32.gmra.mxu0 %v2190
        %v2192 = vpop.f32.mrf.mxu0
        %v2193 = vadd.f32 %v1880, %v2192
        %v2194 = vand.u32 %v300, 4294901760
        %2195 = vmatmul.f32.gmra.mxu0 %v2194
        %v2196 = vpop.f32.mrf.mxu0
        %v2197 = vadd.f32 %v1888, %v2196
        %v2198 = vand.u32 %v303, 4294901760
        %2199 = vmatmul.f32.gmra.mxu0 %v2198
        %v2200 = vpop.f32.mrf.mxu0
        %v2201 = vadd.f32 %v1896, %v2200
        %v2202 = vand.u32 %v306, 4294901760
        %2203 = vmatmul.f32.gmra.mxu0 %v2202
        %v2204 = vpop.f32.mrf.mxu0
        %v2205 = vadd.f32 %v1904, %v2204
        %v2206 = vand.u32 %v309, 4294901760
        %2207 = vmatmul.f32.gmra.mxu0 %v2206
        %v2208 = vpop.f32.mrf.mxu0
        %v2209 = vadd.f32 %v1912, %v2208
        %v2210 = vand.u32 %v312, 4294901760
        %2211 = vmatmul.f32.gmra.mxu0 %v2210
        %v2212 = vpop.f32.mrf.mxu0
        %v2213 = vadd.f32 %v1920, %v2212
        %v2214 = vand.u32 %v315, 4294901760
        %2215 = vmatmul.f32.gmra.mxu0 %v2214
        %v2216 = vpop.f32.mrf.mxu0
        %v2217 = vadd.f32 %v1928, %v2216
        %v2218 = vand.u32 %v318, 4294901760
        %2219 = vmatmul.f32.gmra.mxu0 %v2218
        %v2220 = vpop.f32.mrf.mxu0
        %v2221 = vadd.f32 %v1936, %v2220
        %v2222 = vand.u32 %v321, 4294901760
        %2223 = vmatmul.f32.gmra.mxu0 %v2222
        %v2224 = vpop.f32.mrf.mxu0
        %v2225 = vadd.f32 %v1944, %v2224
        %v2226 = vand.u32 %v324, 4294901760
        %2227 = vmatmul.f32.gmra.mxu0 %v2226
        %v2228 = vpop.f32.mrf.mxu0
        %v2229 = vadd.f32 %v1952, %v2228
        %v2230 = vand.u32 %v327, 4294901760
        %2231 = vmatmul.f32.gmra.mxu0 %v2230
        %v2232 = vpop.f32.mrf.mxu0
        %v2233 = vadd.f32 %v1960, %v2232
        %v2234 = vand.u32 %v330, 4294901760
        %2235 = vmatmul.f32.gmra.mxu0 %v2234
        %v2236 = vpop.f32.mrf.mxu0
        %v2237 = vadd.f32 %v1968, %v2236
        %v2238 = vand.u32 %v333, 4294901760
        %2239 = vmatmul.f32.gmra.mxu0 %v2238
        %v2240 = vpop.f32.mrf.mxu0
        %v2241 = vadd.f32 %v1976, %v2240
        %v2242 = vand.u32 %v336, 4294901760
        %2243 = vmatmul.f32.gmra.mxu0 %v2242
        %v2244 = vpop.f32.mrf.mxu0
        %v2245 = vadd.f32 %v1984, %v2244
        %v2246 = vand.u32 %v339, 4294901760
        %2247 = vmatmul.f32.gmra.mxu0 %v2246
        %v2248 = vpop.f32.mrf.mxu0
        %v2249 = vadd.f32 %v1992, %v2248
        %v2250 = vand.u32 %v342, 4294901760
        %2251 = vmatmul.f32.gmra.mxu0 %v2250
        %v2252 = vpop.f32.mrf.mxu0
        %v2253 = vadd.f32 %v2000, %v2252
        %v2254 = vand.u32 %v345, 4294901760
        %2255 = vmatmul.f32.gmra.mxu0 %v2254
        %v2256 = vpop.f32.mrf.mxu0
        %v2257 = vadd.f32 %v2008, %v2256
        %v2258 = vand.u32 %v348, 4294901760
        %2259 = vmatmul.f32.gmra.mxu0 %v2258
        %v2260 = vpop.f32.mrf.mxu0
        %v2261 = vadd.f32 %v2016, %v2260
        %v2262 = vand.u32 %v351, 4294901760
        %2263 = vmatmul.f32.gmra.mxu0 %v2262
        %v2264 = vpop.f32.mrf.mxu0
        %v2265 = vadd.f32 %v2024, %v2264
        %v2266 = vand.u32 %v354, 4294901760
        %2267 = vmatmul.f32.gmra.mxu0 %v2266
        %v2268 = vpop.f32.mrf.mxu0
        %v2269 = vadd.f32 %v2032, %v2268
        %v2270 = vand.u32 %v357, 4294901760
        %2271 = vmatmul.f32.gmra.mxu0 %v2270
        %v2272 = vpop.f32.mrf.mxu0
        %v2273 = vadd.f32 %v2040, %v2272
        %v2274 = vand.u32 %v360, 4294901760
        %2275 = vmatmul.f32.gmra.mxu0 %v2274
        %v2276 = vpop.f32.mrf.mxu0
        %v2277 = vadd.f32 %v2048, %v2276
        %v2278 = vand.u32 %v363, 4294901760
        %2279 = vmatmul.f32.gmra.mxu0 %v2278
        %v2280 = vpop.f32.mrf.mxu0
        %v2281 = vadd.f32 %v2056, %v2280
        %2282 = vdwg.mxu0
        %v2283 = vand.u32 %v427, 4294901760
        %v2284 = vsub.f32 %v427, %v2283
        %2285 = vmatpush.msra.mxu0 %v2284
        %v2286 = vand.u32 %v425, 4294901760
        %v2287 = vsub.f32 %v425, %v2286
        %2288 = vmatpush.msra.mxu0 %v2287
        %v2289 = vand.u32 %v423, 4294901760
        %v2290 = vsub.f32 %v423, %v2289
        %2291 = vmatpush.msra.mxu0 %v2290
        %v2292 = vand.u32 %v421, 4294901760
        %v2293 = vsub.f32 %v421, %v2292
        %2294 = vmatpush.msra.mxu0 %v2293
        %v2295 = vand.u32 %v419, 4294901760
        %v2296 = vsub.f32 %v419, %v2295
        %2297 = vmatpush.msra.mxu0 %v2296
        %v2298 = vand.u32 %v417, 4294901760
        %v2299 = vsub.f32 %v417, %v2298
        %2300 = vmatpush.msra.mxu0 %v2299
        %v2301 = vand.u32 %v415, 4294901760
        %v2302 = vsub.f32 %v415, %v2301
        %2303 = vmatpush.msra.mxu0 %v2302
        %v2304 = vand.u32 %v413, 4294901760
        %v2305 = vsub.f32 %v413, %v2304
        %2306 = vmatpush.msra.mxu0 %v2305
        %v2307 = vand.u32 %v411, 4294901760
        %v2308 = vsub.f32 %v411, %v2307
        %2309 = vmatpush.msra.mxu0 %v2308
        %v2310 = vand.u32 %v409, 4294901760
        %v2311 = vsub.f32 %v409, %v2310
        %2312 = vmatpush.msra.mxu0 %v2311
        %v2313 = vand.u32 %v407, 4294901760
        %v2314 = vsub.f32 %v407, %v2313
        %2315 = vmatpush.msra.mxu0 %v2314
        %v2316 = vand.u32 %v405, 4294901760
        %v2317 = vsub.f32 %v405, %v2316
        %2318 = vmatpush.msra.mxu0 %v2317
        %v2319 = vand.u32 %v403, 4294901760
        %v2320 = vsub.f32 %v403, %v2319
        %2321 = vmatpush.msra.mxu0 %v2320
        %v2322 = vand.u32 %v401, 4294901760
        %v2323 = vsub.f32 %v401, %v2322
        %2324 = vmatpush.msra.mxu0 %v2323
        %v2325 = vand.u32 %v399, 4294901760
        %v2326 = vsub.f32 %v399, %v2325
        %2327 = vmatpush.msra.mxu0 %v2326
        %v2328 = vand.u32 %v397, 4294901760
        %v2329 = vsub.f32 %v397, %v2328
        %2330 = vmatpush.msra.mxu0 %v2329
        %v2331 = vand.u32 %v270, 4294901760
        %v2332 = vsub.f32 %v270, %v2331
        %2333 = vmatmul.f32.gmra.mxu0 %v2332
        %v2334 = vpop.f32.mrf.mxu0
        %v2335 = vadd.f32 %v2157, %v2334
        %v2336 = vand.u32 %v273, 4294901760
        %v2337 = vsub.f32 %v273, %v2336
        %2338 = vmatmul.f32.gmra.mxu0 %v2337
        %v2339 = vpop.f32.mrf.mxu0
        %v2340 = vadd.f32 %v2161, %v2339
        %v2341 = vand.u32 %v276, 4294901760
        %v2342 = vsub.f32 %v276, %v2341
        %2343 = vmatmul.f32.gmra.mxu0 %v2342
        %v2344 = vpop.f32.mrf.mxu0
        %v2345 = vadd.f32 %v2165, %v2344
        %v2346 = vand.u32 %v279, 4294901760
        %v2347 = vsub.f32 %v279, %v2346
        %2348 = vmatmul.f32.gmra.mxu0 %v2347
        %v2349 = vpop.f32.mrf.mxu0
        %v2350 = vadd.f32 %v2169, %v2349
        %v2351 = vand.u32 %v282, 4294901760
        %v2352 = vsub.f32 %v282, %v2351
        %2353 = vmatmul.f32.gmra.mxu0 %v2352
        %v2354 = vpop.f32.mrf.mxu0
        %v2355 = vadd.f32 %v2173, %v2354
        %v2356 = vand.u32 %v285, 4294901760
        %v2357 = vsub.f32 %v285, %v2356
        %2358 = vmatmul.f32.gmra.mxu0 %v2357
        %v2359 = vpop.f32.mrf.mxu0
        %v2360 = vadd.f32 %v2177, %v2359
        %v2361 = vand.u32 %v288, 4294901760
        %v2362 = vsub.f32 %v288, %v2361
        %2363 = vmatmul.f32.gmra.mxu0 %v2362
        %v2364 = vpop.f32.mrf.mxu0
        %v2365 = vadd.f32 %v2181, %v2364
        %v2366 = vand.u32 %v291, 4294901760
        %v2367 = vsub.f32 %v291, %v2366
        %2368 = vmatmul.f32.gmra.mxu0 %v2367
        %v2369 = vpop.f32.mrf.mxu0
        %v2370 = vadd.f32 %v2185, %v2369
        %v2371 = vand.u32 %v294, 4294901760
        %v2372 = vsub.f32 %v294, %v2371
        %2373 = vmatmul.f32.gmra.mxu0 %v2372
        %v2374 = vpop.f32.mrf.mxu0
        %v2375 = vadd.f32 %v2189, %v2374
        %v2376 = vand.u32 %v297, 4294901760
        %v2377 = vsub.f32 %v297, %v2376
        %2378 = vmatmul.f32.gmra.mxu0 %v2377
        %v2379 = vpop.f32.mrf.mxu0
        %v2380 = vadd.f32 %v2193, %v2379
        %v2381 = vand.u32 %v300, 4294901760
        %v2382 = vsub.f32 %v300, %v2381
        %2383 = vmatmul.f32.gmra.mxu0 %v2382
        %v2384 = vpop.f32.mrf.mxu0
        %v2385 = vadd.f32 %v2197, %v2384
        %v2386 = vand.u32 %v303, 4294901760
        %v2387 = vsub.f32 %v303, %v2386
        %2388 = vmatmul.f32.gmra.mxu0 %v2387
        %v2389 = vpop.f32.mrf.mxu0
        %v2390 = vadd.f32 %v2201, %v2389
        %v2391 = vand.u32 %v306, 4294901760
        %v2392 = vsub.f32 %v306, %v2391
        %2393 = vmatmul.f32.gmra.mxu0 %v2392
        %v2394 = vpop.f32.mrf.mxu0
        %v2395 = vadd.f32 %v2205, %v2394
        %v2396 = vand.u32 %v309, 4294901760
        %v2397 = vsub.f32 %v309, %v2396
        %2398 = vmatmul.f32.gmra.mxu0 %v2397
        %v2399 = vpop.f32.mrf.mxu0
        %v2400 = vadd.f32 %v2209, %v2399
        %v2401 = vand.u32 %v312, 4294901760
        %v2402 = vsub.f32 %v312, %v2401
        %2403 = vmatmul.f32.gmra.mxu0 %v2402
        %v2404 = vpop.f32.mrf.mxu0
        %v2405 = vadd.f32 %v2213, %v2404
        %v2406 = vand.u32 %v315, 4294901760
        %v2407 = vsub.f32 %v315, %v2406
        %2408 = vmatmul.f32.gmra.mxu0 %v2407
        %v2409 = vpop.f32.mrf.mxu0
        %v2410 = vadd.f32 %v2217, %v2409
        %v2411 = vand.u32 %v318, 4294901760
        %v2412 = vsub.f32 %v318, %v2411
        %2413 = vmatmul.f32.gmra.mxu0 %v2412
        %v2414 = vpop.f32.mrf.mxu0
        %v2415 = vadd.f32 %v2221, %v2414
        %v2416 = vand.u32 %v321, 4294901760
        %v2417 = vsub.f32 %v321, %v2416
        %2418 = vmatmul.f32.gmra.mxu0 %v2417
        %v2419 = vpop.f32.mrf.mxu0
        %v2420 = vadd.f32 %v2225, %v2419
        %v2421 = vand.u32 %v324, 4294901760
        %v2422 = vsub.f32 %v324, %v2421
        %2423 = vmatmul.f32.gmra.mxu0 %v2422
        %v2424 = vpop.f32.mrf.mxu0
        %v2425 = vadd.f32 %v2229, %v2424
        %v2426 = vand.u32 %v327, 4294901760
        %v2427 = vsub.f32 %v327, %v2426
        %2428 = vmatmul.f32.gmra.mxu0 %v2427
        %v2429 = vpop.f32.mrf.mxu0
        %v2430 = vadd.f32 %v2233, %v2429
        %v2431 = vand.u32 %v330, 4294901760
        %v2432 = vsub.f32 %v330, %v2431
        %2433 = vmatmul.f32.gmra.mxu0 %v2432
        %v2434 = vpop.f32.mrf.mxu0
        %v2435 = vadd.f32 %v2237, %v2434
        %v2436 = vand.u32 %v333, 4294901760
        %v2437 = vsub.f32 %v333, %v2436
        %2438 = vmatmul.f32.gmra.mxu0 %v2437
        %v2439 = vpop.f32.mrf.mxu0
        %v2440 = vadd.f32 %v2241, %v2439
        %v2441 = vand.u32 %v336, 4294901760
        %v2442 = vsub.f32 %v336, %v2441
        %2443 = vmatmul.f32.gmra.mxu0 %v2442
        %v2444 = vpop.f32.mrf.mxu0
        %v2445 = vadd.f32 %v2245, %v2444
        %v2446 = vand.u32 %v339, 4294901760
        %v2447 = vsub.f32 %v339, %v2446
        %2448 = vmatmul.f32.gmra.mxu0 %v2447
        %v2449 = vpop.f32.mrf.mxu0
        %v2450 = vadd.f32 %v2249, %v2449
        %v2451 = vand.u32 %v342, 4294901760
        %v2452 = vsub.f32 %v342, %v2451
        %2453 = vmatmul.f32.gmra.mxu0 %v2452
        %v2454 = vpop.f32.mrf.mxu0
        %v2455 = vadd.f32 %v2253, %v2454
        %v2456 = vand.u32 %v345, 4294901760
        %v2457 = vsub.f32 %v345, %v2456
        %2458 = vmatmul.f32.gmra.mxu0 %v2457
        %v2459 = vpop.f32.mrf.mxu0
        %v2460 = vadd.f32 %v2257, %v2459
        %v2461 = vand.u32 %v348, 4294901760
        %v2462 = vsub.f32 %v348, %v2461
        %2463 = vmatmul.f32.gmra.mxu0 %v2462
        %v2464 = vpop.f32.mrf.mxu0
        %v2465 = vadd.f32 %v2261, %v2464
        %v2466 = vand.u32 %v351, 4294901760
        %v2467 = vsub.f32 %v351, %v2466
        %2468 = vmatmul.f32.gmra.mxu0 %v2467
        %v2469 = vpop.f32.mrf.mxu0
        %v2470 = vadd.f32 %v2265, %v2469
        %v2471 = vand.u32 %v354, 4294901760
        %v2472 = vsub.f32 %v354, %v2471
        %2473 = vmatmul.f32.gmra.mxu0 %v2472
        %v2474 = vpop.f32.mrf.mxu0
        %v2475 = vadd.f32 %v2269, %v2474
        %v2476 = vand.u32 %v357, 4294901760
        %v2477 = vsub.f32 %v357, %v2476
        %2478 = vmatmul.f32.gmra.mxu0 %v2477
        %v2479 = vpop.f32.mrf.mxu0
        %v2480 = vadd.f32 %v2273, %v2479
        %v2481 = vand.u32 %v360, 4294901760
        %v2482 = vsub.f32 %v360, %v2481
        %2483 = vmatmul.f32.gmra.mxu0 %v2482
        %v2484 = vpop.f32.mrf.mxu0
        %v2485 = vadd.f32 %v2277, %v2484
        %v2486 = vand.u32 %v363, 4294901760
        %v2487 = vsub.f32 %v363, %v2486
        %2488 = vmatmul.f32.gmra.mxu0 %v2487
        %v2489 = vpop.f32.mrf.mxu0
        %v2490 = vadd.f32 %v2281, %v2489
        %2491 = vdwg.mxu0
        %v2492 = vand.u32 %v427, 4294901760
        %2493 = vmatpush.msra.mxu0 %v2492
        %v2494 = vand.u32 %v425, 4294901760
        %2495 = vmatpush.msra.mxu0 %v2494
        %v2496 = vand.u32 %v423, 4294901760
        %2497 = vmatpush.msra.mxu0 %v2496
        %v2498 = vand.u32 %v421, 4294901760
        %2499 = vmatpush.msra.mxu0 %v2498
        %v2500 = vand.u32 %v419, 4294901760
        %2501 = vmatpush.msra.mxu0 %v2500
        %v2502 = vand.u32 %v417, 4294901760
        %2503 = vmatpush.msra.mxu0 %v2502
        %v2504 = vand.u32 %v415, 4294901760
        %2505 = vmatpush.msra.mxu0 %v2504
        %v2506 = vand.u32 %v413, 4294901760
        %2507 = vmatpush.msra.mxu0 %v2506
        %v2508 = vand.u32 %v411, 4294901760
        %2509 = vmatpush.msra.mxu0 %v2508
        %v2510 = vand.u32 %v409, 4294901760
        %2511 = vmatpush.msra.mxu0 %v2510
        %v2512 = vand.u32 %v407, 4294901760
        %2513 = vmatpush.msra.mxu0 %v2512
        %v2514 = vand.u32 %v405, 4294901760
        %2515 = vmatpush.msra.mxu0 %v2514
        %v2516 = vand.u32 %v403, 4294901760
        %2517 = vmatpush.msra.mxu0 %v2516
        %v2518 = vand.u32 %v401, 4294901760
        %2519 = vmatpush.msra.mxu0 %v2518
        %v2520 = vand.u32 %v399, 4294901760
        %2521 = vmatpush.msra.mxu0 %v2520
        %v2522 = vand.u32 %v397, 4294901760
        %2523 = vmatpush.msra.mxu0 %v2522
        %v2524 = vand.u32 %v270, 4294901760
        %v2525 = vsub.f32 %v270, %v2524
        %v2526 = vand.u32 %v2525, 4294901760
        %2527 = vmatmul.f32.gmra.mxu0 %v2526
        %v2528 = vpop.f32.mrf.mxu0
        %v2529 = vadd.f32 %v2335, %v2528
        %v2530 = vand.u32 %v273, 4294901760
        %v2531 = vsub.f32 %v273, %v2530
        %v2532 = vand.u32 %v2531, 4294901760
        %2533 = vmatmul.f32.gmra.mxu0 %v2532
        %v2534 = vpop.f32.mrf.mxu0
        %v2535 = vadd.f32 %v2340, %v2534
        %v2536 = vand.u32 %v276, 4294901760
        %v2537 = vsub.f32 %v276, %v2536
        %v2538 = vand.u32 %v2537, 4294901760
        %2539 = vmatmul.f32.gmra.mxu0 %v2538
        %v2540 = vpop.f32.mrf.mxu0
        %v2541 = vadd.f32 %v2345, %v2540
        %v2542 = vand.u32 %v279, 4294901760
        %v2543 = vsub.f32 %v279, %v2542
        %v2544 = vand.u32 %v2543, 4294901760
        %2545 = vmatmul.f32.gmra.mxu0 %v2544
        %v2546 = vpop.f32.mrf.mxu0
        %v2547 = vadd.f32 %v2350, %v2546
        %v2548 = vand.u32 %v282, 4294901760
        %v2549 = vsub.f32 %v282, %v2548
        %v2550 = vand.u32 %v2549, 4294901760
        %2551 = vmatmul.f32.gmra.mxu0 %v2550
        %v2552 = vpop.f32.mrf.mxu0
        %v2553 = vadd.f32 %v2355, %v2552
        %v2554 = vand.u32 %v285, 4294901760
        %v2555 = vsub.f32 %v285, %v2554
        %v2556 = vand.u32 %v2555, 4294901760
        %2557 = vmatmul.f32.gmra.mxu0 %v2556
        %v2558 = vpop.f32.mrf.mxu0
        %v2559 = vadd.f32 %v2360, %v2558
        %v2560 = vand.u32 %v288, 4294901760
        %v2561 = vsub.f32 %v288, %v2560
        %v2562 = vand.u32 %v2561, 4294901760
        %2563 = vmatmul.f32.gmra.mxu0 %v2562
        %v2564 = vpop.f32.mrf.mxu0
        %v2565 = vadd.f32 %v2365, %v2564
        %v2566 = vand.u32 %v291, 4294901760
        %v2567 = vsub.f32 %v291, %v2566
        %v2568 = vand.u32 %v2567, 4294901760
        %2569 = vmatmul.f32.gmra.mxu0 %v2568
        %v2570 = vpop.f32.mrf.mxu0
        %v2571 = vadd.f32 %v2370, %v2570
        %v2572 = vand.u32 %v294, 4294901760
        %v2573 = vsub.f32 %v294, %v2572
        %v2574 = vand.u32 %v2573, 4294901760
        %2575 = vmatmul.f32.gmra.mxu0 %v2574
        %v2576 = vpop.f32.mrf.mxu0
        %v2577 = vadd.f32 %v2375, %v2576
        %v2578 = vand.u32 %v297, 4294901760
        %v2579 = vsub.f32 %v297, %v2578
        %v2580 = vand.u32 %v2579, 4294901760
        %2581 = vmatmul.f32.gmra.mxu0 %v2580
        %v2582 = vpop.f32.mrf.mxu0
        %v2583 = vadd.f32 %v2380, %v2582
        %v2584 = vand.u32 %v300, 4294901760
        %v2585 = vsub.f32 %v300, %v2584
        %v2586 = vand.u32 %v2585, 4294901760
        %2587 = vmatmul.f32.gmra.mxu0 %v2586
        %v2588 = vpop.f32.mrf.mxu0
        %v2589 = vadd.f32 %v2385, %v2588
        %v2590 = vand.u32 %v303, 4294901760
        %v2591 = vsub.f32 %v303, %v2590
        %v2592 = vand.u32 %v2591, 4294901760
        %2593 = vmatmul.f32.gmra.mxu0 %v2592
        %v2594 = vpop.f32.mrf.mxu0
        %v2595 = vadd.f32 %v2390, %v2594
        %v2596 = vand.u32 %v306, 4294901760
        %v2597 = vsub.f32 %v306, %v2596
        %v2598 = vand.u32 %v2597, 4294901760
        %2599 = vmatmul.f32.gmra.mxu0 %v2598
        %v2600 = vpop.f32.mrf.mxu0
        %v2601 = vadd.f32 %v2395, %v2600
        %v2602 = vand.u32 %v309, 4294901760
        %v2603 = vsub.f32 %v309, %v2602
        %v2604 = vand.u32 %v2603, 4294901760
        %2605 = vmatmul.f32.gmra.mxu0 %v2604
        %v2606 = vpop.f32.mrf.mxu0
        %v2607 = vadd.f32 %v2400, %v2606
        %v2608 = vand.u32 %v312, 4294901760
        %v2609 = vsub.f32 %v312, %v2608
        %v2610 = vand.u32 %v2609, 4294901760
        %2611 = vmatmul.f32.gmra.mxu0 %v2610
        %v2612 = vpop.f32.mrf.mxu0
        %v2613 = vadd.f32 %v2405, %v2612
        %v2614 = vand.u32 %v315, 4294901760
        %v2615 = vsub.f32 %v315, %v2614
        %v2616 = vand.u32 %v2615, 4294901760
        %2617 = vmatmul.f32.gmra.mxu0 %v2616
        %v2618 = vpop.f32.mrf.mxu0
        %v2619 = vadd.f32 %v2410, %v2618
        %v2620 = vand.u32 %v318, 4294901760
        %v2621 = vsub.f32 %v318, %v2620
        %v2622 = vand.u32 %v2621, 4294901760
        %2623 = vmatmul.f32.gmra.mxu0 %v2622
        %v2624 = vpop.f32.mrf.mxu0
        %v2625 = vadd.f32 %v2415, %v2624
        %v2626 = vand.u32 %v321, 4294901760
        %v2627 = vsub.f32 %v321, %v2626
        %v2628 = vand.u32 %v2627, 4294901760
        %2629 = vmatmul.f32.gmra.mxu0 %v2628
        %v2630 = vpop.f32.mrf.mxu0
        %v2631 = vadd.f32 %v2420, %v2630
        %v2632 = vand.u32 %v324, 4294901760
        %v2633 = vsub.f32 %v324, %v2632
        %v2634 = vand.u32 %v2633, 4294901760
        %2635 = vmatmul.f32.gmra.mxu0 %v2634
        %v2636 = vpop.f32.mrf.mxu0
        %v2637 = vadd.f32 %v2425, %v2636
        %v2638 = vand.u32 %v327, 4294901760
        %v2639 = vsub.f32 %v327, %v2638
        %v2640 = vand.u32 %v2639, 4294901760
        %2641 = vmatmul.f32.gmra.mxu0 %v2640
        %v2642 = vpop.f32.mrf.mxu0
        %v2643 = vadd.f32 %v2430, %v2642
        %v2644 = vand.u32 %v330, 4294901760
        %v2645 = vsub.f32 %v330, %v2644
        %v2646 = vand.u32 %v2645, 4294901760
        %2647 = vmatmul.f32.gmra.mxu0 %v2646
        %v2648 = vpop.f32.mrf.mxu0
        %v2649 = vadd.f32 %v2435, %v2648
        %v2650 = vand.u32 %v333, 4294901760
        %v2651 = vsub.f32 %v333, %v2650
        %v2652 = vand.u32 %v2651, 4294901760
        %2653 = vmatmul.f32.gmra.mxu0 %v2652
        %v2654 = vpop.f32.mrf.mxu0
        %v2655 = vadd.f32 %v2440, %v2654
        %v2656 = vand.u32 %v336, 4294901760
        %v2657 = vsub.f32 %v336, %v2656
        %v2658 = vand.u32 %v2657, 4294901760
        %2659 = vmatmul.f32.gmra.mxu0 %v2658
        %v2660 = vpop.f32.mrf.mxu0
        %v2661 = vadd.f32 %v2445, %v2660
        %v2662 = vand.u32 %v339, 4294901760
        %v2663 = vsub.f32 %v339, %v2662
        %v2664 = vand.u32 %v2663, 4294901760
        %2665 = vmatmul.f32.gmra.mxu0 %v2664
        %v2666 = vpop.f32.mrf.mxu0
        %v2667 = vadd.f32 %v2450, %v2666
        %v2668 = vand.u32 %v342, 4294901760
        %v2669 = vsub.f32 %v342, %v2668
        %v2670 = vand.u32 %v2669, 4294901760
        %2671 = vmatmul.f32.gmra.mxu0 %v2670
        %v2672 = vpop.f32.mrf.mxu0
        %v2673 = vadd.f32 %v2455, %v2672
        %v2674 = vand.u32 %v345, 4294901760
        %v2675 = vsub.f32 %v345, %v2674
        %v2676 = vand.u32 %v2675, 4294901760
        %2677 = vmatmul.f32.gmra.mxu0 %v2676
        %v2678 = vpop.f32.mrf.mxu0
        %v2679 = vadd.f32 %v2460, %v2678
        %v2680 = vand.u32 %v348, 4294901760
        %v2681 = vsub.f32 %v348, %v2680
        %v2682 = vand.u32 %v2681, 4294901760
        %2683 = vmatmul.f32.gmra.mxu0 %v2682
        %v2684 = vpop.f32.mrf.mxu0
        %v2685 = vadd.f32 %v2465, %v2684
        %v2686 = vand.u32 %v351, 4294901760
        %v2687 = vsub.f32 %v351, %v2686
        %v2688 = vand.u32 %v2687, 4294901760
        %2689 = vmatmul.f32.gmra.mxu0 %v2688
        %v2690 = vpop.f32.mrf.mxu0
        %v2691 = vadd.f32 %v2470, %v2690
        %v2692 = vand.u32 %v354, 4294901760
        %v2693 = vsub.f32 %v354, %v2692
        %v2694 = vand.u32 %v2693, 4294901760
        %2695 = vmatmul.f32.gmra.mxu0 %v2694
        %v2696 = vpop.f32.mrf.mxu0
        %v2697 = vadd.f32 %v2475, %v2696
        %v2698 = vand.u32 %v357, 4294901760
        %v2699 = vsub.f32 %v357, %v2698
        %v2700 = vand.u32 %v2699, 4294901760
        %2701 = vmatmul.f32.gmra.mxu0 %v2700
        %v2702 = vpop.f32.mrf.mxu0
        %v2703 = vadd.f32 %v2480, %v2702
        %v2704 = vand.u32 %v360, 4294901760
        %v2705 = vsub.f32 %v360, %v2704
        %v2706 = vand.u32 %v2705, 4294901760
        %2707 = vmatmul.f32.gmra.mxu0 %v2706
        %v2708 = vpop.f32.mrf.mxu0
        %v2709 = vadd.f32 %v2485, %v2708
        %v2710 = vand.u32 %v363, 4294901760
        %v2711 = vsub.f32 %v363, %v2710
        %v2712 = vand.u32 %v2711, 4294901760
        %2713 = vmatmul.f32.gmra.mxu0 %v2712
        %v2714 = vpop.f32.mrf.mxu0
        %v2715 = vadd.f32 %v2490, %v2714
        %2716 = vdwg.mxu0
        %v2717 = vand.u32 %v427, 4294901760
        %v2718 = vsub.f32 %v427, %v2717
        %v2719 = vand.u32 %v2718, 4294901760
        %2720 = vmatpush.msra.mxu0 %v2719
        %v2721 = vand.u32 %v425, 4294901760
        %v2722 = vsub.f32 %v425, %v2721
        %v2723 = vand.u32 %v2722, 4294901760
        %2724 = vmatpush.msra.mxu0 %v2723
        %v2725 = vand.u32 %v423, 4294901760
        %v2726 = vsub.f32 %v423, %v2725
        %v2727 = vand.u32 %v2726, 4294901760
        %2728 = vmatpush.msra.mxu0 %v2727
        %v2729 = vand.u32 %v421, 4294901760
        %v2730 = vsub.f32 %v421, %v2729
        %v2731 = vand.u32 %v2730, 4294901760
        %2732 = vmatpush.msra.mxu0 %v2731
        %v2733 = vand.u32 %v419, 4294901760
        %v2734 = vsub.f32 %v419, %v2733
        %v2735 = vand.u32 %v2734, 4294901760
        %2736 = vmatpush.msra.mxu0 %v2735
        %v2737 = vand.u32 %v417, 4294901760
        %v2738 = vsub.f32 %v417, %v2737
        %v2739 = vand.u32 %v2738, 4294901760
        %2740 = vmatpush.msra.mxu0 %v2739
        %v2741 = vand.u32 %v415, 4294901760
        %v2742 = vsub.f32 %v415, %v2741
        %v2743 = vand.u32 %v2742, 4294901760
        %2744 = vmatpush.msra.mxu0 %v2743
        %v2745 = vand.u32 %v413, 4294901760
        %v2746 = vsub.f32 %v413, %v2745
        %v2747 = vand.u32 %v2746, 4294901760
        %2748 = vmatpush.msra.mxu0 %v2747
        %v2749 = vand.u32 %v411, 4294901760
        %v2750 = vsub.f32 %v411, %v2749
        %v2751 = vand.u32 %v2750, 4294901760
        %2752 = vmatpush.msra.mxu0 %v2751
        %v2753 = vand.u32 %v409, 4294901760
        %v2754 = vsub.f32 %v409, %v2753
        %v2755 = vand.u32 %v2754, 4294901760
        %2756 = vmatpush.msra.mxu0 %v2755
        %v2757 = vand.u32 %v407, 4294901760
        %v2758 = vsub.f32 %v407, %v2757
        %v2759 = vand.u32 %v2758, 4294901760
        %2760 = vmatpush.msra.mxu0 %v2759
        %v2761 = vand.u32 %v405, 4294901760
        %v2762 = vsub.f32 %v405, %v2761
        %v2763 = vand.u32 %v2762, 4294901760
        %2764 = vmatpush.msra.mxu0 %v2763
        %v2765 = vand.u32 %v403, 4294901760
        %v2766 = vsub.f32 %v403, %v2765
        %v2767 = vand.u32 %v2766, 4294901760
        %2768 = vmatpush.msra.mxu0 %v2767
        %v2769 = vand.u32 %v401, 4294901760
        %v2770 = vsub.f32 %v401, %v2769
        %v2771 = vand.u32 %v2770, 4294901760
        %2772 = vmatpush.msra.mxu0 %v2771
        %v2773 = vand.u32 %v399, 4294901760
        %v2774 = vsub.f32 %v399, %v2773
        %v2775 = vand.u32 %v2774, 4294901760
        %2776 = vmatpush.msra.mxu0 %v2775
        %v2777 = vand.u32 %v397, 4294901760
        %v2778 = vsub.f32 %v397, %v2777
        %v2779 = vand.u32 %v2778, 4294901760
        %2780 = vmatpush.msra.mxu0 %v2779
        %v2781 = vand.u32 %v270, 4294901760
        %2782 = vmatmul.f32.gmra.mxu0 %v2781
        %v2783 = vpop.f32.mrf.mxu0
        %v2784 = vadd.f32 %v2529, %v2783
        %v2785 = vand.u32 %v273, 4294901760
        %2786 = vmatmul.f32.gmra.mxu0 %v2785
        %v2787 = vpop.f32.mrf.mxu0
        %v2788 = vadd.f32 %v2535, %v2787
        %v2789 = vand.u32 %v276, 4294901760
        %2790 = vmatmul.f32.gmra.mxu0 %v2789
        %v2791 = vpop.f32.mrf.mxu0
        %v2792 = vadd.f32 %v2541, %v2791
        %v2793 = vand.u32 %v279, 4294901760
        %2794 = vmatmul.f32.gmra.mxu0 %v2793
        %v2795 = vpop.f32.mrf.mxu0
        %v2796 = vadd.f32 %v2547, %v2795
        %v2797 = vand.u32 %v282, 4294901760
        %2798 = vmatmul.f32.gmra.mxu0 %v2797
        %v2799 = vpop.f32.mrf.mxu0
        %v2800 = vadd.f32 %v2553, %v2799
        %v2801 = vand.u32 %v285, 4294901760
        %2802 = vmatmul.f32.gmra.mxu0 %v2801
        %v2803 = vpop.f32.mrf.mxu0
        %v2804 = vadd.f32 %v2559, %v2803
        %v2805 = vand.u32 %v288, 4294901760
        %2806 = vmatmul.f32.gmra.mxu0 %v2805
        %v2807 = vpop.f32.mrf.mxu0
        %v2808 = vadd.f32 %v2565, %v2807
        %v2809 = vand.u32 %v291, 4294901760
        %2810 = vmatmul.f32.gmra.mxu0 %v2809
        %v2811 = vpop.f32.mrf.mxu0
        %v2812 = vadd.f32 %v2571, %v2811
        %v2813 = vand.u32 %v294, 4294901760
        %2814 = vmatmul.f32.gmra.mxu0 %v2813
        %v2815 = vpop.f32.mrf.mxu0
        %v2816 = vadd.f32 %v2577, %v2815
        %v2817 = vand.u32 %v297, 4294901760
        %2818 = vmatmul.f32.gmra.mxu0 %v2817
        %v2819 = vpop.f32.mrf.mxu0
        %v2820 = vadd.f32 %v2583, %v2819
        %v2821 = vand.u32 %v300, 4294901760
        %2822 = vmatmul.f32.gmra.mxu0 %v2821
        %v2823 = vpop.f32.mrf.mxu0
        %v2824 = vadd.f32 %v2589, %v2823
        %v2825 = vand.u32 %v303, 4294901760
        %2826 = vmatmul.f32.gmra.mxu0 %v2825
        %v2827 = vpop.f32.mrf.mxu0
        %v2828 = vadd.f32 %v2595, %v2827
        %v2829 = vand.u32 %v306, 4294901760
        %2830 = vmatmul.f32.gmra.mxu0 %v2829
        %v2831 = vpop.f32.mrf.mxu0
        %v2832 = vadd.f32 %v2601, %v2831
        %v2833 = vand.u32 %v309, 4294901760
        %2834 = vmatmul.f32.gmra.mxu0 %v2833
        %v2835 = vpop.f32.mrf.mxu0
        %v2836 = vadd.f32 %v2607, %v2835
        %v2837 = vand.u32 %v312, 4294901760
        %2838 = vmatmul.f32.gmra.mxu0 %v2837
        %v2839 = vpop.f32.mrf.mxu0
        %v2840 = vadd.f32 %v2613, %v2839
        %v2841 = vand.u32 %v315, 4294901760
        %2842 = vmatmul.f32.gmra.mxu0 %v2841
        %v2843 = vpop.f32.mrf.mxu0
        %v2844 = vadd.f32 %v2619, %v2843
        %v2845 = vand.u32 %v318, 4294901760
        %2846 = vmatmul.f32.gmra.mxu0 %v2845
        %v2847 = vpop.f32.mrf.mxu0
        %v2848 = vadd.f32 %v2625, %v2847
        %v2849 = vand.u32 %v321, 4294901760
        %2850 = vmatmul.f32.gmra.mxu0 %v2849
        %v2851 = vpop.f32.mrf.mxu0
        %v2852 = vadd.f32 %v2631, %v2851
        %v2853 = vand.u32 %v324, 4294901760
        %2854 = vmatmul.f32.gmra.mxu0 %v2853
        %v2855 = vpop.f32.mrf.mxu0
        %v2856 = vadd.f32 %v2637, %v2855
        %v2857 = vand.u32 %v327, 4294901760
        %2858 = vmatmul.f32.gmra.mxu0 %v2857
        %v2859 = vpop.f32.mrf.mxu0
        %v2860 = vadd.f32 %v2643, %v2859
        %v2861 = vand.u32 %v330, 4294901760
        %2862 = vmatmul.f32.gmra.mxu0 %v2861
        %v2863 = vpop.f32.mrf.mxu0
        %v2864 = vadd.f32 %v2649, %v2863
        %v2865 = vand.u32 %v333, 4294901760
        %2866 = vmatmul.f32.gmra.mxu0 %v2865
        %v2867 = vpop.f32.mrf.mxu0
        %v2868 = vadd.f32 %v2655, %v2867
        %v2869 = vand.u32 %v336, 4294901760
        %2870 = vmatmul.f32.gmra.mxu0 %v2869
        %v2871 = vpop.f32.mrf.mxu0
        %v2872 = vadd.f32 %v2661, %v2871
        %v2873 = vand.u32 %v339, 4294901760
        %2874 = vmatmul.f32.gmra.mxu0 %v2873
        %v2875 = vpop.f32.mrf.mxu0
        %v2876 = vadd.f32 %v2667, %v2875
        %v2877 = vand.u32 %v342, 4294901760
        %2878 = vmatmul.f32.gmra.mxu0 %v2877
        %v2879 = vpop.f32.mrf.mxu0
        %v2880 = vadd.f32 %v2673, %v2879
        %v2881 = vand.u32 %v345, 4294901760
        %2882 = vmatmul.f32.gmra.mxu0 %v2881
        %v2883 = vpop.f32.mrf.mxu0
        %v2884 = vadd.f32 %v2679, %v2883
        %v2885 = vand.u32 %v348, 4294901760
        %2886 = vmatmul.f32.gmra.mxu0 %v2885
        %v2887 = vpop.f32.mrf.mxu0
        %v2888 = vadd.f32 %v2685, %v2887
        %v2889 = vand.u32 %v351, 4294901760
        %2890 = vmatmul.f32.gmra.mxu0 %v2889
        %v2891 = vpop.f32.mrf.mxu0
        %v2892 = vadd.f32 %v2691, %v2891
        %v2893 = vand.u32 %v354, 4294901760
        %2894 = vmatmul.f32.gmra.mxu0 %v2893
        %v2895 = vpop.f32.mrf.mxu0
        %v2896 = vadd.f32 %v2697, %v2895
        %v2897 = vand.u32 %v357, 4294901760
        %2898 = vmatmul.f32.gmra.mxu0 %v2897
        %v2899 = vpop.f32.mrf.mxu0
        %v2900 = vadd.f32 %v2703, %v2899
        %v2901 = vand.u32 %v360, 4294901760
        %2902 = vmatmul.f32.gmra.mxu0 %v2901
        %v2903 = vpop.f32.mrf.mxu0
        %v2904 = vadd.f32 %v2709, %v2903
        %v2905 = vand.u32 %v363, 4294901760
        %2906 = vmatmul.f32.gmra.mxu0 %v2905
        %v2907 = vpop.f32.mrf.mxu0
        %v2908 = vadd.f32 %v2715, %v2907
        %2909 = vdwg.mxu0
        %v2910 = vand.u32 %v427, 4294901760
        %2911 = vmatpush.msra.mxu0 %v2910
        %v2912 = vand.u32 %v425, 4294901760
        %2913 = vmatpush.msra.mxu0 %v2912
        %v2914 = vand.u32 %v423, 4294901760
        %2915 = vmatpush.msra.mxu0 %v2914
        %v2916 = vand.u32 %v421, 4294901760
        %2917 = vmatpush.msra.mxu0 %v2916
        %v2918 = vand.u32 %v419, 4294901760
        %2919 = vmatpush.msra.mxu0 %v2918
        %v2920 = vand.u32 %v417, 4294901760
        %2921 = vmatpush.msra.mxu0 %v2920
        %v2922 = vand.u32 %v415, 4294901760
        %2923 = vmatpush.msra.mxu0 %v2922
        %v2924 = vand.u32 %v413, 4294901760
        %2925 = vmatpush.msra.mxu0 %v2924
        %v2926 = vand.u32 %v411, 4294901760
        %2927 = vmatpush.msra.mxu0 %v2926
        %v2928 = vand.u32 %v409, 4294901760
        %2929 = vmatpush.msra.mxu0 %v2928
        %v2930 = vand.u32 %v407, 4294901760
        %2931 = vmatpush.msra.mxu0 %v2930
        %v2932 = vand.u32 %v405, 4294901760
        %2933 = vmatpush.msra.mxu0 %v2932
        %v2934 = vand.u32 %v403, 4294901760
        %2935 = vmatpush.msra.mxu0 %v2934
        %v2936 = vand.u32 %v401, 4294901760
        %2937 = vmatpush.msra.mxu0 %v2936
        %v2938 = vand.u32 %v399, 4294901760
        %2939 = vmatpush.msra.mxu0 %v2938
        %v2940 = vand.u32 %v397, 4294901760
        %2941 = vmatpush.msra.mxu0 %v2940
        %v2942 = vand.u32 %v270, 4294901760
        %2943 = vmatmul.f32.gmra.mxu0 %v2942
        %v2944 = vpop.f32.mrf.mxu0
        %v2945 = vadd.f32 %v2784, %v2944
        %v2946 = vand.u32 %v273, 4294901760
        %2947 = vmatmul.f32.gmra.mxu0 %v2946
        %v2948 = vpop.f32.mrf.mxu0
        %v2949 = vadd.f32 %v2788, %v2948
        %v2950 = vand.u32 %v276, 4294901760
        %2951 = vmatmul.f32.gmra.mxu0 %v2950
        %v2952 = vpop.f32.mrf.mxu0
        %v2953 = vadd.f32 %v2792, %v2952
        %v2954 = vand.u32 %v279, 4294901760
        %2955 = vmatmul.f32.gmra.mxu0 %v2954
        %v2956 = vpop.f32.mrf.mxu0
        %v2957 = vadd.f32 %v2796, %v2956
        %v2958 = vand.u32 %v282, 4294901760
        %2959 = vmatmul.f32.gmra.mxu0 %v2958
        %v2960 = vpop.f32.mrf.mxu0
        %v2961 = vadd.f32 %v2800, %v2960
        %v2962 = vand.u32 %v285, 4294901760
        %2963 = vmatmul.f32.gmra.mxu0 %v2962
        %v2964 = vpop.f32.mrf.mxu0
        %v2965 = vadd.f32 %v2804, %v2964
        %v2966 = vand.u32 %v288, 4294901760
        %2967 = vmatmul.f32.gmra.mxu0 %v2966
        %v2968 = vpop.f32.mrf.mxu0
        %v2969 = vadd.f32 %v2808, %v2968
        %v2970 = vand.u32 %v291, 4294901760
        %2971 = vmatmul.f32.gmra.mxu0 %v2970
        %v2972 = vpop.f32.mrf.mxu0
        %v2973 = vadd.f32 %v2812, %v2972
        %v2974 = vand.u32 %v294, 4294901760
        %2975 = vmatmul.f32.gmra.mxu0 %v2974
        %v2976 = vpop.f32.mrf.mxu0
        %v2977 = vadd.f32 %v2816, %v2976
        %v2978 = vand.u32 %v297, 4294901760
        %2979 = vmatmul.f32.gmra.mxu0 %v2978
        %v2980 = vpop.f32.mrf.mxu0
        %v2981 = vadd.f32 %v2820, %v2980
        %v2982 = vand.u32 %v300, 4294901760
        %2983 = vmatmul.f32.gmra.mxu0 %v2982
        %v2984 = vpop.f32.mrf.mxu0
        %v2985 = vadd.f32 %v2824, %v2984
        %v2986 = vand.u32 %v303, 4294901760
        %2987 = vmatmul.f32.gmra.mxu0 %v2986
        %v2988 = vpop.f32.mrf.mxu0
        %v2989 = vadd.f32 %v2828, %v2988
        %v2990 = vand.u32 %v306, 4294901760
        %2991 = vmatmul.f32.gmra.mxu0 %v2990
        %v2992 = vpop.f32.mrf.mxu0
        %v2993 = vadd.f32 %v2832, %v2992
        %v2994 = vand.u32 %v309, 4294901760
        %2995 = vmatmul.f32.gmra.mxu0 %v2994
        %v2996 = vpop.f32.mrf.mxu0
        %v2997 = vadd.f32 %v2836, %v2996
        %v2998 = vand.u32 %v312, 4294901760
        %2999 = vmatmul.f32.gmra.mxu0 %v2998
        %v3000 = vpop.f32.mrf.mxu0
        %v3001 = vadd.f32 %v2840, %v3000
        %v3002 = vand.u32 %v315, 4294901760
        %3003 = vmatmul.f32.gmra.mxu0 %v3002
        %v3004 = vpop.f32.mrf.mxu0
        %v3005 = vadd.f32 %v2844, %v3004
        %v3006 = vand.u32 %v318, 4294901760
        %3007 = vmatmul.f32.gmra.mxu0 %v3006
        %v3008 = vpop.f32.mrf.mxu0
        %v3009 = vadd.f32 %v2848, %v3008
        %v3010 = vand.u32 %v321, 4294901760
        %3011 = vmatmul.f32.gmra.mxu0 %v3010
        %v3012 = vpop.f32.mrf.mxu0
        %v3013 = vadd.f32 %v2852, %v3012
        %v3014 = vand.u32 %v324, 4294901760
        %3015 = vmatmul.f32.gmra.mxu0 %v3014
        %v3016 = vpop.f32.mrf.mxu0
        %v3017 = vadd.f32 %v2856, %v3016
        %v3018 = vand.u32 %v327, 4294901760
        %3019 = vmatmul.f32.gmra.mxu0 %v3018
        %v3020 = vpop.f32.mrf.mxu0
        %v3021 = vadd.f32 %v2860, %v3020
        %v3022 = vand.u32 %v330, 4294901760
        %3023 = vmatmul.f32.gmra.mxu0 %v3022
        %v3024 = vpop.f32.mrf.mxu0
        %v3025 = vadd.f32 %v2864, %v3024
        %v3026 = vand.u32 %v333, 4294901760
        %3027 = vmatmul.f32.gmra.mxu0 %v3026
        %v3028 = vpop.f32.mrf.mxu0
        %v3029 = vadd.f32 %v2868, %v3028
        %v3030 = vand.u32 %v336, 4294901760
        %3031 = vmatmul.f32.gmra.mxu0 %v3030
        %v3032 = vpop.f32.mrf.mxu0
        %v3033 = vadd.f32 %v2872, %v3032
        %v3034 = vand.u32 %v339, 4294901760
        %3035 = vmatmul.f32.gmra.mxu0 %v3034
        %v3036 = vpop.f32.mrf.mxu0
        %v3037 = vadd.f32 %v2876, %v3036
        %v3038 = vand.u32 %v342, 4294901760
        %3039 = vmatmul.f32.gmra.mxu0 %v3038
        %v3040 = vpop.f32.mrf.mxu0
        %v3041 = vadd.f32 %v2880, %v3040
        %v3042 = vand.u32 %v345, 4294901760
        %3043 = vmatmul.f32.gmra.mxu0 %v3042
        %v3044 = vpop.f32.mrf.mxu0
        %v3045 = vadd.f32 %v2884, %v3044
        %v3046 = vand.u32 %v348, 4294901760
        %3047 = vmatmul.f32.gmra.mxu0 %v3046
        %v3048 = vpop.f32.mrf.mxu0
        %v3049 = vadd.f32 %v2888, %v3048
        %v3050 = vand.u32 %v351, 4294901760
        %3051 = vmatmul.f32.gmra.mxu0 %v3050
        %v3052 = vpop.f32.mrf.mxu0
        %v3053 = vadd.f32 %v2892, %v3052
        %v3054 = vand.u32 %v354, 4294901760
        %3055 = vmatmul.f32.gmra.mxu0 %v3054
        %v3056 = vpop.f32.mrf.mxu0
        %v3057 = vadd.f32 %v2896, %v3056
        %v3058 = vand.u32 %v357, 4294901760
        %3059 = vmatmul.f32.gmra.mxu0 %v3058
        %v3060 = vpop.f32.mrf.mxu0
        %v3061 = vadd.f32 %v2900, %v3060
        %v3062 = vand.u32 %v360, 4294901760
        %3063 = vmatmul.f32.gmra.mxu0 %v3062
        %v3064 = vpop.f32.mrf.mxu0
        %v3065 = vadd.f32 %v2904, %v3064
        %v3066 = vand.u32 %v363, 4294901760
        %3067 = vmatmul.f32.gmra.mxu0 %v3066
        %v3068 = vpop.f32.mrf.mxu0
        %v3069 = vadd.f32 %v2908, %v3068
        %3070 = vdwg.mxu0
        %v3071 = vand.u32 %v459, 4294901760
        %3072 = vmatpush.msra.mxu0 %v3071
        %v3073 = vand.u32 %v457, 4294901760
        %3074 = vmatpush.msra.mxu0 %v3073
        %v3075 = vand.u32 %v455, 4294901760
        %3076 = vmatpush.msra.mxu0 %v3075
        %v3077 = vand.u32 %v453, 4294901760
        %3078 = vmatpush.msra.mxu0 %v3077
        %v3079 = vand.u32 %v451, 4294901760
        %3080 = vmatpush.msra.mxu0 %v3079
        %v3081 = vand.u32 %v449, 4294901760
        %3082 = vmatpush.msra.mxu0 %v3081
        %v3083 = vand.u32 %v447, 4294901760
        %3084 = vmatpush.msra.mxu0 %v3083
        %v3085 = vand.u32 %v445, 4294901760
        %3086 = vmatpush.msra.mxu0 %v3085
        %v3087 = vand.u32 %v443, 4294901760
        %3088 = vmatpush.msra.mxu0 %v3087
        %v3089 = vand.u32 %v441, 4294901760
        %3090 = vmatpush.msra.mxu0 %v3089
        %v3091 = vand.u32 %v439, 4294901760
        %3092 = vmatpush.msra.mxu0 %v3091
        %v3093 = vand.u32 %v437, 4294901760
        %3094 = vmatpush.msra.mxu0 %v3093
        %v3095 = vand.u32 %v435, 4294901760
        %3096 = vmatpush.msra.mxu0 %v3095
        %v3097 = vand.u32 %v433, 4294901760
        %3098 = vmatpush.msra.mxu0 %v3097
        %v3099 = vand.u32 %v431, 4294901760
        %3100 = vmatpush.msra.mxu0 %v3099
        %v3101 = vand.u32 %v429, 4294901760
        %3102 = vmatpush.msra.mxu0 %v3101
        %v3103 = vand.u32 %v271, 4294901760
        %v3104 = vsub.f32 %v271, %v3103
        %v3105 = vand.u32 %v3104, 4294901760
        %v3106 = vsub.f32 %v3104, %v3105
        %v3107 = vand.u32 %v3106, 4294901760
        %3108 = vmatmul.f32.gmra.mxu0 %v3107
        %v3109 = vpop.f32.mrf.mxu0
        %v3110 = vadd.f32 %v2945, %v3109
        %v3111 = vand.u32 %v274, 4294901760
        %v3112 = vsub.f32 %v274, %v3111
        %v3113 = vand.u32 %v3112, 4294901760
        %v3114 = vsub.f32 %v3112, %v3113
        %v3115 = vand.u32 %v3114, 4294901760
        %3116 = vmatmul.f32.gmra.mxu0 %v3115
        %v3117 = vpop.f32.mrf.mxu0
        %v3118 = vadd.f32 %v2949, %v3117
        %v3119 = vand.u32 %v277, 4294901760
        %v3120 = vsub.f32 %v277, %v3119
        %v3121 = vand.u32 %v3120, 4294901760
        %v3122 = vsub.f32 %v3120, %v3121
        %v3123 = vand.u32 %v3122, 4294901760
        %3124 = vmatmul.f32.gmra.mxu0 %v3123
        %v3125 = vpop.f32.mrf.mxu0
        %v3126 = vadd.f32 %v2953, %v3125
        %v3127 = vand.u32 %v280, 4294901760
        %v3128 = vsub.f32 %v280, %v3127
        %v3129 = vand.u32 %v3128, 4294901760
        %v3130 = vsub.f32 %v3128, %v3129
        %v3131 = vand.u32 %v3130, 4294901760
        %3132 = vmatmul.f32.gmra.mxu0 %v3131
        %v3133 = vpop.f32.mrf.mxu0
        %v3134 = vadd.f32 %v2957, %v3133
        %v3135 = vand.u32 %v283, 4294901760
        %v3136 = vsub.f32 %v283, %v3135
        %v3137 = vand.u32 %v3136, 4294901760
        %v3138 = vsub.f32 %v3136, %v3137
        %v3139 = vand.u32 %v3138, 4294901760
        %3140 = vmatmul.f32.gmra.mxu0 %v3139
        %v3141 = vpop.f32.mrf.mxu0
        %v3142 = vadd.f32 %v2961, %v3141
        %v3143 = vand.u32 %v286, 4294901760
        %v3144 = vsub.f32 %v286, %v3143
        %v3145 = vand.u32 %v3144, 4294901760
        %v3146 = vsub.f32 %v3144, %v3145
        %v3147 = vand.u32 %v3146, 4294901760
        %3148 = vmatmul.f32.gmra.mxu0 %v3147
        %v3149 = vpop.f32.mrf.mxu0
        %v3150 = vadd.f32 %v2965, %v3149
        %v3151 = vand.u32 %v289, 4294901760
        %v3152 = vsub.f32 %v289, %v3151
        %v3153 = vand.u32 %v3152, 4294901760
        %v3154 = vsub.f32 %v3152, %v3153
        %v3155 = vand.u32 %v3154, 4294901760
        %3156 = vmatmul.f32.gmra.mxu0 %v3155
        %v3157 = vpop.f32.mrf.mxu0
        %v3158 = vadd.f32 %v2969, %v3157
        %v3159 = vand.u32 %v292, 4294901760
        %v3160 = vsub.f32 %v292, %v3159
        %v3161 = vand.u32 %v3160, 4294901760
        %v3162 = vsub.f32 %v3160, %v3161
        %v3163 = vand.u32 %v3162, 4294901760
        %3164 = vmatmul.f32.gmra.mxu0 %v3163
        %v3165 = vpop.f32.mrf.mxu0
        %v3166 = vadd.f32 %v2973, %v3165
        %v3167 = vand.u32 %v295, 4294901760
        %v3168 = vsub.f32 %v295, %v3167
        %v3169 = vand.u32 %v3168, 4294901760
        %v3170 = vsub.f32 %v3168, %v3169
        %v3171 = vand.u32 %v3170, 4294901760
        %3172 = vmatmul.f32.gmra.mxu0 %v3171
        %v3173 = vpop.f32.mrf.mxu0
        %v3174 = vadd.f32 %v2977, %v3173
        %v3175 = vand.u32 %v298, 4294901760
        %v3176 = vsub.f32 %v298, %v3175
        %v3177 = vand.u32 %v3176, 4294901760
        %v3178 = vsub.f32 %v3176, %v3177
        %v3179 = vand.u32 %v3178, 4294901760
        %3180 = vmatmul.f32.gmra.mxu0 %v3179
        %v3181 = vpop.f32.mrf.mxu0
        %v3182 = vadd.f32 %v2981, %v3181
        %v3183 = vand.u32 %v301, 4294901760
        %v3184 = vsub.f32 %v301, %v3183
        %v3185 = vand.u32 %v3184, 4294901760
        %v3186 = vsub.f32 %v3184, %v3185
        %v3187 = vand.u32 %v3186, 4294901760
        %3188 = vmatmul.f32.gmra.mxu0 %v3187
        %v3189 = vpop.f32.mrf.mxu0
        %v3190 = vadd.f32 %v2985, %v3189
        %v3191 = vand.u32 %v304, 4294901760
        %v3192 = vsub.f32 %v304, %v3191
        %v3193 = vand.u32 %v3192, 4294901760
        %v3194 = vsub.f32 %v3192, %v3193
        %v3195 = vand.u32 %v3194, 4294901760
        %3196 = vmatmul.f32.gmra.mxu0 %v3195
        %v3197 = vpop.f32.mrf.mxu0
        %v3198 = vadd.f32 %v2989, %v3197
        %v3199 = vand.u32 %v307, 4294901760
        %v3200 = vsub.f32 %v307, %v3199
        %v3201 = vand.u32 %v3200, 4294901760
        %v3202 = vsub.f32 %v3200, %v3201
        %v3203 = vand.u32 %v3202, 4294901760
        %3204 = vmatmul.f32.gmra.mxu0 %v3203
        %v3205 = vpop.f32.mrf.mxu0
        %v3206 = vadd.f32 %v2993, %v3205
        %v3207 = vand.u32 %v310, 4294901760
        %v3208 = vsub.f32 %v310, %v3207
        %v3209 = vand.u32 %v3208, 4294901760
        %v3210 = vsub.f32 %v3208, %v3209
        %v3211 = vand.u32 %v3210, 4294901760
        %3212 = vmatmul.f32.gmra.mxu0 %v3211
        %v3213 = vpop.f32.mrf.mxu0
        %v3214 = vadd.f32 %v2997, %v3213
        %v3215 = vand.u32 %v313, 4294901760
        %v3216 = vsub.f32 %v313, %v3215
        %v3217 = vand.u32 %v3216, 4294901760
        %v3218 = vsub.f32 %v3216, %v3217
        %v3219 = vand.u32 %v3218, 4294901760
        %3220 = vmatmul.f32.gmra.mxu0 %v3219
        %v3221 = vpop.f32.mrf.mxu0
        %v3222 = vadd.f32 %v3001, %v3221
        %v3223 = vand.u32 %v316, 4294901760
        %v3224 = vsub.f32 %v316, %v3223
        %v3225 = vand.u32 %v3224, 4294901760
        %v3226 = vsub.f32 %v3224, %v3225
        %v3227 = vand.u32 %v3226, 4294901760
        %3228 = vmatmul.f32.gmra.mxu0 %v3227
        %v3229 = vpop.f32.mrf.mxu0
        %v3230 = vadd.f32 %v3005, %v3229
        %v3231 = vand.u32 %v319, 4294901760
        %v3232 = vsub.f32 %v319, %v3231
        %v3233 = vand.u32 %v3232, 4294901760
        %v3234 = vsub.f32 %v3232, %v3233
        %v3235 = vand.u32 %v3234, 4294901760
        %3236 = vmatmul.f32.gmra.mxu0 %v3235
        %v3237 = vpop.f32.mrf.mxu0
        %v3238 = vadd.f32 %v3009, %v3237
        %v3239 = vand.u32 %v322, 4294901760
        %v3240 = vsub.f32 %v322, %v3239
        %v3241 = vand.u32 %v3240, 4294901760
        %v3242 = vsub.f32 %v3240, %v3241
        %v3243 = vand.u32 %v3242, 4294901760
        %3244 = vmatmul.f32.gmra.mxu0 %v3243
        %v3245 = vpop.f32.mrf.mxu0
        %v3246 = vadd.f32 %v3013, %v3245
        %v3247 = vand.u32 %v325, 4294901760
        %v3248 = vsub.f32 %v325, %v3247
        %v3249 = vand.u32 %v3248, 4294901760
        %v3250 = vsub.f32 %v3248, %v3249
        %v3251 = vand.u32 %v3250, 4294901760
        %3252 = vmatmul.f32.gmra.mxu0 %v3251
        %v3253 = vpop.f32.mrf.mxu0
        %v3254 = vadd.f32 %v3017, %v3253
        %v3255 = vand.u32 %v328, 4294901760
        %v3256 = vsub.f32 %v328, %v3255
        %v3257 = vand.u32 %v3256, 4294901760
        %v3258 = vsub.f32 %v3256, %v3257
        %v3259 = vand.u32 %v3258, 4294901760
        %3260 = vmatmul.f32.gmra.mxu0 %v3259
        %v3261 = vpop.f32.mrf.mxu0
        %v3262 = vadd.f32 %v3021, %v3261
        %v3263 = vand.u32 %v331, 4294901760
        %v3264 = vsub.f32 %v331, %v3263
        %v3265 = vand.u32 %v3264, 4294901760
        %v3266 = vsub.f32 %v3264, %v3265
        %v3267 = vand.u32 %v3266, 4294901760
        %3268 = vmatmul.f32.gmra.mxu0 %v3267
        %v3269 = vpop.f32.mrf.mxu0
        %v3270 = vadd.f32 %v3025, %v3269
        %v3271 = vand.u32 %v334, 4294901760
        %v3272 = vsub.f32 %v334, %v3271
        %v3273 = vand.u32 %v3272, 4294901760
        %v3274 = vsub.f32 %v3272, %v3273
        %v3275 = vand.u32 %v3274, 4294901760
        %3276 = vmatmul.f32.gmra.mxu0 %v3275
        %v3277 = vpop.f32.mrf.mxu0
        %v3278 = vadd.f32 %v3029, %v3277
        %v3279 = vand.u32 %v337, 4294901760
        %v3280 = vsub.f32 %v337, %v3279
        %v3281 = vand.u32 %v3280, 4294901760
        %v3282 = vsub.f32 %v3280, %v3281
        %v3283 = vand.u32 %v3282, 4294901760
        %3284 = vmatmul.f32.gmra.mxu0 %v3283
        %v3285 = vpop.f32.mrf.mxu0
        %v3286 = vadd.f32 %v3033, %v3285
        %v3287 = vand.u32 %v340, 4294901760
        %v3288 = vsub.f32 %v340, %v3287
        %v3289 = vand.u32 %v3288, 4294901760
        %v3290 = vsub.f32 %v3288, %v3289
        %v3291 = vand.u32 %v3290, 4294901760
        %3292 = vmatmul.f32.gmra.mxu0 %v3291
        %v3293 = vpop.f32.mrf.mxu0
        %v3294 = vadd.f32 %v3037, %v3293
        %v3295 = vand.u32 %v343, 4294901760
        %v3296 = vsub.f32 %v343, %v3295
        %v3297 = vand.u32 %v3296, 4294901760
        %v3298 = vsub.f32 %v3296, %v3297
        %v3299 = vand.u32 %v3298, 4294901760
        %3300 = vmatmul.f32.gmra.mxu0 %v3299
        %v3301 = vpop.f32.mrf.mxu0
        %v3302 = vadd.f32 %v3041, %v3301
        %v3303 = vand.u32 %v346, 4294901760
        %v3304 = vsub.f32 %v346, %v3303
        %v3305 = vand.u32 %v3304, 4294901760
        %v3306 = vsub.f32 %v3304, %v3305
        %v3307 = vand.u32 %v3306, 4294901760
        %3308 = vmatmul.f32.gmra.mxu0 %v3307
        %v3309 = vpop.f32.mrf.mxu0
        %v3310 = vadd.f32 %v3045, %v3309
        %v3311 = vand.u32 %v349, 4294901760
        %v3312 = vsub.f32 %v349, %v3311
        %v3313 = vand.u32 %v3312, 4294901760
        %v3314 = vsub.f32 %v3312, %v3313
        %v3315 = vand.u32 %v3314, 4294901760
        %3316 = vmatmul.f32.gmra.mxu0 %v3315
        %v3317 = vpop.f32.mrf.mxu0
        %v3318 = vadd.f32 %v3049, %v3317
        %v3319 = vand.u32 %v352, 4294901760
        %v3320 = vsub.f32 %v352, %v3319
        %v3321 = vand.u32 %v3320, 4294901760
        %v3322 = vsub.f32 %v3320, %v3321
        %v3323 = vand.u32 %v3322, 4294901760
        %3324 = vmatmul.f32.gmra.mxu0 %v3323
        %v3325 = vpop.f32.mrf.mxu0
        %v3326 = vadd.f32 %v3053, %v3325
        %v3327 = vand.u32 %v355, 4294901760
        %v3328 = vsub.f32 %v355, %v3327
        %v3329 = vand.u32 %v3328, 4294901760
        %v3330 = vsub.f32 %v3328, %v3329
        %v3331 = vand.u32 %v3330, 4294901760
        %3332 = vmatmul.f32.gmra.mxu0 %v3331
        %v3333 = vpop.f32.mrf.mxu0
        %v3334 = vadd.f32 %v3057, %v3333
        %v3335 = vand.u32 %v358, 4294901760
        %v3336 = vsub.f32 %v358, %v3335
        %v3337 = vand.u32 %v3336, 4294901760
        %v3338 = vsub.f32 %v3336, %v3337
        %v3339 = vand.u32 %v3338, 4294901760
        %3340 = vmatmul.f32.gmra.mxu0 %v3339
        %v3341 = vpop.f32.mrf.mxu0
        %v3342 = vadd.f32 %v3061, %v3341
        %v3343 = vand.u32 %v361, 4294901760
        %v3344 = vsub.f32 %v361, %v3343
        %v3345 = vand.u32 %v3344, 4294901760
        %v3346 = vsub.f32 %v3344, %v3345
        %v3347 = vand.u32 %v3346, 4294901760
        %3348 = vmatmul.f32.gmra.mxu0 %v3347
        %v3349 = vpop.f32.mrf.mxu0
        %v3350 = vadd.f32 %v3065, %v3349
        %v3351 = vand.u32 %v364, 4294901760
        %v3352 = vsub.f32 %v364, %v3351
        %v3353 = vand.u32 %v3352, 4294901760
        %v3354 = vsub.f32 %v3352, %v3353
        %v3355 = vand.u32 %v3354, 4294901760
        %3356 = vmatmul.f32.gmra.mxu0 %v3355
        %v3357 = vpop.f32.mrf.mxu0
        %v3358 = vadd.f32 %v3069, %v3357
        %3359 = vdwg.mxu0
        %v3360 = vand.u32 %v459, 4294901760
        %v3361 = vsub.f32 %v459, %v3360
        %v3362 = vand.u32 %v3361, 4294901760
        %v3363 = vsub.f32 %v3361, %v3362
        %v3364 = vand.u32 %v3363, 4294901760
        %3365 = vmatpush.msra.mxu0 %v3364
        %v3366 = vand.u32 %v457, 4294901760
        %v3367 = vsub.f32 %v457, %v3366
        %v3368 = vand.u32 %v3367, 4294901760
        %v3369 = vsub.f32 %v3367, %v3368
        %v3370 = vand.u32 %v3369, 4294901760
        %3371 = vmatpush.msra.mxu0 %v3370
        %v3372 = vand.u32 %v455, 4294901760
        %v3373 = vsub.f32 %v455, %v3372
        %v3374 = vand.u32 %v3373, 4294901760
        %v3375 = vsub.f32 %v3373, %v3374
        %v3376 = vand.u32 %v3375, 4294901760
        %3377 = vmatpush.msra.mxu0 %v3376
        %v3378 = vand.u32 %v453, 4294901760
        %v3379 = vsub.f32 %v453, %v3378
        %v3380 = vand.u32 %v3379, 4294901760
        %v3381 = vsub.f32 %v3379, %v3380
        %v3382 = vand.u32 %v3381, 4294901760
        %3383 = vmatpush.msra.mxu0 %v3382
        %v3384 = vand.u32 %v451, 4294901760
        %v3385 = vsub.f32 %v451, %v3384
        %v3386 = vand.u32 %v3385, 4294901760
        %v3387 = vsub.f32 %v3385, %v3386
        %v3388 = vand.u32 %v3387, 4294901760
        %3389 = vmatpush.msra.mxu0 %v3388
        %v3390 = vand.u32 %v449, 4294901760
        %v3391 = vsub.f32 %v449, %v3390
        %v3392 = vand.u32 %v3391, 4294901760
        %v3393 = vsub.f32 %v3391, %v3392
        %v3394 = vand.u32 %v3393, 4294901760
        %3395 = vmatpush.msra.mxu0 %v3394
        %v3396 = vand.u32 %v447, 4294901760
        %v3397 = vsub.f32 %v447, %v3396
        %v3398 = vand.u32 %v3397, 4294901760
        %v3399 = vsub.f32 %v3397, %v3398
        %v3400 = vand.u32 %v3399, 4294901760
        %3401 = vmatpush.msra.mxu0 %v3400
        %v3402 = vand.u32 %v445, 4294901760
        %v3403 = vsub.f32 %v445, %v3402
        %v3404 = vand.u32 %v3403, 4294901760
        %v3405 = vsub.f32 %v3403, %v3404
        %v3406 = vand.u32 %v3405, 4294901760
        %3407 = vmatpush.msra.mxu0 %v3406
        %v3408 = vand.u32 %v443, 4294901760
        %v3409 = vsub.f32 %v443, %v3408
        %v3410 = vand.u32 %v3409, 4294901760
        %v3411 = vsub.f32 %v3409, %v3410
        %v3412 = vand.u32 %v3411, 4294901760
        %3413 = vmatpush.msra.mxu0 %v3412
        %v3414 = vand.u32 %v441, 4294901760
        %v3415 = vsub.f32 %v441, %v3414
        %v3416 = vand.u32 %v3415, 4294901760
        %v3417 = vsub.f32 %v3415, %v3416
        %v3418 = vand.u32 %v3417, 4294901760
        %3419 = vmatpush.msra.mxu0 %v3418
        %v3420 = vand.u32 %v439, 4294901760
        %v3421 = vsub.f32 %v439, %v3420
        %v3422 = vand.u32 %v3421, 4294901760
        %v3423 = vsub.f32 %v3421, %v3422
        %v3424 = vand.u32 %v3423, 4294901760
        %3425 = vmatpush.msra.mxu0 %v3424
        %v3426 = vand.u32 %v437, 4294901760
        %v3427 = vsub.f32 %v437, %v3426
        %v3428 = vand.u32 %v3427, 4294901760
        %v3429 = vsub.f32 %v3427, %v3428
        %v3430 = vand.u32 %v3429, 4294901760
        %3431 = vmatpush.msra.mxu0 %v3430
        %v3432 = vand.u32 %v435, 4294901760
        %v3433 = vsub.f32 %v435, %v3432
        %v3434 = vand.u32 %v3433, 4294901760
        %v3435 = vsub.f32 %v3433, %v3434
        %v3436 = vand.u32 %v3435, 4294901760
        %3437 = vmatpush.msra.mxu0 %v3436
        %v3438 = vand.u32 %v433, 4294901760
        %v3439 = vsub.f32 %v433, %v3438
        %v3440 = vand.u32 %v3439, 4294901760
        %v3441 = vsub.f32 %v3439, %v3440
        %v3442 = vand.u32 %v3441, 4294901760
        %3443 = vmatpush.msra.mxu0 %v3442
        %v3444 = vand.u32 %v431, 4294901760
        %v3445 = vsub.f32 %v431, %v3444
        %v3446 = vand.u32 %v3445, 4294901760
        %v3447 = vsub.f32 %v3445, %v3446
        %v3448 = vand.u32 %v3447, 4294901760
        %3449 = vmatpush.msra.mxu0 %v3448
        %v3450 = vand.u32 %v429, 4294901760
        %v3451 = vsub.f32 %v429, %v3450
        %v3452 = vand.u32 %v3451, 4294901760
        %v3453 = vsub.f32 %v3451, %v3452
        %v3454 = vand.u32 %v3453, 4294901760
        %3455 = vmatpush.msra.mxu0 %v3454
        %v3456 = vand.u32 %v271, 4294901760
        %3457 = vmatmul.f32.gmra.mxu0 %v3456
        %v3458 = vpop.f32.mrf.mxu0
        %v3459 = vadd.f32 %v3110, %v3458
        %v3460 = vand.u32 %v274, 4294901760
        %3461 = vmatmul.f32.gmra.mxu0 %v3460
        %v3462 = vpop.f32.mrf.mxu0
        %v3463 = vadd.f32 %v3118, %v3462
        %v3464 = vand.u32 %v277, 4294901760
        %3465 = vmatmul.f32.gmra.mxu0 %v3464
        %v3466 = vpop.f32.mrf.mxu0
        %v3467 = vadd.f32 %v3126, %v3466
        %v3468 = vand.u32 %v280, 4294901760
        %3469 = vmatmul.f32.gmra.mxu0 %v3468
        %v3470 = vpop.f32.mrf.mxu0
        %v3471 = vadd.f32 %v3134, %v3470
        %v3472 = vand.u32 %v283, 4294901760
        %3473 = vmatmul.f32.gmra.mxu0 %v3472
        %v3474 = vpop.f32.mrf.mxu0
        %v3475 = vadd.f32 %v3142, %v3474
        %v3476 = vand.u32 %v286, 4294901760
        %3477 = vmatmul.f32.gmra.mxu0 %v3476
        %v3478 = vpop.f32.mrf.mxu0
        %v3479 = vadd.f32 %v3150, %v3478
        %v3480 = vand.u32 %v289, 4294901760
        %3481 = vmatmul.f32.gmra.mxu0 %v3480
        %v3482 = vpop.f32.mrf.mxu0
        %v3483 = vadd.f32 %v3158, %v3482
        %v3484 = vand.u32 %v292, 4294901760
        %3485 = vmatmul.f32.gmra.mxu0 %v3484
        %v3486 = vpop.f32.mrf.mxu0
        %v3487 = vadd.f32 %v3166, %v3486
        %v3488 = vand.u32 %v295, 4294901760
        %3489 = vmatmul.f32.gmra.mxu0 %v3488
        %v3490 = vpop.f32.mrf.mxu0
        %v3491 = vadd.f32 %v3174, %v3490
        %v3492 = vand.u32 %v298, 4294901760
        %3493 = vmatmul.f32.gmra.mxu0 %v3492
        %v3494 = vpop.f32.mrf.mxu0
        %v3495 = vadd.f32 %v3182, %v3494
        %v3496 = vand.u32 %v301, 4294901760
        %3497 = vmatmul.f32.gmra.mxu0 %v3496
        %v3498 = vpop.f32.mrf.mxu0
        %v3499 = vadd.f32 %v3190, %v3498
        %v3500 = vand.u32 %v304, 4294901760
        %3501 = vmatmul.f32.gmra.mxu0 %v3500
        %v3502 = vpop.f32.mrf.mxu0
        %v3503 = vadd.f32 %v3198, %v3502
        %v3504 = vand.u32 %v307, 4294901760
        %3505 = vmatmul.f32.gmra.mxu0 %v3504
        %v3506 = vpop.f32.mrf.mxu0
        %v3507 = vadd.f32 %v3206, %v3506
        %v3508 = vand.u32 %v310, 4294901760
        %3509 = vmatmul.f32.gmra.mxu0 %v3508
        %v3510 = vpop.f32.mrf.mxu0
        %v3511 = vadd.f32 %v3214, %v3510
        %v3512 = vand.u32 %v313, 4294901760
        %3513 = vmatmul.f32.gmra.mxu0 %v3512
        %v3514 = vpop.f32.mrf.mxu0
        %v3515 = vadd.f32 %v3222, %v3514
        %v3516 = vand.u32 %v316, 4294901760
        %3517 = vmatmul.f32.gmra.mxu0 %v3516
        %v3518 = vpop.f32.mrf.mxu0
        %v3519 = vadd.f32 %v3230, %v3518
        %v3520 = vand.u32 %v319, 4294901760
        %3521 = vmatmul.f32.gmra.mxu0 %v3520
        %v3522 = vpop.f32.mrf.mxu0
        %v3523 = vadd.f32 %v3238, %v3522
        %v3524 = vand.u32 %v322, 4294901760
        %3525 = vmatmul.f32.gmra.mxu0 %v3524
        %v3526 = vpop.f32.mrf.mxu0
        %v3527 = vadd.f32 %v3246, %v3526
        %v3528 = vand.u32 %v325, 4294901760
        %3529 = vmatmul.f32.gmra.mxu0 %v3528
        %v3530 = vpop.f32.mrf.mxu0
        %v3531 = vadd.f32 %v3254, %v3530
        %v3532 = vand.u32 %v328, 4294901760
        %3533 = vmatmul.f32.gmra.mxu0 %v3532
        %v3534 = vpop.f32.mrf.mxu0
        %v3535 = vadd.f32 %v3262, %v3534
        %v3536 = vand.u32 %v331, 4294901760
        %3537 = vmatmul.f32.gmra.mxu0 %v3536
        %v3538 = vpop.f32.mrf.mxu0
        %v3539 = vadd.f32 %v3270, %v3538
        %v3540 = vand.u32 %v334, 4294901760
        %3541 = vmatmul.f32.gmra.mxu0 %v3540
        %v3542 = vpop.f32.mrf.mxu0
        %v3543 = vadd.f32 %v3278, %v3542
        %v3544 = vand.u32 %v337, 4294901760
        %3545 = vmatmul.f32.gmra.mxu0 %v3544
        %v3546 = vpop.f32.mrf.mxu0
        %v3547 = vadd.f32 %v3286, %v3546
        %v3548 = vand.u32 %v340, 4294901760
        %3549 = vmatmul.f32.gmra.mxu0 %v3548
        %v3550 = vpop.f32.mrf.mxu0
        %v3551 = vadd.f32 %v3294, %v3550
        %v3552 = vand.u32 %v343, 4294901760
        %3553 = vmatmul.f32.gmra.mxu0 %v3552
        %v3554 = vpop.f32.mrf.mxu0
        %v3555 = vadd.f32 %v3302, %v3554
        %v3556 = vand.u32 %v346, 4294901760
        %3557 = vmatmul.f32.gmra.mxu0 %v3556
        %v3558 = vpop.f32.mrf.mxu0
        %v3559 = vadd.f32 %v3310, %v3558
        %v3560 = vand.u32 %v349, 4294901760
        %3561 = vmatmul.f32.gmra.mxu0 %v3560
        %v3562 = vpop.f32.mrf.mxu0
        %v3563 = vadd.f32 %v3318, %v3562
        %v3564 = vand.u32 %v352, 4294901760
        %3565 = vmatmul.f32.gmra.mxu0 %v3564
        %v3566 = vpop.f32.mrf.mxu0
        %v3567 = vadd.f32 %v3326, %v3566
        %v3568 = vand.u32 %v355, 4294901760
        %3569 = vmatmul.f32.gmra.mxu0 %v3568
        %v3570 = vpop.f32.mrf.mxu0
        %v3571 = vadd.f32 %v3334, %v3570
        %v3572 = vand.u32 %v358, 4294901760
        %3573 = vmatmul.f32.gmra.mxu0 %v3572
        %v3574 = vpop.f32.mrf.mxu0
        %v3575 = vadd.f32 %v3342, %v3574
        %v3576 = vand.u32 %v361, 4294901760
        %3577 = vmatmul.f32.gmra.mxu0 %v3576
        %v3578 = vpop.f32.mrf.mxu0
        %v3579 = vadd.f32 %v3350, %v3578
        %v3580 = vand.u32 %v364, 4294901760
        %3581 = vmatmul.f32.gmra.mxu0 %v3580
        %v3582 = vpop.f32.mrf.mxu0
        %v3583 = vadd.f32 %v3358, %v3582
        %3584 = vdwg.mxu0
        %v3585 = vand.u32 %v459, 4294901760
        %v3586 = vsub.f32 %v459, %v3585
        %3587 = vmatpush.msra.mxu0 %v3586
        %v3588 = vand.u32 %v457, 4294901760
        %v3589 = vsub.f32 %v457, %v3588
        %3590 = vmatpush.msra.mxu0 %v3589
        %v3591 = vand.u32 %v455, 4294901760
        %v3592 = vsub.f32 %v455, %v3591
        %3593 = vmatpush.msra.mxu0 %v3592
        %v3594 = vand.u32 %v453, 4294901760
        %v3595 = vsub.f32 %v453, %v3594
        %3596 = vmatpush.msra.mxu0 %v3595
        %v3597 = vand.u32 %v451, 4294901760
        %v3598 = vsub.f32 %v451, %v3597
        %3599 = vmatpush.msra.mxu0 %v3598
        %v3600 = vand.u32 %v449, 4294901760
        %v3601 = vsub.f32 %v449, %v3600
        %3602 = vmatpush.msra.mxu0 %v3601
        %v3603 = vand.u32 %v447, 4294901760
        %v3604 = vsub.f32 %v447, %v3603
        %3605 = vmatpush.msra.mxu0 %v3604
        %v3606 = vand.u32 %v445, 4294901760
        %v3607 = vsub.f32 %v445, %v3606
        %3608 = vmatpush.msra.mxu0 %v3607
        %v3609 = vand.u32 %v443, 4294901760
        %v3610 = vsub.f32 %v443, %v3609
        %3611 = vmatpush.msra.mxu0 %v3610
        %v3612 = vand.u32 %v441, 4294901760
        %v3613 = vsub.f32 %v441, %v3612
        %3614 = vmatpush.msra.mxu0 %v3613
        %v3615 = vand.u32 %v439, 4294901760
        %v3616 = vsub.f32 %v439, %v3615
        %3617 = vmatpush.msra.mxu0 %v3616
        %v3618 = vand.u32 %v437, 4294901760
        %v3619 = vsub.f32 %v437, %v3618
        %3620 = vmatpush.msra.mxu0 %v3619
        %v3621 = vand.u32 %v435, 4294901760
        %v3622 = vsub.f32 %v435, %v3621
        %3623 = vmatpush.msra.mxu0 %v3622
        %v3624 = vand.u32 %v433, 4294901760
        %v3625 = vsub.f32 %v433, %v3624
        %3626 = vmatpush.msra.mxu0 %v3625
        %v3627 = vand.u32 %v431, 4294901760
        %v3628 = vsub.f32 %v431, %v3627
        %3629 = vmatpush.msra.mxu0 %v3628
        %v3630 = vand.u32 %v429, 4294901760
        %v3631 = vsub.f32 %v429, %v3630
        %3632 = vmatpush.msra.mxu0 %v3631
        %v3633 = vand.u32 %v271, 4294901760
        %v3634 = vsub.f32 %v271, %v3633
        %3635 = vmatmul.f32.gmra.mxu0 %v3634
        %v3636 = vpop.f32.mrf.mxu0
        %v3637 = vadd.f32 %v3459, %v3636
        %v3638 = vand.u32 %v274, 4294901760
        %v3639 = vsub.f32 %v274, %v3638
        %3640 = vmatmul.f32.gmra.mxu0 %v3639
        %v3641 = vpop.f32.mrf.mxu0
        %v3642 = vadd.f32 %v3463, %v3641
        %v3643 = vand.u32 %v277, 4294901760
        %v3644 = vsub.f32 %v277, %v3643
        %3645 = vmatmul.f32.gmra.mxu0 %v3644
        %v3646 = vpop.f32.mrf.mxu0
        %v3647 = vadd.f32 %v3467, %v3646
        %v3648 = vand.u32 %v280, 4294901760
        %v3649 = vsub.f32 %v280, %v3648
        %3650 = vmatmul.f32.gmra.mxu0 %v3649
        %v3651 = vpop.f32.mrf.mxu0
        %v3652 = vadd.f32 %v3471, %v3651
        %v3653 = vand.u32 %v283, 4294901760
        %v3654 = vsub.f32 %v283, %v3653
        %3655 = vmatmul.f32.gmra.mxu0 %v3654
        %v3656 = vpop.f32.mrf.mxu0
        %v3657 = vadd.f32 %v3475, %v3656
        %v3658 = vand.u32 %v286, 4294901760
        %v3659 = vsub.f32 %v286, %v3658
        %3660 = vmatmul.f32.gmra.mxu0 %v3659
        %v3661 = vpop.f32.mrf.mxu0
        %v3662 = vadd.f32 %v3479, %v3661
        %v3663 = vand.u32 %v289, 4294901760
        %v3664 = vsub.f32 %v289, %v3663
        %3665 = vmatmul.f32.gmra.mxu0 %v3664
        %v3666 = vpop.f32.mrf.mxu0
        %v3667 = vadd.f32 %v3483, %v3666
        %v3668 = vand.u32 %v292, 4294901760
        %v3669 = vsub.f32 %v292, %v3668
        %3670 = vmatmul.f32.gmra.mxu0 %v3669
        %v3671 = vpop.f32.mrf.mxu0
        %v3672 = vadd.f32 %v3487, %v3671
        %v3673 = vand.u32 %v295, 4294901760
        %v3674 = vsub.f32 %v295, %v3673
        %3675 = vmatmul.f32.gmra.mxu0 %v3674
        %v3676 = vpop.f32.mrf.mxu0
        %v3677 = vadd.f32 %v3491, %v3676
        %v3678 = vand.u32 %v298, 4294901760
        %v3679 = vsub.f32 %v298, %v3678
        %3680 = vmatmul.f32.gmra.mxu0 %v3679
        %v3681 = vpop.f32.mrf.mxu0
        %v3682 = vadd.f32 %v3495, %v3681
        %v3683 = vand.u32 %v301, 4294901760
        %v3684 = vsub.f32 %v301, %v3683
        %3685 = vmatmul.f32.gmra.mxu0 %v3684
        %v3686 = vpop.f32.mrf.mxu0
        %v3687 = vadd.f32 %v3499, %v3686
        %v3688 = vand.u32 %v304, 4294901760
        %v3689 = vsub.f32 %v304, %v3688
        %3690 = vmatmul.f32.gmra.mxu0 %v3689
        %v3691 = vpop.f32.mrf.mxu0
        %v3692 = vadd.f32 %v3503, %v3691
        %v3693 = vand.u32 %v307, 4294901760
        %v3694 = vsub.f32 %v307, %v3693
        %3695 = vmatmul.f32.gmra.mxu0 %v3694
        %v3696 = vpop.f32.mrf.mxu0
        %v3697 = vadd.f32 %v3507, %v3696
        %v3698 = vand.u32 %v310, 4294901760
        %v3699 = vsub.f32 %v310, %v3698
        %3700 = vmatmul.f32.gmra.mxu0 %v3699
        %v3701 = vpop.f32.mrf.mxu0
        %v3702 = vadd.f32 %v3511, %v3701
        %v3703 = vand.u32 %v313, 4294901760
        %v3704 = vsub.f32 %v313, %v3703
        %3705 = vmatmul.f32.gmra.mxu0 %v3704
        %v3706 = vpop.f32.mrf.mxu0
        %v3707 = vadd.f32 %v3515, %v3706
        %v3708 = vand.u32 %v316, 4294901760
        %v3709 = vsub.f32 %v316, %v3708
        %3710 = vmatmul.f32.gmra.mxu0 %v3709
        %v3711 = vpop.f32.mrf.mxu0
        %v3712 = vadd.f32 %v3519, %v3711
        %v3713 = vand.u32 %v319, 4294901760
        %v3714 = vsub.f32 %v319, %v3713
        %3715 = vmatmul.f32.gmra.mxu0 %v3714
        %v3716 = vpop.f32.mrf.mxu0
        %v3717 = vadd.f32 %v3523, %v3716
        %v3718 = vand.u32 %v322, 4294901760
        %v3719 = vsub.f32 %v322, %v3718
        %3720 = vmatmul.f32.gmra.mxu0 %v3719
        %v3721 = vpop.f32.mrf.mxu0
        %v3722 = vadd.f32 %v3527, %v3721
        %v3723 = vand.u32 %v325, 4294901760
        %v3724 = vsub.f32 %v325, %v3723
        %3725 = vmatmul.f32.gmra.mxu0 %v3724
        %v3726 = vpop.f32.mrf.mxu0
        %v3727 = vadd.f32 %v3531, %v3726
        %v3728 = vand.u32 %v328, 4294901760
        %v3729 = vsub.f32 %v328, %v3728
        %3730 = vmatmul.f32.gmra.mxu0 %v3729
        %v3731 = vpop.f32.mrf.mxu0
        %v3732 = vadd.f32 %v3535, %v3731
        %v3733 = vand.u32 %v331, 4294901760
        %v3734 = vsub.f32 %v331, %v3733
        %3735 = vmatmul.f32.gmra.mxu0 %v3734
        %v3736 = vpop.f32.mrf.mxu0
        %v3737 = vadd.f32 %v3539, %v3736
        %v3738 = vand.u32 %v334, 4294901760
        %v3739 = vsub.f32 %v334, %v3738
        %3740 = vmatmul.f32.gmra.mxu0 %v3739
        %v3741 = vpop.f32.mrf.mxu0
        %v3742 = vadd.f32 %v3543, %v3741
        %v3743 = vand.u32 %v337, 4294901760
        %v3744 = vsub.f32 %v337, %v3743
        %3745 = vmatmul.f32.gmra.mxu0 %v3744
        %v3746 = vpop.f32.mrf.mxu0
        %v3747 = vadd.f32 %v3547, %v3746
        %v3748 = vand.u32 %v340, 4294901760
        %v3749 = vsub.f32 %v340, %v3748
        %3750 = vmatmul.f32.gmra.mxu0 %v3749
        %v3751 = vpop.f32.mrf.mxu0
        %v3752 = vadd.f32 %v3551, %v3751
        %v3753 = vand.u32 %v343, 4294901760
        %v3754 = vsub.f32 %v343, %v3753
        %3755 = vmatmul.f32.gmra.mxu0 %v3754
        %v3756 = vpop.f32.mrf.mxu0
        %v3757 = vadd.f32 %v3555, %v3756
        %v3758 = vand.u32 %v346, 4294901760
        %v3759 = vsub.f32 %v346, %v3758
        %3760 = vmatmul.f32.gmra.mxu0 %v3759
        %v3761 = vpop.f32.mrf.mxu0
        %v3762 = vadd.f32 %v3559, %v3761
        %v3763 = vand.u32 %v349, 4294901760
        %v3764 = vsub.f32 %v349, %v3763
        %3765 = vmatmul.f32.gmra.mxu0 %v3764
        %v3766 = vpop.f32.mrf.mxu0
        %v3767 = vadd.f32 %v3563, %v3766
        %v3768 = vand.u32 %v352, 4294901760
        %v3769 = vsub.f32 %v352, %v3768
        %3770 = vmatmul.f32.gmra.mxu0 %v3769
        %v3771 = vpop.f32.mrf.mxu0
        %v3772 = vadd.f32 %v3567, %v3771
        %v3773 = vand.u32 %v355, 4294901760
        %v3774 = vsub.f32 %v355, %v3773
        %3775 = vmatmul.f32.gmra.mxu0 %v3774
        %v3776 = vpop.f32.mrf.mxu0
        %v3777 = vadd.f32 %v3571, %v3776
        %v3778 = vand.u32 %v358, 4294901760
        %v3779 = vsub.f32 %v358, %v3778
        %3780 = vmatmul.f32.gmra.mxu0 %v3779
        %v3781 = vpop.f32.mrf.mxu0
        %v3782 = vadd.f32 %v3575, %v3781
        %v3783 = vand.u32 %v361, 4294901760
        %v3784 = vsub.f32 %v361, %v3783
        %3785 = vmatmul.f32.gmra.mxu0 %v3784
        %v3786 = vpop.f32.mrf.mxu0
        %v3787 = vadd.f32 %v3579, %v3786
        %v3788 = vand.u32 %v364, 4294901760
        %v3789 = vsub.f32 %v364, %v3788
        %3790 = vmatmul.f32.gmra.mxu0 %v3789
        %v3791 = vpop.f32.mrf.mxu0
        %v3792 = vadd.f32 %v3583, %v3791
        %3793 = vdwg.mxu0
        %v3794 = vand.u32 %v459, 4294901760
        %3795 = vmatpush.msra.mxu0 %v3794
        %v3796 = vand.u32 %v457, 4294901760
        %3797 = vmatpush.msra.mxu0 %v3796
        %v3798 = vand.u32 %v455, 4294901760
        %3799 = vmatpush.msra.mxu0 %v3798
        %v3800 = vand.u32 %v453, 4294901760
        %3801 = vmatpush.msra.mxu0 %v3800
        %v3802 = vand.u32 %v451, 4294901760
        %3803 = vmatpush.msra.mxu0 %v3802
        %v3804 = vand.u32 %v449, 4294901760
        %3805 = vmatpush.msra.mxu0 %v3804
        %v3806 = vand.u32 %v447, 4294901760
        %3807 = vmatpush.msra.mxu0 %v3806
        %v3808 = vand.u32 %v445, 4294901760
        %3809 = vmatpush.msra.mxu0 %v3808
        %v3810 = vand.u32 %v443, 4294901760
        %3811 = vmatpush.msra.mxu0 %v3810
        %v3812 = vand.u32 %v441, 4294901760
        %3813 = vmatpush.msra.mxu0 %v3812
        %v3814 = vand.u32 %v439, 4294901760
        %3815 = vmatpush.msra.mxu0 %v3814
        %v3816 = vand.u32 %v437, 4294901760
        %3817 = vmatpush.msra.mxu0 %v3816
        %v3818 = vand.u32 %v435, 4294901760
        %3819 = vmatpush.msra.mxu0 %v3818
        %v3820 = vand.u32 %v433, 4294901760
        %3821 = vmatpush.msra.mxu0 %v3820
        %v3822 = vand.u32 %v431, 4294901760
        %3823 = vmatpush.msra.mxu0 %v3822
        %v3824 = vand.u32 %v429, 4294901760
        %3825 = vmatpush.msra.mxu0 %v3824
        %v3826 = vand.u32 %v271, 4294901760
        %v3827 = vsub.f32 %v271, %v3826
        %v3828 = vand.u32 %v3827, 4294901760
        %3829 = vmatmul.f32.gmra.mxu0 %v3828
        %v3830 = vpop.f32.mrf.mxu0
        %v3831 = vadd.f32 %v3637, %v3830
        %v3832 = vand.u32 %v274, 4294901760
        %v3833 = vsub.f32 %v274, %v3832
        %v3834 = vand.u32 %v3833, 4294901760
        %3835 = vmatmul.f32.gmra.mxu0 %v3834
        %v3836 = vpop.f32.mrf.mxu0
        %v3837 = vadd.f32 %v3642, %v3836
        %v3838 = vand.u32 %v277, 4294901760
        %v3839 = vsub.f32 %v277, %v3838
        %v3840 = vand.u32 %v3839, 4294901760
        %3841 = vmatmul.f32.gmra.mxu0 %v3840
        %v3842 = vpop.f32.mrf.mxu0
        %v3843 = vadd.f32 %v3647, %v3842
        %v3844 = vand.u32 %v280, 4294901760
        %v3845 = vsub.f32 %v280, %v3844
        %v3846 = vand.u32 %v3845, 4294901760
        %3847 = vmatmul.f32.gmra.mxu0 %v3846
        %v3848 = vpop.f32.mrf.mxu0
        %v3849 = vadd.f32 %v3652, %v3848
        %v3850 = vand.u32 %v283, 4294901760
        %v3851 = vsub.f32 %v283, %v3850
        %v3852 = vand.u32 %v3851, 4294901760
        %3853 = vmatmul.f32.gmra.mxu0 %v3852
        %v3854 = vpop.f32.mrf.mxu0
        %v3855 = vadd.f32 %v3657, %v3854
        %v3856 = vand.u32 %v286, 4294901760
        %v3857 = vsub.f32 %v286, %v3856
        %v3858 = vand.u32 %v3857, 4294901760
        %3859 = vmatmul.f32.gmra.mxu0 %v3858
        %v3860 = vpop.f32.mrf.mxu0
        %v3861 = vadd.f32 %v3662, %v3860
        %v3862 = vand.u32 %v289, 4294901760
        %v3863 = vsub.f32 %v289, %v3862
        %v3864 = vand.u32 %v3863, 4294901760
        %3865 = vmatmul.f32.gmra.mxu0 %v3864
        %v3866 = vpop.f32.mrf.mxu0
        %v3867 = vadd.f32 %v3667, %v3866
        %v3868 = vand.u32 %v292, 4294901760
        %v3869 = vsub.f32 %v292, %v3868
        %v3870 = vand.u32 %v3869, 4294901760
        %3871 = vmatmul.f32.gmra.mxu0 %v3870
        %v3872 = vpop.f32.mrf.mxu0
        %v3873 = vadd.f32 %v3672, %v3872
        %v3874 = vand.u32 %v295, 4294901760
        %v3875 = vsub.f32 %v295, %v3874
        %v3876 = vand.u32 %v3875, 4294901760
        %3877 = vmatmul.f32.gmra.mxu0 %v3876
        %v3878 = vpop.f32.mrf.mxu0
        %v3879 = vadd.f32 %v3677, %v3878
        %v3880 = vand.u32 %v298, 4294901760
        %v3881 = vsub.f32 %v298, %v3880
        %v3882 = vand.u32 %v3881, 4294901760
        %3883 = vmatmul.f32.gmra.mxu0 %v3882
        %v3884 = vpop.f32.mrf.mxu0
        %v3885 = vadd.f32 %v3682, %v3884
        %v3886 = vand.u32 %v301, 4294901760
        %v3887 = vsub.f32 %v301, %v3886
        %v3888 = vand.u32 %v3887, 4294901760
        %3889 = vmatmul.f32.gmra.mxu0 %v3888
        %v3890 = vpop.f32.mrf.mxu0
        %v3891 = vadd.f32 %v3687, %v3890
        %v3892 = vand.u32 %v304, 4294901760
        %v3893 = vsub.f32 %v304, %v3892
        %v3894 = vand.u32 %v3893, 4294901760
        %3895 = vmatmul.f32.gmra.mxu0 %v3894
        %v3896 = vpop.f32.mrf.mxu0
        %v3897 = vadd.f32 %v3692, %v3896
        %v3898 = vand.u32 %v307, 4294901760
        %v3899 = vsub.f32 %v307, %v3898
        %v3900 = vand.u32 %v3899, 4294901760
        %3901 = vmatmul.f32.gmra.mxu0 %v3900
        %v3902 = vpop.f32.mrf.mxu0
        %v3903 = vadd.f32 %v3697, %v3902
        %v3904 = vand.u32 %v310, 4294901760
        %v3905 = vsub.f32 %v310, %v3904
        %v3906 = vand.u32 %v3905, 4294901760
        %3907 = vmatmul.f32.gmra.mxu0 %v3906
        %v3908 = vpop.f32.mrf.mxu0
        %v3909 = vadd.f32 %v3702, %v3908
        %v3910 = vand.u32 %v313, 4294901760
        %v3911 = vsub.f32 %v313, %v3910
        %v3912 = vand.u32 %v3911, 4294901760
        %3913 = vmatmul.f32.gmra.mxu0 %v3912
        %v3914 = vpop.f32.mrf.mxu0
        %v3915 = vadd.f32 %v3707, %v3914
        %v3916 = vand.u32 %v316, 4294901760
        %v3917 = vsub.f32 %v316, %v3916
        %v3918 = vand.u32 %v3917, 4294901760
        %3919 = vmatmul.f32.gmra.mxu0 %v3918
        %v3920 = vpop.f32.mrf.mxu0
        %v3921 = vadd.f32 %v3712, %v3920
        %v3922 = vand.u32 %v319, 4294901760
        %v3923 = vsub.f32 %v319, %v3922
        %v3924 = vand.u32 %v3923, 4294901760
        %3925 = vmatmul.f32.gmra.mxu0 %v3924
        %v3926 = vpop.f32.mrf.mxu0
        %v3927 = vadd.f32 %v3717, %v3926
        %v3928 = vand.u32 %v322, 4294901760
        %v3929 = vsub.f32 %v322, %v3928
        %v3930 = vand.u32 %v3929, 4294901760
        %3931 = vmatmul.f32.gmra.mxu0 %v3930
        %v3932 = vpop.f32.mrf.mxu0
        %v3933 = vadd.f32 %v3722, %v3932
        %v3934 = vand.u32 %v325, 4294901760
        %v3935 = vsub.f32 %v325, %v3934
        %v3936 = vand.u32 %v3935, 4294901760
        %3937 = vmatmul.f32.gmra.mxu0 %v3936
        %v3938 = vpop.f32.mrf.mxu0
        %v3939 = vadd.f32 %v3727, %v3938
        %v3940 = vand.u32 %v328, 4294901760
        %v3941 = vsub.f32 %v328, %v3940
        %v3942 = vand.u32 %v3941, 4294901760
        %3943 = vmatmul.f32.gmra.mxu0 %v3942
        %v3944 = vpop.f32.mrf.mxu0
        %v3945 = vadd.f32 %v3732, %v3944
        %v3946 = vand.u32 %v331, 4294901760
        %v3947 = vsub.f32 %v331, %v3946
        %v3948 = vand.u32 %v3947, 4294901760
        %3949 = vmatmul.f32.gmra.mxu0 %v3948
        %v3950 = vpop.f32.mrf.mxu0
        %v3951 = vadd.f32 %v3737, %v3950
        %v3952 = vand.u32 %v334, 4294901760
        %v3953 = vsub.f32 %v334, %v3952
        %v3954 = vand.u32 %v3953, 4294901760
        %3955 = vmatmul.f32.gmra.mxu0 %v3954
        %v3956 = vpop.f32.mrf.mxu0
        %v3957 = vadd.f32 %v3742, %v3956
        %v3958 = vand.u32 %v337, 4294901760
        %v3959 = vsub.f32 %v337, %v3958
        %v3960 = vand.u32 %v3959, 4294901760
        %3961 = vmatmul.f32.gmra.mxu0 %v3960
        %v3962 = vpop.f32.mrf.mxu0
        %v3963 = vadd.f32 %v3747, %v3962
        %v3964 = vand.u32 %v340, 4294901760
        %v3965 = vsub.f32 %v340, %v3964
        %v3966 = vand.u32 %v3965, 4294901760
        %3967 = vmatmul.f32.gmra.mxu0 %v3966
        %v3968 = vpop.f32.mrf.mxu0
        %v3969 = vadd.f32 %v3752, %v3968
        %v3970 = vand.u32 %v343, 4294901760
        %v3971 = vsub.f32 %v343, %v3970
        %v3972 = vand.u32 %v3971, 4294901760
        %3973 = vmatmul.f32.gmra.mxu0 %v3972
        %v3974 = vpop.f32.mrf.mxu0
        %v3975 = vadd.f32 %v3757, %v3974
        %v3976 = vand.u32 %v346, 4294901760
        %v3977 = vsub.f32 %v346, %v3976
        %v3978 = vand.u32 %v3977, 4294901760
        %3979 = vmatmul.f32.gmra.mxu0 %v3978
        %v3980 = vpop.f32.mrf.mxu0
        %v3981 = vadd.f32 %v3762, %v3980
        %v3982 = vand.u32 %v349, 4294901760
        %v3983 = vsub.f32 %v349, %v3982
        %v3984 = vand.u32 %v3983, 4294901760
        %3985 = vmatmul.f32.gmra.mxu0 %v3984
        %v3986 = vpop.f32.mrf.mxu0
        %v3987 = vadd.f32 %v3767, %v3986
        %v3988 = vand.u32 %v352, 4294901760
        %v3989 = vsub.f32 %v352, %v3988
        %v3990 = vand.u32 %v3989, 4294901760
        %3991 = vmatmul.f32.gmra.mxu0 %v3990
        %v3992 = vpop.f32.mrf.mxu0
        %v3993 = vadd.f32 %v3772, %v3992
        %v3994 = vand.u32 %v355, 4294901760
        %v3995 = vsub.f32 %v355, %v3994
        %v3996 = vand.u32 %v3995, 4294901760
        %3997 = vmatmul.f32.gmra.mxu0 %v3996
        %v3998 = vpop.f32.mrf.mxu0
        %v3999 = vadd.f32 %v3777, %v3998
        %v4000 = vand.u32 %v358, 4294901760
        %v4001 = vsub.f32 %v358, %v4000
        %v4002 = vand.u32 %v4001, 4294901760
        %4003 = vmatmul.f32.gmra.mxu0 %v4002
        %v4004 = vpop.f32.mrf.mxu0
        %v4005 = vadd.f32 %v3782, %v4004
        %v4006 = vand.u32 %v361, 4294901760
        %v4007 = vsub.f32 %v361, %v4006
        %v4008 = vand.u32 %v4007, 4294901760
        %4009 = vmatmul.f32.gmra.mxu0 %v4008
        %v4010 = vpop.f32.mrf.mxu0
        %v4011 = vadd.f32 %v3787, %v4010
        %v4012 = vand.u32 %v364, 4294901760
        %v4013 = vsub.f32 %v364, %v4012
        %v4014 = vand.u32 %v4013, 4294901760
        %4015 = vmatmul.f32.gmra.mxu0 %v4014
        %v4016 = vpop.f32.mrf.mxu0
        %v4017 = vadd.f32 %v3792, %v4016
        %4018 = vdwg.mxu0
        %v4019 = vand.u32 %v459, 4294901760
        %v4020 = vsub.f32 %v459, %v4019
        %v4021 = vand.u32 %v4020, 4294901760
        %4022 = vmatpush.msra.mxu0 %v4021
        %v4023 = vand.u32 %v457, 4294901760
        %v4024 = vsub.f32 %v457, %v4023
        %v4025 = vand.u32 %v4024, 4294901760
        %4026 = vmatpush.msra.mxu0 %v4025
        %v4027 = vand.u32 %v455, 4294901760
        %v4028 = vsub.f32 %v455, %v4027
        %v4029 = vand.u32 %v4028, 4294901760
        %4030 = vmatpush.msra.mxu0 %v4029
        %v4031 = vand.u32 %v453, 4294901760
        %v4032 = vsub.f32 %v453, %v4031
        %v4033 = vand.u32 %v4032, 4294901760
        %4034 = vmatpush.msra.mxu0 %v4033
        %v4035 = vand.u32 %v451, 4294901760
        %v4036 = vsub.f32 %v451, %v4035
        %v4037 = vand.u32 %v4036, 4294901760
        %4038 = vmatpush.msra.mxu0 %v4037
        %v4039 = vand.u32 %v449, 4294901760
        %v4040 = vsub.f32 %v449, %v4039
        %v4041 = vand.u32 %v4040, 4294901760
        %4042 = vmatpush.msra.mxu0 %v4041
        %v4043 = vand.u32 %v447, 4294901760
        %v4044 = vsub.f32 %v447, %v4043
        %v4045 = vand.u32 %v4044, 4294901760
        %4046 = vmatpush.msra.mxu0 %v4045
        %v4047 = vand.u32 %v445, 4294901760
        %v4048 = vsub.f32 %v445, %v4047
        %v4049 = vand.u32 %v4048, 4294901760
        %4050 = vmatpush.msra.mxu0 %v4049
        %v4051 = vand.u32 %v443, 4294901760
        %v4052 = vsub.f32 %v443, %v4051
        %v4053 = vand.u32 %v4052, 4294901760
        %4054 = vmatpush.msra.mxu0 %v4053
        %v4055 = vand.u32 %v441, 4294901760
        %v4056 = vsub.f32 %v441, %v4055
        %v4057 = vand.u32 %v4056, 4294901760
        %4058 = vmatpush.msra.mxu0 %v4057
        %v4059 = vand.u32 %v439, 4294901760
        %v4060 = vsub.f32 %v439, %v4059
        %v4061 = vand.u32 %v4060, 4294901760
        %4062 = vmatpush.msra.mxu0 %v4061
        %v4063 = vand.u32 %v437, 4294901760
        %v4064 = vsub.f32 %v437, %v4063
        %v4065 = vand.u32 %v4064, 4294901760
        %4066 = vmatpush.msra.mxu0 %v4065
        %v4067 = vand.u32 %v435, 4294901760
        %v4068 = vsub.f32 %v435, %v4067
        %v4069 = vand.u32 %v4068, 4294901760
        %4070 = vmatpush.msra.mxu0 %v4069
        %v4071 = vand.u32 %v433, 4294901760
        %v4072 = vsub.f32 %v433, %v4071
        %v4073 = vand.u32 %v4072, 4294901760
        %4074 = vmatpush.msra.mxu0 %v4073
        %v4075 = vand.u32 %v431, 4294901760
        %v4076 = vsub.f32 %v431, %v4075
        %v4077 = vand.u32 %v4076, 4294901760
        %4078 = vmatpush.msra.mxu0 %v4077
        %v4079 = vand.u32 %v429, 4294901760
        %v4080 = vsub.f32 %v429, %v4079
        %v4081 = vand.u32 %v4080, 4294901760
        %4082 = vmatpush.msra.mxu0 %v4081
        %v4083 = vand.u32 %v271, 4294901760
        %4084 = vmatmul.f32.gmra.mxu0 %v4083
        %v4085 = vpop.f32.mrf.mxu0
        %v4086 = vadd.f32 %v3831, %v4085
        %v4087 = vand.u32 %v274, 4294901760
        %4088 = vmatmul.f32.gmra.mxu0 %v4087
        %v4089 = vpop.f32.mrf.mxu0
        %v4090 = vadd.f32 %v3837, %v4089
        %v4091 = vand.u32 %v277, 4294901760
        %4092 = vmatmul.f32.gmra.mxu0 %v4091
        %v4093 = vpop.f32.mrf.mxu0
        %v4094 = vadd.f32 %v3843, %v4093
        %v4095 = vand.u32 %v280, 4294901760
        %4096 = vmatmul.f32.gmra.mxu0 %v4095
        %v4097 = vpop.f32.mrf.mxu0
        %v4098 = vadd.f32 %v3849, %v4097
        %v4099 = vand.u32 %v283, 4294901760
        %4100 = vmatmul.f32.gmra.mxu0 %v4099
        %v4101 = vpop.f32.mrf.mxu0
        %v4102 = vadd.f32 %v3855, %v4101
        %v4103 = vand.u32 %v286, 4294901760
        %4104 = vmatmul.f32.gmra.mxu0 %v4103
        %v4105 = vpop.f32.mrf.mxu0
        %v4106 = vadd.f32 %v3861, %v4105
        %v4107 = vand.u32 %v289, 4294901760
        %4108 = vmatmul.f32.gmra.mxu0 %v4107
        %v4109 = vpop.f32.mrf.mxu0
        %v4110 = vadd.f32 %v3867, %v4109
        %v4111 = vand.u32 %v292, 4294901760
        %4112 = vmatmul.f32.gmra.mxu0 %v4111
        %v4113 = vpop.f32.mrf.mxu0
        %v4114 = vadd.f32 %v3873, %v4113
        %v4115 = vand.u32 %v295, 4294901760
        %4116 = vmatmul.f32.gmra.mxu0 %v4115
        %v4117 = vpop.f32.mrf.mxu0
        %v4118 = vadd.f32 %v3879, %v4117
        %v4119 = vand.u32 %v298, 4294901760
        %4120 = vmatmul.f32.gmra.mxu0 %v4119
        %v4121 = vpop.f32.mrf.mxu0
        %v4122 = vadd.f32 %v3885, %v4121
        %v4123 = vand.u32 %v301, 4294901760
        %4124 = vmatmul.f32.gmra.mxu0 %v4123
        %v4125 = vpop.f32.mrf.mxu0
        %v4126 = vadd.f32 %v3891, %v4125
        %v4127 = vand.u32 %v304, 4294901760
        %4128 = vmatmul.f32.gmra.mxu0 %v4127
        %v4129 = vpop.f32.mrf.mxu0
        %v4130 = vadd.f32 %v3897, %v4129
        %v4131 = vand.u32 %v307, 4294901760
        %4132 = vmatmul.f32.gmra.mxu0 %v4131
        %v4133 = vpop.f32.mrf.mxu0
        %v4134 = vadd.f32 %v3903, %v4133
        %v4135 = vand.u32 %v310, 4294901760
        %4136 = vmatmul.f32.gmra.mxu0 %v4135
        %v4137 = vpop.f32.mrf.mxu0
        %v4138 = vadd.f32 %v3909, %v4137
        %v4139 = vand.u32 %v313, 4294901760
        %4140 = vmatmul.f32.gmra.mxu0 %v4139
        %v4141 = vpop.f32.mrf.mxu0
        %v4142 = vadd.f32 %v3915, %v4141
        %v4143 = vand.u32 %v316, 4294901760
        %4144 = vmatmul.f32.gmra.mxu0 %v4143
        %v4145 = vpop.f32.mrf.mxu0
        %v4146 = vadd.f32 %v3921, %v4145
        %v4147 = vand.u32 %v319, 4294901760
        %4148 = vmatmul.f32.gmra.mxu0 %v4147
        %v4149 = vpop.f32.mrf.mxu0
        %v4150 = vadd.f32 %v3927, %v4149
        %v4151 = vand.u32 %v322, 4294901760
        %4152 = vmatmul.f32.gmra.mxu0 %v4151
        %v4153 = vpop.f32.mrf.mxu0
        %v4154 = vadd.f32 %v3933, %v4153
        %v4155 = vand.u32 %v325, 4294901760
        %4156 = vmatmul.f32.gmra.mxu0 %v4155
        %v4157 = vpop.f32.mrf.mxu0
        %v4158 = vadd.f32 %v3939, %v4157
        %v4159 = vand.u32 %v328, 4294901760
        %4160 = vmatmul.f32.gmra.mxu0 %v4159
        %v4161 = vpop.f32.mrf.mxu0
        %v4162 = vadd.f32 %v3945, %v4161
        %v4163 = vand.u32 %v331, 4294901760
        %4164 = vmatmul.f32.gmra.mxu0 %v4163
        %v4165 = vpop.f32.mrf.mxu0
        %v4166 = vadd.f32 %v3951, %v4165
        %v4167 = vand.u32 %v334, 4294901760
        %4168 = vmatmul.f32.gmra.mxu0 %v4167
        %v4169 = vpop.f32.mrf.mxu0
        %v4170 = vadd.f32 %v3957, %v4169
        %v4171 = vand.u32 %v337, 4294901760
        %4172 = vmatmul.f32.gmra.mxu0 %v4171
        %v4173 = vpop.f32.mrf.mxu0
        %v4174 = vadd.f32 %v3963, %v4173
        %v4175 = vand.u32 %v340, 4294901760
        %4176 = vmatmul.f32.gmra.mxu0 %v4175
        %v4177 = vpop.f32.mrf.mxu0
        %v4178 = vadd.f32 %v3969, %v4177
        %v4179 = vand.u32 %v343, 4294901760
        %4180 = vmatmul.f32.gmra.mxu0 %v4179
        %v4181 = vpop.f32.mrf.mxu0
        %v4182 = vadd.f32 %v3975, %v4181
        %v4183 = vand.u32 %v346, 4294901760
        %4184 = vmatmul.f32.gmra.mxu0 %v4183
        %v4185 = vpop.f32.mrf.mxu0
        %v4186 = vadd.f32 %v3981, %v4185
        %v4187 = vand.u32 %v349, 4294901760
        %4188 = vmatmul.f32.gmra.mxu0 %v4187
        %v4189 = vpop.f32.mrf.mxu0
        %v4190 = vadd.f32 %v3987, %v4189
        %v4191 = vand.u32 %v352, 4294901760
        %4192 = vmatmul.f32.gmra.mxu0 %v4191
        %v4193 = vpop.f32.mrf.mxu0
        %v4194 = vadd.f32 %v3993, %v4193
        %v4195 = vand.u32 %v355, 4294901760
        %4196 = vmatmul.f32.gmra.mxu0 %v4195
        %v4197 = vpop.f32.mrf.mxu0
        %v4198 = vadd.f32 %v3999, %v4197
        %v4199 = vand.u32 %v358, 4294901760
        %4200 = vmatmul.f32.gmra.mxu0 %v4199
        %v4201 = vpop.f32.mrf.mxu0
        %v4202 = vadd.f32 %v4005, %v4201
        %v4203 = vand.u32 %v361, 4294901760
        %4204 = vmatmul.f32.gmra.mxu0 %v4203
        %v4205 = vpop.f32.mrf.mxu0
        %v4206 = vadd.f32 %v4011, %v4205
        %v4207 = vand.u32 %v364, 4294901760
        %4208 = vmatmul.f32.gmra.mxu0 %v4207
        %v4209 = vpop.f32.mrf.mxu0
        %v4210 = vadd.f32 %v4017, %v4209
        %4211 = vdwg.mxu0
        %v4212 = vand.u32 %v459, 4294901760
        %4213 = vmatpush.msra.mxu0 %v4212
        %v4214 = vand.u32 %v457, 4294901760
        %4215 = vmatpush.msra.mxu0 %v4214
        %v4216 = vand.u32 %v455, 4294901760
        %4217 = vmatpush.msra.mxu0 %v4216
        %v4218 = vand.u32 %v453, 4294901760
        %4219 = vmatpush.msra.mxu0 %v4218
        %v4220 = vand.u32 %v451, 4294901760
        %4221 = vmatpush.msra.mxu0 %v4220
        %v4222 = vand.u32 %v449, 4294901760
        %4223 = vmatpush.msra.mxu0 %v4222
        %v4224 = vand.u32 %v447, 4294901760
        %4225 = vmatpush.msra.mxu0 %v4224
        %v4226 = vand.u32 %v445, 4294901760
        %4227 = vmatpush.msra.mxu0 %v4226
        %v4228 = vand.u32 %v443, 4294901760
        %4229 = vmatpush.msra.mxu0 %v4228
        %v4230 = vand.u32 %v441, 4294901760
        %4231 = vmatpush.msra.mxu0 %v4230
        %v4232 = vand.u32 %v439, 4294901760
        %4233 = vmatpush.msra.mxu0 %v4232
        %v4234 = vand.u32 %v437, 4294901760
        %4235 = vmatpush.msra.mxu0 %v4234
        %v4236 = vand.u32 %v435, 4294901760
        %4237 = vmatpush.msra.mxu0 %v4236
        %v4238 = vand.u32 %v433, 4294901760
        %4239 = vmatpush.msra.mxu0 %v4238
        %v4240 = vand.u32 %v431, 4294901760
        %4241 = vmatpush.msra.mxu0 %v4240
        %v4242 = vand.u32 %v429, 4294901760
        %4243 = vmatpush.msra.mxu0 %v4242
        %v4244 = vand.u32 %v271, 4294901760
        %4245 = vmatmul.f32.gmra.mxu0 %v4244
        %v4246 = vpop.f32.mrf.mxu0
        %v4247 = vadd.f32 %v4086, %v4246
        %v4248 = vand.u32 %v274, 4294901760
        %4249 = vmatmul.f32.gmra.mxu0 %v4248
        %v4250 = vpop.f32.mrf.mxu0
        %v4251 = vadd.f32 %v4090, %v4250
        %v4252 = vand.u32 %v277, 4294901760
        %4253 = vmatmul.f32.gmra.mxu0 %v4252
        %v4254 = vpop.f32.mrf.mxu0
        %v4255 = vadd.f32 %v4094, %v4254
        %v4256 = vand.u32 %v280, 4294901760
        %4257 = vmatmul.f32.gmra.mxu0 %v4256
        %v4258 = vpop.f32.mrf.mxu0
        %v4259 = vadd.f32 %v4098, %v4258
        %v4260 = vand.u32 %v283, 4294901760
        %4261 = vmatmul.f32.gmra.mxu0 %v4260
        %v4262 = vpop.f32.mrf.mxu0
        %v4263 = vadd.f32 %v4102, %v4262
        %v4264 = vand.u32 %v286, 4294901760
        %4265 = vmatmul.f32.gmra.mxu0 %v4264
        %v4266 = vpop.f32.mrf.mxu0
        %v4267 = vadd.f32 %v4106, %v4266
        %v4268 = vand.u32 %v289, 4294901760
        %4269 = vmatmul.f32.gmra.mxu0 %v4268
        %v4270 = vpop.f32.mrf.mxu0
        %v4271 = vadd.f32 %v4110, %v4270
        %v4272 = vand.u32 %v292, 4294901760
        %4273 = vmatmul.f32.gmra.mxu0 %v4272
        %v4274 = vpop.f32.mrf.mxu0
        %v4275 = vadd.f32 %v4114, %v4274
        %v4276 = vand.u32 %v295, 4294901760
        %4277 = vmatmul.f32.gmra.mxu0 %v4276
        %v4278 = vpop.f32.mrf.mxu0
        %v4279 = vadd.f32 %v4118, %v4278
        %v4280 = vand.u32 %v298, 4294901760
        %4281 = vmatmul.f32.gmra.mxu0 %v4280
        %v4282 = vpop.f32.mrf.mxu0
        %v4283 = vadd.f32 %v4122, %v4282
        %v4284 = vand.u32 %v301, 4294901760
        %4285 = vmatmul.f32.gmra.mxu0 %v4284
        %v4286 = vpop.f32.mrf.mxu0
        %v4287 = vadd.f32 %v4126, %v4286
        %v4288 = vand.u32 %v304, 4294901760
        %4289 = vmatmul.f32.gmra.mxu0 %v4288
        %v4290 = vpop.f32.mrf.mxu0
        %v4291 = vadd.f32 %v4130, %v4290
        %v4292 = vand.u32 %v307, 4294901760
        %4293 = vmatmul.f32.gmra.mxu0 %v4292
        %v4294 = vpop.f32.mrf.mxu0
        %v4295 = vadd.f32 %v4134, %v4294
        %v4296 = vand.u32 %v310, 4294901760
        %4297 = vmatmul.f32.gmra.mxu0 %v4296
        %v4298 = vpop.f32.mrf.mxu0
        %v4299 = vadd.f32 %v4138, %v4298
        %v4300 = vand.u32 %v313, 4294901760
        %4301 = vmatmul.f32.gmra.mxu0 %v4300
        %v4302 = vpop.f32.mrf.mxu0
        %v4303 = vadd.f32 %v4142, %v4302
        %v4304 = vand.u32 %v316, 4294901760
        %4305 = vmatmul.f32.gmra.mxu0 %v4304
        %v4306 = vpop.f32.mrf.mxu0
        %v4307 = vadd.f32 %v4146, %v4306
        %v4308 = vand.u32 %v319, 4294901760
        %4309 = vmatmul.f32.gmra.mxu0 %v4308
        %v4310 = vpop.f32.mrf.mxu0
        %v4311 = vadd.f32 %v4150, %v4310
        %v4312 = vand.u32 %v322, 4294901760
        %4313 = vmatmul.f32.gmra.mxu0 %v4312
        %v4314 = vpop.f32.mrf.mxu0
        %v4315 = vadd.f32 %v4154, %v4314
        %v4316 = vand.u32 %v325, 4294901760
        %4317 = vmatmul.f32.gmra.mxu0 %v4316
        %v4318 = vpop.f32.mrf.mxu0
        %v4319 = vadd.f32 %v4158, %v4318
        %v4320 = vand.u32 %v328, 4294901760
        %4321 = vmatmul.f32.gmra.mxu0 %v4320
        %v4322 = vpop.f32.mrf.mxu0
        %v4323 = vadd.f32 %v4162, %v4322
        %v4324 = vand.u32 %v331, 4294901760
        %4325 = vmatmul.f32.gmra.mxu0 %v4324
        %v4326 = vpop.f32.mrf.mxu0
        %v4327 = vadd.f32 %v4166, %v4326
        %v4328 = vand.u32 %v334, 4294901760
        %4329 = vmatmul.f32.gmra.mxu0 %v4328
        %v4330 = vpop.f32.mrf.mxu0
        %v4331 = vadd.f32 %v4170, %v4330
        %v4332 = vand.u32 %v337, 4294901760
        %4333 = vmatmul.f32.gmra.mxu0 %v4332
        %v4334 = vpop.f32.mrf.mxu0
        %v4335 = vadd.f32 %v4174, %v4334
        %v4336 = vand.u32 %v340, 4294901760
        %4337 = vmatmul.f32.gmra.mxu0 %v4336
        %v4338 = vpop.f32.mrf.mxu0
        %v4339 = vadd.f32 %v4178, %v4338
        %v4340 = vand.u32 %v343, 4294901760
        %4341 = vmatmul.f32.gmra.mxu0 %v4340
        %v4342 = vpop.f32.mrf.mxu0
        %v4343 = vadd.f32 %v4182, %v4342
        %v4344 = vand.u32 %v346, 4294901760
        %4345 = vmatmul.f32.gmra.mxu0 %v4344
        %v4346 = vpop.f32.mrf.mxu0
        %v4347 = vadd.f32 %v4186, %v4346
        %v4348 = vand.u32 %v349, 4294901760
        %4349 = vmatmul.f32.gmra.mxu0 %v4348
        %v4350 = vpop.f32.mrf.mxu0
        %v4351 = vadd.f32 %v4190, %v4350
        %v4352 = vand.u32 %v352, 4294901760
        %4353 = vmatmul.f32.gmra.mxu0 %v4352
        %v4354 = vpop.f32.mrf.mxu0
        %v4355 = vadd.f32 %v4194, %v4354
        %v4356 = vand.u32 %v355, 4294901760
        %4357 = vmatmul.f32.gmra.mxu0 %v4356
        %v4358 = vpop.f32.mrf.mxu0
        %v4359 = vadd.f32 %v4198, %v4358
        %v4360 = vand.u32 %v358, 4294901760
        %4361 = vmatmul.f32.gmra.mxu0 %v4360
        %v4362 = vpop.f32.mrf.mxu0
        %v4363 = vadd.f32 %v4202, %v4362
        %v4364 = vand.u32 %v361, 4294901760
        %4365 = vmatmul.f32.gmra.mxu0 %v4364
        %v4366 = vpop.f32.mrf.mxu0
        %v4367 = vadd.f32 %v4206, %v4366
        %v4368 = vand.u32 %v364, 4294901760
        %4369 = vmatmul.f32.gmra.mxu0 %v4368
        %v4370 = vpop.f32.mrf.mxu0
        %v4371 = vadd.f32 %v4210, %v4370
        %4372 = vdwg.mxu0
        %v4373 = vand.u32 %v396, 4294901760
        %4374 = vmatpush.msra.mxu0 %v4373
        %v4375 = vand.u32 %v394, 4294901760
        %4376 = vmatpush.msra.mxu0 %v4375
        %v4377 = vand.u32 %v392, 4294901760
        %4378 = vmatpush.msra.mxu0 %v4377
        %v4379 = vand.u32 %v390, 4294901760
        %4380 = vmatpush.msra.mxu0 %v4379
        %v4381 = vand.u32 %v388, 4294901760
        %4382 = vmatpush.msra.mxu0 %v4381
        %v4383 = vand.u32 %v386, 4294901760
        %4384 = vmatpush.msra.mxu0 %v4383
        %v4385 = vand.u32 %v384, 4294901760
        %4386 = vmatpush.msra.mxu0 %v4385
        %v4387 = vand.u32 %v382, 4294901760
        %4388 = vmatpush.msra.mxu0 %v4387
        %v4389 = vand.u32 %v380, 4294901760
        %4390 = vmatpush.msra.mxu0 %v4389
        %v4391 = vand.u32 %v378, 4294901760
        %4392 = vmatpush.msra.mxu0 %v4391
        %v4393 = vand.u32 %v376, 4294901760
        %4394 = vmatpush.msra.mxu0 %v4393
        %v4395 = vand.u32 %v374, 4294901760
        %4396 = vmatpush.msra.mxu0 %v4395
        %v4397 = vand.u32 %v372, 4294901760
        %4398 = vmatpush.msra.mxu0 %v4397
        %v4399 = vand.u32 %v370, 4294901760
        %4400 = vmatpush.msra.mxu0 %v4399
        %v4401 = vand.u32 %v368, 4294901760
        %4402 = vmatpush.msra.mxu0 %v4401
        %v4403 = vand.u32 %v366, 4294901760
        %4404 = vmatpush.msra.mxu0 %v4403
        %v4405 = vand.u32 %v269, 4294901760
        %v4406 = vsub.f32 %v269, %v4405
        %v4407 = vand.u32 %v4406, 4294901760
        %v4408 = vsub.f32 %v4406, %v4407
        %v4409 = vand.u32 %v4408, 4294901760
        %4410 = vmatmul.f32.gmra.mxu0 %v4409
        %v4411 = vpop.f32.mrf.mxu0
        %v4412 = vadd.f32 %v464, %v4411
        %v4413 = vand.u32 %v272, 4294901760
        %v4414 = vsub.f32 %v272, %v4413
        %v4415 = vand.u32 %v4414, 4294901760
        %v4416 = vsub.f32 %v4414, %v4415
        %v4417 = vand.u32 %v4416, 4294901760
        %4418 = vmatmul.f32.gmra.mxu0 %v4417
        %v4419 = vpop.f32.mrf.mxu0
        %v4420 = vadd.f32 %v464, %v4419
        %v4421 = vand.u32 %v275, 4294901760
        %v4422 = vsub.f32 %v275, %v4421
        %v4423 = vand.u32 %v4422, 4294901760
        %v4424 = vsub.f32 %v4422, %v4423
        %v4425 = vand.u32 %v4424, 4294901760
        %4426 = vmatmul.f32.gmra.mxu0 %v4425
        %v4427 = vpop.f32.mrf.mxu0
        %v4428 = vadd.f32 %v464, %v4427
        %v4429 = vand.u32 %v278, 4294901760
        %v4430 = vsub.f32 %v278, %v4429
        %v4431 = vand.u32 %v4430, 4294901760
        %v4432 = vsub.f32 %v4430, %v4431
        %v4433 = vand.u32 %v4432, 4294901760
        %4434 = vmatmul.f32.gmra.mxu0 %v4433
        %v4435 = vpop.f32.mrf.mxu0
        %v4436 = vadd.f32 %v464, %v4435
        %v4437 = vand.u32 %v281, 4294901760
        %v4438 = vsub.f32 %v281, %v4437
        %v4439 = vand.u32 %v4438, 4294901760
        %v4440 = vsub.f32 %v4438, %v4439
        %v4441 = vand.u32 %v4440, 4294901760
        %4442 = vmatmul.f32.gmra.mxu0 %v4441
        %v4443 = vpop.f32.mrf.mxu0
        %v4444 = vadd.f32 %v464, %v4443
        %v4445 = vand.u32 %v284, 4294901760
        %v4446 = vsub.f32 %v284, %v4445
        %v4447 = vand.u32 %v4446, 4294901760
        %v4448 = vsub.f32 %v4446, %v4447
        %v4449 = vand.u32 %v4448, 4294901760
        %4450 = vmatmul.f32.gmra.mxu0 %v4449
        %v4451 = vpop.f32.mrf.mxu0
        %v4452 = vadd.f32 %v464, %v4451
        %v4453 = vand.u32 %v287, 4294901760
        %v4454 = vsub.f32 %v287, %v4453
        %v4455 = vand.u32 %v4454, 4294901760
        %v4456 = vsub.f32 %v4454, %v4455
        %v4457 = vand.u32 %v4456, 4294901760
        %4458 = vmatmul.f32.gmra.mxu0 %v4457
        %v4459 = vpop.f32.mrf.mxu0
        %v4460 = vadd.f32 %v464, %v4459
        %v4461 = vand.u32 %v290, 4294901760
        %v4462 = vsub.f32 %v290, %v4461
        %v4463 = vand.u32 %v4462, 4294901760
        %v4464 = vsub.f32 %v4462, %v4463
        %v4465 = vand.u32 %v4464, 4294901760
        %4466 = vmatmul.f32.gmra.mxu0 %v4465
        %v4467 = vpop.f32.mrf.mxu0
        %v4468 = vadd.f32 %v464, %v4467
        %v4469 = vand.u32 %v293, 4294901760
        %v4470 = vsub.f32 %v293, %v4469
        %v4471 = vand.u32 %v4470, 4294901760
        %v4472 = vsub.f32 %v4470, %v4471
        %v4473 = vand.u32 %v4472, 4294901760
        %4474 = vmatmul.f32.gmra.mxu0 %v4473
        %v4475 = vpop.f32.mrf.mxu0
        %v4476 = vadd.f32 %v464, %v4475
        %v4477 = vand.u32 %v296, 4294901760
        %v4478 = vsub.f32 %v296, %v4477
        %v4479 = vand.u32 %v4478, 4294901760
        %v4480 = vsub.f32 %v4478, %v4479
        %v4481 = vand.u32 %v4480, 4294901760
        %4482 = vmatmul.f32.gmra.mxu0 %v4481
        %v4483 = vpop.f32.mrf.mxu0
        %v4484 = vadd.f32 %v464, %v4483
        %v4485 = vand.u32 %v299, 4294901760
        %v4486 = vsub.f32 %v299, %v4485
        %v4487 = vand.u32 %v4486, 4294901760
        %v4488 = vsub.f32 %v4486, %v4487
        %v4489 = vand.u32 %v4488, 4294901760
        %4490 = vmatmul.f32.gmra.mxu0 %v4489
        %v4491 = vpop.f32.mrf.mxu0
        %v4492 = vadd.f32 %v464, %v4491
        %v4493 = vand.u32 %v302, 4294901760
        %v4494 = vsub.f32 %v302, %v4493
        %v4495 = vand.u32 %v4494, 4294901760
        %v4496 = vsub.f32 %v4494, %v4495
        %v4497 = vand.u32 %v4496, 4294901760
        %4498 = vmatmul.f32.gmra.mxu0 %v4497
        %v4499 = vpop.f32.mrf.mxu0
        %v4500 = vadd.f32 %v464, %v4499
        %v4501 = vand.u32 %v305, 4294901760
        %v4502 = vsub.f32 %v305, %v4501
        %v4503 = vand.u32 %v4502, 4294901760
        %v4504 = vsub.f32 %v4502, %v4503
        %v4505 = vand.u32 %v4504, 4294901760
        %4506 = vmatmul.f32.gmra.mxu0 %v4505
        %v4507 = vpop.f32.mrf.mxu0
        %v4508 = vadd.f32 %v464, %v4507
        %v4509 = vand.u32 %v308, 4294901760
        %v4510 = vsub.f32 %v308, %v4509
        %v4511 = vand.u32 %v4510, 4294901760
        %v4512 = vsub.f32 %v4510, %v4511
        %v4513 = vand.u32 %v4512, 4294901760
        %4514 = vmatmul.f32.gmra.mxu0 %v4513
        %v4515 = vpop.f32.mrf.mxu0
        %v4516 = vadd.f32 %v464, %v4515
        %v4517 = vand.u32 %v311, 4294901760
        %v4518 = vsub.f32 %v311, %v4517
        %v4519 = vand.u32 %v4518, 4294901760
        %v4520 = vsub.f32 %v4518, %v4519
        %v4521 = vand.u32 %v4520, 4294901760
        %4522 = vmatmul.f32.gmra.mxu0 %v4521
        %v4523 = vpop.f32.mrf.mxu0
        %v4524 = vadd.f32 %v464, %v4523
        %v4525 = vand.u32 %v314, 4294901760
        %v4526 = vsub.f32 %v314, %v4525
        %v4527 = vand.u32 %v4526, 4294901760
        %v4528 = vsub.f32 %v4526, %v4527
        %v4529 = vand.u32 %v4528, 4294901760
        %4530 = vmatmul.f32.gmra.mxu0 %v4529
        %v4531 = vpop.f32.mrf.mxu0
        %v4532 = vadd.f32 %v464, %v4531
        %v4533 = vand.u32 %v317, 4294901760
        %v4534 = vsub.f32 %v317, %v4533
        %v4535 = vand.u32 %v4534, 4294901760
        %v4536 = vsub.f32 %v4534, %v4535
        %v4537 = vand.u32 %v4536, 4294901760
        %4538 = vmatmul.f32.gmra.mxu0 %v4537
        %v4539 = vpop.f32.mrf.mxu0
        %v4540 = vadd.f32 %v464, %v4539
        %v4541 = vand.u32 %v320, 4294901760
        %v4542 = vsub.f32 %v320, %v4541
        %v4543 = vand.u32 %v4542, 4294901760
        %v4544 = vsub.f32 %v4542, %v4543
        %v4545 = vand.u32 %v4544, 4294901760
        %4546 = vmatmul.f32.gmra.mxu0 %v4545
        %v4547 = vpop.f32.mrf.mxu0
        %v4548 = vadd.f32 %v464, %v4547
        %v4549 = vand.u32 %v323, 4294901760
        %v4550 = vsub.f32 %v323, %v4549
        %v4551 = vand.u32 %v4550, 4294901760
        %v4552 = vsub.f32 %v4550, %v4551
        %v4553 = vand.u32 %v4552, 4294901760
        %4554 = vmatmul.f32.gmra.mxu0 %v4553
        %v4555 = vpop.f32.mrf.mxu0
        %v4556 = vadd.f32 %v464, %v4555
        %v4557 = vand.u32 %v326, 4294901760
        %v4558 = vsub.f32 %v326, %v4557
        %v4559 = vand.u32 %v4558, 4294901760
        %v4560 = vsub.f32 %v4558, %v4559
        %v4561 = vand.u32 %v4560, 4294901760
        %4562 = vmatmul.f32.gmra.mxu0 %v4561
        %v4563 = vpop.f32.mrf.mxu0
        %v4564 = vadd.f32 %v464, %v4563
        %v4565 = vand.u32 %v329, 4294901760
        %v4566 = vsub.f32 %v329, %v4565
        %v4567 = vand.u32 %v4566, 4294901760
        %v4568 = vsub.f32 %v4566, %v4567
        %v4569 = vand.u32 %v4568, 4294901760
        %4570 = vmatmul.f32.gmra.mxu0 %v4569
        %v4571 = vpop.f32.mrf.mxu0
        %v4572 = vadd.f32 %v464, %v4571
        %v4573 = vand.u32 %v332, 4294901760
        %v4574 = vsub.f32 %v332, %v4573
        %v4575 = vand.u32 %v4574, 4294901760
        %v4576 = vsub.f32 %v4574, %v4575
        %v4577 = vand.u32 %v4576, 4294901760
        %4578 = vmatmul.f32.gmra.mxu0 %v4577
        %v4579 = vpop.f32.mrf.mxu0
        %v4580 = vadd.f32 %v464, %v4579
        %v4581 = vand.u32 %v335, 4294901760
        %v4582 = vsub.f32 %v335, %v4581
        %v4583 = vand.u32 %v4582, 4294901760
        %v4584 = vsub.f32 %v4582, %v4583
        %v4585 = vand.u32 %v4584, 4294901760
        %4586 = vmatmul.f32.gmra.mxu0 %v4585
        %v4587 = vpop.f32.mrf.mxu0
        %v4588 = vadd.f32 %v464, %v4587
        %v4589 = vand.u32 %v338, 4294901760
        %v4590 = vsub.f32 %v338, %v4589
        %v4591 = vand.u32 %v4590, 4294901760
        %v4592 = vsub.f32 %v4590, %v4591
        %v4593 = vand.u32 %v4592, 4294901760
        %4594 = vmatmul.f32.gmra.mxu0 %v4593
        %v4595 = vpop.f32.mrf.mxu0
        %v4596 = vadd.f32 %v464, %v4595
        %v4597 = vand.u32 %v341, 4294901760
        %v4598 = vsub.f32 %v341, %v4597
        %v4599 = vand.u32 %v4598, 4294901760
        %v4600 = vsub.f32 %v4598, %v4599
        %v4601 = vand.u32 %v4600, 4294901760
        %4602 = vmatmul.f32.gmra.mxu0 %v4601
        %v4603 = vpop.f32.mrf.mxu0
        %v4604 = vadd.f32 %v464, %v4603
        %v4605 = vand.u32 %v344, 4294901760
        %v4606 = vsub.f32 %v344, %v4605
        %v4607 = vand.u32 %v4606, 4294901760
        %v4608 = vsub.f32 %v4606, %v4607
        %v4609 = vand.u32 %v4608, 4294901760
        %4610 = vmatmul.f32.gmra.mxu0 %v4609
        %v4611 = vpop.f32.mrf.mxu0
        %v4612 = vadd.f32 %v464, %v4611
        %v4613 = vand.u32 %v347, 4294901760
        %v4614 = vsub.f32 %v347, %v4613
        %v4615 = vand.u32 %v4614, 4294901760
        %v4616 = vsub.f32 %v4614, %v4615
        %v4617 = vand.u32 %v4616, 4294901760
        %4618 = vmatmul.f32.gmra.mxu0 %v4617
        %v4619 = vpop.f32.mrf.mxu0
        %v4620 = vadd.f32 %v464, %v4619
        %v4621 = vand.u32 %v350, 4294901760
        %v4622 = vsub.f32 %v350, %v4621
        %v4623 = vand.u32 %v4622, 4294901760
        %v4624 = vsub.f32 %v4622, %v4623
        %v4625 = vand.u32 %v4624, 4294901760
        %4626 = vmatmul.f32.gmra.mxu0 %v4625
        %v4627 = vpop.f32.mrf.mxu0
        %v4628 = vadd.f32 %v464, %v4627
        %v4629 = vand.u32 %v353, 4294901760
        %v4630 = vsub.f32 %v353, %v4629
        %v4631 = vand.u32 %v4630, 4294901760
        %v4632 = vsub.f32 %v4630, %v4631
        %v4633 = vand.u32 %v4632, 4294901760
        %4634 = vmatmul.f32.gmra.mxu0 %v4633
        %v4635 = vpop.f32.mrf.mxu0
        %v4636 = vadd.f32 %v464, %v4635
        %v4637 = vand.u32 %v356, 4294901760
        %v4638 = vsub.f32 %v356, %v4637
        %v4639 = vand.u32 %v4638, 4294901760
        %v4640 = vsub.f32 %v4638, %v4639
        %v4641 = vand.u32 %v4640, 4294901760
        %4642 = vmatmul.f32.gmra.mxu0 %v4641
        %v4643 = vpop.f32.mrf.mxu0
        %v4644 = vadd.f32 %v464, %v4643
        %v4645 = vand.u32 %v359, 4294901760
        %v4646 = vsub.f32 %v359, %v4645
        %v4647 = vand.u32 %v4646, 4294901760
        %v4648 = vsub.f32 %v4646, %v4647
        %v4649 = vand.u32 %v4648, 4294901760
        %4650 = vmatmul.f32.gmra.mxu0 %v4649
        %v4651 = vpop.f32.mrf.mxu0
        %v4652 = vadd.f32 %v464, %v4651
        %v4653 = vand.u32 %v362, 4294901760
        %v4654 = vsub.f32 %v362, %v4653
        %v4655 = vand.u32 %v4654, 4294901760
        %v4656 = vsub.f32 %v4654, %v4655
        %v4657 = vand.u32 %v4656, 4294901760
        %4658 = vmatmul.f32.gmra.mxu0 %v4657
        %v4659 = vpop.f32.mrf.mxu0
        %v4660 = vadd.f32 %v464, %v4659
        %4661 = vdwg.mxu0
        %v4662 = vand.u32 %v396, 4294901760
        %v4663 = vsub.f32 %v396, %v4662
        %v4664 = vand.u32 %v4663, 4294901760
        %v4665 = vsub.f32 %v4663, %v4664
        %v4666 = vand.u32 %v4665, 4294901760
        %4667 = vmatpush.msra.mxu0 %v4666
        %v4668 = vand.u32 %v394, 4294901760
        %v4669 = vsub.f32 %v394, %v4668
        %v4670 = vand.u32 %v4669, 4294901760
        %v4671 = vsub.f32 %v4669, %v4670
        %v4672 = vand.u32 %v4671, 4294901760
        %4673 = vmatpush.msra.mxu0 %v4672
        %v4674 = vand.u32 %v392, 4294901760
        %v4675 = vsub.f32 %v392, %v4674
        %v4676 = vand.u32 %v4675, 4294901760
        %v4677 = vsub.f32 %v4675, %v4676
        %v4678 = vand.u32 %v4677, 4294901760
        %4679 = vmatpush.msra.mxu0 %v4678
        %v4680 = vand.u32 %v390, 4294901760
        %v4681 = vsub.f32 %v390, %v4680
        %v4682 = vand.u32 %v4681, 4294901760
        %v4683 = vsub.f32 %v4681, %v4682
        %v4684 = vand.u32 %v4683, 4294901760
        %4685 = vmatpush.msra.mxu0 %v4684
        %v4686 = vand.u32 %v388, 4294901760
        %v4687 = vsub.f32 %v388, %v4686
        %v4688 = vand.u32 %v4687, 4294901760
        %v4689 = vsub.f32 %v4687, %v4688
        %v4690 = vand.u32 %v4689, 4294901760
        %4691 = vmatpush.msra.mxu0 %v4690
        %v4692 = vand.u32 %v386, 4294901760
        %v4693 = vsub.f32 %v386, %v4692
        %v4694 = vand.u32 %v4693, 4294901760
        %v4695 = vsub.f32 %v4693, %v4694
        %v4696 = vand.u32 %v4695, 4294901760
        %4697 = vmatpush.msra.mxu0 %v4696
        %v4698 = vand.u32 %v384, 4294901760
        %v4699 = vsub.f32 %v384, %v4698
        %v4700 = vand.u32 %v4699, 4294901760
        %v4701 = vsub.f32 %v4699, %v4700
        %v4702 = vand.u32 %v4701, 4294901760
        %4703 = vmatpush.msra.mxu0 %v4702
        %v4704 = vand.u32 %v382, 4294901760
        %v4705 = vsub.f32 %v382, %v4704
        %v4706 = vand.u32 %v4705, 4294901760
        %v4707 = vsub.f32 %v4705, %v4706
        %v4708 = vand.u32 %v4707, 4294901760
        %4709 = vmatpush.msra.mxu0 %v4708
        %v4710 = vand.u32 %v380, 4294901760
        %v4711 = vsub.f32 %v380, %v4710
        %v4712 = vand.u32 %v4711, 4294901760
        %v4713 = vsub.f32 %v4711, %v4712
        %v4714 = vand.u32 %v4713, 4294901760
        %4715 = vmatpush.msra.mxu0 %v4714
        %v4716 = vand.u32 %v378, 4294901760
        %v4717 = vsub.f32 %v378, %v4716
        %v4718 = vand.u32 %v4717, 4294901760
        %v4719 = vsub.f32 %v4717, %v4718
        %v4720 = vand.u32 %v4719, 4294901760
        %4721 = vmatpush.msra.mxu0 %v4720
        %v4722 = vand.u32 %v376, 4294901760
        %v4723 = vsub.f32 %v376, %v4722
        %v4724 = vand.u32 %v4723, 4294901760
        %v4725 = vsub.f32 %v4723, %v4724
        %v4726 = vand.u32 %v4725, 4294901760
        %4727 = vmatpush.msra.mxu0 %v4726
        %v4728 = vand.u32 %v374, 4294901760
        %v4729 = vsub.f32 %v374, %v4728
        %v4730 = vand.u32 %v4729, 4294901760
        %v4731 = vsub.f32 %v4729, %v4730
        %v4732 = vand.u32 %v4731, 4294901760
        %4733 = vmatpush.msra.mxu0 %v4732
        %v4734 = vand.u32 %v372, 4294901760
        %v4735 = vsub.f32 %v372, %v4734
        %v4736 = vand.u32 %v4735, 4294901760
        %v4737 = vsub.f32 %v4735, %v4736
        %v4738 = vand.u32 %v4737, 4294901760
        %4739 = vmatpush.msra.mxu0 %v4738
        %v4740 = vand.u32 %v370, 4294901760
        %v4741 = vsub.f32 %v370, %v4740
        %v4742 = vand.u32 %v4741, 4294901760
        %v4743 = vsub.f32 %v4741, %v4742
        %v4744 = vand.u32 %v4743, 4294901760
        %4745 = vmatpush.msra.mxu0 %v4744
        %v4746 = vand.u32 %v368, 4294901760
        %v4747 = vsub.f32 %v368, %v4746
        %v4748 = vand.u32 %v4747, 4294901760
        %v4749 = vsub.f32 %v4747, %v4748
        %v4750 = vand.u32 %v4749, 4294901760
        %4751 = vmatpush.msra.mxu0 %v4750
        %v4752 = vand.u32 %v366, 4294901760
        %v4753 = vsub.f32 %v366, %v4752
        %v4754 = vand.u32 %v4753, 4294901760
        %v4755 = vsub.f32 %v4753, %v4754
        %v4756 = vand.u32 %v4755, 4294901760
        %4757 = vmatpush.msra.mxu0 %v4756
        %v4758 = vand.u32 %v269, 4294901760
        %4759 = vmatmul.f32.gmra.mxu0 %v4758
        %v4760 = vpop.f32.mrf.mxu0
        %v4761 = vadd.f32 %v4412, %v4760
        %v4762 = vand.u32 %v272, 4294901760
        %4763 = vmatmul.f32.gmra.mxu0 %v4762
        %v4764 = vpop.f32.mrf.mxu0
        %v4765 = vadd.f32 %v4420, %v4764
        %v4766 = vand.u32 %v275, 4294901760
        %4767 = vmatmul.f32.gmra.mxu0 %v4766
        %v4768 = vpop.f32.mrf.mxu0
        %v4769 = vadd.f32 %v4428, %v4768
        %v4770 = vand.u32 %v278, 4294901760
        %4771 = vmatmul.f32.gmra.mxu0 %v4770
        %v4772 = vpop.f32.mrf.mxu0
        %v4773 = vadd.f32 %v4436, %v4772
        %v4774 = vand.u32 %v281, 4294901760
        %4775 = vmatmul.f32.gmra.mxu0 %v4774
        %v4776 = vpop.f32.mrf.mxu0
        %v4777 = vadd.f32 %v4444, %v4776
        %v4778 = vand.u32 %v284, 4294901760
        %4779 = vmatmul.f32.gmra.mxu0 %v4778
        %v4780 = vpop.f32.mrf.mxu0
        %v4781 = vadd.f32 %v4452, %v4780
        %v4782 = vand.u32 %v287, 4294901760
        %4783 = vmatmul.f32.gmra.mxu0 %v4782
        %v4784 = vpop.f32.mrf.mxu0
        %v4785 = vadd.f32 %v4460, %v4784
        %v4786 = vand.u32 %v290, 4294901760
        %4787 = vmatmul.f32.gmra.mxu0 %v4786
        %v4788 = vpop.f32.mrf.mxu0
        %v4789 = vadd.f32 %v4468, %v4788
        %v4790 = vand.u32 %v293, 4294901760
        %4791 = vmatmul.f32.gmra.mxu0 %v4790
        %v4792 = vpop.f32.mrf.mxu0
        %v4793 = vadd.f32 %v4476, %v4792
        %v4794 = vand.u32 %v296, 4294901760
        %4795 = vmatmul.f32.gmra.mxu0 %v4794
        %v4796 = vpop.f32.mrf.mxu0
        %v4797 = vadd.f32 %v4484, %v4796
        %v4798 = vand.u32 %v299, 4294901760
        %4799 = vmatmul.f32.gmra.mxu0 %v4798
        %v4800 = vpop.f32.mrf.mxu0
        %v4801 = vadd.f32 %v4492, %v4800
        %v4802 = vand.u32 %v302, 4294901760
        %4803 = vmatmul.f32.gmra.mxu0 %v4802
        %v4804 = vpop.f32.mrf.mxu0
        %v4805 = vadd.f32 %v4500, %v4804
        %v4806 = vand.u32 %v305, 4294901760
        %4807 = vmatmul.f32.gmra.mxu0 %v4806
        %v4808 = vpop.f32.mrf.mxu0
        %v4809 = vadd.f32 %v4508, %v4808
        %v4810 = vand.u32 %v308, 4294901760
        %4811 = vmatmul.f32.gmra.mxu0 %v4810
        %v4812 = vpop.f32.mrf.mxu0
        %v4813 = vadd.f32 %v4516, %v4812
        %v4814 = vand.u32 %v311, 4294901760
        %4815 = vmatmul.f32.gmra.mxu0 %v4814
        %v4816 = vpop.f32.mrf.mxu0
        %v4817 = vadd.f32 %v4524, %v4816
        %v4818 = vand.u32 %v314, 4294901760
        %4819 = vmatmul.f32.gmra.mxu0 %v4818
        %v4820 = vpop.f32.mrf.mxu0
        %v4821 = vadd.f32 %v4532, %v4820
        %v4822 = vand.u32 %v317, 4294901760
        %4823 = vmatmul.f32.gmra.mxu0 %v4822
        %v4824 = vpop.f32.mrf.mxu0
        %v4825 = vadd.f32 %v4540, %v4824
        %v4826 = vand.u32 %v320, 4294901760
        %4827 = vmatmul.f32.gmra.mxu0 %v4826
        %v4828 = vpop.f32.mrf.mxu0
        %v4829 = vadd.f32 %v4548, %v4828
        %v4830 = vand.u32 %v323, 4294901760
        %4831 = vmatmul.f32.gmra.mxu0 %v4830
        %v4832 = vpop.f32.mrf.mxu0
        %v4833 = vadd.f32 %v4556, %v4832
        %v4834 = vand.u32 %v326, 4294901760
        %4835 = vmatmul.f32.gmra.mxu0 %v4834
        %v4836 = vpop.f32.mrf.mxu0
        %v4837 = vadd.f32 %v4564, %v4836
        %v4838 = vand.u32 %v329, 4294901760
        %4839 = vmatmul.f32.gmra.mxu0 %v4838
        %v4840 = vpop.f32.mrf.mxu0
        %v4841 = vadd.f32 %v4572, %v4840
        %v4842 = vand.u32 %v332, 4294901760
        %4843 = vmatmul.f32.gmra.mxu0 %v4842
        %v4844 = vpop.f32.mrf.mxu0
        %v4845 = vadd.f32 %v4580, %v4844
        %v4846 = vand.u32 %v335, 4294901760
        %4847 = vmatmul.f32.gmra.mxu0 %v4846
        %v4848 = vpop.f32.mrf.mxu0
        %v4849 = vadd.f32 %v4588, %v4848
        %v4850 = vand.u32 %v338, 4294901760
        %4851 = vmatmul.f32.gmra.mxu0 %v4850
        %v4852 = vpop.f32.mrf.mxu0
        %v4853 = vadd.f32 %v4596, %v4852
        %v4854 = vand.u32 %v341, 4294901760
        %4855 = vmatmul.f32.gmra.mxu0 %v4854
        %v4856 = vpop.f32.mrf.mxu0
        %v4857 = vadd.f32 %v4604, %v4856
        %v4858 = vand.u32 %v344, 4294901760
        %4859 = vmatmul.f32.gmra.mxu0 %v4858
        %v4860 = vpop.f32.mrf.mxu0
        %v4861 = vadd.f32 %v4612, %v4860
        %v4862 = vand.u32 %v347, 4294901760
        %4863 = vmatmul.f32.gmra.mxu0 %v4862
        %v4864 = vpop.f32.mrf.mxu0
        %v4865 = vadd.f32 %v4620, %v4864
        %v4866 = vand.u32 %v350, 4294901760
        %4867 = vmatmul.f32.gmra.mxu0 %v4866
        %v4868 = vpop.f32.mrf.mxu0
        %v4869 = vadd.f32 %v4628, %v4868
        %v4870 = vand.u32 %v353, 4294901760
        %4871 = vmatmul.f32.gmra.mxu0 %v4870
        %v4872 = vpop.f32.mrf.mxu0
        %v4873 = vadd.f32 %v4636, %v4872
        %v4874 = vand.u32 %v356, 4294901760
        %4875 = vmatmul.f32.gmra.mxu0 %v4874
        %v4876 = vpop.f32.mrf.mxu0
        %v4877 = vadd.f32 %v4644, %v4876
        %v4878 = vand.u32 %v359, 4294901760
        %4879 = vmatmul.f32.gmra.mxu0 %v4878
        %v4880 = vpop.f32.mrf.mxu0
        %v4881 = vadd.f32 %v4652, %v4880
        %v4882 = vand.u32 %v362, 4294901760
        %4883 = vmatmul.f32.gmra.mxu0 %v4882
        %v4884 = vpop.f32.mrf.mxu0
        %v4885 = vadd.f32 %v4660, %v4884
        %4886 = vdwg.mxu0
        %v4887 = vand.u32 %v396, 4294901760
        %v4888 = vsub.f32 %v396, %v4887
        %4889 = vmatpush.msra.mxu0 %v4888
        %v4890 = vand.u32 %v394, 4294901760
        %v4891 = vsub.f32 %v394, %v4890
        %4892 = vmatpush.msra.mxu0 %v4891
        %v4893 = vand.u32 %v392, 4294901760
        %v4894 = vsub.f32 %v392, %v4893
        %4895 = vmatpush.msra.mxu0 %v4894
        %v4896 = vand.u32 %v390, 4294901760
        %v4897 = vsub.f32 %v390, %v4896
        %4898 = vmatpush.msra.mxu0 %v4897
        %v4899 = vand.u32 %v388, 4294901760
        %v4900 = vsub.f32 %v388, %v4899
        %4901 = vmatpush.msra.mxu0 %v4900
        %v4902 = vand.u32 %v386, 4294901760
        %v4903 = vsub.f32 %v386, %v4902
        %4904 = vmatpush.msra.mxu0 %v4903
        %v4905 = vand.u32 %v384, 4294901760
        %v4906 = vsub.f32 %v384, %v4905
        %4907 = vmatpush.msra.mxu0 %v4906
        %v4908 = vand.u32 %v382, 4294901760
        %v4909 = vsub.f32 %v382, %v4908
        %4910 = vmatpush.msra.mxu0 %v4909
        %v4911 = vand.u32 %v380, 4294901760
        %v4912 = vsub.f32 %v380, %v4911
        %4913 = vmatpush.msra.mxu0 %v4912
        %v4914 = vand.u32 %v378, 4294901760
        %v4915 = vsub.f32 %v378, %v4914
        %4916 = vmatpush.msra.mxu0 %v4915
        %v4917 = vand.u32 %v376, 4294901760
        %v4918 = vsub.f32 %v376, %v4917
        %4919 = vmatpush.msra.mxu0 %v4918
        %v4920 = vand.u32 %v374, 4294901760
        %v4921 = vsub.f32 %v374, %v4920
        %4922 = vmatpush.msra.mxu0 %v4921
        %v4923 = vand.u32 %v372, 4294901760
        %v4924 = vsub.f32 %v372, %v4923
        %4925 = vmatpush.msra.mxu0 %v4924
        %v4926 = vand.u32 %v370, 4294901760
        %v4927 = vsub.f32 %v370, %v4926
        %4928 = vmatpush.msra.mxu0 %v4927
        %v4929 = vand.u32 %v368, 4294901760
        %v4930 = vsub.f32 %v368, %v4929
        %4931 = vmatpush.msra.mxu0 %v4930
        %v4932 = vand.u32 %v366, 4294901760
        %v4933 = vsub.f32 %v366, %v4932
        %4934 = vmatpush.msra.mxu0 %v4933
        %v4935 = vand.u32 %v269, 4294901760
        %v4936 = vsub.f32 %v269, %v4935
        %4937 = vmatmul.f32.gmra.mxu0 %v4936
        %v4938 = vpop.f32.mrf.mxu0
        %v4939 = vadd.f32 %v4761, %v4938
        %v4940 = vand.u32 %v272, 4294901760
        %v4941 = vsub.f32 %v272, %v4940
        %4942 = vmatmul.f32.gmra.mxu0 %v4941
        %v4943 = vpop.f32.mrf.mxu0
        %v4944 = vadd.f32 %v4765, %v4943
        %v4945 = vand.u32 %v275, 4294901760
        %v4946 = vsub.f32 %v275, %v4945
        %4947 = vmatmul.f32.gmra.mxu0 %v4946
        %v4948 = vpop.f32.mrf.mxu0
        %v4949 = vadd.f32 %v4769, %v4948
        %v4950 = vand.u32 %v278, 4294901760
        %v4951 = vsub.f32 %v278, %v4950
        %4952 = vmatmul.f32.gmra.mxu0 %v4951
        %v4953 = vpop.f32.mrf.mxu0
        %v4954 = vadd.f32 %v4773, %v4953
        %v4955 = vand.u32 %v281, 4294901760
        %v4956 = vsub.f32 %v281, %v4955
        %4957 = vmatmul.f32.gmra.mxu0 %v4956
        %v4958 = vpop.f32.mrf.mxu0
        %v4959 = vadd.f32 %v4777, %v4958
        %v4960 = vand.u32 %v284, 4294901760
        %v4961 = vsub.f32 %v284, %v4960
        %4962 = vmatmul.f32.gmra.mxu0 %v4961
        %v4963 = vpop.f32.mrf.mxu0
        %v4964 = vadd.f32 %v4781, %v4963
        %v4965 = vand.u32 %v287, 4294901760
        %v4966 = vsub.f32 %v287, %v4965
        %4967 = vmatmul.f32.gmra.mxu0 %v4966
        %v4968 = vpop.f32.mrf.mxu0
        %v4969 = vadd.f32 %v4785, %v4968
        %v4970 = vand.u32 %v290, 4294901760
        %v4971 = vsub.f32 %v290, %v4970
        %4972 = vmatmul.f32.gmra.mxu0 %v4971
        %v4973 = vpop.f32.mrf.mxu0
        %v4974 = vadd.f32 %v4789, %v4973
        %v4975 = vand.u32 %v293, 4294901760
        %v4976 = vsub.f32 %v293, %v4975
        %4977 = vmatmul.f32.gmra.mxu0 %v4976
        %v4978 = vpop.f32.mrf.mxu0
        %v4979 = vadd.f32 %v4793, %v4978
        %v4980 = vand.u32 %v296, 4294901760
        %v4981 = vsub.f32 %v296, %v4980
        %4982 = vmatmul.f32.gmra.mxu0 %v4981
        %v4983 = vpop.f32.mrf.mxu0
        %v4984 = vadd.f32 %v4797, %v4983
        %v4985 = vand.u32 %v299, 4294901760
        %v4986 = vsub.f32 %v299, %v4985
        %4987 = vmatmul.f32.gmra.mxu0 %v4986
        %v4988 = vpop.f32.mrf.mxu0
        %v4989 = vadd.f32 %v4801, %v4988
        %v4990 = vand.u32 %v302, 4294901760
        %v4991 = vsub.f32 %v302, %v4990
        %4992 = vmatmul.f32.gmra.mxu0 %v4991
        %v4993 = vpop.f32.mrf.mxu0
        %v4994 = vadd.f32 %v4805, %v4993
        %v4995 = vand.u32 %v305, 4294901760
        %v4996 = vsub.f32 %v305, %v4995
        %4997 = vmatmul.f32.gmra.mxu0 %v4996
        %v4998 = vpop.f32.mrf.mxu0
        %v4999 = vadd.f32 %v4809, %v4998
        %v5000 = vand.u32 %v308, 4294901760
        %v5001 = vsub.f32 %v308, %v5000
        %5002 = vmatmul.f32.gmra.mxu0 %v5001
        %v5003 = vpop.f32.mrf.mxu0
        %v5004 = vadd.f32 %v4813, %v5003
        %v5005 = vand.u32 %v311, 4294901760
        %v5006 = vsub.f32 %v311, %v5005
        %5007 = vmatmul.f32.gmra.mxu0 %v5006
        %v5008 = vpop.f32.mrf.mxu0
        %v5009 = vadd.f32 %v4817, %v5008
        %v5010 = vand.u32 %v314, 4294901760
        %v5011 = vsub.f32 %v314, %v5010
        %5012 = vmatmul.f32.gmra.mxu0 %v5011
        %v5013 = vpop.f32.mrf.mxu0
        %v5014 = vadd.f32 %v4821, %v5013
        %v5015 = vand.u32 %v317, 4294901760
        %v5016 = vsub.f32 %v317, %v5015
        %5017 = vmatmul.f32.gmra.mxu0 %v5016
        %v5018 = vpop.f32.mrf.mxu0
        %v5019 = vadd.f32 %v4825, %v5018
        %v5020 = vand.u32 %v320, 4294901760
        %v5021 = vsub.f32 %v320, %v5020
        %5022 = vmatmul.f32.gmra.mxu0 %v5021
        %v5023 = vpop.f32.mrf.mxu0
        %v5024 = vadd.f32 %v4829, %v5023
        %v5025 = vand.u32 %v323, 4294901760
        %v5026 = vsub.f32 %v323, %v5025
        %5027 = vmatmul.f32.gmra.mxu0 %v5026
        %v5028 = vpop.f32.mrf.mxu0
        %v5029 = vadd.f32 %v4833, %v5028
        %v5030 = vand.u32 %v326, 4294901760
        %v5031 = vsub.f32 %v326, %v5030
        %5032 = vmatmul.f32.gmra.mxu0 %v5031
        %v5033 = vpop.f32.mrf.mxu0
        %v5034 = vadd.f32 %v4837, %v5033
        %v5035 = vand.u32 %v329, 4294901760
        %v5036 = vsub.f32 %v329, %v5035
        %5037 = vmatmul.f32.gmra.mxu0 %v5036
        %v5038 = vpop.f32.mrf.mxu0
        %v5039 = vadd.f32 %v4841, %v5038
        %v5040 = vand.u32 %v332, 4294901760
        %v5041 = vsub.f32 %v332, %v5040
        %5042 = vmatmul.f32.gmra.mxu0 %v5041
        %v5043 = vpop.f32.mrf.mxu0
        %v5044 = vadd.f32 %v4845, %v5043
        %v5045 = vand.u32 %v335, 4294901760
        %v5046 = vsub.f32 %v335, %v5045
        %5047 = vmatmul.f32.gmra.mxu0 %v5046
        %v5048 = vpop.f32.mrf.mxu0
        %v5049 = vadd.f32 %v4849, %v5048
        %v5050 = vand.u32 %v338, 4294901760
        %v5051 = vsub.f32 %v338, %v5050
        %5052 = vmatmul.f32.gmra.mxu0 %v5051
        %v5053 = vpop.f32.mrf.mxu0
        %v5054 = vadd.f32 %v4853, %v5053
        %v5055 = vand.u32 %v341, 4294901760
        %v5056 = vsub.f32 %v341, %v5055
        %5057 = vmatmul.f32.gmra.mxu0 %v5056
        %v5058 = vpop.f32.mrf.mxu0
        %v5059 = vadd.f32 %v4857, %v5058
        %v5060 = vand.u32 %v344, 4294901760
        %v5061 = vsub.f32 %v344, %v5060
        %5062 = vmatmul.f32.gmra.mxu0 %v5061
        %v5063 = vpop.f32.mrf.mxu0
        %v5064 = vadd.f32 %v4861, %v5063
        %v5065 = vand.u32 %v347, 4294901760
        %v5066 = vsub.f32 %v347, %v5065
        %5067 = vmatmul.f32.gmra.mxu0 %v5066
        %v5068 = vpop.f32.mrf.mxu0
        %v5069 = vadd.f32 %v4865, %v5068
        %v5070 = vand.u32 %v350, 4294901760
        %v5071 = vsub.f32 %v350, %v5070
        %5072 = vmatmul.f32.gmra.mxu0 %v5071
        %v5073 = vpop.f32.mrf.mxu0
        %v5074 = vadd.f32 %v4869, %v5073
        %v5075 = vand.u32 %v353, 4294901760
        %v5076 = vsub.f32 %v353, %v5075
        %5077 = vmatmul.f32.gmra.mxu0 %v5076
        %v5078 = vpop.f32.mrf.mxu0
        %v5079 = vadd.f32 %v4873, %v5078
        %v5080 = vand.u32 %v356, 4294901760
        %v5081 = vsub.f32 %v356, %v5080
        %5082 = vmatmul.f32.gmra.mxu0 %v5081
        %v5083 = vpop.f32.mrf.mxu0
        %v5084 = vadd.f32 %v4877, %v5083
        %v5085 = vand.u32 %v359, 4294901760
        %v5086 = vsub.f32 %v359, %v5085
        %5087 = vmatmul.f32.gmra.mxu0 %v5086
        %v5088 = vpop.f32.mrf.mxu0
        %v5089 = vadd.f32 %v4881, %v5088
        %v5090 = vand.u32 %v362, 4294901760
        %v5091 = vsub.f32 %v362, %v5090
        %5092 = vmatmul.f32.gmra.mxu0 %v5091
        %v5093 = vpop.f32.mrf.mxu0
        %v5094 = vadd.f32 %v4885, %v5093
        %5095 = vdwg.mxu0
        %v5096 = vand.u32 %v396, 4294901760
        %5097 = vmatpush.msra.mxu0 %v5096
        %v5098 = vand.u32 %v394, 4294901760
        %5099 = vmatpush.msra.mxu0 %v5098
        %v5100 = vand.u32 %v392, 4294901760
        %5101 = vmatpush.msra.mxu0 %v5100
        %v5102 = vand.u32 %v390, 4294901760
        %5103 = vmatpush.msra.mxu0 %v5102
        %v5104 = vand.u32 %v388, 4294901760
        %5105 = vmatpush.msra.mxu0 %v5104
        %v5106 = vand.u32 %v386, 4294901760
        %5107 = vmatpush.msra.mxu0 %v5106
        %v5108 = vand.u32 %v384, 4294901760
        %5109 = vmatpush.msra.mxu0 %v5108
        %v5110 = vand.u32 %v382, 4294901760
        %5111 = vmatpush.msra.mxu0 %v5110
        %v5112 = vand.u32 %v380, 4294901760
        %5113 = vmatpush.msra.mxu0 %v5112
        %v5114 = vand.u32 %v378, 4294901760
        %5115 = vmatpush.msra.mxu0 %v5114
        %v5116 = vand.u32 %v376, 4294901760
        %5117 = vmatpush.msra.mxu0 %v5116
        %v5118 = vand.u32 %v374, 4294901760
        %5119 = vmatpush.msra.mxu0 %v5118
        %v5120 = vand.u32 %v372, 4294901760
        %5121 = vmatpush.msra.mxu0 %v5120
        %v5122 = vand.u32 %v370, 4294901760
        %5123 = vmatpush.msra.mxu0 %v5122
        %v5124 = vand.u32 %v368, 4294901760
        %5125 = vmatpush.msra.mxu0 %v5124
        %v5126 = vand.u32 %v366, 4294901760
        %5127 = vmatpush.msra.mxu0 %v5126
        %v5128 = vand.u32 %v269, 4294901760
        %v5129 = vsub.f32 %v269, %v5128
        %v5130 = vand.u32 %v5129, 4294901760
        %5131 = vmatmul.f32.gmra.mxu0 %v5130
        %v5132 = vpop.f32.mrf.mxu0
        %v5133 = vadd.f32 %v4939, %v5132
        %v5134 = vand.u32 %v272, 4294901760
        %v5135 = vsub.f32 %v272, %v5134
        %v5136 = vand.u32 %v5135, 4294901760
        %5137 = vmatmul.f32.gmra.mxu0 %v5136
        %v5138 = vpop.f32.mrf.mxu0
        %v5139 = vadd.f32 %v4944, %v5138
        %v5140 = vand.u32 %v275, 4294901760
        %v5141 = vsub.f32 %v275, %v5140
        %v5142 = vand.u32 %v5141, 4294901760
        %5143 = vmatmul.f32.gmra.mxu0 %v5142
        %v5144 = vpop.f32.mrf.mxu0
        %v5145 = vadd.f32 %v4949, %v5144
        %v5146 = vand.u32 %v278, 4294901760
        %v5147 = vsub.f32 %v278, %v5146
        %v5148 = vand.u32 %v5147, 4294901760
        %5149 = vmatmul.f32.gmra.mxu0 %v5148
        %v5150 = vpop.f32.mrf.mxu0
        %v5151 = vadd.f32 %v4954, %v5150
        %v5152 = vand.u32 %v281, 4294901760
        %v5153 = vsub.f32 %v281, %v5152
        %v5154 = vand.u32 %v5153, 4294901760
        %5155 = vmatmul.f32.gmra.mxu0 %v5154
        %v5156 = vpop.f32.mrf.mxu0
        %v5157 = vadd.f32 %v4959, %v5156
        %v5158 = vand.u32 %v284, 4294901760
        %v5159 = vsub.f32 %v284, %v5158
        %v5160 = vand.u32 %v5159, 4294901760
        %5161 = vmatmul.f32.gmra.mxu0 %v5160
        %v5162 = vpop.f32.mrf.mxu0
        %v5163 = vadd.f32 %v4964, %v5162
        %v5164 = vand.u32 %v287, 4294901760
        %v5165 = vsub.f32 %v287, %v5164
        %v5166 = vand.u32 %v5165, 4294901760
        %5167 = vmatmul.f32.gmra.mxu0 %v5166
        %v5168 = vpop.f32.mrf.mxu0
        %v5169 = vadd.f32 %v4969, %v5168
        %v5170 = vand.u32 %v290, 4294901760
        %v5171 = vsub.f32 %v290, %v5170
        %v5172 = vand.u32 %v5171, 4294901760
        %5173 = vmatmul.f32.gmra.mxu0 %v5172
        %v5174 = vpop.f32.mrf.mxu0
        %v5175 = vadd.f32 %v4974, %v5174
        %v5176 = vand.u32 %v293, 4294901760
        %v5177 = vsub.f32 %v293, %v5176
        %v5178 = vand.u32 %v5177, 4294901760
        %5179 = vmatmul.f32.gmra.mxu0 %v5178
        %v5180 = vpop.f32.mrf.mxu0
        %v5181 = vadd.f32 %v4979, %v5180
        %v5182 = vand.u32 %v296, 4294901760
        %v5183 = vsub.f32 %v296, %v5182
        %v5184 = vand.u32 %v5183, 4294901760
        %5185 = vmatmul.f32.gmra.mxu0 %v5184
        %v5186 = vpop.f32.mrf.mxu0
        %v5187 = vadd.f32 %v4984, %v5186
        %v5188 = vand.u32 %v299, 4294901760
        %v5189 = vsub.f32 %v299, %v5188
        %v5190 = vand.u32 %v5189, 4294901760
        %5191 = vmatmul.f32.gmra.mxu0 %v5190
        %v5192 = vpop.f32.mrf.mxu0
        %v5193 = vadd.f32 %v4989, %v5192
        %v5194 = vand.u32 %v302, 4294901760
        %v5195 = vsub.f32 %v302, %v5194
        %v5196 = vand.u32 %v5195, 4294901760
        %5197 = vmatmul.f32.gmra.mxu0 %v5196
        %v5198 = vpop.f32.mrf.mxu0
        %v5199 = vadd.f32 %v4994, %v5198
        %v5200 = vand.u32 %v305, 4294901760
        %v5201 = vsub.f32 %v305, %v5200
        %v5202 = vand.u32 %v5201, 4294901760
        %5203 = vmatmul.f32.gmra.mxu0 %v5202
        %v5204 = vpop.f32.mrf.mxu0
        %v5205 = vadd.f32 %v4999, %v5204
        %v5206 = vand.u32 %v308, 4294901760
        %v5207 = vsub.f32 %v308, %v5206
        %v5208 = vand.u32 %v5207, 4294901760
        %5209 = vmatmul.f32.gmra.mxu0 %v5208
        %v5210 = vpop.f32.mrf.mxu0
        %v5211 = vadd.f32 %v5004, %v5210
        %v5212 = vand.u32 %v311, 4294901760
        %v5213 = vsub.f32 %v311, %v5212
        %v5214 = vand.u32 %v5213, 4294901760
        %5215 = vmatmul.f32.gmra.mxu0 %v5214
        %v5216 = vpop.f32.mrf.mxu0
        %v5217 = vadd.f32 %v5009, %v5216
        %v5218 = vand.u32 %v314, 4294901760
        %v5219 = vsub.f32 %v314, %v5218
        %v5220 = vand.u32 %v5219, 4294901760
        %5221 = vmatmul.f32.gmra.mxu0 %v5220
        %v5222 = vpop.f32.mrf.mxu0
        %v5223 = vadd.f32 %v5014, %v5222
        %v5224 = vand.u32 %v317, 4294901760
        %v5225 = vsub.f32 %v317, %v5224
        %v5226 = vand.u32 %v5225, 4294901760
        %5227 = vmatmul.f32.gmra.mxu0 %v5226
        %v5228 = vpop.f32.mrf.mxu0
        %v5229 = vadd.f32 %v5019, %v5228
        %v5230 = vand.u32 %v320, 4294901760
        %v5231 = vsub.f32 %v320, %v5230
        %v5232 = vand.u32 %v5231, 4294901760
        %5233 = vmatmul.f32.gmra.mxu0 %v5232
        %v5234 = vpop.f32.mrf.mxu0
        %v5235 = vadd.f32 %v5024, %v5234
        %v5236 = vand.u32 %v323, 4294901760
        %v5237 = vsub.f32 %v323, %v5236
        %v5238 = vand.u32 %v5237, 4294901760
        %5239 = vmatmul.f32.gmra.mxu0 %v5238
        %v5240 = vpop.f32.mrf.mxu0
        %v5241 = vadd.f32 %v5029, %v5240
        %v5242 = vand.u32 %v326, 4294901760
        %v5243 = vsub.f32 %v326, %v5242
        %v5244 = vand.u32 %v5243, 4294901760
        %5245 = vmatmul.f32.gmra.mxu0 %v5244
        %v5246 = vpop.f32.mrf.mxu0
        %v5247 = vadd.f32 %v5034, %v5246
        %v5248 = vand.u32 %v329, 4294901760
        %v5249 = vsub.f32 %v329, %v5248
        %v5250 = vand.u32 %v5249, 4294901760
        %5251 = vmatmul.f32.gmra.mxu0 %v5250
        %v5252 = vpop.f32.mrf.mxu0
        %v5253 = vadd.f32 %v5039, %v5252
        %v5254 = vand.u32 %v332, 4294901760
        %v5255 = vsub.f32 %v332, %v5254
        %v5256 = vand.u32 %v5255, 4294901760
        %5257 = vmatmul.f32.gmra.mxu0 %v5256
        %v5258 = vpop.f32.mrf.mxu0
        %v5259 = vadd.f32 %v5044, %v5258
        %v5260 = vand.u32 %v335, 4294901760
        %v5261 = vsub.f32 %v335, %v5260
        %v5262 = vand.u32 %v5261, 4294901760
        %5263 = vmatmul.f32.gmra.mxu0 %v5262
        %v5264 = vpop.f32.mrf.mxu0
        %v5265 = vadd.f32 %v5049, %v5264
        %v5266 = vand.u32 %v338, 4294901760
        %v5267 = vsub.f32 %v338, %v5266
        %v5268 = vand.u32 %v5267, 4294901760
        %5269 = vmatmul.f32.gmra.mxu0 %v5268
        %v5270 = vpop.f32.mrf.mxu0
        %v5271 = vadd.f32 %v5054, %v5270
        %v5272 = vand.u32 %v341, 4294901760
        %v5273 = vsub.f32 %v341, %v5272
        %v5274 = vand.u32 %v5273, 4294901760
        %5275 = vmatmul.f32.gmra.mxu0 %v5274
        %v5276 = vpop.f32.mrf.mxu0
        %v5277 = vadd.f32 %v5059, %v5276
        %v5278 = vand.u32 %v344, 4294901760
        %v5279 = vsub.f32 %v344, %v5278
        %v5280 = vand.u32 %v5279, 4294901760
        %5281 = vmatmul.f32.gmra.mxu0 %v5280
        %v5282 = vpop.f32.mrf.mxu0
        %v5283 = vadd.f32 %v5064, %v5282
        %v5284 = vand.u32 %v347, 4294901760
        %v5285 = vsub.f32 %v347, %v5284
        %v5286 = vand.u32 %v5285, 4294901760
        %5287 = vmatmul.f32.gmra.mxu0 %v5286
        %v5288 = vpop.f32.mrf.mxu0
        %v5289 = vadd.f32 %v5069, %v5288
        %v5290 = vand.u32 %v350, 4294901760
        %v5291 = vsub.f32 %v350, %v5290
        %v5292 = vand.u32 %v5291, 4294901760
        %5293 = vmatmul.f32.gmra.mxu0 %v5292
        %v5294 = vpop.f32.mrf.mxu0
        %v5295 = vadd.f32 %v5074, %v5294
        %v5296 = vand.u32 %v353, 4294901760
        %v5297 = vsub.f32 %v353, %v5296
        %v5298 = vand.u32 %v5297, 4294901760
        %5299 = vmatmul.f32.gmra.mxu0 %v5298
        %v5300 = vpop.f32.mrf.mxu0
        %v5301 = vadd.f32 %v5079, %v5300
        %v5302 = vand.u32 %v356, 4294901760
        %v5303 = vsub.f32 %v356, %v5302
        %v5304 = vand.u32 %v5303, 4294901760
        %5305 = vmatmul.f32.gmra.mxu0 %v5304
        %v5306 = vpop.f32.mrf.mxu0
        %v5307 = vadd.f32 %v5084, %v5306
        %v5308 = vand.u32 %v359, 4294901760
        %v5309 = vsub.f32 %v359, %v5308
        %v5310 = vand.u32 %v5309, 4294901760
        %5311 = vmatmul.f32.gmra.mxu0 %v5310
        %v5312 = vpop.f32.mrf.mxu0
        %v5313 = vadd.f32 %v5089, %v5312
        %v5314 = vand.u32 %v362, 4294901760
        %v5315 = vsub.f32 %v362, %v5314
        %v5316 = vand.u32 %v5315, 4294901760
        %5317 = vmatmul.f32.gmra.mxu0 %v5316
        %v5318 = vpop.f32.mrf.mxu0
        %v5319 = vadd.f32 %v5094, %v5318
        %5320 = vdwg.mxu0
        %v5321 = vand.u32 %v396, 4294901760
        %v5322 = vsub.f32 %v396, %v5321
        %v5323 = vand.u32 %v5322, 4294901760
        %5324 = vmatpush.msra.mxu0 %v5323
        %v5325 = vand.u32 %v394, 4294901760
        %v5326 = vsub.f32 %v394, %v5325
        %v5327 = vand.u32 %v5326, 4294901760
        %5328 = vmatpush.msra.mxu0 %v5327
        %v5329 = vand.u32 %v392, 4294901760
        %v5330 = vsub.f32 %v392, %v5329
        %v5331 = vand.u32 %v5330, 4294901760
        %5332 = vmatpush.msra.mxu0 %v5331
        %v5333 = vand.u32 %v390, 4294901760
        %v5334 = vsub.f32 %v390, %v5333
        %v5335 = vand.u32 %v5334, 4294901760
        %5336 = vmatpush.msra.mxu0 %v5335
        %v5337 = vand.u32 %v388, 4294901760
        %v5338 = vsub.f32 %v388, %v5337
        %v5339 = vand.u32 %v5338, 4294901760
        %5340 = vmatpush.msra.mxu0 %v5339
        %v5341 = vand.u32 %v386, 4294901760
        %v5342 = vsub.f32 %v386, %v5341
        %v5343 = vand.u32 %v5342, 4294901760
        %5344 = vmatpush.msra.mxu0 %v5343
        %v5345 = vand.u32 %v384, 4294901760
        %v5346 = vsub.f32 %v384, %v5345
        %v5347 = vand.u32 %v5346, 4294901760
        %5348 = vmatpush.msra.mxu0 %v5347
        %v5349 = vand.u32 %v382, 4294901760
        %v5350 = vsub.f32 %v382, %v5349
        %v5351 = vand.u32 %v5350, 4294901760
        %5352 = vmatpush.msra.mxu0 %v5351
        %v5353 = vand.u32 %v380, 4294901760
        %v5354 = vsub.f32 %v380, %v5353
        %v5355 = vand.u32 %v5354, 4294901760
        %5356 = vmatpush.msra.mxu0 %v5355
        %v5357 = vand.u32 %v378, 4294901760
        %v5358 = vsub.f32 %v378, %v5357
        %v5359 = vand.u32 %v5358, 4294901760
        %5360 = vmatpush.msra.mxu0 %v5359
        %v5361 = vand.u32 %v376, 4294901760
        %v5362 = vsub.f32 %v376, %v5361
        %v5363 = vand.u32 %v5362, 4294901760
        %5364 = vmatpush.msra.mxu0 %v5363
        %v5365 = vand.u32 %v374, 4294901760
        %v5366 = vsub.f32 %v374, %v5365
        %v5367 = vand.u32 %v5366, 4294901760
        %5368 = vmatpush.msra.mxu0 %v5367
        %v5369 = vand.u32 %v372, 4294901760
        %v5370 = vsub.f32 %v372, %v5369
        %v5371 = vand.u32 %v5370, 4294901760
        %5372 = vmatpush.msra.mxu0 %v5371
        %v5373 = vand.u32 %v370, 4294901760
        %v5374 = vsub.f32 %v370, %v5373
        %v5375 = vand.u32 %v5374, 4294901760
        %5376 = vmatpush.msra.mxu0 %v5375
        %v5377 = vand.u32 %v368, 4294901760
        %v5378 = vsub.f32 %v368, %v5377
        %v5379 = vand.u32 %v5378, 4294901760
        %5380 = vmatpush.msra.mxu0 %v5379
        %v5381 = vand.u32 %v366, 4294901760
        %v5382 = vsub.f32 %v366, %v5381
        %v5383 = vand.u32 %v5382, 4294901760
        %5384 = vmatpush.msra.mxu0 %v5383
        %v5385 = vand.u32 %v269, 4294901760
        %5386 = vmatmul.f32.gmra.mxu0 %v5385
        %v5387 = vpop.f32.mrf.mxu0
        %v5388 = vadd.f32 %v5133, %v5387
        %v5389 = vand.u32 %v272, 4294901760
        %5390 = vmatmul.f32.gmra.mxu0 %v5389
        %v5391 = vpop.f32.mrf.mxu0
        %v5392 = vadd.f32 %v5139, %v5391
        %v5393 = vand.u32 %v275, 4294901760
        %5394 = vmatmul.f32.gmra.mxu0 %v5393
        %v5395 = vpop.f32.mrf.mxu0
        %v5396 = vadd.f32 %v5145, %v5395
        %v5397 = vand.u32 %v278, 4294901760
        %5398 = vmatmul.f32.gmra.mxu0 %v5397
        %v5399 = vpop.f32.mrf.mxu0
        %v5400 = vadd.f32 %v5151, %v5399
        %v5401 = vand.u32 %v281, 4294901760
        %5402 = vmatmul.f32.gmra.mxu0 %v5401
        %v5403 = vpop.f32.mrf.mxu0
        %v5404 = vadd.f32 %v5157, %v5403
        %v5405 = vand.u32 %v284, 4294901760
        %5406 = vmatmul.f32.gmra.mxu0 %v5405
        %v5407 = vpop.f32.mrf.mxu0
        %v5408 = vadd.f32 %v5163, %v5407
        %v5409 = vand.u32 %v287, 4294901760
        %5410 = vmatmul.f32.gmra.mxu0 %v5409
        %v5411 = vpop.f32.mrf.mxu0
        %v5412 = vadd.f32 %v5169, %v5411
        %v5413 = vand.u32 %v290, 4294901760
        %5414 = vmatmul.f32.gmra.mxu0 %v5413
        %v5415 = vpop.f32.mrf.mxu0
        %v5416 = vadd.f32 %v5175, %v5415
        %v5417 = vand.u32 %v293, 4294901760
        %5418 = vmatmul.f32.gmra.mxu0 %v5417
        %v5419 = vpop.f32.mrf.mxu0
        %v5420 = vadd.f32 %v5181, %v5419
        %v5421 = vand.u32 %v296, 4294901760
        %5422 = vmatmul.f32.gmra.mxu0 %v5421
        %v5423 = vpop.f32.mrf.mxu0
        %v5424 = vadd.f32 %v5187, %v5423
        %v5425 = vand.u32 %v299, 4294901760
        %5426 = vmatmul.f32.gmra.mxu0 %v5425
        %v5427 = vpop.f32.mrf.mxu0
        %v5428 = vadd.f32 %v5193, %v5427
        %v5429 = vand.u32 %v302, 4294901760
        %5430 = vmatmul.f32.gmra.mxu0 %v5429
        %v5431 = vpop.f32.mrf.mxu0
        %v5432 = vadd.f32 %v5199, %v5431
        %v5433 = vand.u32 %v305, 4294901760
        %5434 = vmatmul.f32.gmra.mxu0 %v5433
        %v5435 = vpop.f32.mrf.mxu0
        %v5436 = vadd.f32 %v5205, %v5435
        %v5437 = vand.u32 %v308, 4294901760
        %5438 = vmatmul.f32.gmra.mxu0 %v5437
        %v5439 = vpop.f32.mrf.mxu0
        %v5440 = vadd.f32 %v5211, %v5439
        %v5441 = vand.u32 %v311, 4294901760
        %5442 = vmatmul.f32.gmra.mxu0 %v5441
        %v5443 = vpop.f32.mrf.mxu0
        %v5444 = vadd.f32 %v5217, %v5443
        %v5445 = vand.u32 %v314, 4294901760
        %5446 = vmatmul.f32.gmra.mxu0 %v5445
        %v5447 = vpop.f32.mrf.mxu0
        %v5448 = vadd.f32 %v5223, %v5447
        %v5449 = vand.u32 %v317, 4294901760
        %5450 = vmatmul.f32.gmra.mxu0 %v5449
        %v5451 = vpop.f32.mrf.mxu0
        %v5452 = vadd.f32 %v5229, %v5451
        %v5453 = vand.u32 %v320, 4294901760
        %5454 = vmatmul.f32.gmra.mxu0 %v5453
        %v5455 = vpop.f32.mrf.mxu0
        %v5456 = vadd.f32 %v5235, %v5455
        %v5457 = vand.u32 %v323, 4294901760
        %5458 = vmatmul.f32.gmra.mxu0 %v5457
        %v5459 = vpop.f32.mrf.mxu0
        %v5460 = vadd.f32 %v5241, %v5459
        %v5461 = vand.u32 %v326, 4294901760
        %5462 = vmatmul.f32.gmra.mxu0 %v5461
        %v5463 = vpop.f32.mrf.mxu0
        %v5464 = vadd.f32 %v5247, %v5463
        %v5465 = vand.u32 %v329, 4294901760
        %5466 = vmatmul.f32.gmra.mxu0 %v5465
        %v5467 = vpop.f32.mrf.mxu0
        %v5468 = vadd.f32 %v5253, %v5467
        %v5469 = vand.u32 %v332, 4294901760
        %5470 = vmatmul.f32.gmra.mxu0 %v5469
        %v5471 = vpop.f32.mrf.mxu0
        %v5472 = vadd.f32 %v5259, %v5471
        %v5473 = vand.u32 %v335, 4294901760
        %5474 = vmatmul.f32.gmra.mxu0 %v5473
        %v5475 = vpop.f32.mrf.mxu0
        %v5476 = vadd.f32 %v5265, %v5475
        %v5477 = vand.u32 %v338, 4294901760
        %5478 = vmatmul.f32.gmra.mxu0 %v5477
        %v5479 = vpop.f32.mrf.mxu0
        %v5480 = vadd.f32 %v5271, %v5479
        %v5481 = vand.u32 %v341, 4294901760
        %5482 = vmatmul.f32.gmra.mxu0 %v5481
        %v5483 = vpop.f32.mrf.mxu0
        %v5484 = vadd.f32 %v5277, %v5483
        %v5485 = vand.u32 %v344, 4294901760
        %5486 = vmatmul.f32.gmra.mxu0 %v5485
        %v5487 = vpop.f32.mrf.mxu0
        %v5488 = vadd.f32 %v5283, %v5487
        %v5489 = vand.u32 %v347, 4294901760
        %5490 = vmatmul.f32.gmra.mxu0 %v5489
        %v5491 = vpop.f32.mrf.mxu0
        %v5492 = vadd.f32 %v5289, %v5491
        %v5493 = vand.u32 %v350, 4294901760
        %5494 = vmatmul.f32.gmra.mxu0 %v5493
        %v5495 = vpop.f32.mrf.mxu0
        %v5496 = vadd.f32 %v5295, %v5495
        %v5497 = vand.u32 %v353, 4294901760
        %5498 = vmatmul.f32.gmra.mxu0 %v5497
        %v5499 = vpop.f32.mrf.mxu0
        %v5500 = vadd.f32 %v5301, %v5499
        %v5501 = vand.u32 %v356, 4294901760
        %5502 = vmatmul.f32.gmra.mxu0 %v5501
        %v5503 = vpop.f32.mrf.mxu0
        %v5504 = vadd.f32 %v5307, %v5503
        %v5505 = vand.u32 %v359, 4294901760
        %5506 = vmatmul.f32.gmra.mxu0 %v5505
        %v5507 = vpop.f32.mrf.mxu0
        %v5508 = vadd.f32 %v5313, %v5507
        %v5509 = vand.u32 %v362, 4294901760
        %5510 = vmatmul.f32.gmra.mxu0 %v5509
        %v5511 = vpop.f32.mrf.mxu0
        %v5512 = vadd.f32 %v5319, %v5511
        %5513 = vdwg.mxu0
        %v5514 = vand.u32 %v396, 4294901760
        %5515 = vmatpush.msra.mxu0 %v5514
        %v5516 = vand.u32 %v394, 4294901760
        %5517 = vmatpush.msra.mxu0 %v5516
        %v5518 = vand.u32 %v392, 4294901760
        %5519 = vmatpush.msra.mxu0 %v5518
        %v5520 = vand.u32 %v390, 4294901760
        %5521 = vmatpush.msra.mxu0 %v5520
        %v5522 = vand.u32 %v388, 4294901760
        %5523 = vmatpush.msra.mxu0 %v5522
        %v5524 = vand.u32 %v386, 4294901760
        %5525 = vmatpush.msra.mxu0 %v5524
        %v5526 = vand.u32 %v384, 4294901760
        %5527 = vmatpush.msra.mxu0 %v5526
        %v5528 = vand.u32 %v382, 4294901760
        %5529 = vmatpush.msra.mxu0 %v5528
        %v5530 = vand.u32 %v380, 4294901760
        %5531 = vmatpush.msra.mxu0 %v5530
        %v5532 = vand.u32 %v378, 4294901760
        %5533 = vmatpush.msra.mxu0 %v5532
        %v5534 = vand.u32 %v376, 4294901760
        %5535 = vmatpush.msra.mxu0 %v5534
        %v5536 = vand.u32 %v374, 4294901760
        %5537 = vmatpush.msra.mxu0 %v5536
        %v5538 = vand.u32 %v372, 4294901760
        %5539 = vmatpush.msra.mxu0 %v5538
        %v5540 = vand.u32 %v370, 4294901760
        %5541 = vmatpush.msra.mxu0 %v5540
        %v5542 = vand.u32 %v368, 4294901760
        %5543 = vmatpush.msra.mxu0 %v5542
        %v5544 = vand.u32 %v366, 4294901760
        %5545 = vmatpush.msra.mxu0 %v5544
        %v5546 = vand.u32 %v269, 4294901760
        %5547 = vmatmul.f32.gmra.mxu0 %v5546
        %v5548 = vpop.f32.mrf.mxu0
        %v5549 = vadd.f32 %v5388, %v5548
        %v5550 = vand.u32 %v272, 4294901760
        %5551 = vmatmul.f32.gmra.mxu0 %v5550
        %v5552 = vpop.f32.mrf.mxu0
        %v5553 = vadd.f32 %v5392, %v5552
        %v5554 = vand.u32 %v275, 4294901760
        %5555 = vmatmul.f32.gmra.mxu0 %v5554
        %v5556 = vpop.f32.mrf.mxu0
        %v5557 = vadd.f32 %v5396, %v5556
        %v5558 = vand.u32 %v278, 4294901760
        %5559 = vmatmul.f32.gmra.mxu0 %v5558
        %v5560 = vpop.f32.mrf.mxu0
        %v5561 = vadd.f32 %v5400, %v5560
        %v5562 = vand.u32 %v281, 4294901760
        %5563 = vmatmul.f32.gmra.mxu0 %v5562
        %v5564 = vpop.f32.mrf.mxu0
        %v5565 = vadd.f32 %v5404, %v5564
        %v5566 = vand.u32 %v284, 4294901760
        %5567 = vmatmul.f32.gmra.mxu0 %v5566
        %v5568 = vpop.f32.mrf.mxu0
        %v5569 = vadd.f32 %v5408, %v5568
        %v5570 = vand.u32 %v287, 4294901760
        %5571 = vmatmul.f32.gmra.mxu0 %v5570
        %v5572 = vpop.f32.mrf.mxu0
        %v5573 = vadd.f32 %v5412, %v5572
        %v5574 = vand.u32 %v290, 4294901760
        %5575 = vmatmul.f32.gmra.mxu0 %v5574
        %v5576 = vpop.f32.mrf.mxu0
        %v5577 = vadd.f32 %v5416, %v5576
        %v5578 = vand.u32 %v293, 4294901760
        %5579 = vmatmul.f32.gmra.mxu0 %v5578
        %v5580 = vpop.f32.mrf.mxu0
        %v5581 = vadd.f32 %v5420, %v5580
        %v5582 = vand.u32 %v296, 4294901760
        %5583 = vmatmul.f32.gmra.mxu0 %v5582
        %v5584 = vpop.f32.mrf.mxu0
        %v5585 = vadd.f32 %v5424, %v5584
        %v5586 = vand.u32 %v299, 4294901760
        %5587 = vmatmul.f32.gmra.mxu0 %v5586
        %v5588 = vpop.f32.mrf.mxu0
        %v5589 = vadd.f32 %v5428, %v5588
        %v5590 = vand.u32 %v302, 4294901760
        %5591 = vmatmul.f32.gmra.mxu0 %v5590
        %v5592 = vpop.f32.mrf.mxu0
        %v5593 = vadd.f32 %v5432, %v5592
        %v5594 = vand.u32 %v305, 4294901760
        %5595 = vmatmul.f32.gmra.mxu0 %v5594
        %v5596 = vpop.f32.mrf.mxu0
        %v5597 = vadd.f32 %v5436, %v5596
        %v5598 = vand.u32 %v308, 4294901760
        %5599 = vmatmul.f32.gmra.mxu0 %v5598
        %v5600 = vpop.f32.mrf.mxu0
        %v5601 = vadd.f32 %v5440, %v5600
        %v5602 = vand.u32 %v311, 4294901760
        %5603 = vmatmul.f32.gmra.mxu0 %v5602
        %v5604 = vpop.f32.mrf.mxu0
        %v5605 = vadd.f32 %v5444, %v5604
        %v5606 = vand.u32 %v314, 4294901760
        %5607 = vmatmul.f32.gmra.mxu0 %v5606
        %v5608 = vpop.f32.mrf.mxu0
        %v5609 = vadd.f32 %v5448, %v5608
        %v5610 = vand.u32 %v317, 4294901760
        %5611 = vmatmul.f32.gmra.mxu0 %v5610
        %v5612 = vpop.f32.mrf.mxu0
        %v5613 = vadd.f32 %v5452, %v5612
        %v5614 = vand.u32 %v320, 4294901760
        %5615 = vmatmul.f32.gmra.mxu0 %v5614
        %v5616 = vpop.f32.mrf.mxu0
        %v5617 = vadd.f32 %v5456, %v5616
        %v5618 = vand.u32 %v323, 4294901760
        %5619 = vmatmul.f32.gmra.mxu0 %v5618
        %v5620 = vpop.f32.mrf.mxu0
        %v5621 = vadd.f32 %v5460, %v5620
        %v5622 = vand.u32 %v326, 4294901760
        %5623 = vmatmul.f32.gmra.mxu0 %v5622
        %v5624 = vpop.f32.mrf.mxu0
        %v5625 = vadd.f32 %v5464, %v5624
        %v5626 = vand.u32 %v329, 4294901760
        %5627 = vmatmul.f32.gmra.mxu0 %v5626
        %v5628 = vpop.f32.mrf.mxu0
        %v5629 = vadd.f32 %v5468, %v5628
        %v5630 = vand.u32 %v332, 4294901760
        %5631 = vmatmul.f32.gmra.mxu0 %v5630
        %v5632 = vpop.f32.mrf.mxu0
        %v5633 = vadd.f32 %v5472, %v5632
        %v5634 = vand.u32 %v335, 4294901760
        %5635 = vmatmul.f32.gmra.mxu0 %v5634
        %v5636 = vpop.f32.mrf.mxu0
        %v5637 = vadd.f32 %v5476, %v5636
        %v5638 = vand.u32 %v338, 4294901760
        %5639 = vmatmul.f32.gmra.mxu0 %v5638
        %v5640 = vpop.f32.mrf.mxu0
        %v5641 = vadd.f32 %v5480, %v5640
        %v5642 = vand.u32 %v341, 4294901760
        %5643 = vmatmul.f32.gmra.mxu0 %v5642
        %v5644 = vpop.f32.mrf.mxu0
        %v5645 = vadd.f32 %v5484, %v5644
        %v5646 = vand.u32 %v344, 4294901760
        %5647 = vmatmul.f32.gmra.mxu0 %v5646
        %v5648 = vpop.f32.mrf.mxu0
        %v5649 = vadd.f32 %v5488, %v5648
        %v5650 = vand.u32 %v347, 4294901760
        %5651 = vmatmul.f32.gmra.mxu0 %v5650
        %v5652 = vpop.f32.mrf.mxu0
        %v5653 = vadd.f32 %v5492, %v5652
        %v5654 = vand.u32 %v350, 4294901760
        %5655 = vmatmul.f32.gmra.mxu0 %v5654
        %v5656 = vpop.f32.mrf.mxu0
        %v5657 = vadd.f32 %v5496, %v5656
        %v5658 = vand.u32 %v353, 4294901760
        %5659 = vmatmul.f32.gmra.mxu0 %v5658
        %v5660 = vpop.f32.mrf.mxu0
        %v5661 = vadd.f32 %v5500, %v5660
        %v5662 = vand.u32 %v356, 4294901760
        %5663 = vmatmul.f32.gmra.mxu0 %v5662
        %v5664 = vpop.f32.mrf.mxu0
        %v5665 = vadd.f32 %v5504, %v5664
        %v5666 = vand.u32 %v359, 4294901760
        %5667 = vmatmul.f32.gmra.mxu0 %v5666
        %v5668 = vpop.f32.mrf.mxu0
        %v5669 = vadd.f32 %v5508, %v5668
        %v5670 = vand.u32 %v362, 4294901760
        %5671 = vmatmul.f32.gmra.mxu0 %v5670
        %v5672 = vpop.f32.mrf.mxu0
        %v5673 = vadd.f32 %v5512, %v5672
        %5674 = vdwg.mxu0
        %v5675 = vand.u32 %v428, 4294901760
        %5676 = vmatpush.msra.mxu0 %v5675
        %v5677 = vand.u32 %v426, 4294901760
        %5678 = vmatpush.msra.mxu0 %v5677
        %v5679 = vand.u32 %v424, 4294901760
        %5680 = vmatpush.msra.mxu0 %v5679
        %v5681 = vand.u32 %v422, 4294901760
        %5682 = vmatpush.msra.mxu0 %v5681
        %v5683 = vand.u32 %v420, 4294901760
        %5684 = vmatpush.msra.mxu0 %v5683
        %v5685 = vand.u32 %v418, 4294901760
        %5686 = vmatpush.msra.mxu0 %v5685
        %v5687 = vand.u32 %v416, 4294901760
        %5688 = vmatpush.msra.mxu0 %v5687
        %v5689 = vand.u32 %v414, 4294901760
        %5690 = vmatpush.msra.mxu0 %v5689
        %v5691 = vand.u32 %v412, 4294901760
        %5692 = vmatpush.msra.mxu0 %v5691
        %v5693 = vand.u32 %v410, 4294901760
        %5694 = vmatpush.msra.mxu0 %v5693
        %v5695 = vand.u32 %v408, 4294901760
        %5696 = vmatpush.msra.mxu0 %v5695
        %v5697 = vand.u32 %v406, 4294901760
        %5698 = vmatpush.msra.mxu0 %v5697
        %v5699 = vand.u32 %v404, 4294901760
        %5700 = vmatpush.msra.mxu0 %v5699
        %v5701 = vand.u32 %v402, 4294901760
        %5702 = vmatpush.msra.mxu0 %v5701
        %v5703 = vand.u32 %v400, 4294901760
        %5704 = vmatpush.msra.mxu0 %v5703
        %v5705 = vand.u32 %v398, 4294901760
        %5706 = vmatpush.msra.mxu0 %v5705
        %v5707 = vand.u32 %v270, 4294901760
        %v5708 = vsub.f32 %v270, %v5707
        %v5709 = vand.u32 %v5708, 4294901760
        %v5710 = vsub.f32 %v5708, %v5709
        %v5711 = vand.u32 %v5710, 4294901760
        %5712 = vmatmul.f32.gmra.mxu0 %v5711
        %v5713 = vpop.f32.mrf.mxu0
        %v5714 = vadd.f32 %v5549, %v5713
        %v5715 = vand.u32 %v273, 4294901760
        %v5716 = vsub.f32 %v273, %v5715
        %v5717 = vand.u32 %v5716, 4294901760
        %v5718 = vsub.f32 %v5716, %v5717
        %v5719 = vand.u32 %v5718, 4294901760
        %5720 = vmatmul.f32.gmra.mxu0 %v5719
        %v5721 = vpop.f32.mrf.mxu0
        %v5722 = vadd.f32 %v5553, %v5721
        %v5723 = vand.u32 %v276, 4294901760
        %v5724 = vsub.f32 %v276, %v5723
        %v5725 = vand.u32 %v5724, 4294901760
        %v5726 = vsub.f32 %v5724, %v5725
        %v5727 = vand.u32 %v5726, 4294901760
        %5728 = vmatmul.f32.gmra.mxu0 %v5727
        %v5729 = vpop.f32.mrf.mxu0
        %v5730 = vadd.f32 %v5557, %v5729
        %v5731 = vand.u32 %v279, 4294901760
        %v5732 = vsub.f32 %v279, %v5731
        %v5733 = vand.u32 %v5732, 4294901760
        %v5734 = vsub.f32 %v5732, %v5733
        %v5735 = vand.u32 %v5734, 4294901760
        %5736 = vmatmul.f32.gmra.mxu0 %v5735
        %v5737 = vpop.f32.mrf.mxu0
        %v5738 = vadd.f32 %v5561, %v5737
        %v5739 = vand.u32 %v282, 4294901760
        %v5740 = vsub.f32 %v282, %v5739
        %v5741 = vand.u32 %v5740, 4294901760
        %v5742 = vsub.f32 %v5740, %v5741
        %v5743 = vand.u32 %v5742, 4294901760
        %5744 = vmatmul.f32.gmra.mxu0 %v5743
        %v5745 = vpop.f32.mrf.mxu0
        %v5746 = vadd.f32 %v5565, %v5745
        %v5747 = vand.u32 %v285, 4294901760
        %v5748 = vsub.f32 %v285, %v5747
        %v5749 = vand.u32 %v5748, 4294901760
        %v5750 = vsub.f32 %v5748, %v5749
        %v5751 = vand.u32 %v5750, 4294901760
        %5752 = vmatmul.f32.gmra.mxu0 %v5751
        %v5753 = vpop.f32.mrf.mxu0
        %v5754 = vadd.f32 %v5569, %v5753
        %v5755 = vand.u32 %v288, 4294901760
        %v5756 = vsub.f32 %v288, %v5755
        %v5757 = vand.u32 %v5756, 4294901760
        %v5758 = vsub.f32 %v5756, %v5757
        %v5759 = vand.u32 %v5758, 4294901760
        %5760 = vmatmul.f32.gmra.mxu0 %v5759
        %v5761 = vpop.f32.mrf.mxu0
        %v5762 = vadd.f32 %v5573, %v5761
        %v5763 = vand.u32 %v291, 4294901760
        %v5764 = vsub.f32 %v291, %v5763
        %v5765 = vand.u32 %v5764, 4294901760
        %v5766 = vsub.f32 %v5764, %v5765
        %v5767 = vand.u32 %v5766, 4294901760
        %5768 = vmatmul.f32.gmra.mxu0 %v5767
        %v5769 = vpop.f32.mrf.mxu0
        %v5770 = vadd.f32 %v5577, %v5769
        %v5771 = vand.u32 %v294, 4294901760
        %v5772 = vsub.f32 %v294, %v5771
        %v5773 = vand.u32 %v5772, 4294901760
        %v5774 = vsub.f32 %v5772, %v5773
        %v5775 = vand.u32 %v5774, 4294901760
        %5776 = vmatmul.f32.gmra.mxu0 %v5775
        %v5777 = vpop.f32.mrf.mxu0
        %v5778 = vadd.f32 %v5581, %v5777
        %v5779 = vand.u32 %v297, 4294901760
        %v5780 = vsub.f32 %v297, %v5779
        %v5781 = vand.u32 %v5780, 4294901760
        %v5782 = vsub.f32 %v5780, %v5781
        %v5783 = vand.u32 %v5782, 4294901760
        %5784 = vmatmul.f32.gmra.mxu0 %v5783
        %v5785 = vpop.f32.mrf.mxu0
        %v5786 = vadd.f32 %v5585, %v5785
        %v5787 = vand.u32 %v300, 4294901760
        %v5788 = vsub.f32 %v300, %v5787
        %v5789 = vand.u32 %v5788, 4294901760
        %v5790 = vsub.f32 %v5788, %v5789
        %v5791 = vand.u32 %v5790, 4294901760
        %5792 = vmatmul.f32.gmra.mxu0 %v5791
        %v5793 = vpop.f32.mrf.mxu0
        %v5794 = vadd.f32 %v5589, %v5793
        %v5795 = vand.u32 %v303, 4294901760
        %v5796 = vsub.f32 %v303, %v5795
        %v5797 = vand.u32 %v5796, 4294901760
        %v5798 = vsub.f32 %v5796, %v5797
        %v5799 = vand.u32 %v5798, 4294901760
        %5800 = vmatmul.f32.gmra.mxu0 %v5799
        %v5801 = vpop.f32.mrf.mxu0
        %v5802 = vadd.f32 %v5593, %v5801
        %v5803 = vand.u32 %v306, 4294901760
        %v5804 = vsub.f32 %v306, %v5803
        %v5805 = vand.u32 %v5804, 4294901760
        %v5806 = vsub.f32 %v5804, %v5805
        %v5807 = vand.u32 %v5806, 4294901760
        %5808 = vmatmul.f32.gmra.mxu0 %v5807
        %v5809 = vpop.f32.mrf.mxu0
        %v5810 = vadd.f32 %v5597, %v5809
        %v5811 = vand.u32 %v309, 4294901760
        %v5812 = vsub.f32 %v309, %v5811
        %v5813 = vand.u32 %v5812, 4294901760
        %v5814 = vsub.f32 %v5812, %v5813
        %v5815 = vand.u32 %v5814, 4294901760
        %5816 = vmatmul.f32.gmra.mxu0 %v5815
        %v5817 = vpop.f32.mrf.mxu0
        %v5818 = vadd.f32 %v5601, %v5817
        %v5819 = vand.u32 %v312, 4294901760
        %v5820 = vsub.f32 %v312, %v5819
        %v5821 = vand.u32 %v5820, 4294901760
        %v5822 = vsub.f32 %v5820, %v5821
        %v5823 = vand.u32 %v5822, 4294901760
        %5824 = vmatmul.f32.gmra.mxu0 %v5823
        %v5825 = vpop.f32.mrf.mxu0
        %v5826 = vadd.f32 %v5605, %v5825
        %v5827 = vand.u32 %v315, 4294901760
        %v5828 = vsub.f32 %v315, %v5827
        %v5829 = vand.u32 %v5828, 4294901760
        %v5830 = vsub.f32 %v5828, %v5829
        %v5831 = vand.u32 %v5830, 4294901760
        %5832 = vmatmul.f32.gmra.mxu0 %v5831
        %v5833 = vpop.f32.mrf.mxu0
        %v5834 = vadd.f32 %v5609, %v5833
        %v5835 = vand.u32 %v318, 4294901760
        %v5836 = vsub.f32 %v318, %v5835
        %v5837 = vand.u32 %v5836, 4294901760
        %v5838 = vsub.f32 %v5836, %v5837
        %v5839 = vand.u32 %v5838, 4294901760
        %5840 = vmatmul.f32.gmra.mxu0 %v5839
        %v5841 = vpop.f32.mrf.mxu0
        %v5842 = vadd.f32 %v5613, %v5841
        %v5843 = vand.u32 %v321, 4294901760
        %v5844 = vsub.f32 %v321, %v5843
        %v5845 = vand.u32 %v5844, 4294901760
        %v5846 = vsub.f32 %v5844, %v5845
        %v5847 = vand.u32 %v5846, 4294901760
        %5848 = vmatmul.f32.gmra.mxu0 %v5847
        %v5849 = vpop.f32.mrf.mxu0
        %v5850 = vadd.f32 %v5617, %v5849
        %v5851 = vand.u32 %v324, 4294901760
        %v5852 = vsub.f32 %v324, %v5851
        %v5853 = vand.u32 %v5852, 4294901760
        %v5854 = vsub.f32 %v5852, %v5853
        %v5855 = vand.u32 %v5854, 4294901760
        %5856 = vmatmul.f32.gmra.mxu0 %v5855
        %v5857 = vpop.f32.mrf.mxu0
        %v5858 = vadd.f32 %v5621, %v5857
        %v5859 = vand.u32 %v327, 4294901760
        %v5860 = vsub.f32 %v327, %v5859
        %v5861 = vand.u32 %v5860, 4294901760
        %v5862 = vsub.f32 %v5860, %v5861
        %v5863 = vand.u32 %v5862, 4294901760
        %5864 = vmatmul.f32.gmra.mxu0 %v5863
        %v5865 = vpop.f32.mrf.mxu0
        %v5866 = vadd.f32 %v5625, %v5865
        %v5867 = vand.u32 %v330, 4294901760
        %v5868 = vsub.f32 %v330, %v5867
        %v5869 = vand.u32 %v5868, 4294901760
        %v5870 = vsub.f32 %v5868, %v5869
        %v5871 = vand.u32 %v5870, 4294901760
        %5872 = vmatmul.f32.gmra.mxu0 %v5871
        %v5873 = vpop.f32.mrf.mxu0
        %v5874 = vadd.f32 %v5629, %v5873
        %v5875 = vand.u32 %v333, 4294901760
        %v5876 = vsub.f32 %v333, %v5875
        %v5877 = vand.u32 %v5876, 4294901760
        %v5878 = vsub.f32 %v5876, %v5877
        %v5879 = vand.u32 %v5878, 4294901760
        %5880 = vmatmul.f32.gmra.mxu0 %v5879
        %v5881 = vpop.f32.mrf.mxu0
        %v5882 = vadd.f32 %v5633, %v5881
        %v5883 = vand.u32 %v336, 4294901760
        %v5884 = vsub.f32 %v336, %v5883
        %v5885 = vand.u32 %v5884, 4294901760
        %v5886 = vsub.f32 %v5884, %v5885
        %v5887 = vand.u32 %v5886, 4294901760
        %5888 = vmatmul.f32.gmra.mxu0 %v5887
        %v5889 = vpop.f32.mrf.mxu0
        %v5890 = vadd.f32 %v5637, %v5889
        %v5891 = vand.u32 %v339, 4294901760
        %v5892 = vsub.f32 %v339, %v5891
        %v5893 = vand.u32 %v5892, 4294901760
        %v5894 = vsub.f32 %v5892, %v5893
        %v5895 = vand.u32 %v5894, 4294901760
        %5896 = vmatmul.f32.gmra.mxu0 %v5895
        %v5897 = vpop.f32.mrf.mxu0
        %v5898 = vadd.f32 %v5641, %v5897
        %v5899 = vand.u32 %v342, 4294901760
        %v5900 = vsub.f32 %v342, %v5899
        %v5901 = vand.u32 %v5900, 4294901760
        %v5902 = vsub.f32 %v5900, %v5901
        %v5903 = vand.u32 %v5902, 4294901760
        %5904 = vmatmul.f32.gmra.mxu0 %v5903
        %v5905 = vpop.f32.mrf.mxu0
        %v5906 = vadd.f32 %v5645, %v5905
        %v5907 = vand.u32 %v345, 4294901760
        %v5908 = vsub.f32 %v345, %v5907
        %v5909 = vand.u32 %v5908, 4294901760
        %v5910 = vsub.f32 %v5908, %v5909
        %v5911 = vand.u32 %v5910, 4294901760
        %5912 = vmatmul.f32.gmra.mxu0 %v5911
        %v5913 = vpop.f32.mrf.mxu0
        %v5914 = vadd.f32 %v5649, %v5913
        %v5915 = vand.u32 %v348, 4294901760
        %v5916 = vsub.f32 %v348, %v5915
        %v5917 = vand.u32 %v5916, 4294901760
        %v5918 = vsub.f32 %v5916, %v5917
        %v5919 = vand.u32 %v5918, 4294901760
        %5920 = vmatmul.f32.gmra.mxu0 %v5919
        %v5921 = vpop.f32.mrf.mxu0
        %v5922 = vadd.f32 %v5653, %v5921
        %v5923 = vand.u32 %v351, 4294901760
        %v5924 = vsub.f32 %v351, %v5923
        %v5925 = vand.u32 %v5924, 4294901760
        %v5926 = vsub.f32 %v5924, %v5925
        %v5927 = vand.u32 %v5926, 4294901760
        %5928 = vmatmul.f32.gmra.mxu0 %v5927
        %v5929 = vpop.f32.mrf.mxu0
        %v5930 = vadd.f32 %v5657, %v5929
        %v5931 = vand.u32 %v354, 4294901760
        %v5932 = vsub.f32 %v354, %v5931
        %v5933 = vand.u32 %v5932, 4294901760
        %v5934 = vsub.f32 %v5932, %v5933
        %v5935 = vand.u32 %v5934, 4294901760
        %5936 = vmatmul.f32.gmra.mxu0 %v5935
        %v5937 = vpop.f32.mrf.mxu0
        %v5938 = vadd.f32 %v5661, %v5937
        %v5939 = vand.u32 %v357, 4294901760
        %v5940 = vsub.f32 %v357, %v5939
        %v5941 = vand.u32 %v5940, 4294901760
        %v5942 = vsub.f32 %v5940, %v5941
        %v5943 = vand.u32 %v5942, 4294901760
        %5944 = vmatmul.f32.gmra.mxu0 %v5943
        %v5945 = vpop.f32.mrf.mxu0
        %v5946 = vadd.f32 %v5665, %v5945
        %v5947 = vand.u32 %v360, 4294901760
        %v5948 = vsub.f32 %v360, %v5947
        %v5949 = vand.u32 %v5948, 4294901760
        %v5950 = vsub.f32 %v5948, %v5949
        %v5951 = vand.u32 %v5950, 4294901760
        %5952 = vmatmul.f32.gmra.mxu0 %v5951
        %v5953 = vpop.f32.mrf.mxu0
        %v5954 = vadd.f32 %v5669, %v5953
        %v5955 = vand.u32 %v363, 4294901760
        %v5956 = vsub.f32 %v363, %v5955
        %v5957 = vand.u32 %v5956, 4294901760
        %v5958 = vsub.f32 %v5956, %v5957
        %v5959 = vand.u32 %v5958, 4294901760
        %5960 = vmatmul.f32.gmra.mxu0 %v5959
        %v5961 = vpop.f32.mrf.mxu0
        %v5962 = vadd.f32 %v5673, %v5961
        %5963 = vdwg.mxu0
        %v5964 = vand.u32 %v428, 4294901760
        %v5965 = vsub.f32 %v428, %v5964
        %v5966 = vand.u32 %v5965, 4294901760
        %v5967 = vsub.f32 %v5965, %v5966
        %v5968 = vand.u32 %v5967, 4294901760
        %5969 = vmatpush.msra.mxu0 %v5968
        %v5970 = vand.u32 %v426, 4294901760
        %v5971 = vsub.f32 %v426, %v5970
        %v5972 = vand.u32 %v5971, 4294901760
        %v5973 = vsub.f32 %v5971, %v5972
        %v5974 = vand.u32 %v5973, 4294901760
        %5975 = vmatpush.msra.mxu0 %v5974
        %v5976 = vand.u32 %v424, 4294901760
        %v5977 = vsub.f32 %v424, %v5976
        %v5978 = vand.u32 %v5977, 4294901760
        %v5979 = vsub.f32 %v5977, %v5978
        %v5980 = vand.u32 %v5979, 4294901760
        %5981 = vmatpush.msra.mxu0 %v5980
        %v5982 = vand.u32 %v422, 4294901760
        %v5983 = vsub.f32 %v422, %v5982
        %v5984 = vand.u32 %v5983, 4294901760
        %v5985 = vsub.f32 %v5983, %v5984
        %v5986 = vand.u32 %v5985, 4294901760
        %5987 = vmatpush.msra.mxu0 %v5986
        %v5988 = vand.u32 %v420, 4294901760
        %v5989 = vsub.f32 %v420, %v5988
        %v5990 = vand.u32 %v5989, 4294901760
        %v5991 = vsub.f32 %v5989, %v5990
        %v5992 = vand.u32 %v5991, 4294901760
        %5993 = vmatpush.msra.mxu0 %v5992
        %v5994 = vand.u32 %v418, 4294901760
        %v5995 = vsub.f32 %v418, %v5994
        %v5996 = vand.u32 %v5995, 4294901760
        %v5997 = vsub.f32 %v5995, %v5996
        %v5998 = vand.u32 %v5997, 4294901760
        %5999 = vmatpush.msra.mxu0 %v5998
        %v6000 = vand.u32 %v416, 4294901760
        %v6001 = vsub.f32 %v416, %v6000
        %v6002 = vand.u32 %v6001, 4294901760
        %v6003 = vsub.f32 %v6001, %v6002
        %v6004 = vand.u32 %v6003, 4294901760
        %6005 = vmatpush.msra.mxu0 %v6004
        %v6006 = vand.u32 %v414, 4294901760
        %v6007 = vsub.f32 %v414, %v6006
        %v6008 = vand.u32 %v6007, 4294901760
        %v6009 = vsub.f32 %v6007, %v6008
        %v6010 = vand.u32 %v6009, 4294901760
        %6011 = vmatpush.msra.mxu0 %v6010
        %v6012 = vand.u32 %v412, 4294901760
        %v6013 = vsub.f32 %v412, %v6012
        %v6014 = vand.u32 %v6013, 4294901760
        %v6015 = vsub.f32 %v6013, %v6014
        %v6016 = vand.u32 %v6015, 4294901760
        %6017 = vmatpush.msra.mxu0 %v6016
        %v6018 = vand.u32 %v410, 4294901760
        %v6019 = vsub.f32 %v410, %v6018
        %v6020 = vand.u32 %v6019, 4294901760
        %v6021 = vsub.f32 %v6019, %v6020
        %v6022 = vand.u32 %v6021, 4294901760
        %6023 = vmatpush.msra.mxu0 %v6022
        %v6024 = vand.u32 %v408, 4294901760
        %v6025 = vsub.f32 %v408, %v6024
        %v6026 = vand.u32 %v6025, 4294901760
        %v6027 = vsub.f32 %v6025, %v6026
        %v6028 = vand.u32 %v6027, 4294901760
        %6029 = vmatpush.msra.mxu0 %v6028
        %v6030 = vand.u32 %v406, 4294901760
        %v6031 = vsub.f32 %v406, %v6030
        %v6032 = vand.u32 %v6031, 4294901760
        %v6033 = vsub.f32 %v6031, %v6032
        %v6034 = vand.u32 %v6033, 4294901760
        %6035 = vmatpush.msra.mxu0 %v6034
        %v6036 = vand.u32 %v404, 4294901760
        %v6037 = vsub.f32 %v404, %v6036
        %v6038 = vand.u32 %v6037, 4294901760
        %v6039 = vsub.f32 %v6037, %v6038
        %v6040 = vand.u32 %v6039, 4294901760
        %6041 = vmatpush.msra.mxu0 %v6040
        %v6042 = vand.u32 %v402, 4294901760
        %v6043 = vsub.f32 %v402, %v6042
        %v6044 = vand.u32 %v6043, 4294901760
        %v6045 = vsub.f32 %v6043, %v6044
        %v6046 = vand.u32 %v6045, 4294901760
        %6047 = vmatpush.msra.mxu0 %v6046
        %v6048 = vand.u32 %v400, 4294901760
        %v6049 = vsub.f32 %v400, %v6048
        %v6050 = vand.u32 %v6049, 4294901760
        %v6051 = vsub.f32 %v6049, %v6050
        %v6052 = vand.u32 %v6051, 4294901760
        %6053 = vmatpush.msra.mxu0 %v6052
        %v6054 = vand.u32 %v398, 4294901760
        %v6055 = vsub.f32 %v398, %v6054
        %v6056 = vand.u32 %v6055, 4294901760
        %v6057 = vsub.f32 %v6055, %v6056
        %v6058 = vand.u32 %v6057, 4294901760
        %6059 = vmatpush.msra.mxu0 %v6058
        %v6060 = vand.u32 %v270, 4294901760
        %6061 = vmatmul.f32.gmra.mxu0 %v6060
        %v6062 = vpop.f32.mrf.mxu0
        %v6063 = vadd.f32 %v5714, %v6062
        %v6064 = vand.u32 %v273, 4294901760
        %6065 = vmatmul.f32.gmra.mxu0 %v6064
        %v6066 = vpop.f32.mrf.mxu0
        %v6067 = vadd.f32 %v5722, %v6066
        %v6068 = vand.u32 %v276, 4294901760
        %6069 = vmatmul.f32.gmra.mxu0 %v6068
        %v6070 = vpop.f32.mrf.mxu0
        %v6071 = vadd.f32 %v5730, %v6070
        %v6072 = vand.u32 %v279, 4294901760
        %6073 = vmatmul.f32.gmra.mxu0 %v6072
        %v6074 = vpop.f32.mrf.mxu0
        %v6075 = vadd.f32 %v5738, %v6074
        %v6076 = vand.u32 %v282, 4294901760
        %6077 = vmatmul.f32.gmra.mxu0 %v6076
        %v6078 = vpop.f32.mrf.mxu0
        %v6079 = vadd.f32 %v5746, %v6078
        %v6080 = vand.u32 %v285, 4294901760
        %6081 = vmatmul.f32.gmra.mxu0 %v6080
        %v6082 = vpop.f32.mrf.mxu0
        %v6083 = vadd.f32 %v5754, %v6082
        %v6084 = vand.u32 %v288, 4294901760
        %6085 = vmatmul.f32.gmra.mxu0 %v6084
        %v6086 = vpop.f32.mrf.mxu0
        %v6087 = vadd.f32 %v5762, %v6086
        %v6088 = vand.u32 %v291, 4294901760
        %6089 = vmatmul.f32.gmra.mxu0 %v6088
        %v6090 = vpop.f32.mrf.mxu0
        %v6091 = vadd.f32 %v5770, %v6090
        %v6092 = vand.u32 %v294, 4294901760
        %6093 = vmatmul.f32.gmra.mxu0 %v6092
        %v6094 = vpop.f32.mrf.mxu0
        %v6095 = vadd.f32 %v5778, %v6094
        %v6096 = vand.u32 %v297, 4294901760
        %6097 = vmatmul.f32.gmra.mxu0 %v6096
        %v6098 = vpop.f32.mrf.mxu0
        %v6099 = vadd.f32 %v5786, %v6098
        %v6100 = vand.u32 %v300, 4294901760
        %6101 = vmatmul.f32.gmra.mxu0 %v6100
        %v6102 = vpop.f32.mrf.mxu0
        %v6103 = vadd.f32 %v5794, %v6102
        %v6104 = vand.u32 %v303, 4294901760
        %6105 = vmatmul.f32.gmra.mxu0 %v6104
        %v6106 = vpop.f32.mrf.mxu0
        %v6107 = vadd.f32 %v5802, %v6106
        %v6108 = vand.u32 %v306, 4294901760
        %6109 = vmatmul.f32.gmra.mxu0 %v6108
        %v6110 = vpop.f32.mrf.mxu0
        %v6111 = vadd.f32 %v5810, %v6110
        %v6112 = vand.u32 %v309, 4294901760
        %6113 = vmatmul.f32.gmra.mxu0 %v6112
        %v6114 = vpop.f32.mrf.mxu0
        %v6115 = vadd.f32 %v5818, %v6114
        %v6116 = vand.u32 %v312, 4294901760
        %6117 = vmatmul.f32.gmra.mxu0 %v6116
        %v6118 = vpop.f32.mrf.mxu0
        %v6119 = vadd.f32 %v5826, %v6118
        %v6120 = vand.u32 %v315, 4294901760
        %6121 = vmatmul.f32.gmra.mxu0 %v6120
        %v6122 = vpop.f32.mrf.mxu0
        %v6123 = vadd.f32 %v5834, %v6122
        %v6124 = vand.u32 %v318, 4294901760
        %6125 = vmatmul.f32.gmra.mxu0 %v6124
        %v6126 = vpop.f32.mrf.mxu0
        %v6127 = vadd.f32 %v5842, %v6126
        %v6128 = vand.u32 %v321, 4294901760
        %6129 = vmatmul.f32.gmra.mxu0 %v6128
        %v6130 = vpop.f32.mrf.mxu0
        %v6131 = vadd.f32 %v5850, %v6130
        %v6132 = vand.u32 %v324, 4294901760
        %6133 = vmatmul.f32.gmra.mxu0 %v6132
        %v6134 = vpop.f32.mrf.mxu0
        %v6135 = vadd.f32 %v5858, %v6134
        %v6136 = vand.u32 %v327, 4294901760
        %6137 = vmatmul.f32.gmra.mxu0 %v6136
        %v6138 = vpop.f32.mrf.mxu0
        %v6139 = vadd.f32 %v5866, %v6138
        %v6140 = vand.u32 %v330, 4294901760
        %6141 = vmatmul.f32.gmra.mxu0 %v6140
        %v6142 = vpop.f32.mrf.mxu0
        %v6143 = vadd.f32 %v5874, %v6142
        %v6144 = vand.u32 %v333, 4294901760
        %6145 = vmatmul.f32.gmra.mxu0 %v6144
        %v6146 = vpop.f32.mrf.mxu0
        %v6147 = vadd.f32 %v5882, %v6146
        %v6148 = vand.u32 %v336, 4294901760
        %6149 = vmatmul.f32.gmra.mxu0 %v6148
        %v6150 = vpop.f32.mrf.mxu0
        %v6151 = vadd.f32 %v5890, %v6150
        %v6152 = vand.u32 %v339, 4294901760
        %6153 = vmatmul.f32.gmra.mxu0 %v6152
        %v6154 = vpop.f32.mrf.mxu0
        %v6155 = vadd.f32 %v5898, %v6154
        %v6156 = vand.u32 %v342, 4294901760
        %6157 = vmatmul.f32.gmra.mxu0 %v6156
        %v6158 = vpop.f32.mrf.mxu0
        %v6159 = vadd.f32 %v5906, %v6158
        %v6160 = vand.u32 %v345, 4294901760
        %6161 = vmatmul.f32.gmra.mxu0 %v6160
        %v6162 = vpop.f32.mrf.mxu0
        %v6163 = vadd.f32 %v5914, %v6162
        %v6164 = vand.u32 %v348, 4294901760
        %6165 = vmatmul.f32.gmra.mxu0 %v6164
        %v6166 = vpop.f32.mrf.mxu0
        %v6167 = vadd.f32 %v5922, %v6166
        %v6168 = vand.u32 %v351, 4294901760
        %6169 = vmatmul.f32.gmra.mxu0 %v6168
        %v6170 = vpop.f32.mrf.mxu0
        %v6171 = vadd.f32 %v5930, %v6170
        %v6172 = vand.u32 %v354, 4294901760
        %6173 = vmatmul.f32.gmra.mxu0 %v6172
        %v6174 = vpop.f32.mrf.mxu0
        %v6175 = vadd.f32 %v5938, %v6174
        %v6176 = vand.u32 %v357, 4294901760
        %6177 = vmatmul.f32.gmra.mxu0 %v6176
        %v6178 = vpop.f32.mrf.mxu0
        %v6179 = vadd.f32 %v5946, %v6178
        %v6180 = vand.u32 %v360, 4294901760
        %6181 = vmatmul.f32.gmra.mxu0 %v6180
        %v6182 = vpop.f32.mrf.mxu0
        %v6183 = vadd.f32 %v5954, %v6182
        %v6184 = vand.u32 %v363, 4294901760
        %6185 = vmatmul.f32.gmra.mxu0 %v6184
        %v6186 = vpop.f32.mrf.mxu0
        %v6187 = vadd.f32 %v5962, %v6186
        %6188 = vdwg.mxu0
        %v6189 = vand.u32 %v428, 4294901760
        %v6190 = vsub.f32 %v428, %v6189
        %6191 = vmatpush.msra.mxu0 %v6190
        %v6192 = vand.u32 %v426, 4294901760
        %v6193 = vsub.f32 %v426, %v6192
        %6194 = vmatpush.msra.mxu0 %v6193
        %v6195 = vand.u32 %v424, 4294901760
        %v6196 = vsub.f32 %v424, %v6195
        %6197 = vmatpush.msra.mxu0 %v6196
        %v6198 = vand.u32 %v422, 4294901760
        %v6199 = vsub.f32 %v422, %v6198
        %6200 = vmatpush.msra.mxu0 %v6199
        %v6201 = vand.u32 %v420, 4294901760
        %v6202 = vsub.f32 %v420, %v6201
        %6203 = vmatpush.msra.mxu0 %v6202
        %v6204 = vand.u32 %v418, 4294901760
        %v6205 = vsub.f32 %v418, %v6204
        %6206 = vmatpush.msra.mxu0 %v6205
        %v6207 = vand.u32 %v416, 4294901760
        %v6208 = vsub.f32 %v416, %v6207
        %6209 = vmatpush.msra.mxu0 %v6208
        %v6210 = vand.u32 %v414, 4294901760
        %v6211 = vsub.f32 %v414, %v6210
        %6212 = vmatpush.msra.mxu0 %v6211
        %v6213 = vand.u32 %v412, 4294901760
        %v6214 = vsub.f32 %v412, %v6213
        %6215 = vmatpush.msra.mxu0 %v6214
        %v6216 = vand.u32 %v410, 4294901760
        %v6217 = vsub.f32 %v410, %v6216
        %6218 = vmatpush.msra.mxu0 %v6217
        %v6219 = vand.u32 %v408, 4294901760
        %v6220 = vsub.f32 %v408, %v6219
        %6221 = vmatpush.msra.mxu0 %v6220
        %v6222 = vand.u32 %v406, 4294901760
        %v6223 = vsub.f32 %v406, %v6222
        %6224 = vmatpush.msra.mxu0 %v6223
        %v6225 = vand.u32 %v404, 4294901760
        %v6226 = vsub.f32 %v404, %v6225
        %6227 = vmatpush.msra.mxu0 %v6226
        %v6228 = vand.u32 %v402, 4294901760
        %v6229 = vsub.f32 %v402, %v6228
        %6230 = vmatpush.msra.mxu0 %v6229
        %v6231 = vand.u32 %v400, 4294901760
        %v6232 = vsub.f32 %v400, %v6231
        %6233 = vmatpush.msra.mxu0 %v6232
        %v6234 = vand.u32 %v398, 4294901760
        %v6235 = vsub.f32 %v398, %v6234
        %6236 = vmatpush.msra.mxu0 %v6235
        %v6237 = vand.u32 %v270, 4294901760
        %v6238 = vsub.f32 %v270, %v6237
        %6239 = vmatmul.f32.gmra.mxu0 %v6238
        %v6240 = vpop.f32.mrf.mxu0
        %v6241 = vadd.f32 %v6063, %v6240
        %v6242 = vand.u32 %v273, 4294901760
        %v6243 = vsub.f32 %v273, %v6242
        %6244 = vmatmul.f32.gmra.mxu0 %v6243
        %v6245 = vpop.f32.mrf.mxu0
        %v6246 = vadd.f32 %v6067, %v6245
        %v6247 = vand.u32 %v276, 4294901760
        %v6248 = vsub.f32 %v276, %v6247
        %6249 = vmatmul.f32.gmra.mxu0 %v6248
        %v6250 = vpop.f32.mrf.mxu0
        %v6251 = vadd.f32 %v6071, %v6250
        %v6252 = vand.u32 %v279, 4294901760
        %v6253 = vsub.f32 %v279, %v6252
        %6254 = vmatmul.f32.gmra.mxu0 %v6253
        %v6255 = vpop.f32.mrf.mxu0
        %v6256 = vadd.f32 %v6075, %v6255
        %v6257 = vand.u32 %v282, 4294901760
        %v6258 = vsub.f32 %v282, %v6257
        %6259 = vmatmul.f32.gmra.mxu0 %v6258
        %v6260 = vpop.f32.mrf.mxu0
        %v6261 = vadd.f32 %v6079, %v6260
        %v6262 = vand.u32 %v285, 4294901760
        %v6263 = vsub.f32 %v285, %v6262
        %6264 = vmatmul.f32.gmra.mxu0 %v6263
        %v6265 = vpop.f32.mrf.mxu0
        %v6266 = vadd.f32 %v6083, %v6265
        %v6267 = vand.u32 %v288, 4294901760
        %v6268 = vsub.f32 %v288, %v6267
        %6269 = vmatmul.f32.gmra.mxu0 %v6268
        %v6270 = vpop.f32.mrf.mxu0
        %v6271 = vadd.f32 %v6087, %v6270
        %v6272 = vand.u32 %v291, 4294901760
        %v6273 = vsub.f32 %v291, %v6272
        %6274 = vmatmul.f32.gmra.mxu0 %v6273
        %v6275 = vpop.f32.mrf.mxu0
        %v6276 = vadd.f32 %v6091, %v6275
        %v6277 = vand.u32 %v294, 4294901760
        %v6278 = vsub.f32 %v294, %v6277
        %6279 = vmatmul.f32.gmra.mxu0 %v6278
        %v6280 = vpop.f32.mrf.mxu0
        %v6281 = vadd.f32 %v6095, %v6280
        %v6282 = vand.u32 %v297, 4294901760
        %v6283 = vsub.f32 %v297, %v6282
        %6284 = vmatmul.f32.gmra.mxu0 %v6283
        %v6285 = vpop.f32.mrf.mxu0
        %v6286 = vadd.f32 %v6099, %v6285
        %v6287 = vand.u32 %v300, 4294901760
        %v6288 = vsub.f32 %v300, %v6287
        %6289 = vmatmul.f32.gmra.mxu0 %v6288
        %v6290 = vpop.f32.mrf.mxu0
        %v6291 = vadd.f32 %v6103, %v6290
        %v6292 = vand.u32 %v303, 4294901760
        %v6293 = vsub.f32 %v303, %v6292
        %6294 = vmatmul.f32.gmra.mxu0 %v6293
        %v6295 = vpop.f32.mrf.mxu0
        %v6296 = vadd.f32 %v6107, %v6295
        %v6297 = vand.u32 %v306, 4294901760
        %v6298 = vsub.f32 %v306, %v6297
        %6299 = vmatmul.f32.gmra.mxu0 %v6298
        %v6300 = vpop.f32.mrf.mxu0
        %v6301 = vadd.f32 %v6111, %v6300
        %v6302 = vand.u32 %v309, 4294901760
        %v6303 = vsub.f32 %v309, %v6302
        %6304 = vmatmul.f32.gmra.mxu0 %v6303
        %v6305 = vpop.f32.mrf.mxu0
        %v6306 = vadd.f32 %v6115, %v6305
        %v6307 = vand.u32 %v312, 4294901760
        %v6308 = vsub.f32 %v312, %v6307
        %6309 = vmatmul.f32.gmra.mxu0 %v6308
        %v6310 = vpop.f32.mrf.mxu0
        %v6311 = vadd.f32 %v6119, %v6310
        %v6312 = vand.u32 %v315, 4294901760
        %v6313 = vsub.f32 %v315, %v6312
        %6314 = vmatmul.f32.gmra.mxu0 %v6313
        %v6315 = vpop.f32.mrf.mxu0
        %v6316 = vadd.f32 %v6123, %v6315
        %v6317 = vand.u32 %v318, 4294901760
        %v6318 = vsub.f32 %v318, %v6317
        %6319 = vmatmul.f32.gmra.mxu0 %v6318
        %v6320 = vpop.f32.mrf.mxu0
        %v6321 = vadd.f32 %v6127, %v6320
        %v6322 = vand.u32 %v321, 4294901760
        %v6323 = vsub.f32 %v321, %v6322
        %6324 = vmatmul.f32.gmra.mxu0 %v6323
        %v6325 = vpop.f32.mrf.mxu0
        %v6326 = vadd.f32 %v6131, %v6325
        %v6327 = vand.u32 %v324, 4294901760
        %v6328 = vsub.f32 %v324, %v6327
        %6329 = vmatmul.f32.gmra.mxu0 %v6328
        %v6330 = vpop.f32.mrf.mxu0
        %v6331 = vadd.f32 %v6135, %v6330
        %v6332 = vand.u32 %v327, 4294901760
        %v6333 = vsub.f32 %v327, %v6332
        %6334 = vmatmul.f32.gmra.mxu0 %v6333
        %v6335 = vpop.f32.mrf.mxu0
        %v6336 = vadd.f32 %v6139, %v6335
        %v6337 = vand.u32 %v330, 4294901760
        %v6338 = vsub.f32 %v330, %v6337
        %6339 = vmatmul.f32.gmra.mxu0 %v6338
        %v6340 = vpop.f32.mrf.mxu0
        %v6341 = vadd.f32 %v6143, %v6340
        %v6342 = vand.u32 %v333, 4294901760
        %v6343 = vsub.f32 %v333, %v6342
        %6344 = vmatmul.f32.gmra.mxu0 %v6343
        %v6345 = vpop.f32.mrf.mxu0
        %v6346 = vadd.f32 %v6147, %v6345
        %v6347 = vand.u32 %v336, 4294901760
        %v6348 = vsub.f32 %v336, %v6347
        %6349 = vmatmul.f32.gmra.mxu0 %v6348
        %v6350 = vpop.f32.mrf.mxu0
        %v6351 = vadd.f32 %v6151, %v6350
        %v6352 = vand.u32 %v339, 4294901760
        %v6353 = vsub.f32 %v339, %v6352
        %6354 = vmatmul.f32.gmra.mxu0 %v6353
        %v6355 = vpop.f32.mrf.mxu0
        %v6356 = vadd.f32 %v6155, %v6355
        %v6357 = vand.u32 %v342, 4294901760
        %v6358 = vsub.f32 %v342, %v6357
        %6359 = vmatmul.f32.gmra.mxu0 %v6358
        %v6360 = vpop.f32.mrf.mxu0
        %v6361 = vadd.f32 %v6159, %v6360
        %v6362 = vand.u32 %v345, 4294901760
        %v6363 = vsub.f32 %v345, %v6362
        %6364 = vmatmul.f32.gmra.mxu0 %v6363
        %v6365 = vpop.f32.mrf.mxu0
        %v6366 = vadd.f32 %v6163, %v6365
        %v6367 = vand.u32 %v348, 4294901760
        %v6368 = vsub.f32 %v348, %v6367
        %6369 = vmatmul.f32.gmra.mxu0 %v6368
        %v6370 = vpop.f32.mrf.mxu0
        %v6371 = vadd.f32 %v6167, %v6370
        %v6372 = vand.u32 %v351, 4294901760
        %v6373 = vsub.f32 %v351, %v6372
        %6374 = vmatmul.f32.gmra.mxu0 %v6373
        %v6375 = vpop.f32.mrf.mxu0
        %v6376 = vadd.f32 %v6171, %v6375
        %v6377 = vand.u32 %v354, 4294901760
        %v6378 = vsub.f32 %v354, %v6377
        %6379 = vmatmul.f32.gmra.mxu0 %v6378
        %v6380 = vpop.f32.mrf.mxu0
        %v6381 = vadd.f32 %v6175, %v6380
        %v6382 = vand.u32 %v357, 4294901760
        %v6383 = vsub.f32 %v357, %v6382
        %6384 = vmatmul.f32.gmra.mxu0 %v6383
        %v6385 = vpop.f32.mrf.mxu0
        %v6386 = vadd.f32 %v6179, %v6385
        %v6387 = vand.u32 %v360, 4294901760
        %v6388 = vsub.f32 %v360, %v6387
        %6389 = vmatmul.f32.gmra.mxu0 %v6388
        %v6390 = vpop.f32.mrf.mxu0
        %v6391 = vadd.f32 %v6183, %v6390
        %v6392 = vand.u32 %v363, 4294901760
        %v6393 = vsub.f32 %v363, %v6392
        %6394 = vmatmul.f32.gmra.mxu0 %v6393
        %v6395 = vpop.f32.mrf.mxu0
        %v6396 = vadd.f32 %v6187, %v6395
        %6397 = vdwg.mxu0
        %v6398 = vand.u32 %v428, 4294901760
        %6399 = vmatpush.msra.mxu0 %v6398
        %v6400 = vand.u32 %v426, 4294901760
        %6401 = vmatpush.msra.mxu0 %v6400
        %v6402 = vand.u32 %v424, 4294901760
        %6403 = vmatpush.msra.mxu0 %v6402
        %v6404 = vand.u32 %v422, 4294901760
        %6405 = vmatpush.msra.mxu0 %v6404
        %v6406 = vand.u32 %v420, 4294901760
        %6407 = vmatpush.msra.mxu0 %v6406
        %v6408 = vand.u32 %v418, 4294901760
        %6409 = vmatpush.msra.mxu0 %v6408
        %v6410 = vand.u32 %v416, 4294901760
        %6411 = vmatpush.msra.mxu0 %v6410
        %v6412 = vand.u32 %v414, 4294901760
        %6413 = vmatpush.msra.mxu0 %v6412
        %v6414 = vand.u32 %v412, 4294901760
        %6415 = vmatpush.msra.mxu0 %v6414
        %v6416 = vand.u32 %v410, 4294901760
        %6417 = vmatpush.msra.mxu0 %v6416
        %v6418 = vand.u32 %v408, 4294901760
        %6419 = vmatpush.msra.mxu0 %v6418
        %v6420 = vand.u32 %v406, 4294901760
        %6421 = vmatpush.msra.mxu0 %v6420
        %v6422 = vand.u32 %v404, 4294901760
        %6423 = vmatpush.msra.mxu0 %v6422
        %v6424 = vand.u32 %v402, 4294901760
        %6425 = vmatpush.msra.mxu0 %v6424
        %v6426 = vand.u32 %v400, 4294901760
        %6427 = vmatpush.msra.mxu0 %v6426
        %v6428 = vand.u32 %v398, 4294901760
        %6429 = vmatpush.msra.mxu0 %v6428
        %v6430 = vand.u32 %v270, 4294901760
        %v6431 = vsub.f32 %v270, %v6430
        %v6432 = vand.u32 %v6431, 4294901760
        %6433 = vmatmul.f32.gmra.mxu0 %v6432
        %v6434 = vpop.f32.mrf.mxu0
        %v6435 = vadd.f32 %v6241, %v6434
        %v6436 = vand.u32 %v273, 4294901760
        %v6437 = vsub.f32 %v273, %v6436
        %v6438 = vand.u32 %v6437, 4294901760
        %6439 = vmatmul.f32.gmra.mxu0 %v6438
        %v6440 = vpop.f32.mrf.mxu0
        %v6441 = vadd.f32 %v6246, %v6440
        %v6442 = vand.u32 %v276, 4294901760
        %v6443 = vsub.f32 %v276, %v6442
        %v6444 = vand.u32 %v6443, 4294901760
        %6445 = vmatmul.f32.gmra.mxu0 %v6444
        %v6446 = vpop.f32.mrf.mxu0
        %v6447 = vadd.f32 %v6251, %v6446
        %v6448 = vand.u32 %v279, 4294901760
        %v6449 = vsub.f32 %v279, %v6448
        %v6450 = vand.u32 %v6449, 4294901760
        %6451 = vmatmul.f32.gmra.mxu0 %v6450
        %v6452 = vpop.f32.mrf.mxu0
        %v6453 = vadd.f32 %v6256, %v6452
        %v6454 = vand.u32 %v282, 4294901760
        %v6455 = vsub.f32 %v282, %v6454
        %v6456 = vand.u32 %v6455, 4294901760
        %6457 = vmatmul.f32.gmra.mxu0 %v6456
        %v6458 = vpop.f32.mrf.mxu0
        %v6459 = vadd.f32 %v6261, %v6458
        %v6460 = vand.u32 %v285, 4294901760
        %v6461 = vsub.f32 %v285, %v6460
        %v6462 = vand.u32 %v6461, 4294901760
        %6463 = vmatmul.f32.gmra.mxu0 %v6462
        %v6464 = vpop.f32.mrf.mxu0
        %v6465 = vadd.f32 %v6266, %v6464
        %v6466 = vand.u32 %v288, 4294901760
        %v6467 = vsub.f32 %v288, %v6466
        %v6468 = vand.u32 %v6467, 4294901760
        %6469 = vmatmul.f32.gmra.mxu0 %v6468
        %v6470 = vpop.f32.mrf.mxu0
        %v6471 = vadd.f32 %v6271, %v6470
        %v6472 = vand.u32 %v291, 4294901760
        %v6473 = vsub.f32 %v291, %v6472
        %v6474 = vand.u32 %v6473, 4294901760
        %6475 = vmatmul.f32.gmra.mxu0 %v6474
        %v6476 = vpop.f32.mrf.mxu0
        %v6477 = vadd.f32 %v6276, %v6476
        %v6478 = vand.u32 %v294, 4294901760
        %v6479 = vsub.f32 %v294, %v6478
        %v6480 = vand.u32 %v6479, 4294901760
        %6481 = vmatmul.f32.gmra.mxu0 %v6480
        %v6482 = vpop.f32.mrf.mxu0
        %v6483 = vadd.f32 %v6281, %v6482
        %v6484 = vand.u32 %v297, 4294901760
        %v6485 = vsub.f32 %v297, %v6484
        %v6486 = vand.u32 %v6485, 4294901760
        %6487 = vmatmul.f32.gmra.mxu0 %v6486
        %v6488 = vpop.f32.mrf.mxu0
        %v6489 = vadd.f32 %v6286, %v6488
        %v6490 = vand.u32 %v300, 4294901760
        %v6491 = vsub.f32 %v300, %v6490
        %v6492 = vand.u32 %v6491, 4294901760
        %6493 = vmatmul.f32.gmra.mxu0 %v6492
        %v6494 = vpop.f32.mrf.mxu0
        %v6495 = vadd.f32 %v6291, %v6494
        %v6496 = vand.u32 %v303, 4294901760
        %v6497 = vsub.f32 %v303, %v6496
        %v6498 = vand.u32 %v6497, 4294901760
        %6499 = vmatmul.f32.gmra.mxu0 %v6498
        %v6500 = vpop.f32.mrf.mxu0
        %v6501 = vadd.f32 %v6296, %v6500
        %v6502 = vand.u32 %v306, 4294901760
        %v6503 = vsub.f32 %v306, %v6502
        %v6504 = vand.u32 %v6503, 4294901760
        %6505 = vmatmul.f32.gmra.mxu0 %v6504
        %v6506 = vpop.f32.mrf.mxu0
        %v6507 = vadd.f32 %v6301, %v6506
        %v6508 = vand.u32 %v309, 4294901760
        %v6509 = vsub.f32 %v309, %v6508
        %v6510 = vand.u32 %v6509, 4294901760
        %6511 = vmatmul.f32.gmra.mxu0 %v6510
        %v6512 = vpop.f32.mrf.mxu0
        %v6513 = vadd.f32 %v6306, %v6512
        %v6514 = vand.u32 %v312, 4294901760
        %v6515 = vsub.f32 %v312, %v6514
        %v6516 = vand.u32 %v6515, 4294901760
        %6517 = vmatmul.f32.gmra.mxu0 %v6516
        %v6518 = vpop.f32.mrf.mxu0
        %v6519 = vadd.f32 %v6311, %v6518
        %v6520 = vand.u32 %v315, 4294901760
        %v6521 = vsub.f32 %v315, %v6520
        %v6522 = vand.u32 %v6521, 4294901760
        %6523 = vmatmul.f32.gmra.mxu0 %v6522
        %v6524 = vpop.f32.mrf.mxu0
        %v6525 = vadd.f32 %v6316, %v6524
        %v6526 = vand.u32 %v318, 4294901760
        %v6527 = vsub.f32 %v318, %v6526
        %v6528 = vand.u32 %v6527, 4294901760
        %6529 = vmatmul.f32.gmra.mxu0 %v6528
        %v6530 = vpop.f32.mrf.mxu0
        %v6531 = vadd.f32 %v6321, %v6530
        %v6532 = vand.u32 %v321, 4294901760
        %v6533 = vsub.f32 %v321, %v6532
        %v6534 = vand.u32 %v6533, 4294901760
        %6535 = vmatmul.f32.gmra.mxu0 %v6534
        %v6536 = vpop.f32.mrf.mxu0
        %v6537 = vadd.f32 %v6326, %v6536
        %v6538 = vand.u32 %v324, 4294901760
        %v6539 = vsub.f32 %v324, %v6538
        %v6540 = vand.u32 %v6539, 4294901760
        %6541 = vmatmul.f32.gmra.mxu0 %v6540
        %v6542 = vpop.f32.mrf.mxu0
        %v6543 = vadd.f32 %v6331, %v6542
        %v6544 = vand.u32 %v327, 4294901760
        %v6545 = vsub.f32 %v327, %v6544
        %v6546 = vand.u32 %v6545, 4294901760
        %6547 = vmatmul.f32.gmra.mxu0 %v6546
        %v6548 = vpop.f32.mrf.mxu0
        %v6549 = vadd.f32 %v6336, %v6548
        %v6550 = vand.u32 %v330, 4294901760
        %v6551 = vsub.f32 %v330, %v6550
        %v6552 = vand.u32 %v6551, 4294901760
        %6553 = vmatmul.f32.gmra.mxu0 %v6552
        %v6554 = vpop.f32.mrf.mxu0
        %v6555 = vadd.f32 %v6341, %v6554
        %v6556 = vand.u32 %v333, 4294901760
        %v6557 = vsub.f32 %v333, %v6556
        %v6558 = vand.u32 %v6557, 4294901760
        %6559 = vmatmul.f32.gmra.mxu0 %v6558
        %v6560 = vpop.f32.mrf.mxu0
        %v6561 = vadd.f32 %v6346, %v6560
        %v6562 = vand.u32 %v336, 4294901760
        %v6563 = vsub.f32 %v336, %v6562
        %v6564 = vand.u32 %v6563, 4294901760
        %6565 = vmatmul.f32.gmra.mxu0 %v6564
        %v6566 = vpop.f32.mrf.mxu0
        %v6567 = vadd.f32 %v6351, %v6566
        %v6568 = vand.u32 %v339, 4294901760
        %v6569 = vsub.f32 %v339, %v6568
        %v6570 = vand.u32 %v6569, 4294901760
        %6571 = vmatmul.f32.gmra.mxu0 %v6570
        %v6572 = vpop.f32.mrf.mxu0
        %v6573 = vadd.f32 %v6356, %v6572
        %v6574 = vand.u32 %v342, 4294901760
        %v6575 = vsub.f32 %v342, %v6574
        %v6576 = vand.u32 %v6575, 4294901760
        %6577 = vmatmul.f32.gmra.mxu0 %v6576
        %v6578 = vpop.f32.mrf.mxu0
        %v6579 = vadd.f32 %v6361, %v6578
        %v6580 = vand.u32 %v345, 4294901760
        %v6581 = vsub.f32 %v345, %v6580
        %v6582 = vand.u32 %v6581, 4294901760
        %6583 = vmatmul.f32.gmra.mxu0 %v6582
        %v6584 = vpop.f32.mrf.mxu0
        %v6585 = vadd.f32 %v6366, %v6584
        %v6586 = vand.u32 %v348, 4294901760
        %v6587 = vsub.f32 %v348, %v6586
        %v6588 = vand.u32 %v6587, 4294901760
        %6589 = vmatmul.f32.gmra.mxu0 %v6588
        %v6590 = vpop.f32.mrf.mxu0
        %v6591 = vadd.f32 %v6371, %v6590
        %v6592 = vand.u32 %v351, 4294901760
        %v6593 = vsub.f32 %v351, %v6592
        %v6594 = vand.u32 %v6593, 4294901760
        %6595 = vmatmul.f32.gmra.mxu0 %v6594
        %v6596 = vpop.f32.mrf.mxu0
        %v6597 = vadd.f32 %v6376, %v6596
        %v6598 = vand.u32 %v354, 4294901760
        %v6599 = vsub.f32 %v354, %v6598
        %v6600 = vand.u32 %v6599, 4294901760
        %6601 = vmatmul.f32.gmra.mxu0 %v6600
        %v6602 = vpop.f32.mrf.mxu0
        %v6603 = vadd.f32 %v6381, %v6602
        %v6604 = vand.u32 %v357, 4294901760
        %v6605 = vsub.f32 %v357, %v6604
        %v6606 = vand.u32 %v6605, 4294901760
        %6607 = vmatmul.f32.gmra.mxu0 %v6606
        %v6608 = vpop.f32.mrf.mxu0
        %v6609 = vadd.f32 %v6386, %v6608
        %v6610 = vand.u32 %v360, 4294901760
        %v6611 = vsub.f32 %v360, %v6610
        %v6612 = vand.u32 %v6611, 4294901760
        %6613 = vmatmul.f32.gmra.mxu0 %v6612
        %v6614 = vpop.f32.mrf.mxu0
        %v6615 = vadd.f32 %v6391, %v6614
        %v6616 = vand.u32 %v363, 4294901760
        %v6617 = vsub.f32 %v363, %v6616
        %v6618 = vand.u32 %v6617, 4294901760
        %6619 = vmatmul.f32.gmra.mxu0 %v6618
        %v6620 = vpop.f32.mrf.mxu0
        %v6621 = vadd.f32 %v6396, %v6620
        %6622 = vdwg.mxu0
        %v6623 = vand.u32 %v428, 4294901760
        %v6624 = vsub.f32 %v428, %v6623
        %v6625 = vand.u32 %v6624, 4294901760
        %6626 = vmatpush.msra.mxu0 %v6625
        %v6627 = vand.u32 %v426, 4294901760
        %v6628 = vsub.f32 %v426, %v6627
        %v6629 = vand.u32 %v6628, 4294901760
        %6630 = vmatpush.msra.mxu0 %v6629
        %v6631 = vand.u32 %v424, 4294901760
        %v6632 = vsub.f32 %v424, %v6631
        %v6633 = vand.u32 %v6632, 4294901760
        %6634 = vmatpush.msra.mxu0 %v6633
        %v6635 = vand.u32 %v422, 4294901760
        %v6636 = vsub.f32 %v422, %v6635
        %v6637 = vand.u32 %v6636, 4294901760
        %6638 = vmatpush.msra.mxu0 %v6637
        %v6639 = vand.u32 %v420, 4294901760
        %v6640 = vsub.f32 %v420, %v6639
        %v6641 = vand.u32 %v6640, 4294901760
        %6642 = vmatpush.msra.mxu0 %v6641
        %v6643 = vand.u32 %v418, 4294901760
        %v6644 = vsub.f32 %v418, %v6643
        %v6645 = vand.u32 %v6644, 4294901760
        %6646 = vmatpush.msra.mxu0 %v6645
        %v6647 = vand.u32 %v416, 4294901760
        %v6648 = vsub.f32 %v416, %v6647
        %v6649 = vand.u32 %v6648, 4294901760
        %6650 = vmatpush.msra.mxu0 %v6649
        %v6651 = vand.u32 %v414, 4294901760
        %v6652 = vsub.f32 %v414, %v6651
        %v6653 = vand.u32 %v6652, 4294901760
        %6654 = vmatpush.msra.mxu0 %v6653
        %v6655 = vand.u32 %v412, 4294901760
        %v6656 = vsub.f32 %v412, %v6655
        %v6657 = vand.u32 %v6656, 4294901760
        %6658 = vmatpush.msra.mxu0 %v6657
        %v6659 = vand.u32 %v410, 4294901760
        %v6660 = vsub.f32 %v410, %v6659
        %v6661 = vand.u32 %v6660, 4294901760
        %6662 = vmatpush.msra.mxu0 %v6661
        %v6663 = vand.u32 %v408, 4294901760
        %v6664 = vsub.f32 %v408, %v6663
        %v6665 = vand.u32 %v6664, 4294901760
        %6666 = vmatpush.msra.mxu0 %v6665
        %v6667 = vand.u32 %v406, 4294901760
        %v6668 = vsub.f32 %v406, %v6667
        %v6669 = vand.u32 %v6668, 4294901760
        %6670 = vmatpush.msra.mxu0 %v6669
        %v6671 = vand.u32 %v404, 4294901760
        %v6672 = vsub.f32 %v404, %v6671
        %v6673 = vand.u32 %v6672, 4294901760
        %6674 = vmatpush.msra.mxu0 %v6673
        %v6675 = vand.u32 %v402, 4294901760
        %v6676 = vsub.f32 %v402, %v6675
        %v6677 = vand.u32 %v6676, 4294901760
        %6678 = vmatpush.msra.mxu0 %v6677
        %v6679 = vand.u32 %v400, 4294901760
        %v6680 = vsub.f32 %v400, %v6679
        %v6681 = vand.u32 %v6680, 4294901760
        %6682 = vmatpush.msra.mxu0 %v6681
        %v6683 = vand.u32 %v398, 4294901760
        %v6684 = vsub.f32 %v398, %v6683
        %v6685 = vand.u32 %v6684, 4294901760
        %6686 = vmatpush.msra.mxu0 %v6685
        %v6687 = vand.u32 %v270, 4294901760
        %6688 = vmatmul.f32.gmra.mxu0 %v6687
        %v6689 = vpop.f32.mrf.mxu0
        %v6690 = vadd.f32 %v6435, %v6689
        %v6691 = vand.u32 %v273, 4294901760
        %6692 = vmatmul.f32.gmra.mxu0 %v6691
        %v6693 = vpop.f32.mrf.mxu0
        %v6694 = vadd.f32 %v6441, %v6693
        %v6695 = vand.u32 %v276, 4294901760
        %6696 = vmatmul.f32.gmra.mxu0 %v6695
        %v6697 = vpop.f32.mrf.mxu0
        %v6698 = vadd.f32 %v6447, %v6697
        %v6699 = vand.u32 %v279, 4294901760
        %6700 = vmatmul.f32.gmra.mxu0 %v6699
        %v6701 = vpop.f32.mrf.mxu0
        %v6702 = vadd.f32 %v6453, %v6701
        %v6703 = vand.u32 %v282, 4294901760
        %6704 = vmatmul.f32.gmra.mxu0 %v6703
        %v6705 = vpop.f32.mrf.mxu0
        %v6706 = vadd.f32 %v6459, %v6705
        %v6707 = vand.u32 %v285, 4294901760
        %6708 = vmatmul.f32.gmra.mxu0 %v6707
        %v6709 = vpop.f32.mrf.mxu0
        %v6710 = vadd.f32 %v6465, %v6709
        %v6711 = vand.u32 %v288, 4294901760
        %6712 = vmatmul.f32.gmra.mxu0 %v6711
        %v6713 = vpop.f32.mrf.mxu0
        %v6714 = vadd.f32 %v6471, %v6713
        %v6715 = vand.u32 %v291, 4294901760
        %6716 = vmatmul.f32.gmra.mxu0 %v6715
        %v6717 = vpop.f32.mrf.mxu0
        %v6718 = vadd.f32 %v6477, %v6717
        %v6719 = vand.u32 %v294, 4294901760
        %6720 = vmatmul.f32.gmra.mxu0 %v6719
        %v6721 = vpop.f32.mrf.mxu0
        %v6722 = vadd.f32 %v6483, %v6721
        %v6723 = vand.u32 %v297, 4294901760
        %6724 = vmatmul.f32.gmra.mxu0 %v6723
        %v6725 = vpop.f32.mrf.mxu0
        %v6726 = vadd.f32 %v6489, %v6725
        %v6727 = vand.u32 %v300, 4294901760
        %6728 = vmatmul.f32.gmra.mxu0 %v6727
        %v6729 = vpop.f32.mrf.mxu0
        %v6730 = vadd.f32 %v6495, %v6729
        %v6731 = vand.u32 %v303, 4294901760
        %6732 = vmatmul.f32.gmra.mxu0 %v6731
        %v6733 = vpop.f32.mrf.mxu0
        %v6734 = vadd.f32 %v6501, %v6733
        %v6735 = vand.u32 %v306, 4294901760
        %6736 = vmatmul.f32.gmra.mxu0 %v6735
        %v6737 = vpop.f32.mrf.mxu0
        %v6738 = vadd.f32 %v6507, %v6737
        %v6739 = vand.u32 %v309, 4294901760
        %6740 = vmatmul.f32.gmra.mxu0 %v6739
        %v6741 = vpop.f32.mrf.mxu0
        %v6742 = vadd.f32 %v6513, %v6741
        %v6743 = vand.u32 %v312, 4294901760
        %6744 = vmatmul.f32.gmra.mxu0 %v6743
        %v6745 = vpop.f32.mrf.mxu0
        %v6746 = vadd.f32 %v6519, %v6745
        %v6747 = vand.u32 %v315, 4294901760
        %6748 = vmatmul.f32.gmra.mxu0 %v6747
        %v6749 = vpop.f32.mrf.mxu0
        %v6750 = vadd.f32 %v6525, %v6749
        %v6751 = vand.u32 %v318, 4294901760
        %6752 = vmatmul.f32.gmra.mxu0 %v6751
        %v6753 = vpop.f32.mrf.mxu0
        %v6754 = vadd.f32 %v6531, %v6753
        %v6755 = vand.u32 %v321, 4294901760
        %6756 = vmatmul.f32.gmra.mxu0 %v6755
        %v6757 = vpop.f32.mrf.mxu0
        %v6758 = vadd.f32 %v6537, %v6757
        %v6759 = vand.u32 %v324, 4294901760
        %6760 = vmatmul.f32.gmra.mxu0 %v6759
        %v6761 = vpop.f32.mrf.mxu0
        %v6762 = vadd.f32 %v6543, %v6761
        %v6763 = vand.u32 %v327, 4294901760
        %6764 = vmatmul.f32.gmra.mxu0 %v6763
        %v6765 = vpop.f32.mrf.mxu0
        %v6766 = vadd.f32 %v6549, %v6765
        %v6767 = vand.u32 %v330, 4294901760
        %6768 = vmatmul.f32.gmra.mxu0 %v6767
        %v6769 = vpop.f32.mrf.mxu0
        %v6770 = vadd.f32 %v6555, %v6769
        %v6771 = vand.u32 %v333, 4294901760
        %6772 = vmatmul.f32.gmra.mxu0 %v6771
        %v6773 = vpop.f32.mrf.mxu0
        %v6774 = vadd.f32 %v6561, %v6773
        %v6775 = vand.u32 %v336, 4294901760
        %6776 = vmatmul.f32.gmra.mxu0 %v6775
        %v6777 = vpop.f32.mrf.mxu0
        %v6778 = vadd.f32 %v6567, %v6777
        %v6779 = vand.u32 %v339, 4294901760
        %6780 = vmatmul.f32.gmra.mxu0 %v6779
        %v6781 = vpop.f32.mrf.mxu0
        %v6782 = vadd.f32 %v6573, %v6781
        %v6783 = vand.u32 %v342, 4294901760
        %6784 = vmatmul.f32.gmra.mxu0 %v6783
        %v6785 = vpop.f32.mrf.mxu0
        %v6786 = vadd.f32 %v6579, %v6785
        %v6787 = vand.u32 %v345, 4294901760
        %6788 = vmatmul.f32.gmra.mxu0 %v6787
        %v6789 = vpop.f32.mrf.mxu0
        %v6790 = vadd.f32 %v6585, %v6789
        %v6791 = vand.u32 %v348, 4294901760
        %6792 = vmatmul.f32.gmra.mxu0 %v6791
        %v6793 = vpop.f32.mrf.mxu0
        %v6794 = vadd.f32 %v6591, %v6793
        %v6795 = vand.u32 %v351, 4294901760
        %6796 = vmatmul.f32.gmra.mxu0 %v6795
        %v6797 = vpop.f32.mrf.mxu0
        %v6798 = vadd.f32 %v6597, %v6797
        %v6799 = vand.u32 %v354, 4294901760
        %6800 = vmatmul.f32.gmra.mxu0 %v6799
        %v6801 = vpop.f32.mrf.mxu0
        %v6802 = vadd.f32 %v6603, %v6801
        %v6803 = vand.u32 %v357, 4294901760
        %6804 = vmatmul.f32.gmra.mxu0 %v6803
        %v6805 = vpop.f32.mrf.mxu0
        %v6806 = vadd.f32 %v6609, %v6805
        %v6807 = vand.u32 %v360, 4294901760
        %6808 = vmatmul.f32.gmra.mxu0 %v6807
        %v6809 = vpop.f32.mrf.mxu0
        %v6810 = vadd.f32 %v6615, %v6809
        %v6811 = vand.u32 %v363, 4294901760
        %6812 = vmatmul.f32.gmra.mxu0 %v6811
        %v6813 = vpop.f32.mrf.mxu0
        %v6814 = vadd.f32 %v6621, %v6813
        %6815 = vdwg.mxu0
        %v6816 = vand.u32 %v428, 4294901760
        %6817 = vmatpush.msra.mxu0 %v6816
        %v6818 = vand.u32 %v426, 4294901760
        %6819 = vmatpush.msra.mxu0 %v6818
        %v6820 = vand.u32 %v424, 4294901760
        %6821 = vmatpush.msra.mxu0 %v6820
        %v6822 = vand.u32 %v422, 4294901760
        %6823 = vmatpush.msra.mxu0 %v6822
        %v6824 = vand.u32 %v420, 4294901760
        %6825 = vmatpush.msra.mxu0 %v6824
        %v6826 = vand.u32 %v418, 4294901760
        %6827 = vmatpush.msra.mxu0 %v6826
        %v6828 = vand.u32 %v416, 4294901760
        %6829 = vmatpush.msra.mxu0 %v6828
        %v6830 = vand.u32 %v414, 4294901760
        %6831 = vmatpush.msra.mxu0 %v6830
        %v6832 = vand.u32 %v412, 4294901760
        %6833 = vmatpush.msra.mxu0 %v6832
        %v6834 = vand.u32 %v410, 4294901760
        %6835 = vmatpush.msra.mxu0 %v6834
        %v6836 = vand.u32 %v408, 4294901760
        %6837 = vmatpush.msra.mxu0 %v6836
        %v6838 = vand.u32 %v406, 4294901760
        %6839 = vmatpush.msra.mxu0 %v6838
        %v6840 = vand.u32 %v404, 4294901760
        %6841 = vmatpush.msra.mxu0 %v6840
        %v6842 = vand.u32 %v402, 4294901760
        %6843 = vmatpush.msra.mxu0 %v6842
        %v6844 = vand.u32 %v400, 4294901760
        %6845 = vmatpush.msra.mxu0 %v6844
        %v6846 = vand.u32 %v398, 4294901760
        %6847 = vmatpush.msra.mxu0 %v6846
        %v6848 = vand.u32 %v270, 4294901760
        %6849 = vmatmul.f32.gmra.mxu0 %v6848
        %v6850 = vpop.f32.mrf.mxu0
        %v6851 = vadd.f32 %v6690, %v6850
        %v6852 = vand.u32 %v273, 4294901760
        %6853 = vmatmul.f32.gmra.mxu0 %v6852
        %v6854 = vpop.f32.mrf.mxu0
        %v6855 = vadd.f32 %v6694, %v6854
        %v6856 = vand.u32 %v276, 4294901760
        %6857 = vmatmul.f32.gmra.mxu0 %v6856
        %v6858 = vpop.f32.mrf.mxu0
        %v6859 = vadd.f32 %v6698, %v6858
        %v6860 = vand.u32 %v279, 4294901760
        %6861 = vmatmul.f32.gmra.mxu0 %v6860
        %v6862 = vpop.f32.mrf.mxu0
        %v6863 = vadd.f32 %v6702, %v6862
        %v6864 = vand.u32 %v282, 4294901760
        %6865 = vmatmul.f32.gmra.mxu0 %v6864
        %v6866 = vpop.f32.mrf.mxu0
        %v6867 = vadd.f32 %v6706, %v6866
        %v6868 = vand.u32 %v285, 4294901760
        %6869 = vmatmul.f32.gmra.mxu0 %v6868
        %v6870 = vpop.f32.mrf.mxu0
        %v6871 = vadd.f32 %v6710, %v6870
        %v6872 = vand.u32 %v288, 4294901760
        %6873 = vmatmul.f32.gmra.mxu0 %v6872
        %v6874 = vpop.f32.mrf.mxu0
        %v6875 = vadd.f32 %v6714, %v6874
        %v6876 = vand.u32 %v291, 4294901760
        %6877 = vmatmul.f32.gmra.mxu0 %v6876
        %v6878 = vpop.f32.mrf.mxu0
        %v6879 = vadd.f32 %v6718, %v6878
        %v6880 = vand.u32 %v294, 4294901760
        %6881 = vmatmul.f32.gmra.mxu0 %v6880
        %v6882 = vpop.f32.mrf.mxu0
        %v6883 = vadd.f32 %v6722, %v6882
        %v6884 = vand.u32 %v297, 4294901760
        %6885 = vmatmul.f32.gmra.mxu0 %v6884
        %v6886 = vpop.f32.mrf.mxu0
        %v6887 = vadd.f32 %v6726, %v6886
        %v6888 = vand.u32 %v300, 4294901760
        %6889 = vmatmul.f32.gmra.mxu0 %v6888
        %v6890 = vpop.f32.mrf.mxu0
        %v6891 = vadd.f32 %v6730, %v6890
        %v6892 = vand.u32 %v303, 4294901760
        %6893 = vmatmul.f32.gmra.mxu0 %v6892
        %v6894 = vpop.f32.mrf.mxu0
        %v6895 = vadd.f32 %v6734, %v6894
        %v6896 = vand.u32 %v306, 4294901760
        %6897 = vmatmul.f32.gmra.mxu0 %v6896
        %v6898 = vpop.f32.mrf.mxu0
        %v6899 = vadd.f32 %v6738, %v6898
        %v6900 = vand.u32 %v309, 4294901760
        %6901 = vmatmul.f32.gmra.mxu0 %v6900
        %v6902 = vpop.f32.mrf.mxu0
        %v6903 = vadd.f32 %v6742, %v6902
        %v6904 = vand.u32 %v312, 4294901760
        %6905 = vmatmul.f32.gmra.mxu0 %v6904
        %v6906 = vpop.f32.mrf.mxu0
        %v6907 = vadd.f32 %v6746, %v6906
        %v6908 = vand.u32 %v315, 4294901760
        %6909 = vmatmul.f32.gmra.mxu0 %v6908
        %v6910 = vpop.f32.mrf.mxu0
        %v6911 = vadd.f32 %v6750, %v6910
        %v6912 = vand.u32 %v318, 4294901760
        %6913 = vmatmul.f32.gmra.mxu0 %v6912
        %v6914 = vpop.f32.mrf.mxu0
        %v6915 = vadd.f32 %v6754, %v6914
        %v6916 = vand.u32 %v321, 4294901760
        %6917 = vmatmul.f32.gmra.mxu0 %v6916
        %v6918 = vpop.f32.mrf.mxu0
        %v6919 = vadd.f32 %v6758, %v6918
        %v6920 = vand.u32 %v324, 4294901760
        %6921 = vmatmul.f32.gmra.mxu0 %v6920
        %v6922 = vpop.f32.mrf.mxu0
        %v6923 = vadd.f32 %v6762, %v6922
        %v6924 = vand.u32 %v327, 4294901760
        %6925 = vmatmul.f32.gmra.mxu0 %v6924
        %v6926 = vpop.f32.mrf.mxu0
        %v6927 = vadd.f32 %v6766, %v6926
        %v6928 = vand.u32 %v330, 4294901760
        %6929 = vmatmul.f32.gmra.mxu0 %v6928
        %v6930 = vpop.f32.mrf.mxu0
        %v6931 = vadd.f32 %v6770, %v6930
        %v6932 = vand.u32 %v333, 4294901760
        %6933 = vmatmul.f32.gmra.mxu0 %v6932
        %v6934 = vpop.f32.mrf.mxu0
        %v6935 = vadd.f32 %v6774, %v6934
        %v6936 = vand.u32 %v336, 4294901760
        %6937 = vmatmul.f32.gmra.mxu0 %v6936
        %v6938 = vpop.f32.mrf.mxu0
        %v6939 = vadd.f32 %v6778, %v6938
        %v6940 = vand.u32 %v339, 4294901760
        %6941 = vmatmul.f32.gmra.mxu0 %v6940
        %v6942 = vpop.f32.mrf.mxu0
        %v6943 = vadd.f32 %v6782, %v6942
        %v6944 = vand.u32 %v342, 4294901760
        %6945 = vmatmul.f32.gmra.mxu0 %v6944
        %v6946 = vpop.f32.mrf.mxu0
        %v6947 = vadd.f32 %v6786, %v6946
        %v6948 = vand.u32 %v345, 4294901760
        %6949 = vmatmul.f32.gmra.mxu0 %v6948
        %v6950 = vpop.f32.mrf.mxu0
        %v6951 = vadd.f32 %v6790, %v6950
        %v6952 = vand.u32 %v348, 4294901760
        %6953 = vmatmul.f32.gmra.mxu0 %v6952
        %v6954 = vpop.f32.mrf.mxu0
        %v6955 = vadd.f32 %v6794, %v6954
        %v6956 = vand.u32 %v351, 4294901760
        %6957 = vmatmul.f32.gmra.mxu0 %v6956
        %v6958 = vpop.f32.mrf.mxu0
        %v6959 = vadd.f32 %v6798, %v6958
        %v6960 = vand.u32 %v354, 4294901760
        %6961 = vmatmul.f32.gmra.mxu0 %v6960
        %v6962 = vpop.f32.mrf.mxu0
        %v6963 = vadd.f32 %v6802, %v6962
        %v6964 = vand.u32 %v357, 4294901760
        %6965 = vmatmul.f32.gmra.mxu0 %v6964
        %v6966 = vpop.f32.mrf.mxu0
        %v6967 = vadd.f32 %v6806, %v6966
        %v6968 = vand.u32 %v360, 4294901760
        %6969 = vmatmul.f32.gmra.mxu0 %v6968
        %v6970 = vpop.f32.mrf.mxu0
        %v6971 = vadd.f32 %v6810, %v6970
        %v6972 = vand.u32 %v363, 4294901760
        %6973 = vmatmul.f32.gmra.mxu0 %v6972
        %v6974 = vpop.f32.mrf.mxu0
        %v6975 = vadd.f32 %v6814, %v6974
        %6976 = vdwg.mxu0
        %v6977 = vand.u32 %v460, 4294901760
        %6978 = vmatpush.msra.mxu0 %v6977
        %v6979 = vand.u32 %v458, 4294901760
        %6980 = vmatpush.msra.mxu0 %v6979
        %v6981 = vand.u32 %v456, 4294901760
        %6982 = vmatpush.msra.mxu0 %v6981
        %v6983 = vand.u32 %v454, 4294901760
        %6984 = vmatpush.msra.mxu0 %v6983
        %v6985 = vand.u32 %v452, 4294901760
        %6986 = vmatpush.msra.mxu0 %v6985
        %v6987 = vand.u32 %v450, 4294901760
        %6988 = vmatpush.msra.mxu0 %v6987
        %v6989 = vand.u32 %v448, 4294901760
        %6990 = vmatpush.msra.mxu0 %v6989
        %v6991 = vand.u32 %v446, 4294901760
        %6992 = vmatpush.msra.mxu0 %v6991
        %v6993 = vand.u32 %v444, 4294901760
        %6994 = vmatpush.msra.mxu0 %v6993
        %v6995 = vand.u32 %v442, 4294901760
        %6996 = vmatpush.msra.mxu0 %v6995
        %v6997 = vand.u32 %v440, 4294901760
        %6998 = vmatpush.msra.mxu0 %v6997
        %v6999 = vand.u32 %v438, 4294901760
        %7000 = vmatpush.msra.mxu0 %v6999
        %v7001 = vand.u32 %v436, 4294901760
        %7002 = vmatpush.msra.mxu0 %v7001
        %v7003 = vand.u32 %v434, 4294901760
        %7004 = vmatpush.msra.mxu0 %v7003
        %v7005 = vand.u32 %v432, 4294901760
        %7006 = vmatpush.msra.mxu0 %v7005
        %v7007 = vand.u32 %v430, 4294901760
        %7008 = vmatpush.msra.mxu0 %v7007
        %v7009 = vand.u32 %v271, 4294901760
        %v7010 = vsub.f32 %v271, %v7009
        %v7011 = vand.u32 %v7010, 4294901760
        %v7012 = vsub.f32 %v7010, %v7011
        %v7013 = vand.u32 %v7012, 4294901760
        %7014 = vmatmul.f32.gmra.mxu0 %v7013
        %v7015 = vpop.f32.mrf.mxu0
        %v7016 = vadd.f32 %v6851, %v7015
        %v7017 = vand.u32 %v274, 4294901760
        %v7018 = vsub.f32 %v274, %v7017
        %v7019 = vand.u32 %v7018, 4294901760
        %v7020 = vsub.f32 %v7018, %v7019
        %v7021 = vand.u32 %v7020, 4294901760
        %7022 = vmatmul.f32.gmra.mxu0 %v7021
        %v7023 = vpop.f32.mrf.mxu0
        %v7024 = vadd.f32 %v6855, %v7023
        %v7025 = vand.u32 %v277, 4294901760
        %v7026 = vsub.f32 %v277, %v7025
        %v7027 = vand.u32 %v7026, 4294901760
        %v7028 = vsub.f32 %v7026, %v7027
        %v7029 = vand.u32 %v7028, 4294901760
        %7030 = vmatmul.f32.gmra.mxu0 %v7029
        %v7031 = vpop.f32.mrf.mxu0
        %v7032 = vadd.f32 %v6859, %v7031
        %v7033 = vand.u32 %v280, 4294901760
        %v7034 = vsub.f32 %v280, %v7033
        %v7035 = vand.u32 %v7034, 4294901760
        %v7036 = vsub.f32 %v7034, %v7035
        %v7037 = vand.u32 %v7036, 4294901760
        %7038 = vmatmul.f32.gmra.mxu0 %v7037
        %v7039 = vpop.f32.mrf.mxu0
        %v7040 = vadd.f32 %v6863, %v7039
        %v7041 = vand.u32 %v283, 4294901760
        %v7042 = vsub.f32 %v283, %v7041
        %v7043 = vand.u32 %v7042, 4294901760
        %v7044 = vsub.f32 %v7042, %v7043
        %v7045 = vand.u32 %v7044, 4294901760
        %7046 = vmatmul.f32.gmra.mxu0 %v7045
        %v7047 = vpop.f32.mrf.mxu0
        %v7048 = vadd.f32 %v6867, %v7047
        %v7049 = vand.u32 %v286, 4294901760
        %v7050 = vsub.f32 %v286, %v7049
        %v7051 = vand.u32 %v7050, 4294901760
        %v7052 = vsub.f32 %v7050, %v7051
        %v7053 = vand.u32 %v7052, 4294901760
        %7054 = vmatmul.f32.gmra.mxu0 %v7053
        %v7055 = vpop.f32.mrf.mxu0
        %v7056 = vadd.f32 %v6871, %v7055
        %v7057 = vand.u32 %v289, 4294901760
        %v7058 = vsub.f32 %v289, %v7057
        %v7059 = vand.u32 %v7058, 4294901760
        %v7060 = vsub.f32 %v7058, %v7059
        %v7061 = vand.u32 %v7060, 4294901760
        %7062 = vmatmul.f32.gmra.mxu0 %v7061
        %v7063 = vpop.f32.mrf.mxu0
        %v7064 = vadd.f32 %v6875, %v7063
        %v7065 = vand.u32 %v292, 4294901760
        %v7066 = vsub.f32 %v292, %v7065
        %v7067 = vand.u32 %v7066, 4294901760
        %v7068 = vsub.f32 %v7066, %v7067
        %v7069 = vand.u32 %v7068, 4294901760
        %7070 = vmatmul.f32.gmra.mxu0 %v7069
        %v7071 = vpop.f32.mrf.mxu0
        %v7072 = vadd.f32 %v6879, %v7071
        %v7073 = vand.u32 %v295, 4294901760
        %v7074 = vsub.f32 %v295, %v7073
        %v7075 = vand.u32 %v7074, 4294901760
        %v7076 = vsub.f32 %v7074, %v7075
        %v7077 = vand.u32 %v7076, 4294901760
        %7078 = vmatmul.f32.gmra.mxu0 %v7077
        %v7079 = vpop.f32.mrf.mxu0
        %v7080 = vadd.f32 %v6883, %v7079
        %v7081 = vand.u32 %v298, 4294901760
        %v7082 = vsub.f32 %v298, %v7081
        %v7083 = vand.u32 %v7082, 4294901760
        %v7084 = vsub.f32 %v7082, %v7083
        %v7085 = vand.u32 %v7084, 4294901760
        %7086 = vmatmul.f32.gmra.mxu0 %v7085
        %v7087 = vpop.f32.mrf.mxu0
        %v7088 = vadd.f32 %v6887, %v7087
        %v7089 = vand.u32 %v301, 4294901760
        %v7090 = vsub.f32 %v301, %v7089
        %v7091 = vand.u32 %v7090, 4294901760
        %v7092 = vsub.f32 %v7090, %v7091
        %v7093 = vand.u32 %v7092, 4294901760
        %7094 = vmatmul.f32.gmra.mxu0 %v7093
        %v7095 = vpop.f32.mrf.mxu0
        %v7096 = vadd.f32 %v6891, %v7095
        %v7097 = vand.u32 %v304, 4294901760
        %v7098 = vsub.f32 %v304, %v7097
        %v7099 = vand.u32 %v7098, 4294901760
        %v7100 = vsub.f32 %v7098, %v7099
        %v7101 = vand.u32 %v7100, 4294901760
        %7102 = vmatmul.f32.gmra.mxu0 %v7101
        %v7103 = vpop.f32.mrf.mxu0
        %v7104 = vadd.f32 %v6895, %v7103
        %v7105 = vand.u32 %v307, 4294901760
        %v7106 = vsub.f32 %v307, %v7105
        %v7107 = vand.u32 %v7106, 4294901760
        %v7108 = vsub.f32 %v7106, %v7107
        %v7109 = vand.u32 %v7108, 4294901760
        %7110 = vmatmul.f32.gmra.mxu0 %v7109
        %v7111 = vpop.f32.mrf.mxu0
        %v7112 = vadd.f32 %v6899, %v7111
        %v7113 = vand.u32 %v310, 4294901760
        %v7114 = vsub.f32 %v310, %v7113
        %v7115 = vand.u32 %v7114, 4294901760
        %v7116 = vsub.f32 %v7114, %v7115
        %v7117 = vand.u32 %v7116, 4294901760
        %7118 = vmatmul.f32.gmra.mxu0 %v7117
        %v7119 = vpop.f32.mrf.mxu0
        %v7120 = vadd.f32 %v6903, %v7119
        %v7121 = vand.u32 %v313, 4294901760
        %v7122 = vsub.f32 %v313, %v7121
        %v7123 = vand.u32 %v7122, 4294901760
        %v7124 = vsub.f32 %v7122, %v7123
        %v7125 = vand.u32 %v7124, 4294901760
        %7126 = vmatmul.f32.gmra.mxu0 %v7125
        %v7127 = vpop.f32.mrf.mxu0
        %v7128 = vadd.f32 %v6907, %v7127
        %v7129 = vand.u32 %v316, 4294901760
        %v7130 = vsub.f32 %v316, %v7129
        %v7131 = vand.u32 %v7130, 4294901760
        %v7132 = vsub.f32 %v7130, %v7131
        %v7133 = vand.u32 %v7132, 4294901760
        %7134 = vmatmul.f32.gmra.mxu0 %v7133
        %v7135 = vpop.f32.mrf.mxu0
        %v7136 = vadd.f32 %v6911, %v7135
        %v7137 = vand.u32 %v319, 4294901760
        %v7138 = vsub.f32 %v319, %v7137
        %v7139 = vand.u32 %v7138, 4294901760
        %v7140 = vsub.f32 %v7138, %v7139
        %v7141 = vand.u32 %v7140, 4294901760
        %7142 = vmatmul.f32.gmra.mxu0 %v7141
        %v7143 = vpop.f32.mrf.mxu0
        %v7144 = vadd.f32 %v6915, %v7143
        %v7145 = vand.u32 %v322, 4294901760
        %v7146 = vsub.f32 %v322, %v7145
        %v7147 = vand.u32 %v7146, 4294901760
        %v7148 = vsub.f32 %v7146, %v7147
        %v7149 = vand.u32 %v7148, 4294901760
        %7150 = vmatmul.f32.gmra.mxu0 %v7149
        %v7151 = vpop.f32.mrf.mxu0
        %v7152 = vadd.f32 %v6919, %v7151
        %v7153 = vand.u32 %v325, 4294901760
        %v7154 = vsub.f32 %v325, %v7153
        %v7155 = vand.u32 %v7154, 4294901760
        %v7156 = vsub.f32 %v7154, %v7155
        %v7157 = vand.u32 %v7156, 4294901760
        %7158 = vmatmul.f32.gmra.mxu0 %v7157
        %v7159 = vpop.f32.mrf.mxu0
        %v7160 = vadd.f32 %v6923, %v7159
        %v7161 = vand.u32 %v328, 4294901760
        %v7162 = vsub.f32 %v328, %v7161
        %v7163 = vand.u32 %v7162, 4294901760
        %v7164 = vsub.f32 %v7162, %v7163
        %v7165 = vand.u32 %v7164, 4294901760
        %7166 = vmatmul.f32.gmra.mxu0 %v7165
        %v7167 = vpop.f32.mrf.mxu0
        %v7168 = vadd.f32 %v6927, %v7167
        %v7169 = vand.u32 %v331, 4294901760
        %v7170 = vsub.f32 %v331, %v7169
        %v7171 = vand.u32 %v7170, 4294901760
        %v7172 = vsub.f32 %v7170, %v7171
        %v7173 = vand.u32 %v7172, 4294901760
        %7174 = vmatmul.f32.gmra.mxu0 %v7173
        %v7175 = vpop.f32.mrf.mxu0
        %v7176 = vadd.f32 %v6931, %v7175
        %v7177 = vand.u32 %v334, 4294901760
        %v7178 = vsub.f32 %v334, %v7177
        %v7179 = vand.u32 %v7178, 4294901760
        %v7180 = vsub.f32 %v7178, %v7179
        %v7181 = vand.u32 %v7180, 4294901760
        %7182 = vmatmul.f32.gmra.mxu0 %v7181
        %v7183 = vpop.f32.mrf.mxu0
        %v7184 = vadd.f32 %v6935, %v7183
        %v7185 = vand.u32 %v337, 4294901760
        %v7186 = vsub.f32 %v337, %v7185
        %v7187 = vand.u32 %v7186, 4294901760
        %v7188 = vsub.f32 %v7186, %v7187
        %v7189 = vand.u32 %v7188, 4294901760
        %7190 = vmatmul.f32.gmra.mxu0 %v7189
        %v7191 = vpop.f32.mrf.mxu0
        %v7192 = vadd.f32 %v6939, %v7191
        %v7193 = vand.u32 %v340, 4294901760
        %v7194 = vsub.f32 %v340, %v7193
        %v7195 = vand.u32 %v7194, 4294901760
        %v7196 = vsub.f32 %v7194, %v7195
        %v7197 = vand.u32 %v7196, 4294901760
        %7198 = vmatmul.f32.gmra.mxu0 %v7197
        %v7199 = vpop.f32.mrf.mxu0
        %v7200 = vadd.f32 %v6943, %v7199
        %v7201 = vand.u32 %v343, 4294901760
        %v7202 = vsub.f32 %v343, %v7201
        %v7203 = vand.u32 %v7202, 4294901760
        %v7204 = vsub.f32 %v7202, %v7203
        %v7205 = vand.u32 %v7204, 4294901760
        %7206 = vmatmul.f32.gmra.mxu0 %v7205
        %v7207 = vpop.f32.mrf.mxu0
        %v7208 = vadd.f32 %v6947, %v7207
        %v7209 = vand.u32 %v346, 4294901760
        %v7210 = vsub.f32 %v346, %v7209
        %v7211 = vand.u32 %v7210, 4294901760
        %v7212 = vsub.f32 %v7210, %v7211
        %v7213 = vand.u32 %v7212, 4294901760
        %7214 = vmatmul.f32.gmra.mxu0 %v7213
        %v7215 = vpop.f32.mrf.mxu0
        %v7216 = vadd.f32 %v6951, %v7215
        %v7217 = vand.u32 %v349, 4294901760
        %v7218 = vsub.f32 %v349, %v7217
        %v7219 = vand.u32 %v7218, 4294901760
        %v7220 = vsub.f32 %v7218, %v7219
        %v7221 = vand.u32 %v7220, 4294901760
        %7222 = vmatmul.f32.gmra.mxu0 %v7221
        %v7223 = vpop.f32.mrf.mxu0
        %v7224 = vadd.f32 %v6955, %v7223
        %v7225 = vand.u32 %v352, 4294901760
        %v7226 = vsub.f32 %v352, %v7225
        %v7227 = vand.u32 %v7226, 4294901760
        %v7228 = vsub.f32 %v7226, %v7227
        %v7229 = vand.u32 %v7228, 4294901760
        %7230 = vmatmul.f32.gmra.mxu0 %v7229
        %v7231 = vpop.f32.mrf.mxu0
        %v7232 = vadd.f32 %v6959, %v7231
        %v7233 = vand.u32 %v355, 4294901760
        %v7234 = vsub.f32 %v355, %v7233
        %v7235 = vand.u32 %v7234, 4294901760
        %v7236 = vsub.f32 %v7234, %v7235
        %v7237 = vand.u32 %v7236, 4294901760
        %7238 = vmatmul.f32.gmra.mxu0 %v7237
        %v7239 = vpop.f32.mrf.mxu0
        %v7240 = vadd.f32 %v6963, %v7239
        %v7241 = vand.u32 %v358, 4294901760
        %v7242 = vsub.f32 %v358, %v7241
        %v7243 = vand.u32 %v7242, 4294901760
        %v7244 = vsub.f32 %v7242, %v7243
        %v7245 = vand.u32 %v7244, 4294901760
        %7246 = vmatmul.f32.gmra.mxu0 %v7245
        %v7247 = vpop.f32.mrf.mxu0
        %v7248 = vadd.f32 %v6967, %v7247
        %v7249 = vand.u32 %v361, 4294901760
        %v7250 = vsub.f32 %v361, %v7249
        %v7251 = vand.u32 %v7250, 4294901760
        %v7252 = vsub.f32 %v7250, %v7251
        %v7253 = vand.u32 %v7252, 4294901760
        %7254 = vmatmul.f32.gmra.mxu0 %v7253
        %v7255 = vpop.f32.mrf.mxu0
        %v7256 = vadd.f32 %v6971, %v7255
        %v7257 = vand.u32 %v364, 4294901760
        %v7258 = vsub.f32 %v364, %v7257
        %v7259 = vand.u32 %v7258, 4294901760
        %v7260 = vsub.f32 %v7258, %v7259
        %v7261 = vand.u32 %v7260, 4294901760
        %7262 = vmatmul.f32.gmra.mxu0 %v7261
        %v7263 = vpop.f32.mrf.mxu0
        %v7264 = vadd.f32 %v6975, %v7263
        %7265 = vdwg.mxu0
        %v7266 = vand.u32 %v460, 4294901760
        %v7267 = vsub.f32 %v460, %v7266
        %v7268 = vand.u32 %v7267, 4294901760
        %v7269 = vsub.f32 %v7267, %v7268
        %v7270 = vand.u32 %v7269, 4294901760
        %7271 = vmatpush.msra.mxu0 %v7270
        %v7272 = vand.u32 %v458, 4294901760
        %v7273 = vsub.f32 %v458, %v7272
        %v7274 = vand.u32 %v7273, 4294901760
        %v7275 = vsub.f32 %v7273, %v7274
        %v7276 = vand.u32 %v7275, 4294901760
        %7277 = vmatpush.msra.mxu0 %v7276
        %v7278 = vand.u32 %v456, 4294901760
        %v7279 = vsub.f32 %v456, %v7278
        %v7280 = vand.u32 %v7279, 4294901760
        %v7281 = vsub.f32 %v7279, %v7280
        %v7282 = vand.u32 %v7281, 4294901760
        %7283 = vmatpush.msra.mxu0 %v7282
        %v7284 = vand.u32 %v454, 4294901760
        %v7285 = vsub.f32 %v454, %v7284
        %v7286 = vand.u32 %v7285, 4294901760
        %v7287 = vsub.f32 %v7285, %v7286
        %v7288 = vand.u32 %v7287, 4294901760
        %7289 = vmatpush.msra.mxu0 %v7288
        %v7290 = vand.u32 %v452, 4294901760
        %v7291 = vsub.f32 %v452, %v7290
        %v7292 = vand.u32 %v7291, 4294901760
        %v7293 = vsub.f32 %v7291, %v7292
        %v7294 = vand.u32 %v7293, 4294901760
        %7295 = vmatpush.msra.mxu0 %v7294
        %v7296 = vand.u32 %v450, 4294901760
        %v7297 = vsub.f32 %v450, %v7296
        %v7298 = vand.u32 %v7297, 4294901760
        %v7299 = vsub.f32 %v7297, %v7298
        %v7300 = vand.u32 %v7299, 4294901760
        %7301 = vmatpush.msra.mxu0 %v7300
        %v7302 = vand.u32 %v448, 4294901760
        %v7303 = vsub.f32 %v448, %v7302
        %v7304 = vand.u32 %v7303, 4294901760
        %v7305 = vsub.f32 %v7303, %v7304
        %v7306 = vand.u32 %v7305, 4294901760
        %7307 = vmatpush.msra.mxu0 %v7306
        %v7308 = vand.u32 %v446, 4294901760
        %v7309 = vsub.f32 %v446, %v7308
        %v7310 = vand.u32 %v7309, 4294901760
        %v7311 = vsub.f32 %v7309, %v7310
        %v7312 = vand.u32 %v7311, 4294901760
        %7313 = vmatpush.msra.mxu0 %v7312
        %v7314 = vand.u32 %v444, 4294901760
        %v7315 = vsub.f32 %v444, %v7314
        %v7316 = vand.u32 %v7315, 4294901760
        %v7317 = vsub.f32 %v7315, %v7316
        %v7318 = vand.u32 %v7317, 4294901760
        %7319 = vmatpush.msra.mxu0 %v7318
        %v7320 = vand.u32 %v442, 4294901760
        %v7321 = vsub.f32 %v442, %v7320
        %v7322 = vand.u32 %v7321, 4294901760
        %v7323 = vsub.f32 %v7321, %v7322
        %v7324 = vand.u32 %v7323, 4294901760
        %7325 = vmatpush.msra.mxu0 %v7324
        %v7326 = vand.u32 %v440, 4294901760
        %v7327 = vsub.f32 %v440, %v7326
        %v7328 = vand.u32 %v7327, 4294901760
        %v7329 = vsub.f32 %v7327, %v7328
        %v7330 = vand.u32 %v7329, 4294901760
        %7331 = vmatpush.msra.mxu0 %v7330
        %v7332 = vand.u32 %v438, 4294901760
        %v7333 = vsub.f32 %v438, %v7332
        %v7334 = vand.u32 %v7333, 4294901760
        %v7335 = vsub.f32 %v7333, %v7334
        %v7336 = vand.u32 %v7335, 4294901760
        %7337 = vmatpush.msra.mxu0 %v7336
        %v7338 = vand.u32 %v436, 4294901760
        %v7339 = vsub.f32 %v436, %v7338
        %v7340 = vand.u32 %v7339, 4294901760
        %v7341 = vsub.f32 %v7339, %v7340
        %v7342 = vand.u32 %v7341, 4294901760
        %7343 = vmatpush.msra.mxu0 %v7342
        %v7344 = vand.u32 %v434, 4294901760
        %v7345 = vsub.f32 %v434, %v7344
        %v7346 = vand.u32 %v7345, 4294901760
        %v7347 = vsub.f32 %v7345, %v7346
        %v7348 = vand.u32 %v7347, 4294901760
        %7349 = vmatpush.msra.mxu0 %v7348
        %v7350 = vand.u32 %v432, 4294901760
        %v7351 = vsub.f32 %v432, %v7350
        %v7352 = vand.u32 %v7351, 4294901760
        %v7353 = vsub.f32 %v7351, %v7352
        %v7354 = vand.u32 %v7353, 4294901760
        %7355 = vmatpush.msra.mxu0 %v7354
        %v7356 = vand.u32 %v430, 4294901760
        %v7357 = vsub.f32 %v430, %v7356
        %v7358 = vand.u32 %v7357, 4294901760
        %v7359 = vsub.f32 %v7357, %v7358
        %v7360 = vand.u32 %v7359, 4294901760
        %7361 = vmatpush.msra.mxu0 %v7360
        %v7362 = vand.u32 %v271, 4294901760
        %7363 = vmatmul.f32.gmra.mxu0 %v7362
        %v7364 = vpop.f32.mrf.mxu0
        %v7365 = vadd.f32 %v7016, %v7364
        %v7366 = vand.u32 %v274, 4294901760
        %7367 = vmatmul.f32.gmra.mxu0 %v7366
        %v7368 = vpop.f32.mrf.mxu0
        %v7369 = vadd.f32 %v7024, %v7368
        %v7370 = vand.u32 %v277, 4294901760
        %7371 = vmatmul.f32.gmra.mxu0 %v7370
        %v7372 = vpop.f32.mrf.mxu0
        %v7373 = vadd.f32 %v7032, %v7372
        %v7374 = vand.u32 %v280, 4294901760
        %7375 = vmatmul.f32.gmra.mxu0 %v7374
        %v7376 = vpop.f32.mrf.mxu0
        %v7377 = vadd.f32 %v7040, %v7376
        %v7378 = vand.u32 %v283, 4294901760
        %7379 = vmatmul.f32.gmra.mxu0 %v7378
        %v7380 = vpop.f32.mrf.mxu0
        %v7381 = vadd.f32 %v7048, %v7380
        %v7382 = vand.u32 %v286, 4294901760
        %7383 = vmatmul.f32.gmra.mxu0 %v7382
        %v7384 = vpop.f32.mrf.mxu0
        %v7385 = vadd.f32 %v7056, %v7384
        %v7386 = vand.u32 %v289, 4294901760
        %7387 = vmatmul.f32.gmra.mxu0 %v7386
        %v7388 = vpop.f32.mrf.mxu0
        %v7389 = vadd.f32 %v7064, %v7388
        %v7390 = vand.u32 %v292, 4294901760
        %7391 = vmatmul.f32.gmra.mxu0 %v7390
        %v7392 = vpop.f32.mrf.mxu0
        %v7393 = vadd.f32 %v7072, %v7392
        %v7394 = vand.u32 %v295, 4294901760
        %7395 = vmatmul.f32.gmra.mxu0 %v7394
        %v7396 = vpop.f32.mrf.mxu0
        %v7397 = vadd.f32 %v7080, %v7396
        %v7398 = vand.u32 %v298, 4294901760
        %7399 = vmatmul.f32.gmra.mxu0 %v7398
        %v7400 = vpop.f32.mrf.mxu0
        %v7401 = vadd.f32 %v7088, %v7400
        %v7402 = vand.u32 %v301, 4294901760
        %7403 = vmatmul.f32.gmra.mxu0 %v7402
        %v7404 = vpop.f32.mrf.mxu0
        %v7405 = vadd.f32 %v7096, %v7404
        %v7406 = vand.u32 %v304, 4294901760
        %7407 = vmatmul.f32.gmra.mxu0 %v7406
        %v7408 = vpop.f32.mrf.mxu0
        %v7409 = vadd.f32 %v7104, %v7408
        %v7410 = vand.u32 %v307, 4294901760
        %7411 = vmatmul.f32.gmra.mxu0 %v7410
        %v7412 = vpop.f32.mrf.mxu0
        %v7413 = vadd.f32 %v7112, %v7412
        %v7414 = vand.u32 %v310, 4294901760
        %7415 = vmatmul.f32.gmra.mxu0 %v7414
        %v7416 = vpop.f32.mrf.mxu0
        %v7417 = vadd.f32 %v7120, %v7416
        %v7418 = vand.u32 %v313, 4294901760
        %7419 = vmatmul.f32.gmra.mxu0 %v7418
        %v7420 = vpop.f32.mrf.mxu0
        %v7421 = vadd.f32 %v7128, %v7420
        %v7422 = vand.u32 %v316, 4294901760
        %7423 = vmatmul.f32.gmra.mxu0 %v7422
        %v7424 = vpop.f32.mrf.mxu0
        %v7425 = vadd.f32 %v7136, %v7424
        %v7426 = vand.u32 %v319, 4294901760
        %7427 = vmatmul.f32.gmra.mxu0 %v7426
        %v7428 = vpop.f32.mrf.mxu0
        %v7429 = vadd.f32 %v7144, %v7428
        %v7430 = vand.u32 %v322, 4294901760
        %7431 = vmatmul.f32.gmra.mxu0 %v7430
        %v7432 = vpop.f32.mrf.mxu0
        %v7433 = vadd.f32 %v7152, %v7432
        %v7434 = vand.u32 %v325, 4294901760
        %7435 = vmatmul.f32.gmra.mxu0 %v7434
        %v7436 = vpop.f32.mrf.mxu0
        %v7437 = vadd.f32 %v7160, %v7436
        %v7438 = vand.u32 %v328, 4294901760
        %7439 = vmatmul.f32.gmra.mxu0 %v7438
        %v7440 = vpop.f32.mrf.mxu0
        %v7441 = vadd.f32 %v7168, %v7440
        %v7442 = vand.u32 %v331, 4294901760
        %7443 = vmatmul.f32.gmra.mxu0 %v7442
        %v7444 = vpop.f32.mrf.mxu0
        %v7445 = vadd.f32 %v7176, %v7444
        %v7446 = vand.u32 %v334, 4294901760
        %7447 = vmatmul.f32.gmra.mxu0 %v7446
        %v7448 = vpop.f32.mrf.mxu0
        %v7449 = vadd.f32 %v7184, %v7448
        %v7450 = vand.u32 %v337, 4294901760
        %7451 = vmatmul.f32.gmra.mxu0 %v7450
        %v7452 = vpop.f32.mrf.mxu0
        %v7453 = vadd.f32 %v7192, %v7452
        %v7454 = vand.u32 %v340, 4294901760
        %7455 = vmatmul.f32.gmra.mxu0 %v7454
        %v7456 = vpop.f32.mrf.mxu0
        %v7457 = vadd.f32 %v7200, %v7456
        %v7458 = vand.u32 %v343, 4294901760
        %7459 = vmatmul.f32.gmra.mxu0 %v7458
        %v7460 = vpop.f32.mrf.mxu0
        %v7461 = vadd.f32 %v7208, %v7460
        %v7462 = vand.u32 %v346, 4294901760
        %7463 = vmatmul.f32.gmra.mxu0 %v7462
        %v7464 = vpop.f32.mrf.mxu0
        %v7465 = vadd.f32 %v7216, %v7464
        %v7466 = vand.u32 %v349, 4294901760
        %7467 = vmatmul.f32.gmra.mxu0 %v7466
        %v7468 = vpop.f32.mrf.mxu0
        %v7469 = vadd.f32 %v7224, %v7468
        %v7470 = vand.u32 %v352, 4294901760
        %7471 = vmatmul.f32.gmra.mxu0 %v7470
        %v7472 = vpop.f32.mrf.mxu0
        %v7473 = vadd.f32 %v7232, %v7472
        %v7474 = vand.u32 %v355, 4294901760
        %7475 = vmatmul.f32.gmra.mxu0 %v7474
        %v7476 = vpop.f32.mrf.mxu0
        %v7477 = vadd.f32 %v7240, %v7476
        %v7478 = vand.u32 %v358, 4294901760
        %7479 = vmatmul.f32.gmra.mxu0 %v7478
        %v7480 = vpop.f32.mrf.mxu0
        %v7481 = vadd.f32 %v7248, %v7480
        %v7482 = vand.u32 %v361, 4294901760
        %7483 = vmatmul.f32.gmra.mxu0 %v7482
        %v7484 = vpop.f32.mrf.mxu0
        %v7485 = vadd.f32 %v7256, %v7484
        %v7486 = vand.u32 %v364, 4294901760
        %7487 = vmatmul.f32.gmra.mxu0 %v7486
        %v7488 = vpop.f32.mrf.mxu0
        %v7489 = vadd.f32 %v7264, %v7488
        %7490 = vdwg.mxu0
        %v7491 = vand.u32 %v460, 4294901760
        %v7492 = vsub.f32 %v460, %v7491
        %7493 = vmatpush.msra.mxu0 %v7492
        %v7494 = vand.u32 %v458, 4294901760
        %v7495 = vsub.f32 %v458, %v7494
        %7496 = vmatpush.msra.mxu0 %v7495
        %v7497 = vand.u32 %v456, 4294901760
        %v7498 = vsub.f32 %v456, %v7497
        %7499 = vmatpush.msra.mxu0 %v7498
        %v7500 = vand.u32 %v454, 4294901760
        %v7501 = vsub.f32 %v454, %v7500
        %7502 = vmatpush.msra.mxu0 %v7501
        %v7503 = vand.u32 %v452, 4294901760
        %v7504 = vsub.f32 %v452, %v7503
        %7505 = vmatpush.msra.mxu0 %v7504
        %v7506 = vand.u32 %v450, 4294901760
        %v7507 = vsub.f32 %v450, %v7506
        %7508 = vmatpush.msra.mxu0 %v7507
        %v7509 = vand.u32 %v448, 4294901760
        %v7510 = vsub.f32 %v448, %v7509
        %7511 = vmatpush.msra.mxu0 %v7510
        %v7512 = vand.u32 %v446, 4294901760
        %v7513 = vsub.f32 %v446, %v7512
        %7514 = vmatpush.msra.mxu0 %v7513
        %v7515 = vand.u32 %v444, 4294901760
        %v7516 = vsub.f32 %v444, %v7515
        %7517 = vmatpush.msra.mxu0 %v7516
        %v7518 = vand.u32 %v442, 4294901760
        %v7519 = vsub.f32 %v442, %v7518
        %7520 = vmatpush.msra.mxu0 %v7519
        %v7521 = vand.u32 %v440, 4294901760
        %v7522 = vsub.f32 %v440, %v7521
        %7523 = vmatpush.msra.mxu0 %v7522
        %v7524 = vand.u32 %v438, 4294901760
        %v7525 = vsub.f32 %v438, %v7524
        %7526 = vmatpush.msra.mxu0 %v7525
        %v7527 = vand.u32 %v436, 4294901760
        %v7528 = vsub.f32 %v436, %v7527
        %7529 = vmatpush.msra.mxu0 %v7528
        %v7530 = vand.u32 %v434, 4294901760
        %v7531 = vsub.f32 %v434, %v7530
        %7532 = vmatpush.msra.mxu0 %v7531
        %v7533 = vand.u32 %v432, 4294901760
        %v7534 = vsub.f32 %v432, %v7533
        %7535 = vmatpush.msra.mxu0 %v7534
        %v7536 = vand.u32 %v430, 4294901760
        %v7537 = vsub.f32 %v430, %v7536
        %7538 = vmatpush.msra.mxu0 %v7537
        %v7539 = vand.u32 %v271, 4294901760
        %v7540 = vsub.f32 %v271, %v7539
        %7541 = vmatmul.f32.gmra.mxu0 %v7540
        %v7542 = vpop.f32.mrf.mxu0
        %v7543 = vadd.f32 %v7365, %v7542
        %v7544 = vand.u32 %v274, 4294901760
        %v7545 = vsub.f32 %v274, %v7544
        %7546 = vmatmul.f32.gmra.mxu0 %v7545
        %v7547 = vpop.f32.mrf.mxu0
        %v7548 = vadd.f32 %v7369, %v7547
        %v7549 = vand.u32 %v277, 4294901760
        %v7550 = vsub.f32 %v277, %v7549
        %7551 = vmatmul.f32.gmra.mxu0 %v7550
        %v7552 = vpop.f32.mrf.mxu0
        %v7553 = vadd.f32 %v7373, %v7552
        %v7554 = vand.u32 %v280, 4294901760
        %v7555 = vsub.f32 %v280, %v7554
        %7556 = vmatmul.f32.gmra.mxu0 %v7555
        %v7557 = vpop.f32.mrf.mxu0
        %v7558 = vadd.f32 %v7377, %v7557
        %v7559 = vand.u32 %v283, 4294901760
        %v7560 = vsub.f32 %v283, %v7559
        %7561 = vmatmul.f32.gmra.mxu0 %v7560
        %v7562 = vpop.f32.mrf.mxu0
        %v7563 = vadd.f32 %v7381, %v7562
        %v7564 = vand.u32 %v286, 4294901760
        %v7565 = vsub.f32 %v286, %v7564
        %7566 = vmatmul.f32.gmra.mxu0 %v7565
        %v7567 = vpop.f32.mrf.mxu0
        %v7568 = vadd.f32 %v7385, %v7567
        %v7569 = vand.u32 %v289, 4294901760
        %v7570 = vsub.f32 %v289, %v7569
        %7571 = vmatmul.f32.gmra.mxu0 %v7570
        %v7572 = vpop.f32.mrf.mxu0
        %v7573 = vadd.f32 %v7389, %v7572
        %v7574 = vand.u32 %v292, 4294901760
        %v7575 = vsub.f32 %v292, %v7574
        %7576 = vmatmul.f32.gmra.mxu0 %v7575
        %v7577 = vpop.f32.mrf.mxu0
        %v7578 = vadd.f32 %v7393, %v7577
        %v7579 = vand.u32 %v295, 4294901760
        %v7580 = vsub.f32 %v295, %v7579
        %7581 = vmatmul.f32.gmra.mxu0 %v7580
        %v7582 = vpop.f32.mrf.mxu0
        %v7583 = vadd.f32 %v7397, %v7582
        %v7584 = vand.u32 %v298, 4294901760
        %v7585 = vsub.f32 %v298, %v7584
        %7586 = vmatmul.f32.gmra.mxu0 %v7585
        %v7587 = vpop.f32.mrf.mxu0
        %v7588 = vadd.f32 %v7401, %v7587
        %v7589 = vand.u32 %v301, 4294901760
        %v7590 = vsub.f32 %v301, %v7589
        %7591 = vmatmul.f32.gmra.mxu0 %v7590
        %v7592 = vpop.f32.mrf.mxu0
        %v7593 = vadd.f32 %v7405, %v7592
        %v7594 = vand.u32 %v304, 4294901760
        %v7595 = vsub.f32 %v304, %v7594
        %7596 = vmatmul.f32.gmra.mxu0 %v7595
        %v7597 = vpop.f32.mrf.mxu0
        %v7598 = vadd.f32 %v7409, %v7597
        %v7599 = vand.u32 %v307, 4294901760
        %v7600 = vsub.f32 %v307, %v7599
        %7601 = vmatmul.f32.gmra.mxu0 %v7600
        %v7602 = vpop.f32.mrf.mxu0
        %v7603 = vadd.f32 %v7413, %v7602
        %v7604 = vand.u32 %v310, 4294901760
        %v7605 = vsub.f32 %v310, %v7604
        %7606 = vmatmul.f32.gmra.mxu0 %v7605
        %v7607 = vpop.f32.mrf.mxu0
        %v7608 = vadd.f32 %v7417, %v7607
        %v7609 = vand.u32 %v313, 4294901760
        %v7610 = vsub.f32 %v313, %v7609
        %7611 = vmatmul.f32.gmra.mxu0 %v7610
        %v7612 = vpop.f32.mrf.mxu0
        %v7613 = vadd.f32 %v7421, %v7612
        %v7614 = vand.u32 %v316, 4294901760
        %v7615 = vsub.f32 %v316, %v7614
        %7616 = vmatmul.f32.gmra.mxu0 %v7615
        %v7617 = vpop.f32.mrf.mxu0
        %v7618 = vadd.f32 %v7425, %v7617
        %v7619 = vand.u32 %v319, 4294901760
        %v7620 = vsub.f32 %v319, %v7619
        %7621 = vmatmul.f32.gmra.mxu0 %v7620
        %v7622 = vpop.f32.mrf.mxu0
        %v7623 = vadd.f32 %v7429, %v7622
        %v7624 = vand.u32 %v322, 4294901760
        %v7625 = vsub.f32 %v322, %v7624
        %7626 = vmatmul.f32.gmra.mxu0 %v7625
        %v7627 = vpop.f32.mrf.mxu0
        %v7628 = vadd.f32 %v7433, %v7627
        %v7629 = vand.u32 %v325, 4294901760
        %v7630 = vsub.f32 %v325, %v7629
        %7631 = vmatmul.f32.gmra.mxu0 %v7630
        %v7632 = vpop.f32.mrf.mxu0
        %v7633 = vadd.f32 %v7437, %v7632
        %v7634 = vand.u32 %v328, 4294901760
        %v7635 = vsub.f32 %v328, %v7634
        %7636 = vmatmul.f32.gmra.mxu0 %v7635
        %v7637 = vpop.f32.mrf.mxu0
        %v7638 = vadd.f32 %v7441, %v7637
        %v7639 = vand.u32 %v331, 4294901760
        %v7640 = vsub.f32 %v331, %v7639
        %7641 = vmatmul.f32.gmra.mxu0 %v7640
        %v7642 = vpop.f32.mrf.mxu0
        %v7643 = vadd.f32 %v7445, %v7642
        %v7644 = vand.u32 %v334, 4294901760
        %v7645 = vsub.f32 %v334, %v7644
        %7646 = vmatmul.f32.gmra.mxu0 %v7645
        %v7647 = vpop.f32.mrf.mxu0
        %v7648 = vadd.f32 %v7449, %v7647
        %v7649 = vand.u32 %v337, 4294901760
        %v7650 = vsub.f32 %v337, %v7649
        %7651 = vmatmul.f32.gmra.mxu0 %v7650
        %v7652 = vpop.f32.mrf.mxu0
        %v7653 = vadd.f32 %v7453, %v7652
        %v7654 = vand.u32 %v340, 4294901760
        %v7655 = vsub.f32 %v340, %v7654
        %7656 = vmatmul.f32.gmra.mxu0 %v7655
        %v7657 = vpop.f32.mrf.mxu0
        %v7658 = vadd.f32 %v7457, %v7657
        %v7659 = vand.u32 %v343, 4294901760
        %v7660 = vsub.f32 %v343, %v7659
        %7661 = vmatmul.f32.gmra.mxu0 %v7660
        %v7662 = vpop.f32.mrf.mxu0
        %v7663 = vadd.f32 %v7461, %v7662
        %v7664 = vand.u32 %v346, 4294901760
        %v7665 = vsub.f32 %v346, %v7664
        %7666 = vmatmul.f32.gmra.mxu0 %v7665
        %v7667 = vpop.f32.mrf.mxu0
        %v7668 = vadd.f32 %v7465, %v7667
        %v7669 = vand.u32 %v349, 4294901760
        %v7670 = vsub.f32 %v349, %v7669
        %7671 = vmatmul.f32.gmra.mxu0 %v7670
        %v7672 = vpop.f32.mrf.mxu0
        %v7673 = vadd.f32 %v7469, %v7672
        %v7674 = vand.u32 %v352, 4294901760
        %v7675 = vsub.f32 %v352, %v7674
        %7676 = vmatmul.f32.gmra.mxu0 %v7675
        %v7677 = vpop.f32.mrf.mxu0
        %v7678 = vadd.f32 %v7473, %v7677
        %v7679 = vand.u32 %v355, 4294901760
        %v7680 = vsub.f32 %v355, %v7679
        %7681 = vmatmul.f32.gmra.mxu0 %v7680
        %v7682 = vpop.f32.mrf.mxu0
        %v7683 = vadd.f32 %v7477, %v7682
        %v7684 = vand.u32 %v358, 4294901760
        %v7685 = vsub.f32 %v358, %v7684
        %7686 = vmatmul.f32.gmra.mxu0 %v7685
        %v7687 = vpop.f32.mrf.mxu0
        %v7688 = vadd.f32 %v7481, %v7687
        %v7689 = vand.u32 %v361, 4294901760
        %v7690 = vsub.f32 %v361, %v7689
        %7691 = vmatmul.f32.gmra.mxu0 %v7690
        %v7692 = vpop.f32.mrf.mxu0
        %v7693 = vadd.f32 %v7485, %v7692
        %v7694 = vand.u32 %v364, 4294901760
        %v7695 = vsub.f32 %v364, %v7694
        %7696 = vmatmul.f32.gmra.mxu0 %v7695
        %v7697 = vpop.f32.mrf.mxu0
        %v7698 = vadd.f32 %v7489, %v7697
        %7699 = vdwg.mxu0
        %v7700 = vand.u32 %v460, 4294901760
        %7701 = vmatpush.msra.mxu0 %v7700
        %v7702 = vand.u32 %v458, 4294901760
        %7703 = vmatpush.msra.mxu0 %v7702
        %v7704 = vand.u32 %v456, 4294901760
        %7705 = vmatpush.msra.mxu0 %v7704
        %v7706 = vand.u32 %v454, 4294901760
        %7707 = vmatpush.msra.mxu0 %v7706
        %v7708 = vand.u32 %v452, 4294901760
        %7709 = vmatpush.msra.mxu0 %v7708
        %v7710 = vand.u32 %v450, 4294901760
        %7711 = vmatpush.msra.mxu0 %v7710
        %v7712 = vand.u32 %v448, 4294901760
        %7713 = vmatpush.msra.mxu0 %v7712
        %v7714 = vand.u32 %v446, 4294901760
        %7715 = vmatpush.msra.mxu0 %v7714
        %v7716 = vand.u32 %v444, 4294901760
        %7717 = vmatpush.msra.mxu0 %v7716
        %v7718 = vand.u32 %v442, 4294901760
        %7719 = vmatpush.msra.mxu0 %v7718
        %v7720 = vand.u32 %v440, 4294901760
        %7721 = vmatpush.msra.mxu0 %v7720
        %v7722 = vand.u32 %v438, 4294901760
        %7723 = vmatpush.msra.mxu0 %v7722
        %v7724 = vand.u32 %v436, 4294901760
        %7725 = vmatpush.msra.mxu0 %v7724
        %v7726 = vand.u32 %v434, 4294901760
        %7727 = vmatpush.msra.mxu0 %v7726
        %v7728 = vand.u32 %v432, 4294901760
        %7729 = vmatpush.msra.mxu0 %v7728
        %v7730 = vand.u32 %v430, 4294901760
        %7731 = vmatpush.msra.mxu0 %v7730
        %v7732 = vand.u32 %v271, 4294901760
        %v7733 = vsub.f32 %v271, %v7732
        %v7734 = vand.u32 %v7733, 4294901760
        %7735 = vmatmul.f32.gmra.mxu0 %v7734
        %v7736 = vpop.f32.mrf.mxu0
        %v7737 = vadd.f32 %v7543, %v7736
        %v7738 = vand.u32 %v274, 4294901760
        %v7739 = vsub.f32 %v274, %v7738
        %v7740 = vand.u32 %v7739, 4294901760
        %7741 = vmatmul.f32.gmra.mxu0 %v7740
        %v7742 = vpop.f32.mrf.mxu0
        %v7743 = vadd.f32 %v7548, %v7742
        %v7744 = vand.u32 %v277, 4294901760
        %v7745 = vsub.f32 %v277, %v7744
        %v7746 = vand.u32 %v7745, 4294901760
        %7747 = vmatmul.f32.gmra.mxu0 %v7746
        %v7748 = vpop.f32.mrf.mxu0
        %v7749 = vadd.f32 %v7553, %v7748
        %v7750 = vand.u32 %v280, 4294901760
        %v7751 = vsub.f32 %v280, %v7750
        %v7752 = vand.u32 %v7751, 4294901760
        %7753 = vmatmul.f32.gmra.mxu0 %v7752
        %v7754 = vpop.f32.mrf.mxu0
        %v7755 = vadd.f32 %v7558, %v7754
        %v7756 = vand.u32 %v283, 4294901760
        %v7757 = vsub.f32 %v283, %v7756
        %v7758 = vand.u32 %v7757, 4294901760
        %7759 = vmatmul.f32.gmra.mxu0 %v7758
        %v7760 = vpop.f32.mrf.mxu0
        %v7761 = vadd.f32 %v7563, %v7760
        %v7762 = vand.u32 %v286, 4294901760
        %v7763 = vsub.f32 %v286, %v7762
        %v7764 = vand.u32 %v7763, 4294901760
        %7765 = vmatmul.f32.gmra.mxu0 %v7764
        %v7766 = vpop.f32.mrf.mxu0
        %v7767 = vadd.f32 %v7568, %v7766
        %v7768 = vand.u32 %v289, 4294901760
        %v7769 = vsub.f32 %v289, %v7768
        %v7770 = vand.u32 %v7769, 4294901760
        %7771 = vmatmul.f32.gmra.mxu0 %v7770
        %v7772 = vpop.f32.mrf.mxu0
        %v7773 = vadd.f32 %v7573, %v7772
        %v7774 = vand.u32 %v292, 4294901760
        %v7775 = vsub.f32 %v292, %v7774
        %v7776 = vand.u32 %v7775, 4294901760
        %7777 = vmatmul.f32.gmra.mxu0 %v7776
        %v7778 = vpop.f32.mrf.mxu0
        %v7779 = vadd.f32 %v7578, %v7778
        %v7780 = vand.u32 %v295, 4294901760
        %v7781 = vsub.f32 %v295, %v7780
        %v7782 = vand.u32 %v7781, 4294901760
        %7783 = vmatmul.f32.gmra.mxu0 %v7782
        %v7784 = vpop.f32.mrf.mxu0
        %v7785 = vadd.f32 %v7583, %v7784
        %v7786 = vand.u32 %v298, 4294901760
        %v7787 = vsub.f32 %v298, %v7786
        %v7788 = vand.u32 %v7787, 4294901760
        %7789 = vmatmul.f32.gmra.mxu0 %v7788
        %v7790 = vpop.f32.mrf.mxu0
        %v7791 = vadd.f32 %v7588, %v7790
        %v7792 = vand.u32 %v301, 4294901760
        %v7793 = vsub.f32 %v301, %v7792
        %v7794 = vand.u32 %v7793, 4294901760
        %7795 = vmatmul.f32.gmra.mxu0 %v7794
        %v7796 = vpop.f32.mrf.mxu0
        %v7797 = vadd.f32 %v7593, %v7796
        %v7798 = vand.u32 %v304, 4294901760
        %v7799 = vsub.f32 %v304, %v7798
        %v7800 = vand.u32 %v7799, 4294901760
        %7801 = vmatmul.f32.gmra.mxu0 %v7800
        %v7802 = vpop.f32.mrf.mxu0
        %v7803 = vadd.f32 %v7598, %v7802
        %v7804 = vand.u32 %v307, 4294901760
        %v7805 = vsub.f32 %v307, %v7804
        %v7806 = vand.u32 %v7805, 4294901760
        %7807 = vmatmul.f32.gmra.mxu0 %v7806
        %v7808 = vpop.f32.mrf.mxu0
        %v7809 = vadd.f32 %v7603, %v7808
        %v7810 = vand.u32 %v310, 4294901760
        %v7811 = vsub.f32 %v310, %v7810
        %v7812 = vand.u32 %v7811, 4294901760
        %7813 = vmatmul.f32.gmra.mxu0 %v7812
        %v7814 = vpop.f32.mrf.mxu0
        %v7815 = vadd.f32 %v7608, %v7814
        %v7816 = vand.u32 %v313, 4294901760
        %v7817 = vsub.f32 %v313, %v7816
        %v7818 = vand.u32 %v7817, 4294901760
        %7819 = vmatmul.f32.gmra.mxu0 %v7818
        %v7820 = vpop.f32.mrf.mxu0
        %v7821 = vadd.f32 %v7613, %v7820
        %v7822 = vand.u32 %v316, 4294901760
        %v7823 = vsub.f32 %v316, %v7822
        %v7824 = vand.u32 %v7823, 4294901760
        %7825 = vmatmul.f32.gmra.mxu0 %v7824
        %v7826 = vpop.f32.mrf.mxu0
        %v7827 = vadd.f32 %v7618, %v7826
        %v7828 = vand.u32 %v319, 4294901760
        %v7829 = vsub.f32 %v319, %v7828
        %v7830 = vand.u32 %v7829, 4294901760
        %7831 = vmatmul.f32.gmra.mxu0 %v7830
        %v7832 = vpop.f32.mrf.mxu0
        %v7833 = vadd.f32 %v7623, %v7832
        %v7834 = vand.u32 %v322, 4294901760
        %v7835 = vsub.f32 %v322, %v7834
        %v7836 = vand.u32 %v7835, 4294901760
        %7837 = vmatmul.f32.gmra.mxu0 %v7836
        %v7838 = vpop.f32.mrf.mxu0
        %v7839 = vadd.f32 %v7628, %v7838
        %v7840 = vand.u32 %v325, 4294901760
        %v7841 = vsub.f32 %v325, %v7840
        %v7842 = vand.u32 %v7841, 4294901760
        %7843 = vmatmul.f32.gmra.mxu0 %v7842
        %v7844 = vpop.f32.mrf.mxu0
        %v7845 = vadd.f32 %v7633, %v7844
        %v7846 = vand.u32 %v328, 4294901760
        %v7847 = vsub.f32 %v328, %v7846
        %v7848 = vand.u32 %v7847, 4294901760
        %7849 = vmatmul.f32.gmra.mxu0 %v7848
        %v7850 = vpop.f32.mrf.mxu0
        %v7851 = vadd.f32 %v7638, %v7850
        %v7852 = vand.u32 %v331, 4294901760
        %v7853 = vsub.f32 %v331, %v7852
        %v7854 = vand.u32 %v7853, 4294901760
        %7855 = vmatmul.f32.gmra.mxu0 %v7854
        %v7856 = vpop.f32.mrf.mxu0
        %v7857 = vadd.f32 %v7643, %v7856
        %v7858 = vand.u32 %v334, 4294901760
        %v7859 = vsub.f32 %v334, %v7858
        %v7860 = vand.u32 %v7859, 4294901760
        %7861 = vmatmul.f32.gmra.mxu0 %v7860
        %v7862 = vpop.f32.mrf.mxu0
        %v7863 = vadd.f32 %v7648, %v7862
        %v7864 = vand.u32 %v337, 4294901760
        %v7865 = vsub.f32 %v337, %v7864
        %v7866 = vand.u32 %v7865, 4294901760
        %7867 = vmatmul.f32.gmra.mxu0 %v7866
        %v7868 = vpop.f32.mrf.mxu0
        %v7869 = vadd.f32 %v7653, %v7868
        %v7870 = vand.u32 %v340, 4294901760
        %v7871 = vsub.f32 %v340, %v7870
        %v7872 = vand.u32 %v7871, 4294901760
        %7873 = vmatmul.f32.gmra.mxu0 %v7872
        %v7874 = vpop.f32.mrf.mxu0
        %v7875 = vadd.f32 %v7658, %v7874
        %v7876 = vand.u32 %v343, 4294901760
        %v7877 = vsub.f32 %v343, %v7876
        %v7878 = vand.u32 %v7877, 4294901760
        %7879 = vmatmul.f32.gmra.mxu0 %v7878
        %v7880 = vpop.f32.mrf.mxu0
        %v7881 = vadd.f32 %v7663, %v7880
        %v7882 = vand.u32 %v346, 4294901760
        %v7883 = vsub.f32 %v346, %v7882
        %v7884 = vand.u32 %v7883, 4294901760
        %7885 = vmatmul.f32.gmra.mxu0 %v7884
        %v7886 = vpop.f32.mrf.mxu0
        %v7887 = vadd.f32 %v7668, %v7886
        %v7888 = vand.u32 %v349, 4294901760
        %v7889 = vsub.f32 %v349, %v7888
        %v7890 = vand.u32 %v7889, 4294901760
        %7891 = vmatmul.f32.gmra.mxu0 %v7890
        %v7892 = vpop.f32.mrf.mxu0
        %v7893 = vadd.f32 %v7673, %v7892
        %v7894 = vand.u32 %v352, 4294901760
        %v7895 = vsub.f32 %v352, %v7894
        %v7896 = vand.u32 %v7895, 4294901760
        %7897 = vmatmul.f32.gmra.mxu0 %v7896
        %v7898 = vpop.f32.mrf.mxu0
        %v7899 = vadd.f32 %v7678, %v7898
        %v7900 = vand.u32 %v355, 4294901760
        %v7901 = vsub.f32 %v355, %v7900
        %v7902 = vand.u32 %v7901, 4294901760
        %7903 = vmatmul.f32.gmra.mxu0 %v7902
        %v7904 = vpop.f32.mrf.mxu0
        %v7905 = vadd.f32 %v7683, %v7904
        %v7906 = vand.u32 %v358, 4294901760
        %v7907 = vsub.f32 %v358, %v7906
        %v7908 = vand.u32 %v7907, 4294901760
        %7909 = vmatmul.f32.gmra.mxu0 %v7908
        %v7910 = vpop.f32.mrf.mxu0
        %v7911 = vadd.f32 %v7688, %v7910
        %v7912 = vand.u32 %v361, 4294901760
        %v7913 = vsub.f32 %v361, %v7912
        %v7914 = vand.u32 %v7913, 4294901760
        %7915 = vmatmul.f32.gmra.mxu0 %v7914
        %v7916 = vpop.f32.mrf.mxu0
        %v7917 = vadd.f32 %v7693, %v7916
        %v7918 = vand.u32 %v364, 4294901760
        %v7919 = vsub.f32 %v364, %v7918
        %v7920 = vand.u32 %v7919, 4294901760
        %7921 = vmatmul.f32.gmra.mxu0 %v7920
        %v7922 = vpop.f32.mrf.mxu0
        %v7923 = vadd.f32 %v7698, %v7922
        %7924 = vdwg.mxu0
        %v7925 = vand.u32 %v460, 4294901760
        %v7926 = vsub.f32 %v460, %v7925
        %v7927 = vand.u32 %v7926, 4294901760
        %7928 = vmatpush.msra.mxu0 %v7927
        %v7929 = vand.u32 %v458, 4294901760
        %v7930 = vsub.f32 %v458, %v7929
        %v7931 = vand.u32 %v7930, 4294901760
        %7932 = vmatpush.msra.mxu0 %v7931
        %v7933 = vand.u32 %v456, 4294901760
        %v7934 = vsub.f32 %v456, %v7933
        %v7935 = vand.u32 %v7934, 4294901760
        %7936 = vmatpush.msra.mxu0 %v7935
        %v7937 = vand.u32 %v454, 4294901760
        %v7938 = vsub.f32 %v454, %v7937
        %v7939 = vand.u32 %v7938, 4294901760
        %7940 = vmatpush.msra.mxu0 %v7939
        %v7941 = vand.u32 %v452, 4294901760
        %v7942 = vsub.f32 %v452, %v7941
        %v7943 = vand.u32 %v7942, 4294901760
        %7944 = vmatpush.msra.mxu0 %v7943
        %v7945 = vand.u32 %v450, 4294901760
        %v7946 = vsub.f32 %v450, %v7945
        %v7947 = vand.u32 %v7946, 4294901760
        %7948 = vmatpush.msra.mxu0 %v7947
        %v7949 = vand.u32 %v448, 4294901760
        %v7950 = vsub.f32 %v448, %v7949
        %v7951 = vand.u32 %v7950, 4294901760
        %7952 = vmatpush.msra.mxu0 %v7951
        %v7953 = vand.u32 %v446, 4294901760
        %v7954 = vsub.f32 %v446, %v7953
        %v7955 = vand.u32 %v7954, 4294901760
        %7956 = vmatpush.msra.mxu0 %v7955
        %v7957 = vand.u32 %v444, 4294901760
        %v7958 = vsub.f32 %v444, %v7957
        %v7959 = vand.u32 %v7958, 4294901760
        %7960 = vmatpush.msra.mxu0 %v7959
        %v7961 = vand.u32 %v442, 4294901760
        %v7962 = vsub.f32 %v442, %v7961
        %v7963 = vand.u32 %v7962, 4294901760
        %7964 = vmatpush.msra.mxu0 %v7963
        %v7965 = vand.u32 %v440, 4294901760
        %v7966 = vsub.f32 %v440, %v7965
        %v7967 = vand.u32 %v7966, 4294901760
        %7968 = vmatpush.msra.mxu0 %v7967
        %v7969 = vand.u32 %v438, 4294901760
        %v7970 = vsub.f32 %v438, %v7969
        %v7971 = vand.u32 %v7970, 4294901760
        %7972 = vmatpush.msra.mxu0 %v7971
        %v7973 = vand.u32 %v436, 4294901760
        %v7974 = vsub.f32 %v436, %v7973
        %v7975 = vand.u32 %v7974, 4294901760
        %7976 = vmatpush.msra.mxu0 %v7975
        %v7977 = vand.u32 %v434, 4294901760
        %v7978 = vsub.f32 %v434, %v7977
        %v7979 = vand.u32 %v7978, 4294901760
        %7980 = vmatpush.msra.mxu0 %v7979
        %v7981 = vand.u32 %v432, 4294901760
        %v7982 = vsub.f32 %v432, %v7981
        %v7983 = vand.u32 %v7982, 4294901760
        %7984 = vmatpush.msra.mxu0 %v7983
        %v7985 = vand.u32 %v430, 4294901760
        %v7986 = vsub.f32 %v430, %v7985
        %v7987 = vand.u32 %v7986, 4294901760
        %7988 = vmatpush.msra.mxu0 %v7987
        %v7989 = vand.u32 %v271, 4294901760
        %7990 = vmatmul.f32.gmra.mxu0 %v7989
        %v7991 = vpop.f32.mrf.mxu0
        %v7992 = vadd.f32 %v7737, %v7991
        %v7993 = vand.u32 %v274, 4294901760
        %7994 = vmatmul.f32.gmra.mxu0 %v7993
        %v7995 = vpop.f32.mrf.mxu0
        %v7996 = vadd.f32 %v7743, %v7995
        %v7997 = vand.u32 %v277, 4294901760
        %7998 = vmatmul.f32.gmra.mxu0 %v7997
        %v7999 = vpop.f32.mrf.mxu0
        %v8000 = vadd.f32 %v7749, %v7999
        %v8001 = vand.u32 %v280, 4294901760
        %8002 = vmatmul.f32.gmra.mxu0 %v8001
        %v8003 = vpop.f32.mrf.mxu0
        %v8004 = vadd.f32 %v7755, %v8003
        %v8005 = vand.u32 %v283, 4294901760
        %8006 = vmatmul.f32.gmra.mxu0 %v8005
        %v8007 = vpop.f32.mrf.mxu0
        %v8008 = vadd.f32 %v7761, %v8007
        %v8009 = vand.u32 %v286, 4294901760
        %8010 = vmatmul.f32.gmra.mxu0 %v8009
        %v8011 = vpop.f32.mrf.mxu0
        %v8012 = vadd.f32 %v7767, %v8011
        %v8013 = vand.u32 %v289, 4294901760
        %8014 = vmatmul.f32.gmra.mxu0 %v8013
        %v8015 = vpop.f32.mrf.mxu0
        %v8016 = vadd.f32 %v7773, %v8015
        %v8017 = vand.u32 %v292, 4294901760
        %8018 = vmatmul.f32.gmra.mxu0 %v8017
        %v8019 = vpop.f32.mrf.mxu0
        %v8020 = vadd.f32 %v7779, %v8019
        %v8021 = vand.u32 %v295, 4294901760
        %8022 = vmatmul.f32.gmra.mxu0 %v8021
        %v8023 = vpop.f32.mrf.mxu0
        %v8024 = vadd.f32 %v7785, %v8023
        %v8025 = vand.u32 %v298, 4294901760
        %8026 = vmatmul.f32.gmra.mxu0 %v8025
        %v8027 = vpop.f32.mrf.mxu0
        %v8028 = vadd.f32 %v7791, %v8027
        %v8029 = vand.u32 %v301, 4294901760
        %8030 = vmatmul.f32.gmra.mxu0 %v8029
        %v8031 = vpop.f32.mrf.mxu0
        %v8032 = vadd.f32 %v7797, %v8031
        %v8033 = vand.u32 %v304, 4294901760
        %8034 = vmatmul.f32.gmra.mxu0 %v8033
        %v8035 = vpop.f32.mrf.mxu0
        %v8036 = vadd.f32 %v7803, %v8035
        %v8037 = vand.u32 %v307, 4294901760
        %8038 = vmatmul.f32.gmra.mxu0 %v8037
        %v8039 = vpop.f32.mrf.mxu0
        %v8040 = vadd.f32 %v7809, %v8039
        %v8041 = vand.u32 %v310, 4294901760
        %8042 = vmatmul.f32.gmra.mxu0 %v8041
        %v8043 = vpop.f32.mrf.mxu0
        %v8044 = vadd.f32 %v7815, %v8043
        %v8045 = vand.u32 %v313, 4294901760
        %8046 = vmatmul.f32.gmra.mxu0 %v8045
        %v8047 = vpop.f32.mrf.mxu0
        %v8048 = vadd.f32 %v7821, %v8047
        %v8049 = vand.u32 %v316, 4294901760
        %8050 = vmatmul.f32.gmra.mxu0 %v8049
        %v8051 = vpop.f32.mrf.mxu0
        %v8052 = vadd.f32 %v7827, %v8051
        %v8053 = vand.u32 %v319, 4294901760
        %8054 = vmatmul.f32.gmra.mxu0 %v8053
        %v8055 = vpop.f32.mrf.mxu0
        %v8056 = vadd.f32 %v7833, %v8055
        %v8057 = vand.u32 %v322, 4294901760
        %8058 = vmatmul.f32.gmra.mxu0 %v8057
        %v8059 = vpop.f32.mrf.mxu0
        %v8060 = vadd.f32 %v7839, %v8059
        %v8061 = vand.u32 %v325, 4294901760
        %8062 = vmatmul.f32.gmra.mxu0 %v8061
        %v8063 = vpop.f32.mrf.mxu0
        %v8064 = vadd.f32 %v7845, %v8063
        %v8065 = vand.u32 %v328, 4294901760
        %8066 = vmatmul.f32.gmra.mxu0 %v8065
        %v8067 = vpop.f32.mrf.mxu0
        %v8068 = vadd.f32 %v7851, %v8067
        %v8069 = vand.u32 %v331, 4294901760
        %8070 = vmatmul.f32.gmra.mxu0 %v8069
        %v8071 = vpop.f32.mrf.mxu0
        %v8072 = vadd.f32 %v7857, %v8071
        %v8073 = vand.u32 %v334, 4294901760
        %8074 = vmatmul.f32.gmra.mxu0 %v8073
        %v8075 = vpop.f32.mrf.mxu0
        %v8076 = vadd.f32 %v7863, %v8075
        %v8077 = vand.u32 %v337, 4294901760
        %8078 = vmatmul.f32.gmra.mxu0 %v8077
        %v8079 = vpop.f32.mrf.mxu0
        %v8080 = vadd.f32 %v7869, %v8079
        %v8081 = vand.u32 %v340, 4294901760
        %8082 = vmatmul.f32.gmra.mxu0 %v8081
        %v8083 = vpop.f32.mrf.mxu0
        %v8084 = vadd.f32 %v7875, %v8083
        %v8085 = vand.u32 %v343, 4294901760
        %8086 = vmatmul.f32.gmra.mxu0 %v8085
        %v8087 = vpop.f32.mrf.mxu0
        %v8088 = vadd.f32 %v7881, %v8087
        %v8089 = vand.u32 %v346, 4294901760
        %8090 = vmatmul.f32.gmra.mxu0 %v8089
        %v8091 = vpop.f32.mrf.mxu0
        %v8092 = vadd.f32 %v7887, %v8091
        %v8093 = vand.u32 %v349, 4294901760
        %8094 = vmatmul.f32.gmra.mxu0 %v8093
        %v8095 = vpop.f32.mrf.mxu0
        %v8096 = vadd.f32 %v7893, %v8095
        %v8097 = vand.u32 %v352, 4294901760
        %8098 = vmatmul.f32.gmra.mxu0 %v8097
        %v8099 = vpop.f32.mrf.mxu0
        %v8100 = vadd.f32 %v7899, %v8099
        %v8101 = vand.u32 %v355, 4294901760
        %8102 = vmatmul.f32.gmra.mxu0 %v8101
        %v8103 = vpop.f32.mrf.mxu0
        %v8104 = vadd.f32 %v7905, %v8103
        %v8105 = vand.u32 %v358, 4294901760
        %8106 = vmatmul.f32.gmra.mxu0 %v8105
        %v8107 = vpop.f32.mrf.mxu0
        %v8108 = vadd.f32 %v7911, %v8107
        %v8109 = vand.u32 %v361, 4294901760
        %8110 = vmatmul.f32.gmra.mxu0 %v8109
        %v8111 = vpop.f32.mrf.mxu0
        %v8112 = vadd.f32 %v7917, %v8111
        %v8113 = vand.u32 %v364, 4294901760
        %8114 = vmatmul.f32.gmra.mxu0 %v8113
        %v8115 = vpop.f32.mrf.mxu0
        %v8116 = vadd.f32 %v7923, %v8115
        %8117 = vdwg.mxu0
        %v8118 = vand.u32 %v460, 4294901760
        %8119 = vmatpush.msra.mxu0 %v8118
        %v8120 = vand.u32 %v458, 4294901760
        %8121 = vmatpush.msra.mxu0 %v8120
        %v8122 = vand.u32 %v456, 4294901760
        %8123 = vmatpush.msra.mxu0 %v8122
        %v8124 = vand.u32 %v454, 4294901760
        %8125 = vmatpush.msra.mxu0 %v8124
        %v8126 = vand.u32 %v452, 4294901760
        %8127 = vmatpush.msra.mxu0 %v8126
        %v8128 = vand.u32 %v450, 4294901760
        %8129 = vmatpush.msra.mxu0 %v8128
        %v8130 = vand.u32 %v448, 4294901760
        %8131 = vmatpush.msra.mxu0 %v8130
        %v8132 = vand.u32 %v446, 4294901760
        %8133 = vmatpush.msra.mxu0 %v8132
        %v8134 = vand.u32 %v444, 4294901760
        %8135 = vmatpush.msra.mxu0 %v8134
        %v8136 = vand.u32 %v442, 4294901760
        %8137 = vmatpush.msra.mxu0 %v8136
        %v8138 = vand.u32 %v440, 4294901760
        %8139 = vmatpush.msra.mxu0 %v8138
        %v8140 = vand.u32 %v438, 4294901760
        %8141 = vmatpush.msra.mxu0 %v8140
        %v8142 = vand.u32 %v436, 4294901760
        %8143 = vmatpush.msra.mxu0 %v8142
        %v8144 = vand.u32 %v434, 4294901760
        %8145 = vmatpush.msra.mxu0 %v8144
        %v8146 = vand.u32 %v432, 4294901760
        %8147 = vmatpush.msra.mxu0 %v8146
        %v8148 = vand.u32 %v430, 4294901760
        %8149 = vmatpush.msra.mxu0 %v8148
        %v8150 = vand.u32 %v271, 4294901760
        %8151 = vmatmul.f32.gmra.mxu0 %v8150
        %v8152 = vpop.f32.mrf.mxu0
        %v8153 = vadd.f32 %v7992, %v8152
        %v8154 = vand.u32 %v274, 4294901760
        %8155 = vmatmul.f32.gmra.mxu0 %v8154
        %v8156 = vpop.f32.mrf.mxu0
        %v8157 = vadd.f32 %v7996, %v8156
        %v8158 = vand.u32 %v277, 4294901760
        %8159 = vmatmul.f32.gmra.mxu0 %v8158
        %v8160 = vpop.f32.mrf.mxu0
        %v8161 = vadd.f32 %v8000, %v8160
        %v8162 = vand.u32 %v280, 4294901760
        %8163 = vmatmul.f32.gmra.mxu0 %v8162
        %v8164 = vpop.f32.mrf.mxu0
        %v8165 = vadd.f32 %v8004, %v8164
        %v8166 = vand.u32 %v283, 4294901760
        %8167 = vmatmul.f32.gmra.mxu0 %v8166
        %v8168 = vpop.f32.mrf.mxu0
        %v8169 = vadd.f32 %v8008, %v8168
        %v8170 = vand.u32 %v286, 4294901760
        %8171 = vmatmul.f32.gmra.mxu0 %v8170
        %v8172 = vpop.f32.mrf.mxu0
        %v8173 = vadd.f32 %v8012, %v8172
        %v8174 = vand.u32 %v289, 4294901760
        %8175 = vmatmul.f32.gmra.mxu0 %v8174
        %v8176 = vpop.f32.mrf.mxu0
        %v8177 = vadd.f32 %v8016, %v8176
        %v8178 = vand.u32 %v292, 4294901760
        %8179 = vmatmul.f32.gmra.mxu0 %v8178
        %v8180 = vpop.f32.mrf.mxu0
        %v8181 = vadd.f32 %v8020, %v8180
        %v8182 = vand.u32 %v295, 4294901760
        %8183 = vmatmul.f32.gmra.mxu0 %v8182
        %v8184 = vpop.f32.mrf.mxu0
        %v8185 = vadd.f32 %v8024, %v8184
        %v8186 = vand.u32 %v298, 4294901760
        %8187 = vmatmul.f32.gmra.mxu0 %v8186
        %v8188 = vpop.f32.mrf.mxu0
        %v8189 = vadd.f32 %v8028, %v8188
        %v8190 = vand.u32 %v301, 4294901760
        %8191 = vmatmul.f32.gmra.mxu0 %v8190
        %v8192 = vpop.f32.mrf.mxu0
        %v8193 = vadd.f32 %v8032, %v8192
        %v8194 = vand.u32 %v304, 4294901760
        %8195 = vmatmul.f32.gmra.mxu0 %v8194
        %v8196 = vpop.f32.mrf.mxu0
        %v8197 = vadd.f32 %v8036, %v8196
        %v8198 = vand.u32 %v307, 4294901760
        %8199 = vmatmul.f32.gmra.mxu0 %v8198
        %v8200 = vpop.f32.mrf.mxu0
        %v8201 = vadd.f32 %v8040, %v8200
        %v8202 = vand.u32 %v310, 4294901760
        %8203 = vmatmul.f32.gmra.mxu0 %v8202
        %v8204 = vpop.f32.mrf.mxu0
        %v8205 = vadd.f32 %v8044, %v8204
        %v8206 = vand.u32 %v313, 4294901760
        %8207 = vmatmul.f32.gmra.mxu0 %v8206
        %v8208 = vpop.f32.mrf.mxu0
        %v8209 = vadd.f32 %v8048, %v8208
        %v8210 = vand.u32 %v316, 4294901760
        %8211 = vmatmul.f32.gmra.mxu0 %v8210
        %v8212 = vpop.f32.mrf.mxu0
        %v8213 = vadd.f32 %v8052, %v8212
        %v8214 = vand.u32 %v319, 4294901760
        %8215 = vmatmul.f32.gmra.mxu0 %v8214
        %v8216 = vpop.f32.mrf.mxu0
        %v8217 = vadd.f32 %v8056, %v8216
        %v8218 = vand.u32 %v322, 4294901760
        %8219 = vmatmul.f32.gmra.mxu0 %v8218
        %v8220 = vpop.f32.mrf.mxu0
        %v8221 = vadd.f32 %v8060, %v8220
        %v8222 = vand.u32 %v325, 4294901760
        %8223 = vmatmul.f32.gmra.mxu0 %v8222
        %v8224 = vpop.f32.mrf.mxu0
        %v8225 = vadd.f32 %v8064, %v8224
        %v8226 = vand.u32 %v328, 4294901760
        %8227 = vmatmul.f32.gmra.mxu0 %v8226
        %v8228 = vpop.f32.mrf.mxu0
        %v8229 = vadd.f32 %v8068, %v8228
        %v8230 = vand.u32 %v331, 4294901760
        %8231 = vmatmul.f32.gmra.mxu0 %v8230
        %v8232 = vpop.f32.mrf.mxu0
        %v8233 = vadd.f32 %v8072, %v8232
        %v8234 = vand.u32 %v334, 4294901760
        %8235 = vmatmul.f32.gmra.mxu0 %v8234
        %v8236 = vpop.f32.mrf.mxu0
        %v8237 = vadd.f32 %v8076, %v8236
        %v8238 = vand.u32 %v337, 4294901760
        %8239 = vmatmul.f32.gmra.mxu0 %v8238
        %v8240 = vpop.f32.mrf.mxu0
        %v8241 = vadd.f32 %v8080, %v8240
        %v8242 = vand.u32 %v340, 4294901760
        %8243 = vmatmul.f32.gmra.mxu0 %v8242
        %v8244 = vpop.f32.mrf.mxu0
        %v8245 = vadd.f32 %v8084, %v8244
        %v8246 = vand.u32 %v343, 4294901760
        %8247 = vmatmul.f32.gmra.mxu0 %v8246
        %v8248 = vpop.f32.mrf.mxu0
        %v8249 = vadd.f32 %v8088, %v8248
        %v8250 = vand.u32 %v346, 4294901760
        %8251 = vmatmul.f32.gmra.mxu0 %v8250
        %v8252 = vpop.f32.mrf.mxu0
        %v8253 = vadd.f32 %v8092, %v8252
        %v8254 = vand.u32 %v349, 4294901760
        %8255 = vmatmul.f32.gmra.mxu0 %v8254
        %v8256 = vpop.f32.mrf.mxu0
        %v8257 = vadd.f32 %v8096, %v8256
        %v8258 = vand.u32 %v352, 4294901760
        %8259 = vmatmul.f32.gmra.mxu0 %v8258
        %v8260 = vpop.f32.mrf.mxu0
        %v8261 = vadd.f32 %v8100, %v8260
        %v8262 = vand.u32 %v355, 4294901760
        %8263 = vmatmul.f32.gmra.mxu0 %v8262
        %v8264 = vpop.f32.mrf.mxu0
        %v8265 = vadd.f32 %v8104, %v8264
        %v8266 = vand.u32 %v358, 4294901760
        %8267 = vmatmul.f32.gmra.mxu0 %v8266
        %v8268 = vpop.f32.mrf.mxu0
        %v8269 = vadd.f32 %v8108, %v8268
        %v8270 = vand.u32 %v361, 4294901760
        %8271 = vmatmul.f32.gmra.mxu0 %v8270
        %v8272 = vpop.f32.mrf.mxu0
        %v8273 = vadd.f32 %v8112, %v8272
        %v8274 = vand.u32 %v364, 4294901760
        %8275 = vmatmul.f32.gmra.mxu0 %v8274
        %v8276 = vpop.f32.mrf.mxu0
        %v8277 = vadd.f32 %v8116, %v8276
        %8278 = vdwg.mxu0
        %v8279 = vmax.f32 %v4247, 0.0
        %v8280 = vmax.f32 %v8153, 0.0
        %v8281 = vmax.f32 %v4251, 0.0
        %v8282 = vmax.f32 %v8157, 0.0
        %v8283 = vmax.f32 %v4255, 0.0
        %v8284 = vmax.f32 %v8161, 0.0
        %v8285 = vmax.f32 %v4259, 0.0
        %v8286 = vmax.f32 %v8165, 0.0
        %v8287 = vmax.f32 %v4263, 0.0
        %v8288 = vmax.f32 %v8169, 0.0
        %v8289 = vmax.f32 %v4267, 0.0
        %v8290 = vmax.f32 %v8173, 0.0
        %v8291 = vmax.f32 %v4271, 0.0
        %v8292 = vmax.f32 %v8177, 0.0
        %v8293 = vmax.f32 %v4275, 0.0
        %v8294 = vmax.f32 %v8181, 0.0
        %v8295 = vmax.f32 %v4279, 0.0
        %v8296 = vmax.f32 %v8185, 0.0
        %v8297 = vmax.f32 %v4283, 0.0
        %v8298 = vmax.f32 %v8189, 0.0
        %v8299 = vmax.f32 %v4287, 0.0
        %v8300 = vmax.f32 %v8193, 0.0
        %v8301 = vmax.f32 %v4291, 0.0
        %v8302 = vmax.f32 %v8197, 0.0
        %v8303 = vmax.f32 %v4295, 0.0
        %v8304 = vmax.f32 %v8201, 0.0
        %v8305 = vmax.f32 %v4299, 0.0
        %v8306 = vmax.f32 %v8205, 0.0
        %v8307 = vmax.f32 %v4303, 0.0
        %v8308 = vmax.f32 %v8209, 0.0
        %v8309 = vmax.f32 %v4307, 0.0
        %v8310 = vmax.f32 %v8213, 0.0
        %v8311 = vmax.f32 %v4311, 0.0
        %v8312 = vmax.f32 %v8217, 0.0
        %v8313 = vmax.f32 %v4315, 0.0
        %v8314 = vmax.f32 %v8221, 0.0
        %v8315 = vmax.f32 %v4319, 0.0
        %v8316 = vmax.f32 %v8225, 0.0
        %v8317 = vmax.f32 %v4323, 0.0
        %v8318 = vmax.f32 %v8229, 0.0
        %v8319 = vmax.f32 %v4327, 0.0
        %v8320 = vmax.f32 %v8233, 0.0
        %v8321 = vmax.f32 %v4331, 0.0
        %v8322 = vmax.f32 %v8237, 0.0
        %v8323 = vmax.f32 %v4335, 0.0
        %v8324 = vmax.f32 %v8241, 0.0
        %v8325 = vmax.f32 %v4339, 0.0
        %v8326 = vmax.f32 %v8245, 0.0
        %v8327 = vmax.f32 %v4343, 0.0
        %v8328 = vmax.f32 %v8249, 0.0
        %v8329 = vmax.f32 %v4347, 0.0
        %v8330 = vmax.f32 %v8253, 0.0
        %v8331 = vmax.f32 %v4351, 0.0
        %v8332 = vmax.f32 %v8257, 0.0
        %v8333 = vmax.f32 %v4355, 0.0
        %v8334 = vmax.f32 %v8261, 0.0
        %v8335 = vmax.f32 %v4359, 0.0
        %v8336 = vmax.f32 %v8265, 0.0
        %v8337 = vmax.f32 %v4363, 0.0
        %v8338 = vmax.f32 %v8269, 0.0
        %v8339 = vmax.f32 %v4367, 0.0
        %v8340 = vmax.f32 %v8273, 0.0
        %v8341 = vmax.f32 %v4371, 0.0
        %v8342 = vmax.f32 %v8277, 0.0
        %v8343 = vld [vmem:[#allocation8] sm:$0xff]
        %v8344 = vld [vmem:[#allocation8 + $0x8] sm:$0xff]
        %v8345 = vld [vmem:[#allocation8 + $0x10] sm:$0xff]
        %v8346 = vld [vmem:[#allocation8 + $0x18] sm:$0xff]
        %v8347 = vld [vmem:[#allocation8 + $0x20] sm:$0xff]
        %v8348 = vld [vmem:[#allocation8 + $0x28] sm:$0xff]
        %v8349 = vld [vmem:[#allocation8 + $0x30] sm:$0xff]
        %v8350 = vld [vmem:[#allocation8 + $0x38] sm:$0xff]
        %v8351 = vld [vmem:[#allocation8 + $0x40] sm:$0xff]
        %v8352 = vld [vmem:[#allocation8 + $0x48] sm:$0xff]
        %v8353 = vld [vmem:[#allocation8 + $0x50] sm:$0xff]
        %v8354 = vld [vmem:[#allocation8 + $0x58] sm:$0xff]
        %v8355 = vld [vmem:[#allocation8 + $0x60] sm:$0xff]
        %v8356 = vld [vmem:[#allocation8 + $0x68] sm:$0xff]
        %v8357 = vld [vmem:[#allocation8 + $0x70] sm:$0xff]
        %v8358 = vld [vmem:[#allocation8 + $0x78] sm:$0xff]
        %v8359 = vld [vmem:[#allocation8 + $0x80] sm:$0xff]
        %v8360 = vld [vmem:[#allocation8 + $0x88] sm:$0xff]
        %v8361 = vld [vmem:[#allocation8 + $0x90] sm:$0xff]
        %v8362 = vld [vmem:[#allocation8 + $0x98] sm:$0xff]
        %v8363 = vld [vmem:[#allocation8 + $0xa0] sm:$0xff]
        %v8364 = vld [vmem:[#allocation8 + $0xa8] sm:$0xff]
        %v8365 = vld [vmem:[#allocation8 + $0xb0] sm:$0xff]
        %v8366 = vld [vmem:[#allocation8 + $0xb8] sm:$0xff]
        %v8367 = vld [vmem:[#allocation8 + $0xc0] sm:$0xff]
        %v8368 = vld [vmem:[#allocation8 + $0xc8] sm:$0xff]
        %v8369 = vld [vmem:[#allocation8 + $0xd0] sm:$0xff]
        %v8370 = vld [vmem:[#allocation8 + $0xd8] sm:$0xff]
        %v8371 = vld [vmem:[#allocation8 + $0xe0] sm:$0xff]
        %v8372 = vld [vmem:[#allocation8 + $0xe8] sm:$0xff]
        %v8373 = vld [vmem:[#allocation8 + $0xf0] sm:$0xff]
        %v8374 = vld [vmem:[#allocation8 + $0xf8] sm:$0xff]
        %v8375 = vand.u32 %v8358, 4294901760
        %8376 = vmatpush.msra.mxu0 %v8375
        %v8377 = vand.u32 %v8357, 4294901760
        %8378 = vmatpush.msra.mxu0 %v8377
        %v8379 = vand.u32 %v8356, 4294901760
        %8380 = vmatpush.msra.mxu0 %v8379
        %v8381 = vand.u32 %v8355, 4294901760
        %8382 = vmatpush.msra.mxu0 %v8381
        %v8383 = vand.u32 %v8354, 4294901760
        %8384 = vmatpush.msra.mxu0 %v8383
        %v8385 = vand.u32 %v8353, 4294901760
        %8386 = vmatpush.msra.mxu0 %v8385
        %v8387 = vand.u32 %v8352, 4294901760
        %8388 = vmatpush.msra.mxu0 %v8387
        %v8389 = vand.u32 %v8351, 4294901760
        %8390 = vmatpush.msra.mxu0 %v8389
        %v8391 = vand.u32 %v8350, 4294901760
        %8392 = vmatpush.msra.mxu0 %v8391
        %v8393 = vand.u32 %v8349, 4294901760
        %8394 = vmatpush.msra.mxu0 %v8393
        %v8395 = vand.u32 %v8348, 4294901760
        %8396 = vmatpush.msra.mxu0 %v8395
        %v8397 = vand.u32 %v8347, 4294901760
        %8398 = vmatpush.msra.mxu0 %v8397
        %v8399 = vand.u32 %v8346, 4294901760
        %8400 = vmatpush.msra.mxu0 %v8399
        %v8401 = vand.u32 %v8345, 4294901760
        %8402 = vmatpush.msra.mxu0 %v8401
        %v8403 = vand.u32 %v8344, 4294901760
        %8404 = vmatpush.msra.mxu0 %v8403
        %v8405 = vand.u32 %v8343, 4294901760
        %8406 = vmatpush.msra.mxu0 %v8405
        %v8407 = vand.u32 %v8279, 4294901760
        %v8408 = vsub.f32 %v8279, %v8407
        %v8409 = vand.u32 %v8408, 4294901760
        %v8410 = vsub.f32 %v8408, %v8409
        %v8411 = vand.u32 %v8410, 4294901760
        %8412 = vmatmul.f32.gmra.mxu0 %v8411
        %v8413 = vpop.f32.mrf.mxu0
        %v8414 = vadd.f32 0.0, %v8413
        %v8415 = vand.u32 %v8281, 4294901760
        %v8416 = vsub.f32 %v8281, %v8415
        %v8417 = vand.u32 %v8416, 4294901760
        %v8418 = vsub.f32 %v8416, %v8417
        %v8419 = vand.u32 %v8418, 4294901760
        %8420 = vmatmul.f32.gmra.mxu0 %v8419
        %v8421 = vpop.f32.mrf.mxu0
        %v8422 = vadd.f32 0.0, %v8421
        %v8423 = vand.u32 %v8283, 4294901760
        %v8424 = vsub.f32 %v8283, %v8423
        %v8425 = vand.u32 %v8424, 4294901760
        %v8426 = vsub.f32 %v8424, %v8425
        %v8427 = vand.u32 %v8426, 4294901760
        %8428 = vmatmul.f32.gmra.mxu0 %v8427
        %v8429 = vpop.f32.mrf.mxu0
        %v8430 = vadd.f32 0.0, %v8429
        %v8431 = vand.u32 %v8285, 4294901760
        %v8432 = vsub.f32 %v8285, %v8431
        %v8433 = vand.u32 %v8432, 4294901760
        %v8434 = vsub.f32 %v8432, %v8433
        %v8435 = vand.u32 %v8434, 4294901760
        %8436 = vmatmul.f32.gmra.mxu0 %v8435
        %v8437 = vpop.f32.mrf.mxu0
        %v8438 = vadd.f32 0.0, %v8437
        %v8439 = vand.u32 %v8287, 4294901760
        %v8440 = vsub.f32 %v8287, %v8439
        %v8441 = vand.u32 %v8440, 4294901760
        %v8442 = vsub.f32 %v8440, %v8441
        %v8443 = vand.u32 %v8442, 4294901760
        %8444 = vmatmul.f32.gmra.mxu0 %v8443
        %v8445 = vpop.f32.mrf.mxu0
        %v8446 = vadd.f32 0.0, %v8445
        %v8447 = vand.u32 %v8289, 4294901760
        %v8448 = vsub.f32 %v8289, %v8447
        %v8449 = vand.u32 %v8448, 4294901760
        %v8450 = vsub.f32 %v8448, %v8449
        %v8451 = vand.u32 %v8450, 4294901760
        %8452 = vmatmul.f32.gmra.mxu0 %v8451
        %v8453 = vpop.f32.mrf.mxu0
        %v8454 = vadd.f32 0.0, %v8453
        %v8455 = vand.u32 %v8291, 4294901760
        %v8456 = vsub.f32 %v8291, %v8455
        %v8457 = vand.u32 %v8456, 4294901760
        %v8458 = vsub.f32 %v8456, %v8457
        %v8459 = vand.u32 %v8458, 4294901760
        %8460 = vmatmul.f32.gmra.mxu0 %v8459
        %v8461 = vpop.f32.mrf.mxu0
        %v8462 = vadd.f32 0.0, %v8461
        %v8463 = vand.u32 %v8293, 4294901760
        %v8464 = vsub.f32 %v8293, %v8463
        %v8465 = vand.u32 %v8464, 4294901760
        %v8466 = vsub.f32 %v8464, %v8465
        %v8467 = vand.u32 %v8466, 4294901760
        %8468 = vmatmul.f32.gmra.mxu0 %v8467
        %v8469 = vpop.f32.mrf.mxu0
        %v8470 = vadd.f32 0.0, %v8469
        %v8471 = vand.u32 %v8295, 4294901760
        %v8472 = vsub.f32 %v8295, %v8471
        %v8473 = vand.u32 %v8472, 4294901760
        %v8474 = vsub.f32 %v8472, %v8473
        %v8475 = vand.u32 %v8474, 4294901760
        %8476 = vmatmul.f32.gmra.mxu0 %v8475
        %v8477 = vpop.f32.mrf.mxu0
        %v8478 = vadd.f32 0.0, %v8477
        %v8479 = vand.u32 %v8297, 4294901760
        %v8480 = vsub.f32 %v8297, %v8479
        %v8481 = vand.u32 %v8480, 4294901760
        %v8482 = vsub.f32 %v8480, %v8481
        %v8483 = vand.u32 %v8482, 4294901760
        %8484 = vmatmul.f32.gmra.mxu0 %v8483
        %v8485 = vpop.f32.mrf.mxu0
        %v8486 = vadd.f32 0.0, %v8485
        %v8487 = vand.u32 %v8299, 4294901760
        %v8488 = vsub.f32 %v8299, %v8487
        %v8489 = vand.u32 %v8488, 4294901760
        %v8490 = vsub.f32 %v8488, %v8489
        %v8491 = vand.u32 %v8490, 4294901760
        %8492 = vmatmul.f32.gmra.mxu0 %v8491
        %v8493 = vpop.f32.mrf.mxu0
        %v8494 = vadd.f32 0.0, %v8493
        %v8495 = vand.u32 %v8301, 4294901760
        %v8496 = vsub.f32 %v8301, %v8495
        %v8497 = vand.u32 %v8496, 4294901760
        %v8498 = vsub.f32 %v8496, %v8497
        %v8499 = vand.u32 %v8498, 4294901760
        %8500 = vmatmul.f32.gmra.mxu0 %v8499
        %v8501 = vpop.f32.mrf.mxu0
        %v8502 = vadd.f32 0.0, %v8501
        %v8503 = vand.u32 %v8303, 4294901760
        %v8504 = vsub.f32 %v8303, %v8503
        %v8505 = vand.u32 %v8504, 4294901760
        %v8506 = vsub.f32 %v8504, %v8505
        %v8507 = vand.u32 %v8506, 4294901760
        %8508 = vmatmul.f32.gmra.mxu0 %v8507
        %v8509 = vpop.f32.mrf.mxu0
        %v8510 = vadd.f32 0.0, %v8509
        %v8511 = vand.u32 %v8305, 4294901760
        %v8512 = vsub.f32 %v8305, %v8511
        %v8513 = vand.u32 %v8512, 4294901760
        %v8514 = vsub.f32 %v8512, %v8513
        %v8515 = vand.u32 %v8514, 4294901760
        %8516 = vmatmul.f32.gmra.mxu0 %v8515
        %v8517 = vpop.f32.mrf.mxu0
        %v8518 = vadd.f32 0.0, %v8517
        %v8519 = vand.u32 %v8307, 4294901760
        %v8520 = vsub.f32 %v8307, %v8519
        %v8521 = vand.u32 %v8520, 4294901760
        %v8522 = vsub.f32 %v8520, %v8521
        %v8523 = vand.u32 %v8522, 4294901760
        %8524 = vmatmul.f32.gmra.mxu0 %v8523
        %v8525 = vpop.f32.mrf.mxu0
        %v8526 = vadd.f32 0.0, %v8525
        %v8527 = vand.u32 %v8309, 4294901760
        %v8528 = vsub.f32 %v8309, %v8527
        %v8529 = vand.u32 %v8528, 4294901760
        %v8530 = vsub.f32 %v8528, %v8529
        %v8531 = vand.u32 %v8530, 4294901760
        %8532 = vmatmul.f32.gmra.mxu0 %v8531
        %v8533 = vpop.f32.mrf.mxu0
        %v8534 = vadd.f32 0.0, %v8533
        %v8535 = vand.u32 %v8311, 4294901760
        %v8536 = vsub.f32 %v8311, %v8535
        %v8537 = vand.u32 %v8536, 4294901760
        %v8538 = vsub.f32 %v8536, %v8537
        %v8539 = vand.u32 %v8538, 4294901760
        %8540 = vmatmul.f32.gmra.mxu0 %v8539
        %v8541 = vpop.f32.mrf.mxu0
        %v8542 = vadd.f32 0.0, %v8541
        %v8543 = vand.u32 %v8313, 4294901760
        %v8544 = vsub.f32 %v8313, %v8543
        %v8545 = vand.u32 %v8544, 4294901760
        %v8546 = vsub.f32 %v8544, %v8545
        %v8547 = vand.u32 %v8546, 4294901760
        %8548 = vmatmul.f32.gmra.mxu0 %v8547
        %v8549 = vpop.f32.mrf.mxu0
        %v8550 = vadd.f32 0.0, %v8549
        %v8551 = vand.u32 %v8315, 4294901760
        %v8552 = vsub.f32 %v8315, %v8551
        %v8553 = vand.u32 %v8552, 4294901760
        %v8554 = vsub.f32 %v8552, %v8553
        %v8555 = vand.u32 %v8554, 4294901760
        %8556 = vmatmul.f32.gmra.mxu0 %v8555
        %v8557 = vpop.f32.mrf.mxu0
        %v8558 = vadd.f32 0.0, %v8557
        %v8559 = vand.u32 %v8317, 4294901760
        %v8560 = vsub.f32 %v8317, %v8559
        %v8561 = vand.u32 %v8560, 4294901760
        %v8562 = vsub.f32 %v8560, %v8561
        %v8563 = vand.u32 %v8562, 4294901760
        %8564 = vmatmul.f32.gmra.mxu0 %v8563
        %v8565 = vpop.f32.mrf.mxu0
        %v8566 = vadd.f32 0.0, %v8565
        %v8567 = vand.u32 %v8319, 4294901760
        %v8568 = vsub.f32 %v8319, %v8567
        %v8569 = vand.u32 %v8568, 4294901760
        %v8570 = vsub.f32 %v8568, %v8569
        %v8571 = vand.u32 %v8570, 4294901760
        %8572 = vmatmul.f32.gmra.mxu0 %v8571
        %v8573 = vpop.f32.mrf.mxu0
        %v8574 = vadd.f32 0.0, %v8573
        %v8575 = vand.u32 %v8321, 4294901760
        %v8576 = vsub.f32 %v8321, %v8575
        %v8577 = vand.u32 %v8576, 4294901760
        %v8578 = vsub.f32 %v8576, %v8577
        %v8579 = vand.u32 %v8578, 4294901760
        %8580 = vmatmul.f32.gmra.mxu0 %v8579
        %v8581 = vpop.f32.mrf.mxu0
        %v8582 = vadd.f32 0.0, %v8581
        %v8583 = vand.u32 %v8323, 4294901760
        %v8584 = vsub.f32 %v8323, %v8583
        %v8585 = vand.u32 %v8584, 4294901760
        %v8586 = vsub.f32 %v8584, %v8585
        %v8587 = vand.u32 %v8586, 4294901760
        %8588 = vmatmul.f32.gmra.mxu0 %v8587
        %v8589 = vpop.f32.mrf.mxu0
        %v8590 = vadd.f32 0.0, %v8589
        %v8591 = vand.u32 %v8325, 4294901760
        %v8592 = vsub.f32 %v8325, %v8591
        %v8593 = vand.u32 %v8592, 4294901760
        %v8594 = vsub.f32 %v8592, %v8593
        %v8595 = vand.u32 %v8594, 4294901760
        %8596 = vmatmul.f32.gmra.mxu0 %v8595
        %v8597 = vpop.f32.mrf.mxu0
        %v8598 = vadd.f32 0.0, %v8597
        %v8599 = vand.u32 %v8327, 4294901760
        %v8600 = vsub.f32 %v8327, %v8599
        %v8601 = vand.u32 %v8600, 4294901760
        %v8602 = vsub.f32 %v8600, %v8601
        %v8603 = vand.u32 %v8602, 4294901760
        %8604 = vmatmul.f32.gmra.mxu0 %v8603
        %v8605 = vpop.f32.mrf.mxu0
        %v8606 = vadd.f32 0.0, %v8605
        %v8607 = vand.u32 %v8329, 4294901760
        %v8608 = vsub.f32 %v8329, %v8607
        %v8609 = vand.u32 %v8608, 4294901760
        %v8610 = vsub.f32 %v8608, %v8609
        %v8611 = vand.u32 %v8610, 4294901760
        %8612 = vmatmul.f32.gmra.mxu0 %v8611
        %v8613 = vpop.f32.mrf.mxu0
        %v8614 = vadd.f32 0.0, %v8613
        %v8615 = vand.u32 %v8331, 4294901760
        %v8616 = vsub.f32 %v8331, %v8615
        %v8617 = vand.u32 %v8616, 4294901760
        %v8618 = vsub.f32 %v8616, %v8617
        %v8619 = vand.u32 %v8618, 4294901760
        %8620 = vmatmul.f32.gmra.mxu0 %v8619
        %v8621 = vpop.f32.mrf.mxu0
        %v8622 = vadd.f32 0.0, %v8621
        %v8623 = vand.u32 %v8333, 4294901760
        %v8624 = vsub.f32 %v8333, %v8623
        %v8625 = vand.u32 %v8624, 4294901760
        %v8626 = vsub.f32 %v8624, %v8625
        %v8627 = vand.u32 %v8626, 4294901760
        %8628 = vmatmul.f32.gmra.mxu0 %v8627
        %v8629 = vpop.f32.mrf.mxu0
        %v8630 = vadd.f32 0.0, %v8629
        %v8631 = vand.u32 %v8335, 4294901760
        %v8632 = vsub.f32 %v8335, %v8631
        %v8633 = vand.u32 %v8632, 4294901760
        %v8634 = vsub.f32 %v8632, %v8633
        %v8635 = vand.u32 %v8634, 4294901760
        %8636 = vmatmul.f32.gmra.mxu0 %v8635
        %v8637 = vpop.f32.mrf.mxu0
        %v8638 = vadd.f32 0.0, %v8637
        %v8639 = vand.u32 %v8337, 4294901760
        %v8640 = vsub.f32 %v8337, %v8639
        %v8641 = vand.u32 %v8640, 4294901760
        %v8642 = vsub.f32 %v8640, %v8641
        %v8643 = vand.u32 %v8642, 4294901760
        %8644 = vmatmul.f32.gmra.mxu0 %v8643
        %v8645 = vpop.f32.mrf.mxu0
        %v8646 = vadd.f32 0.0, %v8645
        %v8647 = vand.u32 %v8339, 4294901760
        %v8648 = vsub.f32 %v8339, %v8647
        %v8649 = vand.u32 %v8648, 4294901760
        %v8650 = vsub.f32 %v8648, %v8649
        %v8651 = vand.u32 %v8650, 4294901760
        %8652 = vmatmul.f32.gmra.mxu0 %v8651
        %v8653 = vpop.f32.mrf.mxu0
        %v8654 = vadd.f32 0.0, %v8653
        %v8655 = vand.u32 %v8341, 4294901760
        %v8656 = vsub.f32 %v8341, %v8655
        %v8657 = vand.u32 %v8656, 4294901760
        %v8658 = vsub.f32 %v8656, %v8657
        %v8659 = vand.u32 %v8658, 4294901760
        %8660 = vmatmul.f32.gmra.mxu0 %v8659
        %v8661 = vpop.f32.mrf.mxu0
        %v8662 = vadd.f32 0.0, %v8661
        %8663 = vdwg.mxu0
        %v8664 = vand.u32 %v8358, 4294901760
        %v8665 = vsub.f32 %v8358, %v8664
        %v8666 = vand.u32 %v8665, 4294901760
        %v8667 = vsub.f32 %v8665, %v8666
        %v8668 = vand.u32 %v8667, 4294901760
        %8669 = vmatpush.msra.mxu0 %v8668
        %v8670 = vand.u32 %v8357, 4294901760
        %v8671 = vsub.f32 %v8357, %v8670
        %v8672 = vand.u32 %v8671, 4294901760
        %v8673 = vsub.f32 %v8671, %v8672
        %v8674 = vand.u32 %v8673, 4294901760
        %8675 = vmatpush.msra.mxu0 %v8674
        %v8676 = vand.u32 %v8356, 4294901760
        %v8677 = vsub.f32 %v8356, %v8676
        %v8678 = vand.u32 %v8677, 4294901760
        %v8679 = vsub.f32 %v8677, %v8678
        %v8680 = vand.u32 %v8679, 4294901760
        %8681 = vmatpush.msra.mxu0 %v8680
        %v8682 = vand.u32 %v8355, 4294901760
        %v8683 = vsub.f32 %v8355, %v8682
        %v8684 = vand.u32 %v8683, 4294901760
        %v8685 = vsub.f32 %v8683, %v8684
        %v8686 = vand.u32 %v8685, 4294901760
        %8687 = vmatpush.msra.mxu0 %v8686
        %v8688 = vand.u32 %v8354, 4294901760
        %v8689 = vsub.f32 %v8354, %v8688
        %v8690 = vand.u32 %v8689, 4294901760
        %v8691 = vsub.f32 %v8689, %v8690
        %v8692 = vand.u32 %v8691, 4294901760
        %8693 = vmatpush.msra.mxu0 %v8692
        %v8694 = vand.u32 %v8353, 4294901760
        %v8695 = vsub.f32 %v8353, %v8694
        %v8696 = vand.u32 %v8695, 4294901760
        %v8697 = vsub.f32 %v8695, %v8696
        %v8698 = vand.u32 %v8697, 4294901760
        %8699 = vmatpush.msra.mxu0 %v8698
        %v8700 = vand.u32 %v8352, 4294901760
        %v8701 = vsub.f32 %v8352, %v8700
        %v8702 = vand.u32 %v8701, 4294901760
        %v8703 = vsub.f32 %v8701, %v8702
        %v8704 = vand.u32 %v8703, 4294901760
        %8705 = vmatpush.msra.mxu0 %v8704
        %v8706 = vand.u32 %v8351, 4294901760
        %v8707 = vsub.f32 %v8351, %v8706
        %v8708 = vand.u32 %v8707, 4294901760
        %v8709 = vsub.f32 %v8707, %v8708
        %v8710 = vand.u32 %v8709, 4294901760
        %8711 = vmatpush.msra.mxu0 %v8710
        %v8712 = vand.u32 %v8350, 4294901760
        %v8713 = vsub.f32 %v8350, %v8712
        %v8714 = vand.u32 %v8713, 4294901760
        %v8715 = vsub.f32 %v8713, %v8714
        %v8716 = vand.u32 %v8715, 4294901760
        %8717 = vmatpush.msra.mxu0 %v8716
        %v8718 = vand.u32 %v8349, 4294901760
        %v8719 = vsub.f32 %v8349, %v8718
        %v8720 = vand.u32 %v8719, 4294901760
        %v8721 = vsub.f32 %v8719, %v8720
        %v8722 = vand.u32 %v8721, 4294901760
        %8723 = vmatpush.msra.mxu0 %v8722
        %v8724 = vand.u32 %v8348, 4294901760
        %v8725 = vsub.f32 %v8348, %v8724
        %v8726 = vand.u32 %v8725, 4294901760
        %v8727 = vsub.f32 %v8725, %v8726
        %v8728 = vand.u32 %v8727, 4294901760
        %8729 = vmatpush.msra.mxu0 %v8728
        %v8730 = vand.u32 %v8347, 4294901760
        %v8731 = vsub.f32 %v8347, %v8730
        %v8732 = vand.u32 %v8731, 4294901760
        %v8733 = vsub.f32 %v8731, %v8732
        %v8734 = vand.u32 %v8733, 4294901760
        %8735 = vmatpush.msra.mxu0 %v8734
        %v8736 = vand.u32 %v8346, 4294901760
        %v8737 = vsub.f32 %v8346, %v8736
        %v8738 = vand.u32 %v8737, 4294901760
        %v8739 = vsub.f32 %v8737, %v8738
        %v8740 = vand.u32 %v8739, 4294901760
        %8741 = vmatpush.msra.mxu0 %v8740
        %v8742 = vand.u32 %v8345, 4294901760
        %v8743 = vsub.f32 %v8345, %v8742
        %v8744 = vand.u32 %v8743, 4294901760
        %v8745 = vsub.f32 %v8743, %v8744
        %v8746 = vand.u32 %v8745, 4294901760
        %8747 = vmatpush.msra.mxu0 %v8746
        %v8748 = vand.u32 %v8344, 4294901760
        %v8749 = vsub.f32 %v8344, %v8748
        %v8750 = vand.u32 %v8749, 4294901760
        %v8751 = vsub.f32 %v8749, %v8750
        %v8752 = vand.u32 %v8751, 4294901760
        %8753 = vmatpush.msra.mxu0 %v8752
        %v8754 = vand.u32 %v8343, 4294901760
        %v8755 = vsub.f32 %v8343, %v8754
        %v8756 = vand.u32 %v8755, 4294901760
        %v8757 = vsub.f32 %v8755, %v8756
        %v8758 = vand.u32 %v8757, 4294901760
        %8759 = vmatpush.msra.mxu0 %v8758
        %v8760 = vand.u32 %v8279, 4294901760
        %8761 = vmatmul.f32.gmra.mxu0 %v8760
        %v8762 = vpop.f32.mrf.mxu0
        %v8763 = vadd.f32 %v8414, %v8762
        %v8764 = vand.u32 %v8281, 4294901760
        %8765 = vmatmul.f32.gmra.mxu0 %v8764
        %v8766 = vpop.f32.mrf.mxu0
        %v8767 = vadd.f32 %v8422, %v8766
        %v8768 = vand.u32 %v8283, 4294901760
        %8769 = vmatmul.f32.gmra.mxu0 %v8768
        %v8770 = vpop.f32.mrf.mxu0
        %v8771 = vadd.f32 %v8430, %v8770
        %v8772 = vand.u32 %v8285, 4294901760
        %8773 = vmatmul.f32.gmra.mxu0 %v8772
        %v8774 = vpop.f32.mrf.mxu0
        %v8775 = vadd.f32 %v8438, %v8774
        %v8776 = vand.u32 %v8287, 4294901760
        %8777 = vmatmul.f32.gmra.mxu0 %v8776
        %v8778 = vpop.f32.mrf.mxu0
        %v8779 = vadd.f32 %v8446, %v8778
        %v8780 = vand.u32 %v8289, 4294901760
        %8781 = vmatmul.f32.gmra.mxu0 %v8780
        %v8782 = vpop.f32.mrf.mxu0
        %v8783 = vadd.f32 %v8454, %v8782
        %v8784 = vand.u32 %v8291, 4294901760
        %8785 = vmatmul.f32.gmra.mxu0 %v8784
        %v8786 = vpop.f32.mrf.mxu0
        %v8787 = vadd.f32 %v8462, %v8786
        %v8788 = vand.u32 %v8293, 4294901760
        %8789 = vmatmul.f32.gmra.mxu0 %v8788
        %v8790 = vpop.f32.mrf.mxu0
        %v8791 = vadd.f32 %v8470, %v8790
        %v8792 = vand.u32 %v8295, 4294901760
        %8793 = vmatmul.f32.gmra.mxu0 %v8792
        %v8794 = vpop.f32.mrf.mxu0
        %v8795 = vadd.f32 %v8478, %v8794
        %v8796 = vand.u32 %v8297, 4294901760
        %8797 = vmatmul.f32.gmra.mxu0 %v8796
        %v8798 = vpop.f32.mrf.mxu0
        %v8799 = vadd.f32 %v8486, %v8798
        %v8800 = vand.u32 %v8299, 4294901760
        %8801 = vmatmul.f32.gmra.mxu0 %v8800
        %v8802 = vpop.f32.mrf.mxu0
        %v8803 = vadd.f32 %v8494, %v8802
        %v8804 = vand.u32 %v8301, 4294901760
        %8805 = vmatmul.f32.gmra.mxu0 %v8804
        %v8806 = vpop.f32.mrf.mxu0
        %v8807 = vadd.f32 %v8502, %v8806
        %v8808 = vand.u32 %v8303, 4294901760
        %8809 = vmatmul.f32.gmra.mxu0 %v8808
        %v8810 = vpop.f32.mrf.mxu0
        %v8811 = vadd.f32 %v8510, %v8810
        %v8812 = vand.u32 %v8305, 4294901760
        %8813 = vmatmul.f32.gmra.mxu0 %v8812
        %v8814 = vpop.f32.mrf.mxu0
        %v8815 = vadd.f32 %v8518, %v8814
        %v8816 = vand.u32 %v8307, 4294901760
        %8817 = vmatmul.f32.gmra.mxu0 %v8816
        %v8818 = vpop.f32.mrf.mxu0
        %v8819 = vadd.f32 %v8526, %v8818
        %v8820 = vand.u32 %v8309, 4294901760
        %8821 = vmatmul.f32.gmra.mxu0 %v8820
        %v8822 = vpop.f32.mrf.mxu0
        %v8823 = vadd.f32 %v8534, %v8822
        %v8824 = vand.u32 %v8311, 4294901760
        %8825 = vmatmul.f32.gmra.mxu0 %v8824
        %v8826 = vpop.f32.mrf.mxu0
        %v8827 = vadd.f32 %v8542, %v8826
        %v8828 = vand.u32 %v8313, 4294901760
        %8829 = vmatmul.f32.gmra.mxu0 %v8828
        %v8830 = vpop.f32.mrf.mxu0
        %v8831 = vadd.f32 %v8550, %v8830
        %v8832 = vand.u32 %v8315, 4294901760
        %8833 = vmatmul.f32.gmra.mxu0 %v8832
        %v8834 = vpop.f32.mrf.mxu0
        %v8835 = vadd.f32 %v8558, %v8834
        %v8836 = vand.u32 %v8317, 4294901760
        %8837 = vmatmul.f32.gmra.mxu0 %v8836
        %v8838 = vpop.f32.mrf.mxu0
        %v8839 = vadd.f32 %v8566, %v8838
        %v8840 = vand.u32 %v8319, 4294901760
        %8841 = vmatmul.f32.gmra.mxu0 %v8840
        %v8842 = vpop.f32.mrf.mxu0
        %v8843 = vadd.f32 %v8574, %v8842
        %v8844 = vand.u32 %v8321, 4294901760
        %8845 = vmatmul.f32.gmra.mxu0 %v8844
        %v8846 = vpop.f32.mrf.mxu0
        %v8847 = vadd.f32 %v8582, %v8846
        %v8848 = vand.u32 %v8323, 4294901760
        %8849 = vmatmul.f32.gmra.mxu0 %v8848
        %v8850 = vpop.f32.mrf.mxu0
        %v8851 = vadd.f32 %v8590, %v8850
        %v8852 = vand.u32 %v8325, 4294901760
        %8853 = vmatmul.f32.gmra.mxu0 %v8852
        %v8854 = vpop.f32.mrf.mxu0
        %v8855 = vadd.f32 %v8598, %v8854
        %v8856 = vand.u32 %v8327, 4294901760
        %8857 = vmatmul.f32.gmra.mxu0 %v8856
        %v8858 = vpop.f32.mrf.mxu0
        %v8859 = vadd.f32 %v8606, %v8858
        %v8860 = vand.u32 %v8329, 4294901760
        %8861 = vmatmul.f32.gmra.mxu0 %v8860
        %v8862 = vpop.f32.mrf.mxu0
        %v8863 = vadd.f32 %v8614, %v8862
        %v8864 = vand.u32 %v8331, 4294901760
        %8865 = vmatmul.f32.gmra.mxu0 %v8864
        %v8866 = vpop.f32.mrf.mxu0
        %v8867 = vadd.f32 %v8622, %v8866
        %v8868 = vand.u32 %v8333, 4294901760
        %8869 = vmatmul.f32.gmra.mxu0 %v8868
        %v8870 = vpop.f32.mrf.mxu0
        %v8871 = vadd.f32 %v8630, %v8870
        %v8872 = vand.u32 %v8335, 4294901760
        %8873 = vmatmul.f32.gmra.mxu0 %v8872
        %v8874 = vpop.f32.mrf.mxu0
        %v8875 = vadd.f32 %v8638, %v8874
        %v8876 = vand.u32 %v8337, 4294901760
        %8877 = vmatmul.f32.gmra.mxu0 %v8876
        %v8878 = vpop.f32.mrf.mxu0
        %v8879 = vadd.f32 %v8646, %v8878
        %v8880 = vand.u32 %v8339, 4294901760
        %8881 = vmatmul.f32.gmra.mxu0 %v8880
        %v8882 = vpop.f32.mrf.mxu0
        %v8883 = vadd.f32 %v8654, %v8882
        %v8884 = vand.u32 %v8341, 4294901760
        %8885 = vmatmul.f32.gmra.mxu0 %v8884
        %v8886 = vpop.f32.mrf.mxu0
        %v8887 = vadd.f32 %v8662, %v8886
        %8888 = vdwg.mxu0
        %v8889 = vand.u32 %v8358, 4294901760
        %v8890 = vsub.f32 %v8358, %v8889
        %8891 = vmatpush.msra.mxu0 %v8890
        %v8892 = vand.u32 %v8357, 4294901760
        %v8893 = vsub.f32 %v8357, %v8892
        %8894 = vmatpush.msra.mxu0 %v8893
        %v8895 = vand.u32 %v8356, 4294901760
        %v8896 = vsub.f32 %v8356, %v8895
        %8897 = vmatpush.msra.mxu0 %v8896
        %v8898 = vand.u32 %v8355, 4294901760
        %v8899 = vsub.f32 %v8355, %v8898
        %8900 = vmatpush.msra.mxu0 %v8899
        %v8901 = vand.u32 %v8354, 4294901760
        %v8902 = vsub.f32 %v8354, %v8901
        %8903 = vmatpush.msra.mxu0 %v8902
        %v8904 = vand.u32 %v8353, 4294901760
        %v8905 = vsub.f32 %v8353, %v8904
        %8906 = vmatpush.msra.mxu0 %v8905
        %v8907 = vand.u32 %v8352, 4294901760
        %v8908 = vsub.f32 %v8352, %v8907
        %8909 = vmatpush.msra.mxu0 %v8908
        %v8910 = vand.u32 %v8351, 4294901760
        %v8911 = vsub.f32 %v8351, %v8910
        %8912 = vmatpush.msra.mxu0 %v8911
        %v8913 = vand.u32 %v8350, 4294901760
        %v8914 = vsub.f32 %v8350, %v8913
        %8915 = vmatpush.msra.mxu0 %v8914
        %v8916 = vand.u32 %v8349, 4294901760
        %v8917 = vsub.f32 %v8349, %v8916
        %8918 = vmatpush.msra.mxu0 %v8917
        %v8919 = vand.u32 %v8348, 4294901760
        %v8920 = vsub.f32 %v8348, %v8919
        %8921 = vmatpush.msra.mxu0 %v8920
        %v8922 = vand.u32 %v8347, 4294901760
        %v8923 = vsub.f32 %v8347, %v8922
        %8924 = vmatpush.msra.mxu0 %v8923
        %v8925 = vand.u32 %v8346, 4294901760
        %v8926 = vsub.f32 %v8346, %v8925
        %8927 = vmatpush.msra.mxu0 %v8926
        %v8928 = vand.u32 %v8345, 4294901760
        %v8929 = vsub.f32 %v8345, %v8928
        %8930 = vmatpush.msra.mxu0 %v8929
        %v8931 = vand.u32 %v8344, 4294901760
        %v8932 = vsub.f32 %v8344, %v8931
        %8933 = vmatpush.msra.mxu0 %v8932
        %v8934 = vand.u32 %v8343, 4294901760
        %v8935 = vsub.f32 %v8343, %v8934
        %8936 = vmatpush.msra.mxu0 %v8935
        %v8937 = vand.u32 %v8279, 4294901760
        %v8938 = vsub.f32 %v8279, %v8937
        %8939 = vmatmul.f32.gmra.mxu0 %v8938
        %v8940 = vpop.f32.mrf.mxu0
        %v8941 = vadd.f32 %v8763, %v8940
        %v8942 = vand.u32 %v8281, 4294901760
        %v8943 = vsub.f32 %v8281, %v8942
        %8944 = vmatmul.f32.gmra.mxu0 %v8943
        %v8945 = vpop.f32.mrf.mxu0
        %v8946 = vadd.f32 %v8767, %v8945
        %v8947 = vand.u32 %v8283, 4294901760
        %v8948 = vsub.f32 %v8283, %v8947
        %8949 = vmatmul.f32.gmra.mxu0 %v8948
        %v8950 = vpop.f32.mrf.mxu0
        %v8951 = vadd.f32 %v8771, %v8950
        %v8952 = vand.u32 %v8285, 4294901760
        %v8953 = vsub.f32 %v8285, %v8952
        %8954 = vmatmul.f32.gmra.mxu0 %v8953
        %v8955 = vpop.f32.mrf.mxu0
        %v8956 = vadd.f32 %v8775, %v8955
        %v8957 = vand.u32 %v8287, 4294901760
        %v8958 = vsub.f32 %v8287, %v8957
        %8959 = vmatmul.f32.gmra.mxu0 %v8958
        %v8960 = vpop.f32.mrf.mxu0
        %v8961 = vadd.f32 %v8779, %v8960
        %v8962 = vand.u32 %v8289, 4294901760
        %v8963 = vsub.f32 %v8289, %v8962
        %8964 = vmatmul.f32.gmra.mxu0 %v8963
        %v8965 = vpop.f32.mrf.mxu0
        %v8966 = vadd.f32 %v8783, %v8965
        %v8967 = vand.u32 %v8291, 4294901760
        %v8968 = vsub.f32 %v8291, %v8967
        %8969 = vmatmul.f32.gmra.mxu0 %v8968
        %v8970 = vpop.f32.mrf.mxu0
        %v8971 = vadd.f32 %v8787, %v8970
        %v8972 = vand.u32 %v8293, 4294901760
        %v8973 = vsub.f32 %v8293, %v8972
        %8974 = vmatmul.f32.gmra.mxu0 %v8973
        %v8975 = vpop.f32.mrf.mxu0
        %v8976 = vadd.f32 %v8791, %v8975
        %v8977 = vand.u32 %v8295, 4294901760
        %v8978 = vsub.f32 %v8295, %v8977
        %8979 = vmatmul.f32.gmra.mxu0 %v8978
        %v8980 = vpop.f32.mrf.mxu0
        %v8981 = vadd.f32 %v8795, %v8980
        %v8982 = vand.u32 %v8297, 4294901760
        %v8983 = vsub.f32 %v8297, %v8982
        %8984 = vmatmul.f32.gmra.mxu0 %v8983
        %v8985 = vpop.f32.mrf.mxu0
        %v8986 = vadd.f32 %v8799, %v8985
        %v8987 = vand.u32 %v8299, 4294901760
        %v8988 = vsub.f32 %v8299, %v8987
        %8989 = vmatmul.f32.gmra.mxu0 %v8988
        %v8990 = vpop.f32.mrf.mxu0
        %v8991 = vadd.f32 %v8803, %v8990
        %v8992 = vand.u32 %v8301, 4294901760
        %v8993 = vsub.f32 %v8301, %v8992
        %8994 = vmatmul.f32.gmra.mxu0 %v8993
        %v8995 = vpop.f32.mrf.mxu0
        %v8996 = vadd.f32 %v8807, %v8995
        %v8997 = vand.u32 %v8303, 4294901760
        %v8998 = vsub.f32 %v8303, %v8997
        %8999 = vmatmul.f32.gmra.mxu0 %v8998
        %v9000 = vpop.f32.mrf.mxu0
        %v9001 = vadd.f32 %v8811, %v9000
        %v9002 = vand.u32 %v8305, 4294901760
        %v9003 = vsub.f32 %v8305, %v9002
        %9004 = vmatmul.f32.gmra.mxu0 %v9003
        %v9005 = vpop.f32.mrf.mxu0
        %v9006 = vadd.f32 %v8815, %v9005
        %v9007 = vand.u32 %v8307, 4294901760
        %v9008 = vsub.f32 %v8307, %v9007
        %9009 = vmatmul.f32.gmra.mxu0 %v9008
        %v9010 = vpop.f32.mrf.mxu0
        %v9011 = vadd.f32 %v8819, %v9010
        %v9012 = vand.u32 %v8309, 4294901760
        %v9013 = vsub.f32 %v8309, %v9012
        %9014 = vmatmul.f32.gmra.mxu0 %v9013
        %v9015 = vpop.f32.mrf.mxu0
        %v9016 = vadd.f32 %v8823, %v9015
        %v9017 = vand.u32 %v8311, 4294901760
        %v9018 = vsub.f32 %v8311, %v9017
        %9019 = vmatmul.f32.gmra.mxu0 %v9018
        %v9020 = vpop.f32.mrf.mxu0
        %v9021 = vadd.f32 %v8827, %v9020
        %v9022 = vand.u32 %v8313, 4294901760
        %v9023 = vsub.f32 %v8313, %v9022
        %9024 = vmatmul.f32.gmra.mxu0 %v9023
        %v9025 = vpop.f32.mrf.mxu0
        %v9026 = vadd.f32 %v8831, %v9025
        %v9027 = vand.u32 %v8315, 4294901760
        %v9028 = vsub.f32 %v8315, %v9027
        %9029 = vmatmul.f32.gmra.mxu0 %v9028
        %v9030 = vpop.f32.mrf.mxu0
        %v9031 = vadd.f32 %v8835, %v9030
        %v9032 = vand.u32 %v8317, 4294901760
        %v9033 = vsub.f32 %v8317, %v9032
        %9034 = vmatmul.f32.gmra.mxu0 %v9033
        %v9035 = vpop.f32.mrf.mxu0
        %v9036 = vadd.f32 %v8839, %v9035
        %v9037 = vand.u32 %v8319, 4294901760
        %v9038 = vsub.f32 %v8319, %v9037
        %9039 = vmatmul.f32.gmra.mxu0 %v9038
        %v9040 = vpop.f32.mrf.mxu0
        %v9041 = vadd.f32 %v8843, %v9040
        %v9042 = vand.u32 %v8321, 4294901760
        %v9043 = vsub.f32 %v8321, %v9042
        %9044 = vmatmul.f32.gmra.mxu0 %v9043
        %v9045 = vpop.f32.mrf.mxu0
        %v9046 = vadd.f32 %v8847, %v9045
        %v9047 = vand.u32 %v8323, 4294901760
        %v9048 = vsub.f32 %v8323, %v9047
        %9049 = vmatmul.f32.gmra.mxu0 %v9048
        %v9050 = vpop.f32.mrf.mxu0
        %v9051 = vadd.f32 %v8851, %v9050
        %v9052 = vand.u32 %v8325, 4294901760
        %v9053 = vsub.f32 %v8325, %v9052
        %9054 = vmatmul.f32.gmra.mxu0 %v9053
        %v9055 = vpop.f32.mrf.mxu0
        %v9056 = vadd.f32 %v8855, %v9055
        %v9057 = vand.u32 %v8327, 4294901760
        %v9058 = vsub.f32 %v8327, %v9057
        %9059 = vmatmul.f32.gmra.mxu0 %v9058
        %v9060 = vpop.f32.mrf.mxu0
        %v9061 = vadd.f32 %v8859, %v9060
        %v9062 = vand.u32 %v8329, 4294901760
        %v9063 = vsub.f32 %v8329, %v9062
        %9064 = vmatmul.f32.gmra.mxu0 %v9063
        %v9065 = vpop.f32.mrf.mxu0
        %v9066 = vadd.f32 %v8863, %v9065
        %v9067 = vand.u32 %v8331, 4294901760
        %v9068 = vsub.f32 %v8331, %v9067
        %9069 = vmatmul.f32.gmra.mxu0 %v9068
        %v9070 = vpop.f32.mrf.mxu0
        %v9071 = vadd.f32 %v8867, %v9070
        %v9072 = vand.u32 %v8333, 4294901760
        %v9073 = vsub.f32 %v8333, %v9072
        %9074 = vmatmul.f32.gmra.mxu0 %v9073
        %v9075 = vpop.f32.mrf.mxu0
        %v9076 = vadd.f32 %v8871, %v9075
        %v9077 = vand.u32 %v8335, 4294901760
        %v9078 = vsub.f32 %v8335, %v9077
        %9079 = vmatmul.f32.gmra.mxu0 %v9078
        %v9080 = vpop.f32.mrf.mxu0
        %v9081 = vadd.f32 %v8875, %v9080
        %v9082 = vand.u32 %v8337, 4294901760
        %v9083 = vsub.f32 %v8337, %v9082
        %9084 = vmatmul.f32.gmra.mxu0 %v9083
        %v9085 = vpop.f32.mrf.mxu0
        %v9086 = vadd.f32 %v8879, %v9085
        %v9087 = vand.u32 %v8339, 4294901760
        %v9088 = vsub.f32 %v8339, %v9087
        %9089 = vmatmul.f32.gmra.mxu0 %v9088
        %v9090 = vpop.f32.mrf.mxu0
        %v9091 = vadd.f32 %v8883, %v9090
        %v9092 = vand.u32 %v8341, 4294901760
        %v9093 = vsub.f32 %v8341, %v9092
        %9094 = vmatmul.f32.gmra.mxu0 %v9093
        %v9095 = vpop.f32.mrf.mxu0
        %v9096 = vadd.f32 %v8887, %v9095
        %9097 = vdwg.mxu0
        %v9098 = vand.u32 %v8358, 4294901760
        %9099 = vmatpush.msra.mxu0 %v9098
        %v9100 = vand.u32 %v8357, 4294901760
        %9101 = vmatpush.msra.mxu0 %v9100
        %v9102 = vand.u32 %v8356, 4294901760
        %9103 = vmatpush.msra.mxu0 %v9102
        %v9104 = vand.u32 %v8355, 4294901760
        %9105 = vmatpush.msra.mxu0 %v9104
        %v9106 = vand.u32 %v8354, 4294901760
        %9107 = vmatpush.msra.mxu0 %v9106
        %v9108 = vand.u32 %v8353, 4294901760
        %9109 = vmatpush.msra.mxu0 %v9108
        %v9110 = vand.u32 %v8352, 4294901760
        %9111 = vmatpush.msra.mxu0 %v9110
        %v9112 = vand.u32 %v8351, 4294901760
        %9113 = vmatpush.msra.mxu0 %v9112
        %v9114 = vand.u32 %v8350, 4294901760
        %9115 = vmatpush.msra.mxu0 %v9114
        %v9116 = vand.u32 %v8349, 4294901760
        %9117 = vmatpush.msra.mxu0 %v9116
        %v9118 = vand.u32 %v8348, 4294901760
        %9119 = vmatpush.msra.mxu0 %v9118
        %v9120 = vand.u32 %v8347, 4294901760
        %9121 = vmatpush.msra.mxu0 %v9120
        %v9122 = vand.u32 %v8346, 4294901760
        %9123 = vmatpush.msra.mxu0 %v9122
        %v9124 = vand.u32 %v8345, 4294901760
        %9125 = vmatpush.msra.mxu0 %v9124
        %v9126 = vand.u32 %v8344, 4294901760
        %9127 = vmatpush.msra.mxu0 %v9126
        %v9128 = vand.u32 %v8343, 4294901760
        %9129 = vmatpush.msra.mxu0 %v9128
        %v9130 = vand.u32 %v8279, 4294901760
        %v9131 = vsub.f32 %v8279, %v9130
        %v9132 = vand.u32 %v9131, 4294901760
        %9133 = vmatmul.f32.gmra.mxu0 %v9132
        %v9134 = vpop.f32.mrf.mxu0
        %v9135 = vadd.f32 %v8941, %v9134
        %v9136 = vand.u32 %v8281, 4294901760
        %v9137 = vsub.f32 %v8281, %v9136
        %v9138 = vand.u32 %v9137, 4294901760
        %9139 = vmatmul.f32.gmra.mxu0 %v9138
        %v9140 = vpop.f32.mrf.mxu0
        %v9141 = vadd.f32 %v8946, %v9140
        %v9142 = vand.u32 %v8283, 4294901760
        %v9143 = vsub.f32 %v8283, %v9142
        %v9144 = vand.u32 %v9143, 4294901760
        %9145 = vmatmul.f32.gmra.mxu0 %v9144
        %v9146 = vpop.f32.mrf.mxu0
        %v9147 = vadd.f32 %v8951, %v9146
        %v9148 = vand.u32 %v8285, 4294901760
        %v9149 = vsub.f32 %v8285, %v9148
        %v9150 = vand.u32 %v9149, 4294901760
        %9151 = vmatmul.f32.gmra.mxu0 %v9150
        %v9152 = vpop.f32.mrf.mxu0
        %v9153 = vadd.f32 %v8956, %v9152
        %v9154 = vand.u32 %v8287, 4294901760
        %v9155 = vsub.f32 %v8287, %v9154
        %v9156 = vand.u32 %v9155, 4294901760
        %9157 = vmatmul.f32.gmra.mxu0 %v9156
        %v9158 = vpop.f32.mrf.mxu0
        %v9159 = vadd.f32 %v8961, %v9158
        %v9160 = vand.u32 %v8289, 4294901760
        %v9161 = vsub.f32 %v8289, %v9160
        %v9162 = vand.u32 %v9161, 4294901760
        %9163 = vmatmul.f32.gmra.mxu0 %v9162
        %v9164 = vpop.f32.mrf.mxu0
        %v9165 = vadd.f32 %v8966, %v9164
        %v9166 = vand.u32 %v8291, 4294901760
        %v9167 = vsub.f32 %v8291, %v9166
        %v9168 = vand.u32 %v9167, 4294901760
        %9169 = vmatmul.f32.gmra.mxu0 %v9168
        %v9170 = vpop.f32.mrf.mxu0
        %v9171 = vadd.f32 %v8971, %v9170
        %v9172 = vand.u32 %v8293, 4294901760
        %v9173 = vsub.f32 %v8293, %v9172
        %v9174 = vand.u32 %v9173, 4294901760
        %9175 = vmatmul.f32.gmra.mxu0 %v9174
        %v9176 = vpop.f32.mrf.mxu0
        %v9177 = vadd.f32 %v8976, %v9176
        %v9178 = vand.u32 %v8295, 4294901760
        %v9179 = vsub.f32 %v8295, %v9178
        %v9180 = vand.u32 %v9179, 4294901760
        %9181 = vmatmul.f32.gmra.mxu0 %v9180
        %v9182 = vpop.f32.mrf.mxu0
        %v9183 = vadd.f32 %v8981, %v9182
        %v9184 = vand.u32 %v8297, 4294901760
        %v9185 = vsub.f32 %v8297, %v9184
        %v9186 = vand.u32 %v9185, 4294901760
        %9187 = vmatmul.f32.gmra.mxu0 %v9186
        %v9188 = vpop.f32.mrf.mxu0
        %v9189 = vadd.f32 %v8986, %v9188
        %v9190 = vand.u32 %v8299, 4294901760
        %v9191 = vsub.f32 %v8299, %v9190
        %v9192 = vand.u32 %v9191, 4294901760
        %9193 = vmatmul.f32.gmra.mxu0 %v9192
        %v9194 = vpop.f32.mrf.mxu0
        %v9195 = vadd.f32 %v8991, %v9194
        %v9196 = vand.u32 %v8301, 4294901760
        %v9197 = vsub.f32 %v8301, %v9196
        %v9198 = vand.u32 %v9197, 4294901760
        %9199 = vmatmul.f32.gmra.mxu0 %v9198
        %v9200 = vpop.f32.mrf.mxu0
        %v9201 = vadd.f32 %v8996, %v9200
        %v9202 = vand.u32 %v8303, 4294901760
        %v9203 = vsub.f32 %v8303, %v9202
        %v9204 = vand.u32 %v9203, 4294901760
        %9205 = vmatmul.f32.gmra.mxu0 %v9204
        %v9206 = vpop.f32.mrf.mxu0
        %v9207 = vadd.f32 %v9001, %v9206
        %v9208 = vand.u32 %v8305, 4294901760
        %v9209 = vsub.f32 %v8305, %v9208
        %v9210 = vand.u32 %v9209, 4294901760
        %9211 = vmatmul.f32.gmra.mxu0 %v9210
        %v9212 = vpop.f32.mrf.mxu0
        %v9213 = vadd.f32 %v9006, %v9212
        %v9214 = vand.u32 %v8307, 4294901760
        %v9215 = vsub.f32 %v8307, %v9214
        %v9216 = vand.u32 %v9215, 4294901760
        %9217 = vmatmul.f32.gmra.mxu0 %v9216
        %v9218 = vpop.f32.mrf.mxu0
        %v9219 = vadd.f32 %v9011, %v9218
        %v9220 = vand.u32 %v8309, 4294901760
        %v9221 = vsub.f32 %v8309, %v9220
        %v9222 = vand.u32 %v9221, 4294901760
        %9223 = vmatmul.f32.gmra.mxu0 %v9222
        %v9224 = vpop.f32.mrf.mxu0
        %v9225 = vadd.f32 %v9016, %v9224
        %v9226 = vand.u32 %v8311, 4294901760
        %v9227 = vsub.f32 %v8311, %v9226
        %v9228 = vand.u32 %v9227, 4294901760
        %9229 = vmatmul.f32.gmra.mxu0 %v9228
        %v9230 = vpop.f32.mrf.mxu0
        %v9231 = vadd.f32 %v9021, %v9230
        %v9232 = vand.u32 %v8313, 4294901760
        %v9233 = vsub.f32 %v8313, %v9232
        %v9234 = vand.u32 %v9233, 4294901760
        %9235 = vmatmul.f32.gmra.mxu0 %v9234
        %v9236 = vpop.f32.mrf.mxu0
        %v9237 = vadd.f32 %v9026, %v9236
        %v9238 = vand.u32 %v8315, 4294901760
        %v9239 = vsub.f32 %v8315, %v9238
        %v9240 = vand.u32 %v9239, 4294901760
        %9241 = vmatmul.f32.gmra.mxu0 %v9240
        %v9242 = vpop.f32.mrf.mxu0
        %v9243 = vadd.f32 %v9031, %v9242
        %v9244 = vand.u32 %v8317, 4294901760
        %v9245 = vsub.f32 %v8317, %v9244
        %v9246 = vand.u32 %v9245, 4294901760
        %9247 = vmatmul.f32.gmra.mxu0 %v9246
        %v9248 = vpop.f32.mrf.mxu0
        %v9249 = vadd.f32 %v9036, %v9248
        %v9250 = vand.u32 %v8319, 4294901760
        %v9251 = vsub.f32 %v8319, %v9250
        %v9252 = vand.u32 %v9251, 4294901760
        %9253 = vmatmul.f32.gmra.mxu0 %v9252
        %v9254 = vpop.f32.mrf.mxu0
        %v9255 = vadd.f32 %v9041, %v9254
        %v9256 = vand.u32 %v8321, 4294901760
        %v9257 = vsub.f32 %v8321, %v9256
        %v9258 = vand.u32 %v9257, 4294901760
        %9259 = vmatmul.f32.gmra.mxu0 %v9258
        %v9260 = vpop.f32.mrf.mxu0
        %v9261 = vadd.f32 %v9046, %v9260
        %v9262 = vand.u32 %v8323, 4294901760
        %v9263 = vsub.f32 %v8323, %v9262
        %v9264 = vand.u32 %v9263, 4294901760
        %9265 = vmatmul.f32.gmra.mxu0 %v9264
        %v9266 = vpop.f32.mrf.mxu0
        %v9267 = vadd.f32 %v9051, %v9266
        %v9268 = vand.u32 %v8325, 4294901760
        %v9269 = vsub.f32 %v8325, %v9268
        %v9270 = vand.u32 %v9269, 4294901760
        %9271 = vmatmul.f32.gmra.mxu0 %v9270
        %v9272 = vpop.f32.mrf.mxu0
        %v9273 = vadd.f32 %v9056, %v9272
        %v9274 = vand.u32 %v8327, 4294901760
        %v9275 = vsub.f32 %v8327, %v9274
        %v9276 = vand.u32 %v9275, 4294901760
        %9277 = vmatmul.f32.gmra.mxu0 %v9276
        %v9278 = vpop.f32.mrf.mxu0
        %v9279 = vadd.f32 %v9061, %v9278
        %v9280 = vand.u32 %v8329, 4294901760
        %v9281 = vsub.f32 %v8329, %v9280
        %v9282 = vand.u32 %v9281, 4294901760
        %9283 = vmatmul.f32.gmra.mxu0 %v9282
        %v9284 = vpop.f32.mrf.mxu0
        %v9285 = vadd.f32 %v9066, %v9284
        %v9286 = vand.u32 %v8331, 4294901760
        %v9287 = vsub.f32 %v8331, %v9286
        %v9288 = vand.u32 %v9287, 4294901760
        %9289 = vmatmul.f32.gmra.mxu0 %v9288
        %v9290 = vpop.f32.mrf.mxu0
        %v9291 = vadd.f32 %v9071, %v9290
        %v9292 = vand.u32 %v8333, 4294901760
        %v9293 = vsub.f32 %v8333, %v9292
        %v9294 = vand.u32 %v9293, 4294901760
        %9295 = vmatmul.f32.gmra.mxu0 %v9294
        %v9296 = vpop.f32.mrf.mxu0
        %v9297 = vadd.f32 %v9076, %v9296
        %v9298 = vand.u32 %v8335, 4294901760
        %v9299 = vsub.f32 %v8335, %v9298
        %v9300 = vand.u32 %v9299, 4294901760
        %9301 = vmatmul.f32.gmra.mxu0 %v9300
        %v9302 = vpop.f32.mrf.mxu0
        %v9303 = vadd.f32 %v9081, %v9302
        %v9304 = vand.u32 %v8337, 4294901760
        %v9305 = vsub.f32 %v8337, %v9304
        %v9306 = vand.u32 %v9305, 4294901760
        %9307 = vmatmul.f32.gmra.mxu0 %v9306
        %v9308 = vpop.f32.mrf.mxu0
        %v9309 = vadd.f32 %v9086, %v9308
        %v9310 = vand.u32 %v8339, 4294901760
        %v9311 = vsub.f32 %v8339, %v9310
        %v9312 = vand.u32 %v9311, 4294901760
        %9313 = vmatmul.f32.gmra.mxu0 %v9312
        %v9314 = vpop.f32.mrf.mxu0
        %v9315 = vadd.f32 %v9091, %v9314
        %v9316 = vand.u32 %v8341, 4294901760
        %v9317 = vsub.f32 %v8341, %v9316
        %v9318 = vand.u32 %v9317, 4294901760
        %9319 = vmatmul.f32.gmra.mxu0 %v9318
        %v9320 = vpop.f32.mrf.mxu0
        %v9321 = vadd.f32 %v9096, %v9320
        %9322 = vdwg.mxu0
        %v9323 = vand.u32 %v8358, 4294901760
        %v9324 = vsub.f32 %v8358, %v9323
        %v9325 = vand.u32 %v9324, 4294901760
        %9326 = vmatpush.msra.mxu0 %v9325
        %v9327 = vand.u32 %v8357, 4294901760
        %v9328 = vsub.f32 %v8357, %v9327
        %v9329 = vand.u32 %v9328, 4294901760
        %9330 = vmatpush.msra.mxu0 %v9329
        %v9331 = vand.u32 %v8356, 4294901760
        %v9332 = vsub.f32 %v8356, %v9331
        %v9333 = vand.u32 %v9332, 4294901760
        %9334 = vmatpush.msra.mxu0 %v9333
        %v9335 = vand.u32 %v8355, 4294901760
        %v9336 = vsub.f32 %v8355, %v9335
        %v9337 = vand.u32 %v9336, 4294901760
        %9338 = vmatpush.msra.mxu0 %v9337
        %v9339 = vand.u32 %v8354, 4294901760
        %v9340 = vsub.f32 %v8354, %v9339
        %v9341 = vand.u32 %v9340, 4294901760
        %9342 = vmatpush.msra.mxu0 %v9341
        %v9343 = vand.u32 %v8353, 4294901760
        %v9344 = vsub.f32 %v8353, %v9343
        %v9345 = vand.u32 %v9344, 4294901760
        %9346 = vmatpush.msra.mxu0 %v9345
        %v9347 = vand.u32 %v8352, 4294901760
        %v9348 = vsub.f32 %v8352, %v9347
        %v9349 = vand.u32 %v9348, 4294901760
        %9350 = vmatpush.msra.mxu0 %v9349
        %v9351 = vand.u32 %v8351, 4294901760
        %v9352 = vsub.f32 %v8351, %v9351
        %v9353 = vand.u32 %v9352, 4294901760
        %9354 = vmatpush.msra.mxu0 %v9353
        %v9355 = vand.u32 %v8350, 4294901760
        %v9356 = vsub.f32 %v8350, %v9355
        %v9357 = vand.u32 %v9356, 4294901760
        %9358 = vmatpush.msra.mxu0 %v9357
        %v9359 = vand.u32 %v8349, 4294901760
        %v9360 = vsub.f32 %v8349, %v9359
        %v9361 = vand.u32 %v9360, 4294901760
        %9362 = vmatpush.msra.mxu0 %v9361
        %v9363 = vand.u32 %v8348, 4294901760
        %v9364 = vsub.f32 %v8348, %v9363
        %v9365 = vand.u32 %v9364, 4294901760
        %9366 = vmatpush.msra.mxu0 %v9365
        %v9367 = vand.u32 %v8347, 4294901760
        %v9368 = vsub.f32 %v8347, %v9367
        %v9369 = vand.u32 %v9368, 4294901760
        %9370 = vmatpush.msra.mxu0 %v9369
        %v9371 = vand.u32 %v8346, 4294901760
        %v9372 = vsub.f32 %v8346, %v9371
        %v9373 = vand.u32 %v9372, 4294901760
        %9374 = vmatpush.msra.mxu0 %v9373
        %v9375 = vand.u32 %v8345, 4294901760
        %v9376 = vsub.f32 %v8345, %v9375
        %v9377 = vand.u32 %v9376, 4294901760
        %9378 = vmatpush.msra.mxu0 %v9377
        %v9379 = vand.u32 %v8344, 4294901760
        %v9380 = vsub.f32 %v8344, %v9379
        %v9381 = vand.u32 %v9380, 4294901760
        %9382 = vmatpush.msra.mxu0 %v9381
        %v9383 = vand.u32 %v8343, 4294901760
        %v9384 = vsub.f32 %v8343, %v9383
        %v9385 = vand.u32 %v9384, 4294901760
        %9386 = vmatpush.msra.mxu0 %v9385
        %v9387 = vand.u32 %v8279, 4294901760
        %9388 = vmatmul.f32.gmra.mxu0 %v9387
        %v9389 = vpop.f32.mrf.mxu0
        %v9390 = vadd.f32 %v9135, %v9389
        %v9391 = vand.u32 %v8281, 4294901760
        %9392 = vmatmul.f32.gmra.mxu0 %v9391
        %v9393 = vpop.f32.mrf.mxu0
        %v9394 = vadd.f32 %v9141, %v9393
        %v9395 = vand.u32 %v8283, 4294901760
        %9396 = vmatmul.f32.gmra.mxu0 %v9395
        %v9397 = vpop.f32.mrf.mxu0
        %v9398 = vadd.f32 %v9147, %v9397
        %v9399 = vand.u32 %v8285, 4294901760
        %9400 = vmatmul.f32.gmra.mxu0 %v9399
        %v9401 = vpop.f32.mrf.mxu0
        %v9402 = vadd.f32 %v9153, %v9401
        %v9403 = vand.u32 %v8287, 4294901760
        %9404 = vmatmul.f32.gmra.mxu0 %v9403
        %v9405 = vpop.f32.mrf.mxu0
        %v9406 = vadd.f32 %v9159, %v9405
        %v9407 = vand.u32 %v8289, 4294901760
        %9408 = vmatmul.f32.gmra.mxu0 %v9407
        %v9409 = vpop.f32.mrf.mxu0
        %v9410 = vadd.f32 %v9165, %v9409
        %v9411 = vand.u32 %v8291, 4294901760
        %9412 = vmatmul.f32.gmra.mxu0 %v9411
        %v9413 = vpop.f32.mrf.mxu0
        %v9414 = vadd.f32 %v9171, %v9413
        %v9415 = vand.u32 %v8293, 4294901760
        %9416 = vmatmul.f32.gmra.mxu0 %v9415
        %v9417 = vpop.f32.mrf.mxu0
        %v9418 = vadd.f32 %v9177, %v9417
        %v9419 = vand.u32 %v8295, 4294901760
        %9420 = vmatmul.f32.gmra.mxu0 %v9419
        %v9421 = vpop.f32.mrf.mxu0
        %v9422 = vadd.f32 %v9183, %v9421
        %v9423 = vand.u32 %v8297, 4294901760
        %9424 = vmatmul.f32.gmra.mxu0 %v9423
        %v9425 = vpop.f32.mrf.mxu0
        %v9426 = vadd.f32 %v9189, %v9425
        %v9427 = vand.u32 %v8299, 4294901760
        %9428 = vmatmul.f32.gmra.mxu0 %v9427
        %v9429 = vpop.f32.mrf.mxu0
        %v9430 = vadd.f32 %v9195, %v9429
        %v9431 = vand.u32 %v8301, 4294901760
        %9432 = vmatmul.f32.gmra.mxu0 %v9431
        %v9433 = vpop.f32.mrf.mxu0
        %v9434 = vadd.f32 %v9201, %v9433
        %v9435 = vand.u32 %v8303, 4294901760
        %9436 = vmatmul.f32.gmra.mxu0 %v9435
        %v9437 = vpop.f32.mrf.mxu0
        %v9438 = vadd.f32 %v9207, %v9437
        %v9439 = vand.u32 %v8305, 4294901760
        %9440 = vmatmul.f32.gmra.mxu0 %v9439
        %v9441 = vpop.f32.mrf.mxu0
        %v9442 = vadd.f32 %v9213, %v9441
        %v9443 = vand.u32 %v8307, 4294901760
        %9444 = vmatmul.f32.gmra.mxu0 %v9443
        %v9445 = vpop.f32.mrf.mxu0
        %v9446 = vadd.f32 %v9219, %v9445
        %v9447 = vand.u32 %v8309, 4294901760
        %9448 = vmatmul.f32.gmra.mxu0 %v9447
        %v9449 = vpop.f32.mrf.mxu0
        %v9450 = vadd.f32 %v9225, %v9449
        %v9451 = vand.u32 %v8311, 4294901760
        %9452 = vmatmul.f32.gmra.mxu0 %v9451
        %v9453 = vpop.f32.mrf.mxu0
        %v9454 = vadd.f32 %v9231, %v9453
        %v9455 = vand.u32 %v8313, 4294901760
        %9456 = vmatmul.f32.gmra.mxu0 %v9455
        %v9457 = vpop.f32.mrf.mxu0
        %v9458 = vadd.f32 %v9237, %v9457
        %v9459 = vand.u32 %v8315, 4294901760
        %9460 = vmatmul.f32.gmra.mxu0 %v9459
        %v9461 = vpop.f32.mrf.mxu0
        %v9462 = vadd.f32 %v9243, %v9461
        %v9463 = vand.u32 %v8317, 4294901760
        %9464 = vmatmul.f32.gmra.mxu0 %v9463
        %v9465 = vpop.f32.mrf.mxu0
        %v9466 = vadd.f32 %v9249, %v9465
        %v9467 = vand.u32 %v8319, 4294901760
        %9468 = vmatmul.f32.gmra.mxu0 %v9467
        %v9469 = vpop.f32.mrf.mxu0
        %v9470 = vadd.f32 %v9255, %v9469
        %v9471 = vand.u32 %v8321, 4294901760
        %9472 = vmatmul.f32.gmra.mxu0 %v9471
        %v9473 = vpop.f32.mrf.mxu0
        %v9474 = vadd.f32 %v9261, %v9473
        %v9475 = vand.u32 %v8323, 4294901760
        %9476 = vmatmul.f32.gmra.mxu0 %v9475
        %v9477 = vpop.f32.mrf.mxu0
        %v9478 = vadd.f32 %v9267, %v9477
        %v9479 = vand.u32 %v8325, 4294901760
        %9480 = vmatmul.f32.gmra.mxu0 %v9479
        %v9481 = vpop.f32.mrf.mxu0
        %v9482 = vadd.f32 %v9273, %v9481
        %v9483 = vand.u32 %v8327, 4294901760
        %9484 = vmatmul.f32.gmra.mxu0 %v9483
        %v9485 = vpop.f32.mrf.mxu0
        %v9486 = vadd.f32 %v9279, %v9485
        %v9487 = vand.u32 %v8329, 4294901760
        %9488 = vmatmul.f32.gmra.mxu0 %v9487
        %v9489 = vpop.f32.mrf.mxu0
        %v9490 = vadd.f32 %v9285, %v9489
        %v9491 = vand.u32 %v8331, 4294901760
        %9492 = vmatmul.f32.gmra.mxu0 %v9491
        %v9493 = vpop.f32.mrf.mxu0
        %v9494 = vadd.f32 %v9291, %v9493
        %v9495 = vand.u32 %v8333, 4294901760
        %9496 = vmatmul.f32.gmra.mxu0 %v9495
        %v9497 = vpop.f32.mrf.mxu0
        %v9498 = vadd.f32 %v9297, %v9497
        %v9499 = vand.u32 %v8335, 4294901760
        %9500 = vmatmul.f32.gmra.mxu0 %v9499
        %v9501 = vpop.f32.mrf.mxu0
        %v9502 = vadd.f32 %v9303, %v9501
        %v9503 = vand.u32 %v8337, 4294901760
        %9504 = vmatmul.f32.gmra.mxu0 %v9503
        %v9505 = vpop.f32.mrf.mxu0
        %v9506 = vadd.f32 %v9309, %v9505
        %v9507 = vand.u32 %v8339, 4294901760
        %9508 = vmatmul.f32.gmra.mxu0 %v9507
        %v9509 = vpop.f32.mrf.mxu0
        %v9510 = vadd.f32 %v9315, %v9509
        %v9511 = vand.u32 %v8341, 4294901760
        %9512 = vmatmul.f32.gmra.mxu0 %v9511
        %v9513 = vpop.f32.mrf.mxu0
        %v9514 = vadd.f32 %v9321, %v9513
        %9515 = vdwg.mxu0
        %v9516 = vand.u32 %v8358, 4294901760
        %9517 = vmatpush.msra.mxu0 %v9516
        %v9518 = vand.u32 %v8357, 4294901760
        %9519 = vmatpush.msra.mxu0 %v9518
        %v9520 = vand.u32 %v8356, 4294901760
        %9521 = vmatpush.msra.mxu0 %v9520
        %v9522 = vand.u32 %v8355, 4294901760
        %9523 = vmatpush.msra.mxu0 %v9522
        %v9524 = vand.u32 %v8354, 4294901760
        %9525 = vmatpush.msra.mxu0 %v9524
        %v9526 = vand.u32 %v8353, 4294901760
        %9527 = vmatpush.msra.mxu0 %v9526
        %v9528 = vand.u32 %v8352, 4294901760
        %9529 = vmatpush.msra.mxu0 %v9528
        %v9530 = vand.u32 %v8351, 4294901760
        %9531 = vmatpush.msra.mxu0 %v9530
        %v9532 = vand.u32 %v8350, 4294901760
        %9533 = vmatpush.msra.mxu0 %v9532
        %v9534 = vand.u32 %v8349, 4294901760
        %9535 = vmatpush.msra.mxu0 %v9534
        %v9536 = vand.u32 %v8348, 4294901760
        %9537 = vmatpush.msra.mxu0 %v9536
        %v9538 = vand.u32 %v8347, 4294901760
        %9539 = vmatpush.msra.mxu0 %v9538
        %v9540 = vand.u32 %v8346, 4294901760
        %9541 = vmatpush.msra.mxu0 %v9540
        %v9542 = vand.u32 %v8345, 4294901760
        %9543 = vmatpush.msra.mxu0 %v9542
        %v9544 = vand.u32 %v8344, 4294901760
        %9545 = vmatpush.msra.mxu0 %v9544
        %v9546 = vand.u32 %v8343, 4294901760
        %9547 = vmatpush.msra.mxu0 %v9546
        %v9548 = vand.u32 %v8279, 4294901760
        %9549 = vmatmul.f32.gmra.mxu0 %v9548
        %v9550 = vpop.f32.mrf.mxu0
        %v9551 = vadd.f32 %v9390, %v9550
        %v9552 = vand.u32 %v8281, 4294901760
        %9553 = vmatmul.f32.gmra.mxu0 %v9552
        %v9554 = vpop.f32.mrf.mxu0
        %v9555 = vadd.f32 %v9394, %v9554
        %v9556 = vand.u32 %v8283, 4294901760
        %9557 = vmatmul.f32.gmra.mxu0 %v9556
        %v9558 = vpop.f32.mrf.mxu0
        %v9559 = vadd.f32 %v9398, %v9558
        %v9560 = vand.u32 %v8285, 4294901760
        %9561 = vmatmul.f32.gmra.mxu0 %v9560
        %v9562 = vpop.f32.mrf.mxu0
        %v9563 = vadd.f32 %v9402, %v9562
        %v9564 = vand.u32 %v8287, 4294901760
        %9565 = vmatmul.f32.gmra.mxu0 %v9564
        %v9566 = vpop.f32.mrf.mxu0
        %v9567 = vadd.f32 %v9406, %v9566
        %v9568 = vand.u32 %v8289, 4294901760
        %9569 = vmatmul.f32.gmra.mxu0 %v9568
        %v9570 = vpop.f32.mrf.mxu0
        %v9571 = vadd.f32 %v9410, %v9570
        %v9572 = vand.u32 %v8291, 4294901760
        %9573 = vmatmul.f32.gmra.mxu0 %v9572
        %v9574 = vpop.f32.mrf.mxu0
        %v9575 = vadd.f32 %v9414, %v9574
        %v9576 = vand.u32 %v8293, 4294901760
        %9577 = vmatmul.f32.gmra.mxu0 %v9576
        %v9578 = vpop.f32.mrf.mxu0
        %v9579 = vadd.f32 %v9418, %v9578
        %v9580 = vand.u32 %v8295, 4294901760
        %9581 = vmatmul.f32.gmra.mxu0 %v9580
        %v9582 = vpop.f32.mrf.mxu0
        %v9583 = vadd.f32 %v9422, %v9582
        %v9584 = vand.u32 %v8297, 4294901760
        %9585 = vmatmul.f32.gmra.mxu0 %v9584
        %v9586 = vpop.f32.mrf.mxu0
        %v9587 = vadd.f32 %v9426, %v9586
        %v9588 = vand.u32 %v8299, 4294901760
        %9589 = vmatmul.f32.gmra.mxu0 %v9588
        %v9590 = vpop.f32.mrf.mxu0
        %v9591 = vadd.f32 %v9430, %v9590
        %v9592 = vand.u32 %v8301, 4294901760
        %9593 = vmatmul.f32.gmra.mxu0 %v9592
        %v9594 = vpop.f32.mrf.mxu0
        %v9595 = vadd.f32 %v9434, %v9594
        %v9596 = vand.u32 %v8303, 4294901760
        %9597 = vmatmul.f32.gmra.mxu0 %v9596
        %v9598 = vpop.f32.mrf.mxu0
        %v9599 = vadd.f32 %v9438, %v9598
        %v9600 = vand.u32 %v8305, 4294901760
        %9601 = vmatmul.f32.gmra.mxu0 %v9600
        %v9602 = vpop.f32.mrf.mxu0
        %v9603 = vadd.f32 %v9442, %v9602
        %v9604 = vand.u32 %v8307, 4294901760
        %9605 = vmatmul.f32.gmra.mxu0 %v9604
        %v9606 = vpop.f32.mrf.mxu0
        %v9607 = vadd.f32 %v9446, %v9606
        %v9608 = vand.u32 %v8309, 4294901760
        %9609 = vmatmul.f32.gmra.mxu0 %v9608
        %v9610 = vpop.f32.mrf.mxu0
        %v9611 = vadd.f32 %v9450, %v9610
        %v9612 = vand.u32 %v8311, 4294901760
        %9613 = vmatmul.f32.gmra.mxu0 %v9612
        %v9614 = vpop.f32.mrf.mxu0
        %v9615 = vadd.f32 %v9454, %v9614
        %v9616 = vand.u32 %v8313, 4294901760
        %9617 = vmatmul.f32.gmra.mxu0 %v9616
        %v9618 = vpop.f32.mrf.mxu0
        %v9619 = vadd.f32 %v9458, %v9618
        %v9620 = vand.u32 %v8315, 4294901760
        %9621 = vmatmul.f32.gmra.mxu0 %v9620
        %v9622 = vpop.f32.mrf.mxu0
        %v9623 = vadd.f32 %v9462, %v9622
        %v9624 = vand.u32 %v8317, 4294901760
        %9625 = vmatmul.f32.gmra.mxu0 %v9624
        %v9626 = vpop.f32.mrf.mxu0
        %v9627 = vadd.f32 %v9466, %v9626
        %v9628 = vand.u32 %v8319, 4294901760
        %9629 = vmatmul.f32.gmra.mxu0 %v9628
        %v9630 = vpop.f32.mrf.mxu0
        %v9631 = vadd.f32 %v9470, %v9630
        %v9632 = vand.u32 %v8321, 4294901760
        %9633 = vmatmul.f32.gmra.mxu0 %v9632
        %v9634 = vpop.f32.mrf.mxu0
        %v9635 = vadd.f32 %v9474, %v9634
        %v9636 = vand.u32 %v8323, 4294901760
        %9637 = vmatmul.f32.gmra.mxu0 %v9636
        %v9638 = vpop.f32.mrf.mxu0
        %v9639 = vadd.f32 %v9478, %v9638
        %v9640 = vand.u32 %v8325, 4294901760
        %9641 = vmatmul.f32.gmra.mxu0 %v9640
        %v9642 = vpop.f32.mrf.mxu0
        %v9643 = vadd.f32 %v9482, %v9642
        %v9644 = vand.u32 %v8327, 4294901760
        %9645 = vmatmul.f32.gmra.mxu0 %v9644
        %v9646 = vpop.f32.mrf.mxu0
        %v9647 = vadd.f32 %v9486, %v9646
        %v9648 = vand.u32 %v8329, 4294901760
        %9649 = vmatmul.f32.gmra.mxu0 %v9648
        %v9650 = vpop.f32.mrf.mxu0
        %v9651 = vadd.f32 %v9490, %v9650
        %v9652 = vand.u32 %v8331, 4294901760
        %9653 = vmatmul.f32.gmra.mxu0 %v9652
        %v9654 = vpop.f32.mrf.mxu0
        %v9655 = vadd.f32 %v9494, %v9654
        %v9656 = vand.u32 %v8333, 4294901760
        %9657 = vmatmul.f32.gmra.mxu0 %v9656
        %v9658 = vpop.f32.mrf.mxu0
        %v9659 = vadd.f32 %v9498, %v9658
        %v9660 = vand.u32 %v8335, 4294901760
        %9661 = vmatmul.f32.gmra.mxu0 %v9660
        %v9662 = vpop.f32.mrf.mxu0
        %v9663 = vadd.f32 %v9502, %v9662
        %v9664 = vand.u32 %v8337, 4294901760
        %9665 = vmatmul.f32.gmra.mxu0 %v9664
        %v9666 = vpop.f32.mrf.mxu0
        %v9667 = vadd.f32 %v9506, %v9666
        %v9668 = vand.u32 %v8339, 4294901760
        %9669 = vmatmul.f32.gmra.mxu0 %v9668
        %v9670 = vpop.f32.mrf.mxu0
        %v9671 = vadd.f32 %v9510, %v9670
        %v9672 = vand.u32 %v8341, 4294901760
        %9673 = vmatmul.f32.gmra.mxu0 %v9672
        %v9674 = vpop.f32.mrf.mxu0
        %v9675 = vadd.f32 %v9514, %v9674
        %9676 = vdwg.mxu0
        %v9677 = vand.u32 %v8374, 4294901760
        %9678 = vmatpush.msra.mxu0 %v9677
        %v9679 = vand.u32 %v8373, 4294901760
        %9680 = vmatpush.msra.mxu0 %v9679
        %v9681 = vand.u32 %v8372, 4294901760
        %9682 = vmatpush.msra.mxu0 %v9681
        %v9683 = vand.u32 %v8371, 4294901760
        %9684 = vmatpush.msra.mxu0 %v9683
        %v9685 = vand.u32 %v8370, 4294901760
        %9686 = vmatpush.msra.mxu0 %v9685
        %v9687 = vand.u32 %v8369, 4294901760
        %9688 = vmatpush.msra.mxu0 %v9687
        %v9689 = vand.u32 %v8368, 4294901760
        %9690 = vmatpush.msra.mxu0 %v9689
        %v9691 = vand.u32 %v8367, 4294901760
        %9692 = vmatpush.msra.mxu0 %v9691
        %v9693 = vand.u32 %v8366, 4294901760
        %9694 = vmatpush.msra.mxu0 %v9693
        %v9695 = vand.u32 %v8365, 4294901760
        %9696 = vmatpush.msra.mxu0 %v9695
        %v9697 = vand.u32 %v8364, 4294901760
        %9698 = vmatpush.msra.mxu0 %v9697
        %v9699 = vand.u32 %v8363, 4294901760
        %9700 = vmatpush.msra.mxu0 %v9699
        %v9701 = vand.u32 %v8362, 4294901760
        %9702 = vmatpush.msra.mxu0 %v9701
        %v9703 = vand.u32 %v8361, 4294901760
        %9704 = vmatpush.msra.mxu0 %v9703
        %v9705 = vand.u32 %v8360, 4294901760
        %9706 = vmatpush.msra.mxu0 %v9705
        %v9707 = vand.u32 %v8359, 4294901760
        %9708 = vmatpush.msra.mxu0 %v9707
        %v9709 = vand.u32 %v8280, 4294901760
        %v9710 = vsub.f32 %v8280, %v9709
        %v9711 = vand.u32 %v9710, 4294901760
        %v9712 = vsub.f32 %v9710, %v9711
        %v9713 = vand.u32 %v9712, 4294901760
        %9714 = vmatmul.f32.gmra.mxu0 %v9713
        %v9715 = vpop.f32.mrf.mxu0
        %v9716 = vadd.f32 %v9551, %v9715
        %v9717 = vand.u32 %v8282, 4294901760
        %v9718 = vsub.f32 %v8282, %v9717
        %v9719 = vand.u32 %v9718, 4294901760
        %v9720 = vsub.f32 %v9718, %v9719
        %v9721 = vand.u32 %v9720, 4294901760
        %9722 = vmatmul.f32.gmra.mxu0 %v9721
        %v9723 = vpop.f32.mrf.mxu0
        %v9724 = vadd.f32 %v9555, %v9723
        %v9725 = vand.u32 %v8284, 4294901760
        %v9726 = vsub.f32 %v8284, %v9725
        %v9727 = vand.u32 %v9726, 4294901760
        %v9728 = vsub.f32 %v9726, %v9727
        %v9729 = vand.u32 %v9728, 4294901760
        %9730 = vmatmul.f32.gmra.mxu0 %v9729
        %v9731 = vpop.f32.mrf.mxu0
        %v9732 = vadd.f32 %v9559, %v9731
        %v9733 = vand.u32 %v8286, 4294901760
        %v9734 = vsub.f32 %v8286, %v9733
        %v9735 = vand.u32 %v9734, 4294901760
        %v9736 = vsub.f32 %v9734, %v9735
        %v9737 = vand.u32 %v9736, 4294901760
        %9738 = vmatmul.f32.gmra.mxu0 %v9737
        %v9739 = vpop.f32.mrf.mxu0
        %v9740 = vadd.f32 %v9563, %v9739
        %v9741 = vand.u32 %v8288, 4294901760
        %v9742 = vsub.f32 %v8288, %v9741
        %v9743 = vand.u32 %v9742, 4294901760
        %v9744 = vsub.f32 %v9742, %v9743
        %v9745 = vand.u32 %v9744, 4294901760
        %9746 = vmatmul.f32.gmra.mxu0 %v9745
        %v9747 = vpop.f32.mrf.mxu0
        %v9748 = vadd.f32 %v9567, %v9747
        %v9749 = vand.u32 %v8290, 4294901760
        %v9750 = vsub.f32 %v8290, %v9749
        %v9751 = vand.u32 %v9750, 4294901760
        %v9752 = vsub.f32 %v9750, %v9751
        %v9753 = vand.u32 %v9752, 4294901760
        %9754 = vmatmul.f32.gmra.mxu0 %v9753
        %v9755 = vpop.f32.mrf.mxu0
        %v9756 = vadd.f32 %v9571, %v9755
        %v9757 = vand.u32 %v8292, 4294901760
        %v9758 = vsub.f32 %v8292, %v9757
        %v9759 = vand.u32 %v9758, 4294901760
        %v9760 = vsub.f32 %v9758, %v9759
        %v9761 = vand.u32 %v9760, 4294901760
        %9762 = vmatmul.f32.gmra.mxu0 %v9761
        %v9763 = vpop.f32.mrf.mxu0
        %v9764 = vadd.f32 %v9575, %v9763
        %v9765 = vand.u32 %v8294, 4294901760
        %v9766 = vsub.f32 %v8294, %v9765
        %v9767 = vand.u32 %v9766, 4294901760
        %v9768 = vsub.f32 %v9766, %v9767
        %v9769 = vand.u32 %v9768, 4294901760
        %9770 = vmatmul.f32.gmra.mxu0 %v9769
        %v9771 = vpop.f32.mrf.mxu0
        %v9772 = vadd.f32 %v9579, %v9771
        %v9773 = vand.u32 %v8296, 4294901760
        %v9774 = vsub.f32 %v8296, %v9773
        %v9775 = vand.u32 %v9774, 4294901760
        %v9776 = vsub.f32 %v9774, %v9775
        %v9777 = vand.u32 %v9776, 4294901760
        %9778 = vmatmul.f32.gmra.mxu0 %v9777
        %v9779 = vpop.f32.mrf.mxu0
        %v9780 = vadd.f32 %v9583, %v9779
        %v9781 = vand.u32 %v8298, 4294901760
        %v9782 = vsub.f32 %v8298, %v9781
        %v9783 = vand.u32 %v9782, 4294901760
        %v9784 = vsub.f32 %v9782, %v9783
        %v9785 = vand.u32 %v9784, 4294901760
        %9786 = vmatmul.f32.gmra.mxu0 %v9785
        %v9787 = vpop.f32.mrf.mxu0
        %v9788 = vadd.f32 %v9587, %v9787
        %v9789 = vand.u32 %v8300, 4294901760
        %v9790 = vsub.f32 %v8300, %v9789
        %v9791 = vand.u32 %v9790, 4294901760
        %v9792 = vsub.f32 %v9790, %v9791
        %v9793 = vand.u32 %v9792, 4294901760
        %9794 = vmatmul.f32.gmra.mxu0 %v9793
        %v9795 = vpop.f32.mrf.mxu0
        %v9796 = vadd.f32 %v9591, %v9795
        %v9797 = vand.u32 %v8302, 4294901760
        %v9798 = vsub.f32 %v8302, %v9797
        %v9799 = vand.u32 %v9798, 4294901760
        %v9800 = vsub.f32 %v9798, %v9799
        %v9801 = vand.u32 %v9800, 4294901760
        %9802 = vmatmul.f32.gmra.mxu0 %v9801
        %v9803 = vpop.f32.mrf.mxu0
        %v9804 = vadd.f32 %v9595, %v9803
        %v9805 = vand.u32 %v8304, 4294901760
        %v9806 = vsub.f32 %v8304, %v9805
        %v9807 = vand.u32 %v9806, 4294901760
        %v9808 = vsub.f32 %v9806, %v9807
        %v9809 = vand.u32 %v9808, 4294901760
        %9810 = vmatmul.f32.gmra.mxu0 %v9809
        %v9811 = vpop.f32.mrf.mxu0
        %v9812 = vadd.f32 %v9599, %v9811
        %v9813 = vand.u32 %v8306, 4294901760
        %v9814 = vsub.f32 %v8306, %v9813
        %v9815 = vand.u32 %v9814, 4294901760
        %v9816 = vsub.f32 %v9814, %v9815
        %v9817 = vand.u32 %v9816, 4294901760
        %9818 = vmatmul.f32.gmra.mxu0 %v9817
        %v9819 = vpop.f32.mrf.mxu0
        %v9820 = vadd.f32 %v9603, %v9819
        %v9821 = vand.u32 %v8308, 4294901760
        %v9822 = vsub.f32 %v8308, %v9821
        %v9823 = vand.u32 %v9822, 4294901760
        %v9824 = vsub.f32 %v9822, %v9823
        %v9825 = vand.u32 %v9824, 4294901760
        %9826 = vmatmul.f32.gmra.mxu0 %v9825
        %v9827 = vpop.f32.mrf.mxu0
        %v9828 = vadd.f32 %v9607, %v9827
        %v9829 = vand.u32 %v8310, 4294901760
        %v9830 = vsub.f32 %v8310, %v9829
        %v9831 = vand.u32 %v9830, 4294901760
        %v9832 = vsub.f32 %v9830, %v9831
        %v9833 = vand.u32 %v9832, 4294901760
        %9834 = vmatmul.f32.gmra.mxu0 %v9833
        %v9835 = vpop.f32.mrf.mxu0
        %v9836 = vadd.f32 %v9611, %v9835
        %v9837 = vand.u32 %v8312, 4294901760
        %v9838 = vsub.f32 %v8312, %v9837
        %v9839 = vand.u32 %v9838, 4294901760
        %v9840 = vsub.f32 %v9838, %v9839
        %v9841 = vand.u32 %v9840, 4294901760
        %9842 = vmatmul.f32.gmra.mxu0 %v9841
        %v9843 = vpop.f32.mrf.mxu0
        %v9844 = vadd.f32 %v9615, %v9843
        %v9845 = vand.u32 %v8314, 4294901760
        %v9846 = vsub.f32 %v8314, %v9845
        %v9847 = vand.u32 %v9846, 4294901760
        %v9848 = vsub.f32 %v9846, %v9847
        %v9849 = vand.u32 %v9848, 4294901760
        %9850 = vmatmul.f32.gmra.mxu0 %v9849
        %v9851 = vpop.f32.mrf.mxu0
        %v9852 = vadd.f32 %v9619, %v9851
        %v9853 = vand.u32 %v8316, 4294901760
        %v9854 = vsub.f32 %v8316, %v9853
        %v9855 = vand.u32 %v9854, 4294901760
        %v9856 = vsub.f32 %v9854, %v9855
        %v9857 = vand.u32 %v9856, 4294901760
        %9858 = vmatmul.f32.gmra.mxu0 %v9857
        %v9859 = vpop.f32.mrf.mxu0
        %v9860 = vadd.f32 %v9623, %v9859
        %v9861 = vand.u32 %v8318, 4294901760
        %v9862 = vsub.f32 %v8318, %v9861
        %v9863 = vand.u32 %v9862, 4294901760
        %v9864 = vsub.f32 %v9862, %v9863
        %v9865 = vand.u32 %v9864, 4294901760
        %9866 = vmatmul.f32.gmra.mxu0 %v9865
        %v9867 = vpop.f32.mrf.mxu0
        %v9868 = vadd.f32 %v9627, %v9867
        %v9869 = vand.u32 %v8320, 4294901760
        %v9870 = vsub.f32 %v8320, %v9869
        %v9871 = vand.u32 %v9870, 4294901760
        %v9872 = vsub.f32 %v9870, %v9871
        %v9873 = vand.u32 %v9872, 4294901760
        %9874 = vmatmul.f32.gmra.mxu0 %v9873
        %v9875 = vpop.f32.mrf.mxu0
        %v9876 = vadd.f32 %v9631, %v9875
        %v9877 = vand.u32 %v8322, 4294901760
        %v9878 = vsub.f32 %v8322, %v9877
        %v9879 = vand.u32 %v9878, 4294901760
        %v9880 = vsub.f32 %v9878, %v9879
        %v9881 = vand.u32 %v9880, 4294901760
        %9882 = vmatmul.f32.gmra.mxu0 %v9881
        %v9883 = vpop.f32.mrf.mxu0
        %v9884 = vadd.f32 %v9635, %v9883
        %v9885 = vand.u32 %v8324, 4294901760
        %v9886 = vsub.f32 %v8324, %v9885
        %v9887 = vand.u32 %v9886, 4294901760
        %v9888 = vsub.f32 %v9886, %v9887
        %v9889 = vand.u32 %v9888, 4294901760
        %9890 = vmatmul.f32.gmra.mxu0 %v9889
        %v9891 = vpop.f32.mrf.mxu0
        %v9892 = vadd.f32 %v9639, %v9891
        %v9893 = vand.u32 %v8326, 4294901760
        %v9894 = vsub.f32 %v8326, %v9893
        %v9895 = vand.u32 %v9894, 4294901760
        %v9896 = vsub.f32 %v9894, %v9895
        %v9897 = vand.u32 %v9896, 4294901760
        %9898 = vmatmul.f32.gmra.mxu0 %v9897
        %v9899 = vpop.f32.mrf.mxu0
        %v9900 = vadd.f32 %v9643, %v9899
        %v9901 = vand.u32 %v8328, 4294901760
        %v9902 = vsub.f32 %v8328, %v9901
        %v9903 = vand.u32 %v9902, 4294901760
        %v9904 = vsub.f32 %v9902, %v9903
        %v9905 = vand.u32 %v9904, 4294901760
        %9906 = vmatmul.f32.gmra.mxu0 %v9905
        %v9907 = vpop.f32.mrf.mxu0
        %v9908 = vadd.f32 %v9647, %v9907
        %v9909 = vand.u32 %v8330, 4294901760
        %v9910 = vsub.f32 %v8330, %v9909
        %v9911 = vand.u32 %v9910, 4294901760
        %v9912 = vsub.f32 %v9910, %v9911
        %v9913 = vand.u32 %v9912, 4294901760
        %9914 = vmatmul.f32.gmra.mxu0 %v9913
        %v9915 = vpop.f32.mrf.mxu0
        %v9916 = vadd.f32 %v9651, %v9915
        %v9917 = vand.u32 %v8332, 4294901760
        %v9918 = vsub.f32 %v8332, %v9917
        %v9919 = vand.u32 %v9918, 4294901760
        %v9920 = vsub.f32 %v9918, %v9919
        %v9921 = vand.u32 %v9920, 4294901760
        %9922 = vmatmul.f32.gmra.mxu0 %v9921
        %v9923 = vpop.f32.mrf.mxu0
        %v9924 = vadd.f32 %v9655, %v9923
        %v9925 = vand.u32 %v8334, 4294901760
        %v9926 = vsub.f32 %v8334, %v9925
        %v9927 = vand.u32 %v9926, 4294901760
        %v9928 = vsub.f32 %v9926, %v9927
        %v9929 = vand.u32 %v9928, 4294901760
        %9930 = vmatmul.f32.gmra.mxu0 %v9929
        %v9931 = vpop.f32.mrf.mxu0
        %v9932 = vadd.f32 %v9659, %v9931
        %v9933 = vand.u32 %v8336, 4294901760
        %v9934 = vsub.f32 %v8336, %v9933
        %v9935 = vand.u32 %v9934, 4294901760
        %v9936 = vsub.f32 %v9934, %v9935
        %v9937 = vand.u32 %v9936, 4294901760
        %9938 = vmatmul.f32.gmra.mxu0 %v9937
        %v9939 = vpop.f32.mrf.mxu0
        %v9940 = vadd.f32 %v9663, %v9939
        %v9941 = vand.u32 %v8338, 4294901760
        %v9942 = vsub.f32 %v8338, %v9941
        %v9943 = vand.u32 %v9942, 4294901760
        %v9944 = vsub.f32 %v9942, %v9943
        %v9945 = vand.u32 %v9944, 4294901760
        %9946 = vmatmul.f32.gmra.mxu0 %v9945
        %v9947 = vpop.f32.mrf.mxu0
        %v9948 = vadd.f32 %v9667, %v9947
        %v9949 = vand.u32 %v8340, 4294901760
        %v9950 = vsub.f32 %v8340, %v9949
        %v9951 = vand.u32 %v9950, 4294901760
        %v9952 = vsub.f32 %v9950, %v9951
        %v9953 = vand.u32 %v9952, 4294901760
        %9954 = vmatmul.f32.gmra.mxu0 %v9953
        %v9955 = vpop.f32.mrf.mxu0
        %v9956 = vadd.f32 %v9671, %v9955
        %v9957 = vand.u32 %v8342, 4294901760
        %v9958 = vsub.f32 %v8342, %v9957
        %v9959 = vand.u32 %v9958, 4294901760
        %v9960 = vsub.f32 %v9958, %v9959
        %v9961 = vand.u32 %v9960, 4294901760
        %9962 = vmatmul.f32.gmra.mxu0 %v9961
        %v9963 = vpop.f32.mrf.mxu0
        %v9964 = vadd.f32 %v9675, %v9963
        %9965 = vdwg.mxu0
        %v9966 = vand.u32 %v8374, 4294901760
        %v9967 = vsub.f32 %v8374, %v9966
        %v9968 = vand.u32 %v9967, 4294901760
        %v9969 = vsub.f32 %v9967, %v9968
        %v9970 = vand.u32 %v9969, 4294901760
        %9971 = vmatpush.msra.mxu0 %v9970
        %v9972 = vand.u32 %v8373, 4294901760
        %v9973 = vsub.f32 %v8373, %v9972
        %v9974 = vand.u32 %v9973, 4294901760
        %v9975 = vsub.f32 %v9973, %v9974
        %v9976 = vand.u32 %v9975, 4294901760
        %9977 = vmatpush.msra.mxu0 %v9976
        %v9978 = vand.u32 %v8372, 4294901760
        %v9979 = vsub.f32 %v8372, %v9978
        %v9980 = vand.u32 %v9979, 4294901760
        %v9981 = vsub.f32 %v9979, %v9980
        %v9982 = vand.u32 %v9981, 4294901760
        %9983 = vmatpush.msra.mxu0 %v9982
        %v9984 = vand.u32 %v8371, 4294901760
        %v9985 = vsub.f32 %v8371, %v9984
        %v9986 = vand.u32 %v9985, 4294901760
        %v9987 = vsub.f32 %v9985, %v9986
        %v9988 = vand.u32 %v9987, 4294901760
        %9989 = vmatpush.msra.mxu0 %v9988
        %v9990 = vand.u32 %v8370, 4294901760
        %v9991 = vsub.f32 %v8370, %v9990
        %v9992 = vand.u32 %v9991, 4294901760
        %v9993 = vsub.f32 %v9991, %v9992
        %v9994 = vand.u32 %v9993, 4294901760
        %9995 = vmatpush.msra.mxu0 %v9994
        %v9996 = vand.u32 %v8369, 4294901760
        %v9997 = vsub.f32 %v8369, %v9996
        %v9998 = vand.u32 %v9997, 4294901760
        %v9999 = vsub.f32 %v9997, %v9998
        %v10000 = vand.u32 %v9999, 4294901760
        %10001 = vmatpush.msra.mxu0 %v10000
        %v10002 = vand.u32 %v8368, 4294901760
        %v10003 = vsub.f32 %v8368, %v10002
        %v10004 = vand.u32 %v10003, 4294901760
        %v10005 = vsub.f32 %v10003, %v10004
        %v10006 = vand.u32 %v10005, 4294901760
        %10007 = vmatpush.msra.mxu0 %v10006
        %v10008 = vand.u32 %v8367, 4294901760
        %v10009 = vsub.f32 %v8367, %v10008
        %v10010 = vand.u32 %v10009, 4294901760
        %v10011 = vsub.f32 %v10009, %v10010
        %v10012 = vand.u32 %v10011, 4294901760
        %10013 = vmatpush.msra.mxu0 %v10012
        %v10014 = vand.u32 %v8366, 4294901760
        %v10015 = vsub.f32 %v8366, %v10014
        %v10016 = vand.u32 %v10015, 4294901760
        %v10017 = vsub.f32 %v10015, %v10016
        %v10018 = vand.u32 %v10017, 4294901760
        %10019 = vmatpush.msra.mxu0 %v10018
        %v10020 = vand.u32 %v8365, 4294901760
        %v10021 = vsub.f32 %v8365, %v10020
        %v10022 = vand.u32 %v10021, 4294901760
        %v10023 = vsub.f32 %v10021, %v10022
        %v10024 = vand.u32 %v10023, 4294901760
        %10025 = vmatpush.msra.mxu0 %v10024
        %v10026 = vand.u32 %v8364, 4294901760
        %v10027 = vsub.f32 %v8364, %v10026
        %v10028 = vand.u32 %v10027, 4294901760
        %v10029 = vsub.f32 %v10027, %v10028
        %v10030 = vand.u32 %v10029, 4294901760
        %10031 = vmatpush.msra.mxu0 %v10030
        %v10032 = vand.u32 %v8363, 4294901760
        %v10033 = vsub.f32 %v8363, %v10032
        %v10034 = vand.u32 %v10033, 4294901760
        %v10035 = vsub.f32 %v10033, %v10034
        %v10036 = vand.u32 %v10035, 4294901760
        %10037 = vmatpush.msra.mxu0 %v10036
        %v10038 = vand.u32 %v8362, 4294901760
        %v10039 = vsub.f32 %v8362, %v10038
        %v10040 = vand.u32 %v10039, 4294901760
        %v10041 = vsub.f32 %v10039, %v10040
        %v10042 = vand.u32 %v10041, 4294901760
        %10043 = vmatpush.msra.mxu0 %v10042
        %v10044 = vand.u32 %v8361, 4294901760
        %v10045 = vsub.f32 %v8361, %v10044
        %v10046 = vand.u32 %v10045, 4294901760
        %v10047 = vsub.f32 %v10045, %v10046
        %v10048 = vand.u32 %v10047, 4294901760
        %10049 = vmatpush.msra.mxu0 %v10048
        %v10050 = vand.u32 %v8360, 4294901760
        %v10051 = vsub.f32 %v8360, %v10050
        %v10052 = vand.u32 %v10051, 4294901760
        %v10053 = vsub.f32 %v10051, %v10052
        %v10054 = vand.u32 %v10053, 4294901760
        %10055 = vmatpush.msra.mxu0 %v10054
        %v10056 = vand.u32 %v8359, 4294901760
        %v10057 = vsub.f32 %v8359, %v10056
        %v10058 = vand.u32 %v10057, 4294901760
        %v10059 = vsub.f32 %v10057, %v10058
        %v10060 = vand.u32 %v10059, 4294901760
        %10061 = vmatpush.msra.mxu0 %v10060
        %v10062 = vand.u32 %v8280, 4294901760
        %10063 = vmatmul.f32.gmra.mxu0 %v10062
        %v10064 = vpop.f32.mrf.mxu0
        %v10065 = vadd.f32 %v9716, %v10064
        %v10066 = vand.u32 %v8282, 4294901760
        %10067 = vmatmul.f32.gmra.mxu0 %v10066
        %v10068 = vpop.f32.mrf.mxu0
        %v10069 = vadd.f32 %v9724, %v10068
        %v10070 = vand.u32 %v8284, 4294901760
        %10071 = vmatmul.f32.gmra.mxu0 %v10070
        %v10072 = vpop.f32.mrf.mxu0
        %v10073 = vadd.f32 %v9732, %v10072
        %v10074 = vand.u32 %v8286, 4294901760
        %10075 = vmatmul.f32.gmra.mxu0 %v10074
        %v10076 = vpop.f32.mrf.mxu0
        %v10077 = vadd.f32 %v9740, %v10076
        %v10078 = vand.u32 %v8288, 4294901760
        %10079 = vmatmul.f32.gmra.mxu0 %v10078
        %v10080 = vpop.f32.mrf.mxu0
        %v10081 = vadd.f32 %v9748, %v10080
        %v10082 = vand.u32 %v8290, 4294901760
        %10083 = vmatmul.f32.gmra.mxu0 %v10082
        %v10084 = vpop.f32.mrf.mxu0
        %v10085 = vadd.f32 %v9756, %v10084
        %v10086 = vand.u32 %v8292, 4294901760
        %10087 = vmatmul.f32.gmra.mxu0 %v10086
        %v10088 = vpop.f32.mrf.mxu0
        %v10089 = vadd.f32 %v9764, %v10088
        %v10090 = vand.u32 %v8294, 4294901760
        %10091 = vmatmul.f32.gmra.mxu0 %v10090
        %v10092 = vpop.f32.mrf.mxu0
        %v10093 = vadd.f32 %v9772, %v10092
        %v10094 = vand.u32 %v8296, 4294901760
        %10095 = vmatmul.f32.gmra.mxu0 %v10094
        %v10096 = vpop.f32.mrf.mxu0
        %v10097 = vadd.f32 %v9780, %v10096
        %v10098 = vand.u32 %v8298, 4294901760
        %10099 = vmatmul.f32.gmra.mxu0 %v10098
        %v10100 = vpop.f32.mrf.mxu0
        %v10101 = vadd.f32 %v9788, %v10100
        %v10102 = vand.u32 %v8300, 4294901760
        %10103 = vmatmul.f32.gmra.mxu0 %v10102
        %v10104 = vpop.f32.mrf.mxu0
        %v10105 = vadd.f32 %v9796, %v10104
        %v10106 = vand.u32 %v8302, 4294901760
        %10107 = vmatmul.f32.gmra.mxu0 %v10106
        %v10108 = vpop.f32.mrf.mxu0
        %v10109 = vadd.f32 %v9804, %v10108
        %v10110 = vand.u32 %v8304, 4294901760
        %10111 = vmatmul.f32.gmra.mxu0 %v10110
        %v10112 = vpop.f32.mrf.mxu0
        %v10113 = vadd.f32 %v9812, %v10112
        %v10114 = vand.u32 %v8306, 4294901760
        %10115 = vmatmul.f32.gmra.mxu0 %v10114
        %v10116 = vpop.f32.mrf.mxu0
        %v10117 = vadd.f32 %v9820, %v10116
        %v10118 = vand.u32 %v8308, 4294901760
        %10119 = vmatmul.f32.gmra.mxu0 %v10118
        %v10120 = vpop.f32.mrf.mxu0
        %v10121 = vadd.f32 %v9828, %v10120
        %v10122 = vand.u32 %v8310, 4294901760
        %10123 = vmatmul.f32.gmra.mxu0 %v10122
        %v10124 = vpop.f32.mrf.mxu0
        %v10125 = vadd.f32 %v9836, %v10124
        %v10126 = vand.u32 %v8312, 4294901760
        %10127 = vmatmul.f32.gmra.mxu0 %v10126
        %v10128 = vpop.f32.mrf.mxu0
        %v10129 = vadd.f32 %v9844, %v10128
        %v10130 = vand.u32 %v8314, 4294901760
        %10131 = vmatmul.f32.gmra.mxu0 %v10130
        %v10132 = vpop.f32.mrf.mxu0
        %v10133 = vadd.f32 %v9852, %v10132
        %v10134 = vand.u32 %v8316, 4294901760
        %10135 = vmatmul.f32.gmra.mxu0 %v10134
        %v10136 = vpop.f32.mrf.mxu0
        %v10137 = vadd.f32 %v9860, %v10136
        %v10138 = vand.u32 %v8318, 4294901760
        %10139 = vmatmul.f32.gmra.mxu0 %v10138
        %v10140 = vpop.f32.mrf.mxu0
        %v10141 = vadd.f32 %v9868, %v10140
        %v10142 = vand.u32 %v8320, 4294901760
        %10143 = vmatmul.f32.gmra.mxu0 %v10142
        %v10144 = vpop.f32.mrf.mxu0
        %v10145 = vadd.f32 %v9876, %v10144
        %v10146 = vand.u32 %v8322, 4294901760
        %10147 = vmatmul.f32.gmra.mxu0 %v10146
        %v10148 = vpop.f32.mrf.mxu0
        %v10149 = vadd.f32 %v9884, %v10148
        %v10150 = vand.u32 %v8324, 4294901760
        %10151 = vmatmul.f32.gmra.mxu0 %v10150
        %v10152 = vpop.f32.mrf.mxu0
        %v10153 = vadd.f32 %v9892, %v10152
        %v10154 = vand.u32 %v8326, 4294901760
        %10155 = vmatmul.f32.gmra.mxu0 %v10154
        %v10156 = vpop.f32.mrf.mxu0
        %v10157 = vadd.f32 %v9900, %v10156
        %v10158 = vand.u32 %v8328, 4294901760
        %10159 = vmatmul.f32.gmra.mxu0 %v10158
        %v10160 = vpop.f32.mrf.mxu0
        %v10161 = vadd.f32 %v9908, %v10160
        %v10162 = vand.u32 %v8330, 4294901760
        %10163 = vmatmul.f32.gmra.mxu0 %v10162
        %v10164 = vpop.f32.mrf.mxu0
        %v10165 = vadd.f32 %v9916, %v10164
        %v10166 = vand.u32 %v8332, 4294901760
        %10167 = vmatmul.f32.gmra.mxu0 %v10166
        %v10168 = vpop.f32.mrf.mxu0
        %v10169 = vadd.f32 %v9924, %v10168
        %v10170 = vand.u32 %v8334, 4294901760
        %10171 = vmatmul.f32.gmra.mxu0 %v10170
        %v10172 = vpop.f32.mrf.mxu0
        %v10173 = vadd.f32 %v9932, %v10172
        %v10174 = vand.u32 %v8336, 4294901760
        %10175 = vmatmul.f32.gmra.mxu0 %v10174
        %v10176 = vpop.f32.mrf.mxu0
        %v10177 = vadd.f32 %v9940, %v10176
        %v10178 = vand.u32 %v8338, 4294901760
        %10179 = vmatmul.f32.gmra.mxu0 %v10178
        %v10180 = vpop.f32.mrf.mxu0
        %v10181 = vadd.f32 %v9948, %v10180
        %v10182 = vand.u32 %v8340, 4294901760
        %10183 = vmatmul.f32.gmra.mxu0 %v10182
        %v10184 = vpop.f32.mrf.mxu0
        %v10185 = vadd.f32 %v9956, %v10184
        %v10186 = vand.u32 %v8342, 4294901760
        %10187 = vmatmul.f32.gmra.mxu0 %v10186
        %v10188 = vpop.f32.mrf.mxu0
        %v10189 = vadd.f32 %v9964, %v10188
        %10190 = vdwg.mxu0
        %v10191 = vand.u32 %v8374, 4294901760
        %v10192 = vsub.f32 %v8374, %v10191
        %10193 = vmatpush.msra.mxu0 %v10192
        %v10194 = vand.u32 %v8373, 4294901760
        %v10195 = vsub.f32 %v8373, %v10194
        %10196 = vmatpush.msra.mxu0 %v10195
        %v10197 = vand.u32 %v8372, 4294901760
        %v10198 = vsub.f32 %v8372, %v10197
        %10199 = vmatpush.msra.mxu0 %v10198
        %v10200 = vand.u32 %v8371, 4294901760
        %v10201 = vsub.f32 %v8371, %v10200
        %10202 = vmatpush.msra.mxu0 %v10201
        %v10203 = vand.u32 %v8370, 4294901760
        %v10204 = vsub.f32 %v8370, %v10203
        %10205 = vmatpush.msra.mxu0 %v10204
        %v10206 = vand.u32 %v8369, 4294901760
        %v10207 = vsub.f32 %v8369, %v10206
        %10208 = vmatpush.msra.mxu0 %v10207
        %v10209 = vand.u32 %v8368, 4294901760
        %v10210 = vsub.f32 %v8368, %v10209
        %10211 = vmatpush.msra.mxu0 %v10210
        %v10212 = vand.u32 %v8367, 4294901760
        %v10213 = vsub.f32 %v8367, %v10212
        %10214 = vmatpush.msra.mxu0 %v10213
        %v10215 = vand.u32 %v8366, 4294901760
        %v10216 = vsub.f32 %v8366, %v10215
        %10217 = vmatpush.msra.mxu0 %v10216
        %v10218 = vand.u32 %v8365, 4294901760
        %v10219 = vsub.f32 %v8365, %v10218
        %10220 = vmatpush.msra.mxu0 %v10219
        %v10221 = vand.u32 %v8364, 4294901760
        %v10222 = vsub.f32 %v8364, %v10221
        %10223 = vmatpush.msra.mxu0 %v10222
        %v10224 = vand.u32 %v8363, 4294901760
        %v10225 = vsub.f32 %v8363, %v10224
        %10226 = vmatpush.msra.mxu0 %v10225
        %v10227 = vand.u32 %v8362, 4294901760
        %v10228 = vsub.f32 %v8362, %v10227
        %10229 = vmatpush.msra.mxu0 %v10228
        %v10230 = vand.u32 %v8361, 4294901760
        %v10231 = vsub.f32 %v8361, %v10230
        %10232 = vmatpush.msra.mxu0 %v10231
        %v10233 = vand.u32 %v8360, 4294901760
        %v10234 = vsub.f32 %v8360, %v10233
        %10235 = vmatpush.msra.mxu0 %v10234
        %v10236 = vand.u32 %v8359, 4294901760
        %v10237 = vsub.f32 %v8359, %v10236
        %10238 = vmatpush.msra.mxu0 %v10237
        %v10239 = vand.u32 %v8280, 4294901760
        %v10240 = vsub.f32 %v8280, %v10239
        %10241 = vmatmul.f32.gmra.mxu0 %v10240
        %v10242 = vpop.f32.mrf.mxu0
        %v10243 = vadd.f32 %v10065, %v10242
        %v10244 = vand.u32 %v8282, 4294901760
        %v10245 = vsub.f32 %v8282, %v10244
        %10246 = vmatmul.f32.gmra.mxu0 %v10245
        %v10247 = vpop.f32.mrf.mxu0
        %v10248 = vadd.f32 %v10069, %v10247
        %v10249 = vand.u32 %v8284, 4294901760
        %v10250 = vsub.f32 %v8284, %v10249
        %10251 = vmatmul.f32.gmra.mxu0 %v10250
        %v10252 = vpop.f32.mrf.mxu0
        %v10253 = vadd.f32 %v10073, %v10252
        %v10254 = vand.u32 %v8286, 4294901760
        %v10255 = vsub.f32 %v8286, %v10254
        %10256 = vmatmul.f32.gmra.mxu0 %v10255
        %v10257 = vpop.f32.mrf.mxu0
        %v10258 = vadd.f32 %v10077, %v10257
        %v10259 = vand.u32 %v8288, 4294901760
        %v10260 = vsub.f32 %v8288, %v10259
        %10261 = vmatmul.f32.gmra.mxu0 %v10260
        %v10262 = vpop.f32.mrf.mxu0
        %v10263 = vadd.f32 %v10081, %v10262
        %v10264 = vand.u32 %v8290, 4294901760
        %v10265 = vsub.f32 %v8290, %v10264
        %10266 = vmatmul.f32.gmra.mxu0 %v10265
        %v10267 = vpop.f32.mrf.mxu0
        %v10268 = vadd.f32 %v10085, %v10267
        %v10269 = vand.u32 %v8292, 4294901760
        %v10270 = vsub.f32 %v8292, %v10269
        %10271 = vmatmul.f32.gmra.mxu0 %v10270
        %v10272 = vpop.f32.mrf.mxu0
        %v10273 = vadd.f32 %v10089, %v10272
        %v10274 = vand.u32 %v8294, 4294901760
        %v10275 = vsub.f32 %v8294, %v10274
        %10276 = vmatmul.f32.gmra.mxu0 %v10275
        %v10277 = vpop.f32.mrf.mxu0
        %v10278 = vadd.f32 %v10093, %v10277
        %v10279 = vand.u32 %v8296, 4294901760
        %v10280 = vsub.f32 %v8296, %v10279
        %10281 = vmatmul.f32.gmra.mxu0 %v10280
        %v10282 = vpop.f32.mrf.mxu0
        %v10283 = vadd.f32 %v10097, %v10282
        %v10284 = vand.u32 %v8298, 4294901760
        %v10285 = vsub.f32 %v8298, %v10284
        %10286 = vmatmul.f32.gmra.mxu0 %v10285
        %v10287 = vpop.f32.mrf.mxu0
        %v10288 = vadd.f32 %v10101, %v10287
        %v10289 = vand.u32 %v8300, 4294901760
        %v10290 = vsub.f32 %v8300, %v10289
        %10291 = vmatmul.f32.gmra.mxu0 %v10290
        %v10292 = vpop.f32.mrf.mxu0
        %v10293 = vadd.f32 %v10105, %v10292
        %v10294 = vand.u32 %v8302, 4294901760
        %v10295 = vsub.f32 %v8302, %v10294
        %10296 = vmatmul.f32.gmra.mxu0 %v10295
        %v10297 = vpop.f32.mrf.mxu0
        %v10298 = vadd.f32 %v10109, %v10297
        %v10299 = vand.u32 %v8304, 4294901760
        %v10300 = vsub.f32 %v8304, %v10299
        %10301 = vmatmul.f32.gmra.mxu0 %v10300
        %v10302 = vpop.f32.mrf.mxu0
        %v10303 = vadd.f32 %v10113, %v10302
        %v10304 = vand.u32 %v8306, 4294901760
        %v10305 = vsub.f32 %v8306, %v10304
        %10306 = vmatmul.f32.gmra.mxu0 %v10305
        %v10307 = vpop.f32.mrf.mxu0
        %v10308 = vadd.f32 %v10117, %v10307
        %v10309 = vand.u32 %v8308, 4294901760
        %v10310 = vsub.f32 %v8308, %v10309
        %10311 = vmatmul.f32.gmra.mxu0 %v10310
        %v10312 = vpop.f32.mrf.mxu0
        %v10313 = vadd.f32 %v10121, %v10312
        %v10314 = vand.u32 %v8310, 4294901760
        %v10315 = vsub.f32 %v8310, %v10314
        %10316 = vmatmul.f32.gmra.mxu0 %v10315
        %v10317 = vpop.f32.mrf.mxu0
        %v10318 = vadd.f32 %v10125, %v10317
        %v10319 = vand.u32 %v8312, 4294901760
        %v10320 = vsub.f32 %v8312, %v10319
        %10321 = vmatmul.f32.gmra.mxu0 %v10320
        %v10322 = vpop.f32.mrf.mxu0
        %v10323 = vadd.f32 %v10129, %v10322
        %v10324 = vand.u32 %v8314, 4294901760
        %v10325 = vsub.f32 %v8314, %v10324
        %10326 = vmatmul.f32.gmra.mxu0 %v10325
        %v10327 = vpop.f32.mrf.mxu0
        %v10328 = vadd.f32 %v10133, %v10327
        %v10329 = vand.u32 %v8316, 4294901760
        %v10330 = vsub.f32 %v8316, %v10329
        %10331 = vmatmul.f32.gmra.mxu0 %v10330
        %v10332 = vpop.f32.mrf.mxu0
        %v10333 = vadd.f32 %v10137, %v10332
        %v10334 = vand.u32 %v8318, 4294901760
        %v10335 = vsub.f32 %v8318, %v10334
        %10336 = vmatmul.f32.gmra.mxu0 %v10335
        %v10337 = vpop.f32.mrf.mxu0
        %v10338 = vadd.f32 %v10141, %v10337
        %v10339 = vand.u32 %v8320, 4294901760
        %v10340 = vsub.f32 %v8320, %v10339
        %10341 = vmatmul.f32.gmra.mxu0 %v10340
        %v10342 = vpop.f32.mrf.mxu0
        %v10343 = vadd.f32 %v10145, %v10342
        %v10344 = vand.u32 %v8322, 4294901760
        %v10345 = vsub.f32 %v8322, %v10344
        %10346 = vmatmul.f32.gmra.mxu0 %v10345
        %v10347 = vpop.f32.mrf.mxu0
        %v10348 = vadd.f32 %v10149, %v10347
        %v10349 = vand.u32 %v8324, 4294901760
        %v10350 = vsub.f32 %v8324, %v10349
        %10351 = vmatmul.f32.gmra.mxu0 %v10350
        %v10352 = vpop.f32.mrf.mxu0
        %v10353 = vadd.f32 %v10153, %v10352
        %v10354 = vand.u32 %v8326, 4294901760
        %v10355 = vsub.f32 %v8326, %v10354
        %10356 = vmatmul.f32.gmra.mxu0 %v10355
        %v10357 = vpop.f32.mrf.mxu0
        %v10358 = vadd.f32 %v10157, %v10357
        %v10359 = vand.u32 %v8328, 4294901760
        %v10360 = vsub.f32 %v8328, %v10359
        %10361 = vmatmul.f32.gmra.mxu0 %v10360
        %v10362 = vpop.f32.mrf.mxu0
        %v10363 = vadd.f32 %v10161, %v10362
        %v10364 = vand.u32 %v8330, 4294901760
        %v10365 = vsub.f32 %v8330, %v10364
        %10366 = vmatmul.f32.gmra.mxu0 %v10365
        %v10367 = vpop.f32.mrf.mxu0
        %v10368 = vadd.f32 %v10165, %v10367
        %v10369 = vand.u32 %v8332, 4294901760
        %v10370 = vsub.f32 %v8332, %v10369
        %10371 = vmatmul.f32.gmra.mxu0 %v10370
        %v10372 = vpop.f32.mrf.mxu0
        %v10373 = vadd.f32 %v10169, %v10372
        %v10374 = vand.u32 %v8334, 4294901760
        %v10375 = vsub.f32 %v8334, %v10374
        %10376 = vmatmul.f32.gmra.mxu0 %v10375
        %v10377 = vpop.f32.mrf.mxu0
        %v10378 = vadd.f32 %v10173, %v10377
        %v10379 = vand.u32 %v8336, 4294901760
        %v10380 = vsub.f32 %v8336, %v10379
        %10381 = vmatmul.f32.gmra.mxu0 %v10380
        %v10382 = vpop.f32.mrf.mxu0
        %v10383 = vadd.f32 %v10177, %v10382
        %v10384 = vand.u32 %v8338, 4294901760
        %v10385 = vsub.f32 %v8338, %v10384
        %10386 = vmatmul.f32.gmra.mxu0 %v10385
        %v10387 = vpop.f32.mrf.mxu0
        %v10388 = vadd.f32 %v10181, %v10387
        %v10389 = vand.u32 %v8340, 4294901760
        %v10390 = vsub.f32 %v8340, %v10389
        %10391 = vmatmul.f32.gmra.mxu0 %v10390
        %v10392 = vpop.f32.mrf.mxu0
        %v10393 = vadd.f32 %v10185, %v10392
        %v10394 = vand.u32 %v8342, 4294901760
        %v10395 = vsub.f32 %v8342, %v10394
        %10396 = vmatmul.f32.gmra.mxu0 %v10395
        %v10397 = vpop.f32.mrf.mxu0
        %v10398 = vadd.f32 %v10189, %v10397
        %10399 = vdwg.mxu0
        %v10400 = vand.u32 %v8374, 4294901760
        %10401 = vmatpush.msra.mxu0 %v10400
        %v10402 = vand.u32 %v8373, 4294901760
        %10403 = vmatpush.msra.mxu0 %v10402
        %v10404 = vand.u32 %v8372, 4294901760
        %10405 = vmatpush.msra.mxu0 %v10404
        %v10406 = vand.u32 %v8371, 4294901760
        %10407 = vmatpush.msra.mxu0 %v10406
        %v10408 = vand.u32 %v8370, 4294901760
        %10409 = vmatpush.msra.mxu0 %v10408
        %v10410 = vand.u32 %v8369, 4294901760
        %10411 = vmatpush.msra.mxu0 %v10410
        %v10412 = vand.u32 %v8368, 4294901760
        %10413 = vmatpush.msra.mxu0 %v10412
        %v10414 = vand.u32 %v8367, 4294901760
        %10415 = vmatpush.msra.mxu0 %v10414
        %v10416 = vand.u32 %v8366, 4294901760
        %10417 = vmatpush.msra.mxu0 %v10416
        %v10418 = vand.u32 %v8365, 4294901760
        %10419 = vmatpush.msra.mxu0 %v10418
        %v10420 = vand.u32 %v8364, 4294901760
        %10421 = vmatpush.msra.mxu0 %v10420
        %v10422 = vand.u32 %v8363, 4294901760
        %10423 = vmatpush.msra.mxu0 %v10422
        %v10424 = vand.u32 %v8362, 4294901760
        %10425 = vmatpush.msra.mxu0 %v10424
        %v10426 = vand.u32 %v8361, 4294901760
        %10427 = vmatpush.msra.mxu0 %v10426
        %v10428 = vand.u32 %v8360, 4294901760
        %10429 = vmatpush.msra.mxu0 %v10428
        %v10430 = vand.u32 %v8359, 4294901760
        %10431 = vmatpush.msra.mxu0 %v10430
        %v10432 = vand.u32 %v8280, 4294901760
        %v10433 = vsub.f32 %v8280, %v10432
        %v10434 = vand.u32 %v10433, 4294901760
        %10435 = vmatmul.f32.gmra.mxu0 %v10434
        %v10436 = vpop.f32.mrf.mxu0
        %v10437 = vadd.f32 %v10243, %v10436
        %v10438 = vand.u32 %v8282, 4294901760
        %v10439 = vsub.f32 %v8282, %v10438
        %v10440 = vand.u32 %v10439, 4294901760
        %10441 = vmatmul.f32.gmra.mxu0 %v10440
        %v10442 = vpop.f32.mrf.mxu0
        %v10443 = vadd.f32 %v10248, %v10442
        %v10444 = vand.u32 %v8284, 4294901760
        %v10445 = vsub.f32 %v8284, %v10444
        %v10446 = vand.u32 %v10445, 4294901760
        %10447 = vmatmul.f32.gmra.mxu0 %v10446
        %v10448 = vpop.f32.mrf.mxu0
        %v10449 = vadd.f32 %v10253, %v10448
        %v10450 = vand.u32 %v8286, 4294901760
        %v10451 = vsub.f32 %v8286, %v10450
        %v10452 = vand.u32 %v10451, 4294901760
        %10453 = vmatmul.f32.gmra.mxu0 %v10452
        %v10454 = vpop.f32.mrf.mxu0
        %v10455 = vadd.f32 %v10258, %v10454
        %v10456 = vand.u32 %v8288, 4294901760
        %v10457 = vsub.f32 %v8288, %v10456
        %v10458 = vand.u32 %v10457, 4294901760
        %10459 = vmatmul.f32.gmra.mxu0 %v10458
        %v10460 = vpop.f32.mrf.mxu0
        %v10461 = vadd.f32 %v10263, %v10460
        %v10462 = vand.u32 %v8290, 4294901760
        %v10463 = vsub.f32 %v8290, %v10462
        %v10464 = vand.u32 %v10463, 4294901760
        %10465 = vmatmul.f32.gmra.mxu0 %v10464
        %v10466 = vpop.f32.mrf.mxu0
        %v10467 = vadd.f32 %v10268, %v10466
        %v10468 = vand.u32 %v8292, 4294901760
        %v10469 = vsub.f32 %v8292, %v10468
        %v10470 = vand.u32 %v10469, 4294901760
        %10471 = vmatmul.f32.gmra.mxu0 %v10470
        %v10472 = vpop.f32.mrf.mxu0
        %v10473 = vadd.f32 %v10273, %v10472
        %v10474 = vand.u32 %v8294, 4294901760
        %v10475 = vsub.f32 %v8294, %v10474
        %v10476 = vand.u32 %v10475, 4294901760
        %10477 = vmatmul.f32.gmra.mxu0 %v10476
        %v10478 = vpop.f32.mrf.mxu0
        %v10479 = vadd.f32 %v10278, %v10478
        %v10480 = vand.u32 %v8296, 4294901760
        %v10481 = vsub.f32 %v8296, %v10480
        %v10482 = vand.u32 %v10481, 4294901760
        %10483 = vmatmul.f32.gmra.mxu0 %v10482
        %v10484 = vpop.f32.mrf.mxu0
        %v10485 = vadd.f32 %v10283, %v10484
        %v10486 = vand.u32 %v8298, 4294901760
        %v10487 = vsub.f32 %v8298, %v10486
        %v10488 = vand.u32 %v10487, 4294901760
        %10489 = vmatmul.f32.gmra.mxu0 %v10488
        %v10490 = vpop.f32.mrf.mxu0
        %v10491 = vadd.f32 %v10288, %v10490
        %v10492 = vand.u32 %v8300, 4294901760
        %v10493 = vsub.f32 %v8300, %v10492
        %v10494 = vand.u32 %v10493, 4294901760
        %10495 = vmatmul.f32.gmra.mxu0 %v10494
        %v10496 = vpop.f32.mrf.mxu0
        %v10497 = vadd.f32 %v10293, %v10496
        %v10498 = vand.u32 %v8302, 4294901760
        %v10499 = vsub.f32 %v8302, %v10498
        %v10500 = vand.u32 %v10499, 4294901760
        %10501 = vmatmul.f32.gmra.mxu0 %v10500
        %v10502 = vpop.f32.mrf.mxu0
        %v10503 = vadd.f32 %v10298, %v10502
        %v10504 = vand.u32 %v8304, 4294901760
        %v10505 = vsub.f32 %v8304, %v10504
        %v10506 = vand.u32 %v10505, 4294901760
        %10507 = vmatmul.f32.gmra.mxu0 %v10506
        %v10508 = vpop.f32.mrf.mxu0
        %v10509 = vadd.f32 %v10303, %v10508
        %v10510 = vand.u32 %v8306, 4294901760
        %v10511 = vsub.f32 %v8306, %v10510
        %v10512 = vand.u32 %v10511, 4294901760
        %10513 = vmatmul.f32.gmra.mxu0 %v10512
        %v10514 = vpop.f32.mrf.mxu0
        %v10515 = vadd.f32 %v10308, %v10514
        %v10516 = vand.u32 %v8308, 4294901760
        %v10517 = vsub.f32 %v8308, %v10516
        %v10518 = vand.u32 %v10517, 4294901760
        %10519 = vmatmul.f32.gmra.mxu0 %v10518
        %v10520 = vpop.f32.mrf.mxu0
        %v10521 = vadd.f32 %v10313, %v10520
        %v10522 = vand.u32 %v8310, 4294901760
        %v10523 = vsub.f32 %v8310, %v10522
        %v10524 = vand.u32 %v10523, 4294901760
        %10525 = vmatmul.f32.gmra.mxu0 %v10524
        %v10526 = vpop.f32.mrf.mxu0
        %v10527 = vadd.f32 %v10318, %v10526
        %v10528 = vand.u32 %v8312, 4294901760
        %v10529 = vsub.f32 %v8312, %v10528
        %v10530 = vand.u32 %v10529, 4294901760
        %10531 = vmatmul.f32.gmra.mxu0 %v10530
        %v10532 = vpop.f32.mrf.mxu0
        %v10533 = vadd.f32 %v10323, %v10532
        %v10534 = vand.u32 %v8314, 4294901760
        %v10535 = vsub.f32 %v8314, %v10534
        %v10536 = vand.u32 %v10535, 4294901760
        %10537 = vmatmul.f32.gmra.mxu0 %v10536
        %v10538 = vpop.f32.mrf.mxu0
        %v10539 = vadd.f32 %v10328, %v10538
        %v10540 = vand.u32 %v8316, 4294901760
        %v10541 = vsub.f32 %v8316, %v10540
        %v10542 = vand.u32 %v10541, 4294901760
        %10543 = vmatmul.f32.gmra.mxu0 %v10542
        %v10544 = vpop.f32.mrf.mxu0
        %v10545 = vadd.f32 %v10333, %v10544
        %v10546 = vand.u32 %v8318, 4294901760
        %v10547 = vsub.f32 %v8318, %v10546
        %v10548 = vand.u32 %v10547, 4294901760
        %10549 = vmatmul.f32.gmra.mxu0 %v10548
        %v10550 = vpop.f32.mrf.mxu0
        %v10551 = vadd.f32 %v10338, %v10550
        %v10552 = vand.u32 %v8320, 4294901760
        %v10553 = vsub.f32 %v8320, %v10552
        %v10554 = vand.u32 %v10553, 4294901760
        %10555 = vmatmul.f32.gmra.mxu0 %v10554
        %v10556 = vpop.f32.mrf.mxu0
        %v10557 = vadd.f32 %v10343, %v10556
        %v10558 = vand.u32 %v8322, 4294901760
        %v10559 = vsub.f32 %v8322, %v10558
        %v10560 = vand.u32 %v10559, 4294901760
        %10561 = vmatmul.f32.gmra.mxu0 %v10560
        %v10562 = vpop.f32.mrf.mxu0
        %v10563 = vadd.f32 %v10348, %v10562
        %v10564 = vand.u32 %v8324, 4294901760
        %v10565 = vsub.f32 %v8324, %v10564
        %v10566 = vand.u32 %v10565, 4294901760
        %10567 = vmatmul.f32.gmra.mxu0 %v10566
        %v10568 = vpop.f32.mrf.mxu0
        %v10569 = vadd.f32 %v10353, %v10568
        %v10570 = vand.u32 %v8326, 4294901760
        %v10571 = vsub.f32 %v8326, %v10570
        %v10572 = vand.u32 %v10571, 4294901760
        %10573 = vmatmul.f32.gmra.mxu0 %v10572
        %v10574 = vpop.f32.mrf.mxu0
        %v10575 = vadd.f32 %v10358, %v10574
        %v10576 = vand.u32 %v8328, 4294901760
        %v10577 = vsub.f32 %v8328, %v10576
        %v10578 = vand.u32 %v10577, 4294901760
        %10579 = vmatmul.f32.gmra.mxu0 %v10578
        %v10580 = vpop.f32.mrf.mxu0
        %v10581 = vadd.f32 %v10363, %v10580
        %v10582 = vand.u32 %v8330, 4294901760
        %v10583 = vsub.f32 %v8330, %v10582
        %v10584 = vand.u32 %v10583, 4294901760
        %10585 = vmatmul.f32.gmra.mxu0 %v10584
        %v10586 = vpop.f32.mrf.mxu0
        %v10587 = vadd.f32 %v10368, %v10586
        %v10588 = vand.u32 %v8332, 4294901760
        %v10589 = vsub.f32 %v8332, %v10588
        %v10590 = vand.u32 %v10589, 4294901760
        %10591 = vmatmul.f32.gmra.mxu0 %v10590
        %v10592 = vpop.f32.mrf.mxu0
        %v10593 = vadd.f32 %v10373, %v10592
        %v10594 = vand.u32 %v8334, 4294901760
        %v10595 = vsub.f32 %v8334, %v10594
        %v10596 = vand.u32 %v10595, 4294901760
        %10597 = vmatmul.f32.gmra.mxu0 %v10596
        %v10598 = vpop.f32.mrf.mxu0
        %v10599 = vadd.f32 %v10378, %v10598
        %v10600 = vand.u32 %v8336, 4294901760
        %v10601 = vsub.f32 %v8336, %v10600
        %v10602 = vand.u32 %v10601, 4294901760
        %10603 = vmatmul.f32.gmra.mxu0 %v10602
        %v10604 = vpop.f32.mrf.mxu0
        %v10605 = vadd.f32 %v10383, %v10604
        %v10606 = vand.u32 %v8338, 4294901760
        %v10607 = vsub.f32 %v8338, %v10606
        %v10608 = vand.u32 %v10607, 4294901760
        %10609 = vmatmul.f32.gmra.mxu0 %v10608
        %v10610 = vpop.f32.mrf.mxu0
        %v10611 = vadd.f32 %v10388, %v10610
        %v10612 = vand.u32 %v8340, 4294901760
        %v10613 = vsub.f32 %v8340, %v10612
        %v10614 = vand.u32 %v10613, 4294901760
        %10615 = vmatmul.f32.gmra.mxu0 %v10614
        %v10616 = vpop.f32.mrf.mxu0
        %v10617 = vadd.f32 %v10393, %v10616
        %v10618 = vand.u32 %v8342, 4294901760
        %v10619 = vsub.f32 %v8342, %v10618
        %v10620 = vand.u32 %v10619, 4294901760
        %10621 = vmatmul.f32.gmra.mxu0 %v10620
        %v10622 = vpop.f32.mrf.mxu0
        %v10623 = vadd.f32 %v10398, %v10622
        %10624 = vdwg.mxu0
        %v10625 = vand.u32 %v8374, 4294901760
        %v10626 = vsub.f32 %v8374, %v10625
        %v10627 = vand.u32 %v10626, 4294901760
        %10628 = vmatpush.msra.mxu0 %v10627
        %v10629 = vand.u32 %v8373, 4294901760
        %v10630 = vsub.f32 %v8373, %v10629
        %v10631 = vand.u32 %v10630, 4294901760
        %10632 = vmatpush.msra.mxu0 %v10631
        %v10633 = vand.u32 %v8372, 4294901760
        %v10634 = vsub.f32 %v8372, %v10633
        %v10635 = vand.u32 %v10634, 4294901760
        %10636 = vmatpush.msra.mxu0 %v10635
        %v10637 = vand.u32 %v8371, 4294901760
        %v10638 = vsub.f32 %v8371, %v10637
        %v10639 = vand.u32 %v10638, 4294901760
        %10640 = vmatpush.msra.mxu0 %v10639
        %v10641 = vand.u32 %v8370, 4294901760
        %v10642 = vsub.f32 %v8370, %v10641
        %v10643 = vand.u32 %v10642, 4294901760
        %10644 = vmatpush.msra.mxu0 %v10643
        %v10645 = vand.u32 %v8369, 4294901760
        %v10646 = vsub.f32 %v8369, %v10645
        %v10647 = vand.u32 %v10646, 4294901760
        %10648 = vmatpush.msra.mxu0 %v10647
        %v10649 = vand.u32 %v8368, 4294901760
        %v10650 = vsub.f32 %v8368, %v10649
        %v10651 = vand.u32 %v10650, 4294901760
        %10652 = vmatpush.msra.mxu0 %v10651
        %v10653 = vand.u32 %v8367, 4294901760
        %v10654 = vsub.f32 %v8367, %v10653
        %v10655 = vand.u32 %v10654, 4294901760
        %10656 = vmatpush.msra.mxu0 %v10655
        %v10657 = vand.u32 %v8366, 4294901760
        %v10658 = vsub.f32 %v8366, %v10657
        %v10659 = vand.u32 %v10658, 4294901760
        %10660 = vmatpush.msra.mxu0 %v10659
        %v10661 = vand.u32 %v8365, 4294901760
        %v10662 = vsub.f32 %v8365, %v10661
        %v10663 = vand.u32 %v10662, 4294901760
        %10664 = vmatpush.msra.mxu0 %v10663
        %v10665 = vand.u32 %v8364, 4294901760
        %v10666 = vsub.f32 %v8364, %v10665
        %v10667 = vand.u32 %v10666, 4294901760
        %10668 = vmatpush.msra.mxu0 %v10667
        %v10669 = vand.u32 %v8363, 4294901760
        %v10670 = vsub.f32 %v8363, %v10669
        %v10671 = vand.u32 %v10670, 4294901760
        %10672 = vmatpush.msra.mxu0 %v10671
        %v10673 = vand.u32 %v8362, 4294901760
        %v10674 = vsub.f32 %v8362, %v10673
        %v10675 = vand.u32 %v10674, 4294901760
        %10676 = vmatpush.msra.mxu0 %v10675
        %v10677 = vand.u32 %v8361, 4294901760
        %v10678 = vsub.f32 %v8361, %v10677
        %v10679 = vand.u32 %v10678, 4294901760
        %10680 = vmatpush.msra.mxu0 %v10679
        %v10681 = vand.u32 %v8360, 4294901760
        %v10682 = vsub.f32 %v8360, %v10681
        %v10683 = vand.u32 %v10682, 4294901760
        %10684 = vmatpush.msra.mxu0 %v10683
        %v10685 = vand.u32 %v8359, 4294901760
        %v10686 = vsub.f32 %v8359, %v10685
        %v10687 = vand.u32 %v10686, 4294901760
        %10688 = vmatpush.msra.mxu0 %v10687
        %v10689 = vand.u32 %v8280, 4294901760
        %10690 = vmatmul.f32.gmra.mxu0 %v10689
        %v10691 = vpop.f32.mrf.mxu0
        %v10692 = vadd.f32 %v10437, %v10691
        %v10693 = vand.u32 %v8282, 4294901760
        %10694 = vmatmul.f32.gmra.mxu0 %v10693
        %v10695 = vpop.f32.mrf.mxu0
        %v10696 = vadd.f32 %v10443, %v10695
        %v10697 = vand.u32 %v8284, 4294901760
        %10698 = vmatmul.f32.gmra.mxu0 %v10697
        %v10699 = vpop.f32.mrf.mxu0
        %v10700 = vadd.f32 %v10449, %v10699
        %v10701 = vand.u32 %v8286, 4294901760
        %10702 = vmatmul.f32.gmra.mxu0 %v10701
        %v10703 = vpop.f32.mrf.mxu0
        %v10704 = vadd.f32 %v10455, %v10703
        %v10705 = vand.u32 %v8288, 4294901760
        %10706 = vmatmul.f32.gmra.mxu0 %v10705
        %v10707 = vpop.f32.mrf.mxu0
        %v10708 = vadd.f32 %v10461, %v10707
        %v10709 = vand.u32 %v8290, 4294901760
        %10710 = vmatmul.f32.gmra.mxu0 %v10709
        %v10711 = vpop.f32.mrf.mxu0
        %v10712 = vadd.f32 %v10467, %v10711
        %v10713 = vand.u32 %v8292, 4294901760
        %10714 = vmatmul.f32.gmra.mxu0 %v10713
        %v10715 = vpop.f32.mrf.mxu0
        %v10716 = vadd.f32 %v10473, %v10715
        %v10717 = vand.u32 %v8294, 4294901760
        %10718 = vmatmul.f32.gmra.mxu0 %v10717
        %v10719 = vpop.f32.mrf.mxu0
        %v10720 = vadd.f32 %v10479, %v10719
        %v10721 = vand.u32 %v8296, 4294901760
        %10722 = vmatmul.f32.gmra.mxu0 %v10721
        %v10723 = vpop.f32.mrf.mxu0
        %v10724 = vadd.f32 %v10485, %v10723
        %v10725 = vand.u32 %v8298, 4294901760
        %10726 = vmatmul.f32.gmra.mxu0 %v10725
        %v10727 = vpop.f32.mrf.mxu0
        %v10728 = vadd.f32 %v10491, %v10727
        %v10729 = vand.u32 %v8300, 4294901760
        %10730 = vmatmul.f32.gmra.mxu0 %v10729
        %v10731 = vpop.f32.mrf.mxu0
        %v10732 = vadd.f32 %v10497, %v10731
        %v10733 = vand.u32 %v8302, 4294901760
        %10734 = vmatmul.f32.gmra.mxu0 %v10733
        %v10735 = vpop.f32.mrf.mxu0
        %v10736 = vadd.f32 %v10503, %v10735
        %v10737 = vand.u32 %v8304, 4294901760
        %10738 = vmatmul.f32.gmra.mxu0 %v10737
        %v10739 = vpop.f32.mrf.mxu0
        %v10740 = vadd.f32 %v10509, %v10739
        %v10741 = vand.u32 %v8306, 4294901760
        %10742 = vmatmul.f32.gmra.mxu0 %v10741
        %v10743 = vpop.f32.mrf.mxu0
        %v10744 = vadd.f32 %v10515, %v10743
        %v10745 = vand.u32 %v8308, 4294901760
        %10746 = vmatmul.f32.gmra.mxu0 %v10745
        %v10747 = vpop.f32.mrf.mxu0
        %v10748 = vadd.f32 %v10521, %v10747
        %v10749 = vand.u32 %v8310, 4294901760
        %10750 = vmatmul.f32.gmra.mxu0 %v10749
        %v10751 = vpop.f32.mrf.mxu0
        %v10752 = vadd.f32 %v10527, %v10751
        %v10753 = vand.u32 %v8312, 4294901760
        %10754 = vmatmul.f32.gmra.mxu0 %v10753
        %v10755 = vpop.f32.mrf.mxu0
        %v10756 = vadd.f32 %v10533, %v10755
        %v10757 = vand.u32 %v8314, 4294901760
        %10758 = vmatmul.f32.gmra.mxu0 %v10757
        %v10759 = vpop.f32.mrf.mxu0
        %v10760 = vadd.f32 %v10539, %v10759
        %v10761 = vand.u32 %v8316, 4294901760
        %10762 = vmatmul.f32.gmra.mxu0 %v10761
        %v10763 = vpop.f32.mrf.mxu0
        %v10764 = vadd.f32 %v10545, %v10763
        %v10765 = vand.u32 %v8318, 4294901760
        %10766 = vmatmul.f32.gmra.mxu0 %v10765
        %v10767 = vpop.f32.mrf.mxu0
        %v10768 = vadd.f32 %v10551, %v10767
        %v10769 = vand.u32 %v8320, 4294901760
        %10770 = vmatmul.f32.gmra.mxu0 %v10769
        %v10771 = vpop.f32.mrf.mxu0
        %v10772 = vadd.f32 %v10557, %v10771
        %v10773 = vand.u32 %v8322, 4294901760
        %10774 = vmatmul.f32.gmra.mxu0 %v10773
        %v10775 = vpop.f32.mrf.mxu0
        %v10776 = vadd.f32 %v10563, %v10775
        %v10777 = vand.u32 %v8324, 4294901760
        %10778 = vmatmul.f32.gmra.mxu0 %v10777
        %v10779 = vpop.f32.mrf.mxu0
        %v10780 = vadd.f32 %v10569, %v10779
        %v10781 = vand.u32 %v8326, 4294901760
        %10782 = vmatmul.f32.gmra.mxu0 %v10781
        %v10783 = vpop.f32.mrf.mxu0
        %v10784 = vadd.f32 %v10575, %v10783
        %v10785 = vand.u32 %v8328, 4294901760
        %10786 = vmatmul.f32.gmra.mxu0 %v10785
        %v10787 = vpop.f32.mrf.mxu0
        %v10788 = vadd.f32 %v10581, %v10787
        %v10789 = vand.u32 %v8330, 4294901760
        %10790 = vmatmul.f32.gmra.mxu0 %v10789
        %v10791 = vpop.f32.mrf.mxu0
        %v10792 = vadd.f32 %v10587, %v10791
        %v10793 = vand.u32 %v8332, 4294901760
        %10794 = vmatmul.f32.gmra.mxu0 %v10793
        %v10795 = vpop.f32.mrf.mxu0
        %v10796 = vadd.f32 %v10593, %v10795
        %v10797 = vand.u32 %v8334, 4294901760
        %10798 = vmatmul.f32.gmra.mxu0 %v10797
        %v10799 = vpop.f32.mrf.mxu0
        %v10800 = vadd.f32 %v10599, %v10799
        %v10801 = vand.u32 %v8336, 4294901760
        %10802 = vmatmul.f32.gmra.mxu0 %v10801
        %v10803 = vpop.f32.mrf.mxu0
        %v10804 = vadd.f32 %v10605, %v10803
        %v10805 = vand.u32 %v8338, 4294901760
        %10806 = vmatmul.f32.gmra.mxu0 %v10805
        %v10807 = vpop.f32.mrf.mxu0
        %v10808 = vadd.f32 %v10611, %v10807
        %v10809 = vand.u32 %v8340, 4294901760
        %10810 = vmatmul.f32.gmra.mxu0 %v10809
        %v10811 = vpop.f32.mrf.mxu0
        %v10812 = vadd.f32 %v10617, %v10811
        %v10813 = vand.u32 %v8342, 4294901760
        %10814 = vmatmul.f32.gmra.mxu0 %v10813
        %v10815 = vpop.f32.mrf.mxu0
        %v10816 = vadd.f32 %v10623, %v10815
        %10817 = vdwg.mxu0
        %v10818 = vand.u32 %v8374, 4294901760
        %10819 = vmatpush.msra.mxu0 %v10818
        %v10820 = vand.u32 %v8373, 4294901760
        %10821 = vmatpush.msra.mxu0 %v10820
        %v10822 = vand.u32 %v8372, 4294901760
        %10823 = vmatpush.msra.mxu0 %v10822
        %v10824 = vand.u32 %v8371, 4294901760
        %10825 = vmatpush.msra.mxu0 %v10824
        %v10826 = vand.u32 %v8370, 4294901760
        %10827 = vmatpush.msra.mxu0 %v10826
        %v10828 = vand.u32 %v8369, 4294901760
        %10829 = vmatpush.msra.mxu0 %v10828
        %v10830 = vand.u32 %v8368, 4294901760
        %10831 = vmatpush.msra.mxu0 %v10830
        %v10832 = vand.u32 %v8367, 4294901760
        %10833 = vmatpush.msra.mxu0 %v10832
        %v10834 = vand.u32 %v8366, 4294901760
        %10835 = vmatpush.msra.mxu0 %v10834
        %v10836 = vand.u32 %v8365, 4294901760
        %10837 = vmatpush.msra.mxu0 %v10836
        %v10838 = vand.u32 %v8364, 4294901760
        %10839 = vmatpush.msra.mxu0 %v10838
        %v10840 = vand.u32 %v8363, 4294901760
        %10841 = vmatpush.msra.mxu0 %v10840
        %v10842 = vand.u32 %v8362, 4294901760
        %10843 = vmatpush.msra.mxu0 %v10842
        %v10844 = vand.u32 %v8361, 4294901760
        %10845 = vmatpush.msra.mxu0 %v10844
        %v10846 = vand.u32 %v8360, 4294901760
        %10847 = vmatpush.msra.mxu0 %v10846
        %v10848 = vand.u32 %v8359, 4294901760
        %10849 = vmatpush.msra.mxu0 %v10848
        %v10850 = vand.u32 %v8280, 4294901760
        %10851 = vmatmul.f32.gmra.mxu0 %v10850
        %v10852 = vpop.f32.mrf.mxu0
        %v10853 = vadd.f32 %v10692, %v10852
        %v10854 = vand.u32 %v8282, 4294901760
        %10855 = vmatmul.f32.gmra.mxu0 %v10854
        %v10856 = vpop.f32.mrf.mxu0
        %v10857 = vadd.f32 %v10696, %v10856
        %v10858 = vand.u32 %v8284, 4294901760
        %10859 = vmatmul.f32.gmra.mxu0 %v10858
        %v10860 = vpop.f32.mrf.mxu0
        %v10861 = vadd.f32 %v10700, %v10860
        %v10862 = vand.u32 %v8286, 4294901760
        %10863 = vmatmul.f32.gmra.mxu0 %v10862
        %v10864 = vpop.f32.mrf.mxu0
        %v10865 = vadd.f32 %v10704, %v10864
        %v10866 = vand.u32 %v8288, 4294901760
        %10867 = vmatmul.f32.gmra.mxu0 %v10866
        %v10868 = vpop.f32.mrf.mxu0
        %v10869 = vadd.f32 %v10708, %v10868
        %v10870 = vand.u32 %v8290, 4294901760
        %10871 = vmatmul.f32.gmra.mxu0 %v10870
        %v10872 = vpop.f32.mrf.mxu0
        %v10873 = vadd.f32 %v10712, %v10872
        %v10874 = vand.u32 %v8292, 4294901760
        %10875 = vmatmul.f32.gmra.mxu0 %v10874
        %v10876 = vpop.f32.mrf.mxu0
        %v10877 = vadd.f32 %v10716, %v10876
        %v10878 = vand.u32 %v8294, 4294901760
        %10879 = vmatmul.f32.gmra.mxu0 %v10878
        %v10880 = vpop.f32.mrf.mxu0
        %v10881 = vadd.f32 %v10720, %v10880
        %v10882 = vand.u32 %v8296, 4294901760
        %10883 = vmatmul.f32.gmra.mxu0 %v10882
        %v10884 = vpop.f32.mrf.mxu0
        %v10885 = vadd.f32 %v10724, %v10884
        %v10886 = vand.u32 %v8298, 4294901760
        %10887 = vmatmul.f32.gmra.mxu0 %v10886
        %v10888 = vpop.f32.mrf.mxu0
        %v10889 = vadd.f32 %v10728, %v10888
        %v10890 = vand.u32 %v8300, 4294901760
        %10891 = vmatmul.f32.gmra.mxu0 %v10890
        %v10892 = vpop.f32.mrf.mxu0
        %v10893 = vadd.f32 %v10732, %v10892
        %v10894 = vand.u32 %v8302, 4294901760
        %10895 = vmatmul.f32.gmra.mxu0 %v10894
        %v10896 = vpop.f32.mrf.mxu0
        %v10897 = vadd.f32 %v10736, %v10896
        %v10898 = vand.u32 %v8304, 4294901760
        %10899 = vmatmul.f32.gmra.mxu0 %v10898
        %v10900 = vpop.f32.mrf.mxu0
        %v10901 = vadd.f32 %v10740, %v10900
        %v10902 = vand.u32 %v8306, 4294901760
        %10903 = vmatmul.f32.gmra.mxu0 %v10902
        %v10904 = vpop.f32.mrf.mxu0
        %v10905 = vadd.f32 %v10744, %v10904
        %v10906 = vand.u32 %v8308, 4294901760
        %10907 = vmatmul.f32.gmra.mxu0 %v10906
        %v10908 = vpop.f32.mrf.mxu0
        %v10909 = vadd.f32 %v10748, %v10908
        %v10910 = vand.u32 %v8310, 4294901760
        %10911 = vmatmul.f32.gmra.mxu0 %v10910
        %v10912 = vpop.f32.mrf.mxu0
        %v10913 = vadd.f32 %v10752, %v10912
        %v10914 = vand.u32 %v8312, 4294901760
        %10915 = vmatmul.f32.gmra.mxu0 %v10914
        %v10916 = vpop.f32.mrf.mxu0
        %v10917 = vadd.f32 %v10756, %v10916
        %v10918 = vand.u32 %v8314, 4294901760
        %10919 = vmatmul.f32.gmra.mxu0 %v10918
        %v10920 = vpop.f32.mrf.mxu0
        %v10921 = vadd.f32 %v10760, %v10920
        %v10922 = vand.u32 %v8316, 4294901760
        %10923 = vmatmul.f32.gmra.mxu0 %v10922
        %v10924 = vpop.f32.mrf.mxu0
        %v10925 = vadd.f32 %v10764, %v10924
        %v10926 = vand.u32 %v8318, 4294901760
        %10927 = vmatmul.f32.gmra.mxu0 %v10926
        %v10928 = vpop.f32.mrf.mxu0
        %v10929 = vadd.f32 %v10768, %v10928
        %v10930 = vand.u32 %v8320, 4294901760
        %10931 = vmatmul.f32.gmra.mxu0 %v10930
        %v10932 = vpop.f32.mrf.mxu0
        %v10933 = vadd.f32 %v10772, %v10932
        %v10934 = vand.u32 %v8322, 4294901760
        %10935 = vmatmul.f32.gmra.mxu0 %v10934
        %v10936 = vpop.f32.mrf.mxu0
        %v10937 = vadd.f32 %v10776, %v10936
        %v10938 = vand.u32 %v8324, 4294901760
        %10939 = vmatmul.f32.gmra.mxu0 %v10938
        %v10940 = vpop.f32.mrf.mxu0
        %v10941 = vadd.f32 %v10780, %v10940
        %v10942 = vand.u32 %v8326, 4294901760
        %10943 = vmatmul.f32.gmra.mxu0 %v10942
        %v10944 = vpop.f32.mrf.mxu0
        %v10945 = vadd.f32 %v10784, %v10944
        %v10946 = vand.u32 %v8328, 4294901760
        %10947 = vmatmul.f32.gmra.mxu0 %v10946
        %v10948 = vpop.f32.mrf.mxu0
        %v10949 = vadd.f32 %v10788, %v10948
        %v10950 = vand.u32 %v8330, 4294901760
        %10951 = vmatmul.f32.gmra.mxu0 %v10950
        %v10952 = vpop.f32.mrf.mxu0
        %v10953 = vadd.f32 %v10792, %v10952
        %v10954 = vand.u32 %v8332, 4294901760
        %10955 = vmatmul.f32.gmra.mxu0 %v10954
        %v10956 = vpop.f32.mrf.mxu0
        %v10957 = vadd.f32 %v10796, %v10956
        %v10958 = vand.u32 %v8334, 4294901760
        %10959 = vmatmul.f32.gmra.mxu0 %v10958
        %v10960 = vpop.f32.mrf.mxu0
        %v10961 = vadd.f32 %v10800, %v10960
        %v10962 = vand.u32 %v8336, 4294901760
        %10963 = vmatmul.f32.gmra.mxu0 %v10962
        %v10964 = vpop.f32.mrf.mxu0
        %v10965 = vadd.f32 %v10804, %v10964
        %v10966 = vand.u32 %v8338, 4294901760
        %10967 = vmatmul.f32.gmra.mxu0 %v10966
        %v10968 = vpop.f32.mrf.mxu0
        %v10969 = vadd.f32 %v10808, %v10968
        %v10970 = vand.u32 %v8340, 4294901760
        %10971 = vmatmul.f32.gmra.mxu0 %v10970
        %v10972 = vpop.f32.mrf.mxu0
        %v10973 = vadd.f32 %v10812, %v10972
        %v10974 = vand.u32 %v8342, 4294901760
        %10975 = vmatmul.f32.gmra.mxu0 %v10974
        %v10976 = vpop.f32.mrf.mxu0
        %v10977 = vadd.f32 %v10816, %v10976
        %10978 = vdwg.mxu0
        %v10979 = vld [vmem:[%s226] sm:$0xff]
        %v10980 = vld [vmem:[%s226 + $0x18] sm:$0xff]
        %v10981 = vld [vmem:[%s226 + $0x30] sm:$0xff]
        %v10982 = vld [vmem:[%s226 + $0x48] sm:$0xff]
        %v10983 = vld [vmem:[%s226 + $0x60] sm:$0xff]
        %v10984 = vld [vmem:[%s226 + $0x78] sm:$0xff]
        %v10985 = vld [vmem:[%s226 + $0x90] sm:$0xff]
        %v10986 = vld [vmem:[%s226 + $0xa8] sm:$0xff]
        %v10987 = vld [vmem:[%s226 + $0xc0] sm:$0xff]
        %v10988 = vld [vmem:[%s226 + $0xd8] sm:$0xff]
        %v10989 = vld [vmem:[%s226 + $0xf0] sm:$0xff]
        %v10990 = vld [vmem:[%s226 + $0x108] sm:$0xff]
        %v10991 = vld [vmem:[%s226 + $0x120] sm:$0xff]
        %v10992 = vld [vmem:[%s226 + $0x138] sm:$0xff]
        %v10993 = vld [vmem:[%s226 + $0x150] sm:$0xff]
        %v10994 = vld [vmem:[%s226 + $0x168] sm:$0xff]
        %v10995 = vld [vmem:[%s226 + $0x180] sm:$0xff]
        %v10996 = vld [vmem:[%s226 + $0x198] sm:$0xff]
        %v10997 = vld [vmem:[%s226 + $0x1b0] sm:$0xff]
        %v10998 = vld [vmem:[%s226 + $0x1c8] sm:$0xff]
        %v10999 = vld [vmem:[%s226 + $0x1e0] sm:$0xff]
        %v11000 = vld [vmem:[%s226 + $0x1f8] sm:$0xff]
        %v11001 = vld [vmem:[%s226 + $0x210] sm:$0xff]
        %v11002 = vld [vmem:[%s226 + $0x228] sm:$0xff]
        %v11003 = vld [vmem:[%s226 + $0x240] sm:$0xff]
        %v11004 = vld [vmem:[%s226 + $0x258] sm:$0xff]
        %v11005 = vld [vmem:[%s226 + $0x270] sm:$0xff]
        %v11006 = vld [vmem:[%s226 + $0x288] sm:$0xff]
        %v11007 = vld [vmem:[%s226 + $0x2a0] sm:$0xff]
        %v11008 = vld [vmem:[%s226 + $0x2b8] sm:$0xff]
        %v11009 = vld [vmem:[%s226 + $0x2d0] sm:$0xff]
        %v11010 = vld [vmem:[%s226 + $0x2e8] sm:$0xff]
        %v11011 = vadd.f32 %v10979, %v10853
        %v11012 = vadd.f32 %v10980, %v10857
        %v11013 = vadd.f32 %v10981, %v10861
        %v11014 = vadd.f32 %v10982, %v10865
        %v11015 = vadd.f32 %v10983, %v10869
        %v11016 = vadd.f32 %v10984, %v10873
        %v11017 = vadd.f32 %v10985, %v10877
        %v11018 = vadd.f32 %v10986, %v10881
        %v11019 = vadd.f32 %v10987, %v10885
        %v11020 = vadd.f32 %v10988, %v10889
        %v11021 = vadd.f32 %v10989, %v10893
        %v11022 = vadd.f32 %v10990, %v10897
        %v11023 = vadd.f32 %v10991, %v10901
        %v11024 = vadd.f32 %v10992, %v10905
        %v11025 = vadd.f32 %v10993, %v10909
        %v11026 = vadd.f32 %v10994, %v10913
        %v11027 = vadd.f32 %v10995, %v10917
        %v11028 = vadd.f32 %v10996, %v10921
        %v11029 = vadd.f32 %v10997, %v10925
        %v11030 = vadd.f32 %v10998, %v10929
        %v11031 = vadd.f32 %v10999, %v10933
        %v11032 = vadd.f32 %v11000, %v10937
        %v11033 = vadd.f32 %v11001, %v10941
        %v11034 = vadd.f32 %v11002, %v10945
        %v11035 = vadd.f32 %v11003, %v10949
        %v11036 = vadd.f32 %v11004, %v10953
        %v11037 = vadd.f32 %v11005, %v10957
        %v11038 = vadd.f32 %v11006, %v10961
        %v11039 = vadd.f32 %v11007, %v10965
        %v11040 = vadd.f32 %v11008, %v10969
        %v11041 = vadd.f32 %v11009, %v10973
        %v11042 = vadd.f32 %v11010, %v10977
        %11043 = vst [vmem:[%s266] sm:$0xff] %v11011
        %11044 = vst [vmem:[%s266 + $0x8] sm:$0xff] %v11012
        %11045 = vst [vmem:[%s266 + $0x10] sm:$0xff] %v11013
        %11046 = vst [vmem:[%s266 + $0x18] sm:$0xff] %v11014
        %11047 = vst [vmem:[%s266 + $0x20] sm:$0xff] %v11015
        %11048 = vst [vmem:[%s266 + $0x28] sm:$0xff] %v11016
        %11049 = vst [vmem:[%s266 + $0x30] sm:$0xff] %v11017
        %11050 = vst [vmem:[%s266 + $0x38] sm:$0xff] %v11018
        %11051 = vst [vmem:[%s266 + $0x40] sm:$0xff] %v11019
        %11052 = vst [vmem:[%s266 + $0x48] sm:$0xff] %v11020
        %11053 = vst [vmem:[%s266 + $0x50] sm:$0xff] %v11021
        %11054 = vst [vmem:[%s266 + $0x58] sm:$0xff] %v11022
        %11055 = vst [vmem:[%s266 + $0x60] sm:$0xff] %v11023
        %11056 = vst [vmem:[%s266 + $0x68] sm:$0xff] %v11024
        %11057 = vst [vmem:[%s266 + $0x70] sm:$0xff] %v11025
        %11058 = vst [vmem:[%s266 + $0x78] sm:$0xff] %v11026
        %11059 = vst [vmem:[%s266 + $0x80] sm:$0xff] %v11027
        %11060 = vst [vmem:[%s266 + $0x88] sm:$0xff] %v11028
        %11061 = vst [vmem:[%s266 + $0x90] sm:$0xff] %v11029
        %11062 = vst [vmem:[%s266 + $0x98] sm:$0xff] %v11030
        %11063 = vst [vmem:[%s266 + $0xa0] sm:$0xff] %v11031
        %11064 = vst [vmem:[%s266 + $0xa8] sm:$0xff] %v11032
        %11065 = vst [vmem:[%s266 + $0xb0] sm:$0xff] %v11033
        %11066 = vst [vmem:[%s266 + $0xb8] sm:$0xff] %v11034
        %11067 = vst [vmem:[%s266 + $0xc0] sm:$0xff] %v11035
        %11068 = vst [vmem:[%s266 + $0xc8] sm:$0xff] %v11036
        %11069 = vst [vmem:[%s266 + $0xd0] sm:$0xff] %v11037
        %11070 = vst [vmem:[%s266 + $0xd8] sm:$0xff] %v11038
        %11071 = vst [vmem:[%s266 + $0xe0] sm:$0xff] %v11039
        %11072 = vst [vmem:[%s266 + $0xe8] sm:$0xff] %v11040
        %11073 = vst [vmem:[%s266 + $0xf0] sm:$0xff] %v11041
        %11074 = vst [vmem:[%s266 + $0xf8] sm:$0xff] %v11042
        %s11075 = sand.u32 %s120, 1
        %s11076 = scalar_lea.sflag [#allocation4], %s11075
        %s11077 = sand.u32 %s120, 1
        %s11078 = smul.addr %s11077, 256
        %s11079 = scalar_lea.vmem [#allocation10], %s11078
        // Predicated region
        $region53: #{tpu_custom_call.1} parent=35 // pred_check
          %p11080 = pneg %p130
        $region54: #{tpu_custom_call.1} parent=35 // pred_check_branch
          %11082 = sbr.rel (%p11080) target = $region56
        $region55: #{tpu_custom_call.1} parent=35 // pred_region
          %s11083 = smul.u32 32, %s23
          %11085 = vsyncadd %s11076, 0
          %s11086 = smul.addr %s11083, 8
          %s11087 = scalar_lea.hbm %s4, %s11086
          %s11088 = sshll.u32 %s11079, 4
          %s11089 = int_to_ptr.vmem [resolvable:$true] %s11088
          %s11090 = sshll.u32 %s11087, 4
          %s11091 = int_to_ptr.hbm [resolvable:$true] %s11090
          %11096 = dma.vmem_to_hbm [thread:$0]  %s11089, 4096, %s11091, %s11076, 128, 128, 8
        $region56: #{tpu_custom_call.1} parent=35 // pred_fallthru
          _
      $region36: #{tpu_custom_call.1} parent=5 // pred_fallthru
        _
      %p11097 = scmp.le.s32.totalorder 2, %s18
      // Predicated region
      $region57: #{tpu_custom_call.1} parent=5 // pred_check
        %p11098 = pneg %p11097
      $region58: #{tpu_custom_call.1} parent=5 // pred_check_branch
        %11100 = sbr.rel (%p11098) target = $region60
      $region59: #{tpu_custom_call.1} parent=5 // pred_region
        %s11101 = ssub.s32 %s18, 2
        // Predicated region
        $region61: #{tpu_custom_call.1} parent=59 // pred_check
          %p11102 = pneg %p136
        $region62: #{tpu_custom_call.1} parent=59 // pred_check_branch
          %11104 = sbr.rel (%p11102) target = $region64
        $region63: #{tpu_custom_call.1} parent=59 // pred_region
          %s11105 = sand.u32 %s121, 1
          %s11106 = scalar_lea.sflag [#allocation4], %s11105
          %s11107 = sand.u32 %s121, 1
          %s11108 = smul.addr %s11107, 256
          %s11109 = scalar_lea.vmem [#allocation10], %s11108
          %11111 = dma.done %s11106, 4096
        $region64: #{tpu_custom_call.1} parent=59 // pred_fallthru
          _
      $region60: #{tpu_custom_call.1} parent=5 // pred_fallthru
        _
    $region6: #{tpu_custom_call.1} parent=1 // loop_footer
      %s22 = sadd.s32 1, %s18
    $region7: #{tpu_custom_call.1} parent=1 // loop_footer_branch
      %17 = sbr.rel target = $region3
    $region8: #{tpu_custom_call.1} parent=1 // loop_exit
      _
    %11112 = vsyncpa [#allocation3], 1
    %s11113 = scalar_lea.sflag [#allocation3], 1
    %11114 = vsyncpa %s11113, 1
    %11115 = vsyncpa [#allocation6], 1
    %11116 = vsyncpa [#allocation9], 1
    %11117 = vsyncpa [#allocation4], 1
    %s11118 = scalar_lea.sflag [#allocation4], 1
    %11119 = vsyncpa %s11118, 1

</llo_original>
